<compile_context>
chip_gen: v7x
topology: tpu7x:2x2x1
jax: 0.10.0
libtpu: 0.0.40
codegen_flags: <defaults>
</compile_context>

<pallas_src>
import jax
import jax.numpy as jnp
import numpy as np
from jax import lax
from jax.experimental import pallas as pl
from jax.experimental.pallas import tpu as pltpu

WORD_WIN_SIZES = (3, 5, 7)
NF = len(WORD_WIN_SIZES)
MAXW = max(WORD_WIN_SIZES)
LANE = 128                      # one filter-group per aligned 128-lane block
GW = MAXW * LANE                # width of the folded (table @ conv-weight) table
NEG = -1e30                     # additive mask value for invalid (t, filter)
_HIGHEST = jax.lax.Precision.HIGHEST


def _round_up(x, m):
    return ((x + m - 1) // m) * m


def stnc_cnn_kernel(ids_ref, comb_ref, mask_ref, bias_ref, out_ref):
    """Fused embedding+conv lookup, shifted adds, masked max-pool, bias+ReLU.

    ids_ref  : (TB, S_pad) int32   S_pad = round_up(S + MAXW - 1, 8); tail ids dummy
    comb_ref : (Vp, MAXW*128) f32  comb[v, i*128+f] = table[v] . w_f[i]  (0 beyond)
    mask_ref : (1, S, 128)   f32   0 at valid (t, filter) positions, -1e30 elsewhere
    bias_ref : (1, 128)      f32   conv biases in lanes [0, NF)
    out_ref  : (TB, 128)     f32   result in lanes [0, NF)
    """
    ids = ids_ref[...]                                   # (TB, S_pad)
    tb, s_pad = ids.shape
    vp, gw = comb_ref.shape
    s = mask_ref.shape[1]                                # true sequence length

    # ---- embedding+conv lookup: one-hot(ids) @ comb on the MXU -------------
    # The iota is a (1,1,Vp) row broadcast inside the compare (no materialized
    # full-size int32 iota); the one-hot is emitted directly in f32.
    iota_v = lax.broadcasted_iota(jnp.int32, (1, 1, vp), 2)
    onehot = (ids[:, :, None] == iota_v).astype(jnp.float32)      # (TB,S_pad,Vp)
    # HIGHEST keeps the 0/1 row selection exact in f32 (comb is f32).
    proj = jnp.dot(onehot.reshape(tb * s_pad, vp), comb_ref[...],
                   preferred_element_type=jnp.float32,
                   precision=_HIGHEST)                            # (TB*S_pad, GW)
    proj = proj.reshape(tb, s_pad, gw)

    # ---- all three convs = MAXW time-shifted adds over aligned lane groups --
    # acc[b, t, f] = sum_i comb[ids[b, t+i], i*128 + f]  (== conv_f output at t)
    acc = proj[:, 0:s, 0:LANE]
    for i in range(1, MAXW):                             # static unroll (7)
        acc = acc + proj[:, i:i + s, i * LANE:(i + 1) * LANE]     # (TB, S, 128)

    # ---- static tail mask, global max over time, bias + ReLU ----------------
    # (bias+ReLU after the max is identical to relu-then-max by monotonicity)
    pooled = jnp.max(acc + mask_ref[...], axis=1)                 # (TB, 128)
    out_ref[...] = jnp.maximum(pooled + bias_ref[...], 0.0)


def sentence_cnn_forward(X, emb_table, weights, biases, *, batch_tile=None):
    """Pallas forward for SentenceCNN. X:(B,S) int ids -> (B, NF) f32."""
    B, S = X.shape
    V, D = emb_table.shape
    assert S >= MAXW, "sequence length must be >= the largest conv window"

    S_pad = _round_up(S + MAXW - 1, 8)       # time padded for shifts + sublanes
    Vp = _round_up(V, 128)                   # lane-dense one-hot

    # ---- fold conv weights into the embedding table (conv is linear in emb) --
    wstack = np.zeros((MAXW, D, NF), np.float32)
    for f, w in enumerate(WORD_WIN_SIZES):
        wstack[:w, :, f] = np.asarray(weights[f], np.float32)
    comb = jnp.einsum('vd,idf->vif',
                      emb_table.astype(jnp.float32),
                      jnp.asarray(wstack),
                      precision=_HIGHEST)                          # (V, MAXW, NF)
    comb_p = jnp.zeros((Vp, MAXW, LANE), jnp.float32)
    comb_p = comb_p.at[:V, :, :NF].set(comb).reshape(Vp, GW)

    # ---- static per-filter validity mask (compile-time constant) ------------
    mask = np.full((1, S, LANE), NEG, np.float32)
    for f, w in enumerate(WORD_WIN_SIZES):
        mask[0, :S - w + 1, f] = 0.0
    mask = jnp.asarray(mask)
    bias_p = jnp.zeros((1, LANE), jnp.float32).at[0, :NF].set(
        jnp.asarray(biases, jnp.float32))

    # ---- batch tile: largest multiple of 8 whose intermediates fit a VMEM
    # budget (generation-aware); keep grid >= 2 when the batch allows so the
    # "parallel" axis actually shards across v7x's two TensorCores. -----------
    try:
        vmem_cap = int(pltpu.get_tpu_info().vmem_capacity_bytes)
    except Exception:
        vmem_cap = 64 << 20
    vmem_limit = int(min(64 << 20, max(32 << 20, vmem_cap // 2)))
    budget = vmem_limit // 4
    bytes_per_row = 4 * (S_pad * Vp + S_pad * GW + S * LANE)   # onehot+proj+acc
    cap_rows = max(8, (budget // bytes_per_row) // 8 * 8)
    if batch_tile is None:
        batch_tile = min(_round_up(B, 8), cap_rows)
        if _round_up(B, batch_tile) // batch_tile < 2 and _round_up(B, 8) >= 16:
            batch_tile = max(8, (_round_up(B, 8) // 2) // 8 * 8)
    batch_tile = max(8, (batch_tile // 8) * 8)
    B_pad = _round_up(B, batch_tile)
    grid = (B_pad // batch_tile,)

    # ids padded along time and batch with dummy id 0 (never leaks into valid
    # conv positions: weights for shifts past a filter's window are zero, and
    # per-filter tail positions are masked before the max).
    X_pad = jnp.zeros((B_pad, S_pad), jnp.int32)
    X_pad = X_pad.at[:B, :S].set(X.astype(jnp.int32))

    out = pl.pallas_call(
        stnc_cnn_kernel,
        out_shape=jax.ShapeDtypeStruct((B_pad, LANE), jnp.float32),
        grid_spec=pltpu.PrefetchScalarGridSpec(
            num_scalar_prefetch=0,
            grid=grid,
            in_specs=[
                pl.BlockSpec((batch_tile, S_pad), lambda i: (i, 0)),   # ids
                pl.BlockSpec((Vp, GW), lambda i: (0, 0)),              # folded table
                pl.BlockSpec((1, S, LANE), lambda i: (0, 0, 0)),       # tail mask
                pl.BlockSpec((1, LANE), lambda i: (0, 0)),             # biases
            ],
            out_specs=pl.BlockSpec((batch_tile, LANE), lambda i: (i, 0)),
        ),
        compiler_params=pltpu.CompilerParams(
            dimension_semantics=("parallel",),
            vmem_limit_bytes=vmem_limit),
    )(X_pad, comb_p, mask, bias_p)
    return out[:B, :NF]


def reference_forward(X, emb_table, weights, biases):
    """Pure-JAX reference mirroring the PyTorch module (NCHW conv path)."""
    emb = jnp.take(emb_table, X, axis=0).astype(jnp.float32)      # (B, S, D)
    x = emb[:, None, :, :]                                        # (B,1,S,D) NCHW
    outs = []
    for f, w in enumerate(WORD_WIN_SIZES):
        kern = weights[f][None, None, :, :]                       # (1,1,w,D) OIHW
        c = lax.conv_general_dilated(
            x, kern, window_strides=(1, 1), padding="VALID",
            dimension_numbers=("NCHW", "OIHW", "NCHW"),
            precision=_HIGHEST)                                   # (B,1,S-w+1,1)
        c = jnp.maximum(c + biases[f], 0.0)
        outs.append(jnp.max(c, axis=(1, 2, 3)))                   # (B,)
    return jnp.stack(outs, axis=1)                                # (B, NF)


if __name__ == "__main__":
    # Small, deterministic setup consistent with the module.
    vocab_size = 50
    embed_dim = 32
    batch = 16
    seq = 16

    key = jax.random.PRNGKey(0)
    keys = jax.random.split(key, 2 + 2 * NF)
    k_emb, k_x = keys[0], keys[1]
    k_params = keys[2:]

    emb_table = jax.random.normal(k_emb, (vocab_size, embed_dim), jnp.float32)
    X = jax.random.randint(k_x, (batch, seq), 0, vocab_size, jnp.int32)

    weights = []
    bias_list = []
    for i, w in enumerate(WORD_WIN_SIZES):
        fan_in = 1 * w * embed_dim
        bound = 1.0 / np.sqrt(fan_in)
        weights.append(jax.random.uniform(
            k_params[2 * i], (w, embed_dim), jnp.float32, -bound, bound))
        bias_list.append(jax.random.uniform(
            k_params[2 * i + 1], (), jnp.float32, -bound, bound))
    biases = jnp.stack(bias_list)                                 # (NF,)

    out = jax.block_until_ready(
        sentence_cnn_forward(X, emb_table, weights, biases))
    ref = jax.block_until_ready(
        reference_forward(X, emb_table, weights, biases))

    np.testing.assert_allclose(np.asarray(out), np.asarray(ref),
                               rtol=1e-4, atol=1e-4)
    assert out.shape == (batch, NF)
    print("KERNEL_OK")
</pallas_src>

<mosaic_0001>
module attributes {stable_mosaic.version = 11 : i64} {
  func.func @stnc_cnn_kernel(%arg0: i32, %arg1: memref<8x24xi32, #tpu.memory_space<vmem>>, %arg2: memref<128x896xf32, #tpu.memory_space<vmem>>, %arg3: memref<1x16x128xf32, #tpu.memory_space<vmem>>, %arg4: memref<1x128xf32, #tpu.memory_space<vmem>>, %arg5: memref<8x128xf32, #tpu.memory_space<vmem>>) attributes {dimension_semantics = [#tpu.dimension_semantics<parallel>], iteration_bounds = array<i64: 2>, scalar_prefetch = 0 : i64, scratch_operands = 0 : i64, tpu.core_type = #tpu.core_type<tc>, window_params = [{transform_indices = @transform_0, window_bounds = array<i64: 8, 24>}, {pipeline_mode = #tpu.pipeline_mode<synchronous>, transform_indices = @transform_1, window_bounds = array<i64: 128, 896>}, {pipeline_mode = #tpu.pipeline_mode<synchronous>, transform_indices = @transform_2, window_bounds = array<i64: 1, 16, 128>}, {pipeline_mode = #tpu.pipeline_mode<synchronous>, transform_indices = @transform_3, window_bounds = array<i64: 1, 128>}, {transform_indices = @transform_4, window_bounds = array<i64: 8, 128>}]} {
    %c0 = arith.constant 0 : index
    %c0_0 = arith.constant 0 : index
    %0 = vector.load %arg1[%c0, %c0_0] : memref<8x24xi32, #tpu.memory_space<vmem>>, vector<8x24xi32>
    %1 = tpu.iota {dimensions = array<i32: 2>} : vector<1x1x128xi32>
    %2 = vector.shape_cast %0 : vector<8x24xi32> to vector<8x24x1xi32>
    %3 = vector.broadcast %2 : vector<8x24x1xi32> to vector<8x24x128xi32>
    %4 = vector.broadcast %1 : vector<1x1x128xi32> to vector<8x24x128xi32>
    %5 = arith.cmpi eq, %3, %4 : vector<8x24x128xi32>
    %6 = arith.extui %5 : vector<8x24x128xi1> to vector<8x24x128xi32>
    %7 = arith.sitofp %6 : vector<8x24x128xi32> to vector<8x24x128xf32>
    %8 = vector.shape_cast %7 : vector<8x24x128xf32> to vector<192x128xf32>
    %c0_1 = arith.constant 0 : index
    %c0_2 = arith.constant 0 : index
    %9 = vector.load %arg2[%c0_1, %c0_2] : memref<128x896xf32, #tpu.memory_space<vmem>>, vector<128x896xf32>
    %cst = arith.constant dense<0.000000e+00> : vector<192x896xf32>
    %10 = tpu.matmul %8, %9, %cst {dimension_numbers = #tpu.dot_dimension_numbers<[1], [0], [0], [1], [0, 0, 1, 1], [], []>, precision = #tpu.contract_precision<fp32>} : vector<192x128xf32>, vector<128x896xf32>, vector<192x896xf32> -> vector<192x896xf32>
    %11 = vector.shape_cast %10 : vector<192x896xf32> to vector<8x24x896xf32>
    %12 = vector.extract_strided_slice %11 {offsets = [0, 0, 0], sizes = [8, 16, 128], strides = [1, 1, 1]} : vector<8x24x896xf32> to vector<8x16x128xf32>
    %13 = vector.extract_strided_slice %11 {offsets = [0, 1, 128], sizes = [8, 16, 128], strides = [1, 1, 1]} : vector<8x24x896xf32> to vector<8x16x128xf32>
    %14 = arith.addf %12, %13 : vector<8x16x128xf32>
    %15 = vector.extract_strided_slice %11 {offsets = [0, 2, 256], sizes = [8, 16, 128], strides = [1, 1, 1]} : vector<8x24x896xf32> to vector<8x16x128xf32>
    %16 = arith.addf %14, %15 : vector<8x16x128xf32>
    %17 = vector.extract_strided_slice %11 {offsets = [0, 3, 384], sizes = [8, 16, 128], strides = [1, 1, 1]} : vector<8x24x896xf32> to vector<8x16x128xf32>
    %18 = arith.addf %16, %17 : vector<8x16x128xf32>
    %19 = vector.extract_strided_slice %11 {offsets = [0, 4, 512], sizes = [8, 16, 128], strides = [1, 1, 1]} : vector<8x24x896xf32> to vector<8x16x128xf32>
    %20 = arith.addf %18, %19 : vector<8x16x128xf32>
    %21 = vector.extract_strided_slice %11 {offsets = [0, 5, 640], sizes = [8, 16, 128], strides = [1, 1, 1]} : vector<8x24x896xf32> to vector<8x16x128xf32>
    %22 = arith.addf %20, %21 : vector<8x16x128xf32>
    %23 = vector.extract_strided_slice %11 {offsets = [0, 6, 768], sizes = [8, 16, 128], strides = [1, 1, 1]} : vector<8x24x896xf32> to vector<8x16x128xf32>
    %24 = arith.addf %22, %23 : vector<8x16x128xf32>
    %c0_3 = arith.constant 0 : index
    %c0_4 = arith.constant 0 : index
    %c0_5 = arith.constant 0 : index
    %25 = vector.load %arg3[%c0_3, %c0_4, %c0_5] : memref<1x16x128xf32, #tpu.memory_space<vmem>>, vector<1x16x128xf32>
    %26 = vector.broadcast %25 : vector<1x16x128xf32> to vector<8x16x128xf32>
    %27 = arith.addf %24, %26 : vector<8x16x128xf32>
    %cst_6 = arith.constant dense<0xFF800000> : vector<8x128xf32>
    %28 = vector.multi_reduction <maximumf>, %27, %cst_6 [1] : vector<8x16x128xf32> to vector<8x128xf32>
    %c0_7 = arith.constant 0 : index
    %c0_8 = arith.constant 0 : index
    %29 = vector.load %arg4[%c0_7, %c0_8] : memref<1x128xf32, #tpu.memory_space<vmem>>, vector<1x128xf32>
    %30 = vector.broadcast %29 : vector<1x128xf32> to vector<8x128xf32>
    %31 = arith.addf %28, %30 : vector<8x128xf32>
    %cst_9 = arith.constant 0.000000e+00 : f32
    %32 = vector.broadcast %cst_9 : f32 to vector<8x128xf32>
    %33 = arith.maximumf %31, %32 : vector<8x128xf32>
    %c0_10 = arith.constant 0 : index
    %c0_11 = arith.constant 0 : index
    %34 = vector.load %arg5[%c0_10, %c0_11] : memref<8x128xf32, #tpu.memory_space<vmem>>, vector<8x128xf32>
    tpu.vector_store %arg5[%c0_10, %c0_11], %33 {strides = array<i32>} : memref<8x128xf32, #tpu.memory_space<vmem>>, vector<8x128xf32>,
    return
  }
  func.func @transform_0(%arg0: i32) -> (i32, i32) {
    %c0_i32 = arith.constant 0 : i32
    %c0_i32_0 = arith.constant 0 : i32
    return %arg0, %c0_i32 : i32, i32
  }
  func.func @transform_1(%arg0: i32) -> (i32, i32) {
    %c0_i32 = arith.constant 0 : i32
    %c0_i32_0 = arith.constant 0 : i32
    %c0_i32_1 = arith.constant 0 : i32
    return %c0_i32, %c0_i32_0 : i32, i32
  }
  func.func @transform_2(%arg0: i32) -> (i32, i32, i32) {
    %c0_i32 = arith.constant 0 : i32
    %c0_i32_0 = arith.constant 0 : i32
    %c0_i32_1 = arith.constant 0 : i32
    %c0_i32_2 = arith.constant 0 : i32
    return %c0_i32, %c0_i32_0, %c0_i32_1 : i32, i32, i32
  }
  func.func @transform_3(%arg0: i32) -> (i32, i32) {
    %c0_i32 = arith.constant 0 : i32
    %c0_i32_0 = arith.constant 0 : i32
    %c0_i32_1 = arith.constant 0 : i32
    return %c0_i32, %c0_i32_0 : i32, i32
  }
  func.func @transform_4(%arg0: i32) -> (i32, i32) {
    %c0_i32 = arith.constant 0 : i32
    %c0_i32_0 = arith.constant 0 : i32
    return %arg0, %c0_i32 : i32, i32
  }
}

</mosaic_0001>

<llo_original>
// kernel: tpu_custom_call.1
$region0: #{tpu_custom_call.1}
  #allocation0 [shape = 'u32[]', space=smem, size = 0x4, offset = 0x4, fixed_abs, tag = 'smem constant byte address 0x4 - core index']
  #allocation1 [shape = 'u32[144,128]{1,0:T(1,128)}', space=vmem, size = 0x12000, scoped, tag = 'internal scratch']
  %s0 = inlined_call_operand.hbm [shape: s32[16,24], index: 0, kind: input, shape index: {}]
  %s1 = inlined_call_operand.hbm [shape: f32[128,896], index: 1, kind: input, shape index: {}]
  %s2 = inlined_call_operand.hbm [shape: f32[1,16,128], index: 2, kind: input, shape index: {}]
  %s3 = inlined_call_operand.vmem [shape: f32[1,128], index: 3, kind: input, shape index: {}]
  %s4 = inlined_call_operand.hbm [shape: f32[16,128], index: 4, kind: output, shape index: {}]
  %s5 = sld [smem:[#allocation0]]
  $region61: #{tpu_custom_call.1} parent=0
    _
  %s7 = ssub.s32 1, %s5
  %s8 = scalar_select 0, %s7, %s5
  $region1: #{tpu_custom_call.1} parent=0
    #allocation2 [shape = 'u8[8192]{0}', space=vmem, size = 0x2000, scoped, tag = 'input window, operand 0']
    #allocation3 [shape = 's32[2]{0}', space=sflag, size = 0x8, scoped, tag = 'scoped memory for tpu_custom_call.1']
    #allocation4 [shape = 's32[2]{0}', space=sflag, size = 0x8, scoped, tag = 'scoped memory for tpu_custom_call.1']
    #allocation5 [shape = 'u8[458752]{0}', space=vmem, size = 0x70000, scoped, tag = 'input window, operand 1, single buffered']
    #allocation6 [shape = 's32[1]{0}', space=sflag, size = 0x4, scoped, tag = 'scoped memory for tpu_custom_call.1']
    #allocation7 [shape = 'u8[8192]{0}', space=vmem, size = 0x2000, scoped, tag = 'input window, operand 2, single buffered']
    #allocation8 [shape = 'u8[8192]{0}', space=vmem, size = 0x2000, scoped, tag = 'output window, operand 0']
    %9 = vsyncpa [#allocation3], 0
    %s10 = scalar_lea.sflag [#allocation3], 1
    %11 = vsyncpa %s10, 0
    %12 = vsyncpa [#allocation6], 0
    %13 = vsyncpa [#allocation4], 0
    %s14 = scalar_lea.sflag [#allocation4], 1
    %15 = vsyncpa %s14, 0
    loop: start=0, step=1, limit=4
    $region2: #{tpu_custom_call.1} parent=1 // loop_pre_header
      _
    $region3: #{tpu_custom_call.1} parent=1 // loop_header
      %s17 = sphi 0, %s21
      %p18 = scmp.ge.s32.totalorder %s17, 4
      %s27 = sphi 0, %s29
      %s30 = sphi 0, %s27
      %s31 = sphi 0, %s30
      %s47 = sphi 0, %s31
      %s51 = sphi 0, %s51
      %s53 = sphi 0, %s51
      %s54 = sphi 0, %s53
      %s68 = sphi 0, %s54
      %s72 = sphi 0, %s72
      %s74 = sphi 0, %s72
      %s75 = sphi 0, %s74
      %s89 = sphi 0, %s75
      %s93 = sphi 0, %s93
      %s95 = sphi 0, %s93
      %s96 = sphi 0, %s95
      %s110 = sphi 0, %s96
      %s116 = sphi 0, %s118
      %s119 = sphi 0, %s116
      %s120 = sphi 0, %s119
      %s136 = sphi 0, %s120
    $region4: #{tpu_custom_call.1} parent=1 // loop_header_branch
      %20 = sbr.rel (%p18) target = $region8
    $region5: #{tpu_custom_call.1} parent=1 // loop_body
      %s22 = ssub.s32 %s17, 1
      %s23 = ssub.s32 %s17, 2
      %s24 = sadd.s32 %s17, 1
      %s25 = ssub.s32 %s17, %s24
      %p26 = scmp.eq.s32.totalorder %s25, 0
      %s28 = sadd.s32 %s27, 1
      %s29 = scalar_select %p26, %s27, %s28
      %p32 = pneg %p26
      %p33 = scmp.eq.s32.totalorder %s17, 1
      %p34 = por %p32, %p33
      %p35 = scmp.ne.s32.totalorder %s27, %s30
      %p36 = scmp.eq.s32.totalorder %s17, 0
      %p37 = por %p35, %p36
      %p38 = scmp.ne.s32.totalorder %s27, %s30
      %p39 = scmp.eq.s32.totalorder %s22, 1
      %p40 = por %p38, %p39
      %p41 = scmp.ne.s32.totalorder %s30, %s31
      %p42 = scmp.eq.s32.totalorder %s22, 0
      %p43 = por %p41, %p42
      %p44 = scmp.ne.s32.totalorder %s30, %s31
      %p45 = scmp.eq.s32.totalorder %s23, 1
      %p46 = por %p44, %p45
      %p48 = scmp.ne.s32.totalorder %s31, %s47
      %p49 = scmp.eq.s32.totalorder %s23, 0
      %p50 = por %p48, %p49
      %s52 = sadd.s32 %s51, 1
      %p55 = scmp.eq.s32.totalorder %s17, 1
      %p56 = scmp.ne.s32.totalorder %s51, %s53
      %p57 = scmp.eq.s32.totalorder %s17, 0
      %p58 = por %p56, %p57
      %p59 = scmp.ne.s32.totalorder %s51, %s53
      %p60 = scmp.eq.s32.totalorder %s22, 1
      %p61 = por %p59, %p60
      %p62 = scmp.ne.s32.totalorder %s53, %s54
      %p63 = scmp.eq.s32.totalorder %s22, 0
      %p64 = por %p62, %p63
      %p65 = scmp.ne.s32.totalorder %s53, %s54
      %p66 = scmp.eq.s32.totalorder %s23, 1
      %p67 = por %p65, %p66
      %p69 = scmp.ne.s32.totalorder %s54, %s68
      %p70 = scmp.eq.s32.totalorder %s23, 0
      %p71 = por %p69, %p70
      %s73 = sadd.s32 %s72, 1
      %p76 = scmp.eq.s32.totalorder %s17, 1
      %p77 = scmp.ne.s32.totalorder %s72, %s74
      %p78 = scmp.eq.s32.totalorder %s17, 0
      %p79 = por %p77, %p78
      %p80 = scmp.ne.s32.totalorder %s72, %s74
      %p81 = scmp.eq.s32.totalorder %s22, 1
      %p82 = por %p80, %p81
      %p83 = scmp.ne.s32.totalorder %s74, %s75
      %p84 = scmp.eq.s32.totalorder %s22, 0
      %p85 = por %p83, %p84
      %p86 = scmp.ne.s32.totalorder %s74, %s75
      %p87 = scmp.eq.s32.totalorder %s23, 1
      %p88 = por %p86, %p87
      %p90 = scmp.ne.s32.totalorder %s75, %s89
      %p91 = scmp.eq.s32.totalorder %s23, 0
      %p92 = por %p90, %p91
      %s94 = sadd.s32 %s93, 1
      %p97 = scmp.eq.s32.totalorder %s17, 1
      %p98 = scmp.ne.s32.totalorder %s93, %s95
      %p99 = scmp.eq.s32.totalorder %s17, 0
      %p100 = por %p98, %p99
      %p101 = scmp.ne.s32.totalorder %s93, %s95
      %p102 = scmp.eq.s32.totalorder %s22, 1
      %p103 = por %p101, %p102
      %p104 = scmp.ne.s32.totalorder %s95, %s96
      %p105 = scmp.eq.s32.totalorder %s22, 0
      %p106 = por %p104, %p105
      %p107 = scmp.ne.s32.totalorder %s95, %s96
      %p108 = scmp.eq.s32.totalorder %s23, 1
      %p109 = por %p107, %p108
      %p111 = scmp.ne.s32.totalorder %s96, %s110
      %p112 = scmp.eq.s32.totalorder %s23, 0
      %p113 = por %p111, %p112
      %s114 = ssub.s32 %s17, %s24
      %p115 = scmp.eq.s32.totalorder %s114, 0
      %s117 = sadd.s32 %s116, 1
      %s118 = scalar_select %p115, %s116, %s117
      %p121 = pneg %p115
      %p122 = scmp.eq.s32.totalorder %s17, 1
      %p123 = por %p121, %p122
      %p124 = scmp.ne.s32.totalorder %s116, %s119
      %p125 = scmp.eq.s32.totalorder %s17, 0
      %p126 = por %p124, %p125
      %p127 = scmp.ne.s32.totalorder %s116, %s119
      %p128 = scmp.eq.s32.totalorder %s22, 1
      %p129 = por %p127, %p128
      %p130 = scmp.ne.s32.totalorder %s119, %s120
      %p131 = scmp.eq.s32.totalorder %s22, 0
      %p132 = por %p130, %p131
      %p133 = scmp.ne.s32.totalorder %s119, %s120
      %p134 = scmp.eq.s32.totalorder %s23, 1
      %p135 = por %p133, %p134
      %p137 = scmp.ne.s32.totalorder %s120, %s136
      %p138 = scmp.eq.s32.totalorder %s23, 0
      %p139 = por %p137, %p138
      %p140 = scmp.le.s32.totalorder 1, %s17
      %p141 = scmp.lt.s32.totalorder %s17, 3
      %p142 = pnand %p140, %p141
      %p143 = pneg %p142
      // Predicated region
      $region9: #{tpu_custom_call.1} parent=5 // pred_check
        _
      $region10: #{tpu_custom_call.1} parent=5 // pred_check_branch
        %145 = sbr.rel (%p142) target = $region12
      $region11: #{tpu_custom_call.1} parent=5 // pred_region
        %s146 = ssub.s32 %s17, 1
        // Predicated region
        $region13: #{tpu_custom_call.1} parent=11 // pred_check
          %p147 = pneg %p64
        $region14: #{tpu_custom_call.1} parent=11 // pred_check_branch
          %149 = sbr.rel (%p147) target = $region16
        $region15: #{tpu_custom_call.1} parent=11 // pred_region
          %s151 = ssub.s32 14336, 14336
          %152 = vsyncadd [#allocation6], %s151
          %s153 = sshll.u32 [#allocation5], 4
          %s154 = int_to_ptr.vmem [resolvable:$true] %s153
          %159 = dma.hbm_to_vmem [thread:$0]  %s1, 14336, %s154, [#allocation6], 896, 896, 56
        $region16: #{tpu_custom_call.1} parent=11 // pred_fallthru
          _
        // Predicated region
        $region17: #{tpu_custom_call.1} parent=11 // pred_check
          %p160 = pneg %p85
        $region18: #{tpu_custom_call.1} parent=11 // pred_check_branch
          %162 = sbr.rel (%p160) target = $region20
        $region19: #{tpu_custom_call.1} parent=11 // pred_region
          %s164 = ssub.s32 256, 256
          %165 = vsyncadd [#allocation6], %s164
          %s166 = sshll.u32 [#allocation7], 4
          %s167 = int_to_ptr.vmem [resolvable:$true] %s166
          %172 = dma.hbm_to_vmem [thread:$0]  %s2, 256, %s167, [#allocation6], 128, 128, 8
        $region20: #{tpu_custom_call.1} parent=11 // pred_fallthru
          _
        // Predicated region
        $region21: #{tpu_custom_call.1} parent=11 // pred_check
          %p173 = pneg %p106
        $region22: #{tpu_custom_call.1} parent=11 // pred_check_branch
          %175 = sbr.rel (%p173) target = $region24
        $region23: #{tpu_custom_call.1} parent=11 // pred_region
          _
        $region24: #{tpu_custom_call.1} parent=11 // pred_fallthru
          _
      $region12: #{tpu_custom_call.1} parent=5 // pred_fallthru
        _
      %p176 = scmp.lt.s32.totalorder %s17, 2
      // Predicated region
      $region25: #{tpu_custom_call.1} parent=5 // pred_check
        %p177 = pneg %p176
      $region26: #{tpu_custom_call.1} parent=5 // pred_check_branch
        %179 = sbr.rel (%p177) target = $region28
      $region27: #{tpu_custom_call.1} parent=5 // pred_region
        // Predicated region
        $region29: #{tpu_custom_call.1} parent=27 // pred_check
          %p180 = pneg %p37
        $region30: #{tpu_custom_call.1} parent=27 // pred_check_branch
          %182 = sbr.rel (%p180) target = $region32
        $region31: #{tpu_custom_call.1} parent=27 // pred_region
          %s183 = sand.u32 %s27, 1
          %s184 = scalar_lea.sflag [#allocation3], %s183
          %s185 = sand.u32 %s27, 1
          %s186 = smul.addr %s185, 8
          %s187 = scalar_lea.vmem [#allocation2], %s186
          %s189 = ssub.s32 128, 128
          %190 = vsyncadd %s184, %s189
          %s191 = smul.addr %s17, 128
          %s192 = scalar_lea.hbm %s0, %s191
          %s194 = sshll.u32 %s187, 4
          %s195 = int_to_ptr.vmem [resolvable:$true] %s194
          %197 = dma.hbm_to_vmem [thread:$0]  %s192, 128, %s195, %s184
        $region32: #{tpu_custom_call.1} parent=27 // pred_fallthru
          _
      $region28: #{tpu_custom_call.1} parent=5 // pred_fallthru
        _
      %p198 = scmp.le.s32.totalorder 1, %s17
      %p199 = scmp.lt.s32.totalorder %s17, 3
      %p200 = pnand %p198, %p199
      %p201 = pneg %p200
      // Predicated region
      $region33: #{tpu_custom_call.1} parent=5 // pred_check
        _
      $region34: #{tpu_custom_call.1} parent=5 // pred_check_branch
        %203 = sbr.rel (%p200) target = $region36
      $region35: #{tpu_custom_call.1} parent=5 // pred_region
        %s204 = ssub.s32 %s17, 1
        %s205 = sand.u32 %s30, 1
        %s206 = scalar_lea.sflag [#allocation3], %s205
        %s207 = sand.u32 %s30, 1
        %s208 = smul.addr %s207, 8
        %s209 = scalar_lea.vmem [#allocation2], %s208
        // Predicated region
        $region37: #{tpu_custom_call.1} parent=35 // pred_check
          %p210 = pneg %p43
        $region38: #{tpu_custom_call.1} parent=35 // pred_check_branch
          %212 = sbr.rel (%p210) target = $region40
        $region39: #{tpu_custom_call.1} parent=35 // pred_region
          %213 = dma.done %s206, 128
        $region40: #{tpu_custom_call.1} parent=35 // pred_fallthru
          _
        // Predicated region
        $region41: #{tpu_custom_call.1} parent=35 // pred_check
          %p214 = pneg %p64
        $region42: #{tpu_custom_call.1} parent=35 // pred_check_branch
          %216 = sbr.rel (%p214) target = $region44
        $region43: #{tpu_custom_call.1} parent=35 // pred_region
          %217 = dma.done [#allocation6], 14336
        $region44: #{tpu_custom_call.1} parent=35 // pred_fallthru
          _
        // Predicated region
        $region45: #{tpu_custom_call.1} parent=35 // pred_check
          %p218 = pneg %p85
        $region46: #{tpu_custom_call.1} parent=35 // pred_check_branch
          %220 = sbr.rel (%p218) target = $region48
        $region47: #{tpu_custom_call.1} parent=35 // pred_region
          %221 = dma.done [#allocation6], 256
        $region48: #{tpu_custom_call.1} parent=35 // pred_fallthru
          _
        %s222 = sand.u32 %s30, 1
        %s223 = scalar_lea.sflag [#allocation3], %s222
        %s224 = sand.u32 %s30, 1
        %s225 = smul.addr %s224, 8
        %s226 = scalar_lea.vmem [#allocation2], %s225
        %p227 = pneg %p43
        %p228 = pneg %p40
        %p229 = pneg %p64
        %p230 = pneg %p61
        %p231 = pneg %p85
        %p232 = pneg %p82
        %p233 = pneg %p106
        %p234 = pneg %p103
        %p235 = pneg %p132
        %p236 = pneg %p129
        %s237 = sand.u32 %s119, 1
        %s238 = scalar_lea.sflag [#allocation4], %s237
        %s239 = sand.u32 %s119, 1
        %s240 = smul.addr %s239, 8
        %s241 = scalar_lea.vmem [#allocation8], %s240
        %v242 = vld [vmem:[%s209] sm:$0xff]
        %v243 = vlaneseq
        %v244 = vand.u32 %v243, 127
        %v245 = vlaneseq
        %v246 = vshrl.u32 %v245, 7
        %v247 = vsub.s32 0, %v246
        %v248 = vrot.slane %v242, %v247
        %250 = vbcast.lane.b32.xlu0 %v248, 256
        %v251 = vpop.permute.xlu0 %250
        %s253 = sor.u32 256, 8
        %254 = vbcast.lane.b32.xlu0 %v248, %s253
        %v255 = vpop.permute.xlu0 %254
        %s257 = sor.u32 256, 16
        %258 = vbcast.lane.b32.xlu0 %v248, %s257
        %v259 = vpop.permute.xlu0 %258
        %v260 = vlaneseq
        %v261 = vshrl.u32 %v260, 7
        %v262 = vsub.s32 1, %v261
        %v263 = vrot.slane %v242, %v262
        %265 = vbcast.lane.b32.xlu0 %v263, 256
        %v266 = vpop.permute.xlu0 %265
        %s268 = sor.u32 256, 8
        %269 = vbcast.lane.b32.xlu0 %v263, %s268
        %v270 = vpop.permute.xlu0 %269
        %s272 = sor.u32 256, 16
        %273 = vbcast.lane.b32.xlu0 %v263, %s272
        %v274 = vpop.permute.xlu0 %273
        %v275 = vlaneseq
        %v276 = vshrl.u32 %v275, 7
        %v277 = vsub.s32 2, %v276
        %v278 = vrot.slane %v242, %v277
        %280 = vbcast.lane.b32.xlu0 %v278, 256
        %v281 = vpop.permute.xlu0 %280
        %s283 = sor.u32 256, 8
        %284 = vbcast.lane.b32.xlu0 %v278, %s283
        %v285 = vpop.permute.xlu0 %284
        %s287 = sor.u32 256, 16
        %288 = vbcast.lane.b32.xlu0 %v278, %s287
        %v289 = vpop.permute.xlu0 %288
        %v290 = vlaneseq
        %v291 = vshrl.u32 %v290, 7
        %v292 = vsub.s32 3, %v291
        %v293 = vrot.slane %v242, %v292
        %295 = vbcast.lane.b32.xlu0 %v293, 256
        %v296 = vpop.permute.xlu0 %295
        %s298 = sor.u32 256, 8
        %299 = vbcast.lane.b32.xlu0 %v293, %s298
        %v300 = vpop.permute.xlu0 %299
        %s302 = sor.u32 256, 16
        %303 = vbcast.lane.b32.xlu0 %v293, %s302
        %v304 = vpop.permute.xlu0 %303
        %v305 = vlaneseq
        %v306 = vshrl.u32 %v305, 7
        %v307 = vsub.s32 4, %v306
        %v308 = vrot.slane %v242, %v307
        %310 = vbcast.lane.b32.xlu0 %v308, 256
        %v311 = vpop.permute.xlu0 %310
        %s313 = sor.u32 256, 8
        %314 = vbcast.lane.b32.xlu0 %v308, %s313
        %v315 = vpop.permute.xlu0 %314
        %s317 = sor.u32 256, 16
        %318 = vbcast.lane.b32.xlu0 %v308, %s317
        %v319 = vpop.permute.xlu0 %318
        %v320 = vlaneseq
        %v321 = vshrl.u32 %v320, 7
        %v322 = vsub.s32 5, %v321
        %v323 = vrot.slane %v242, %v322
        %325 = vbcast.lane.b32.xlu0 %v323, 256
        %v326 = vpop.permute.xlu0 %325
        %s328 = sor.u32 256, 8
        %329 = vbcast.lane.b32.xlu0 %v323, %s328
        %v330 = vpop.permute.xlu0 %329
        %s332 = sor.u32 256, 16
        %333 = vbcast.lane.b32.xlu0 %v323, %s332
        %v334 = vpop.permute.xlu0 %333
        %v335 = vlaneseq
        %v336 = vshrl.u32 %v335, 7
        %v337 = vsub.s32 6, %v336
        %v338 = vrot.slane %v242, %v337
        %340 = vbcast.lane.b32.xlu0 %v338, 256
        %v341 = vpop.permute.xlu0 %340
        %s343 = sor.u32 256, 8
        %344 = vbcast.lane.b32.xlu0 %v338, %s343
        %v345 = vpop.permute.xlu0 %344
        %s347 = sor.u32 256, 16
        %348 = vbcast.lane.b32.xlu0 %v338, %s347
        %v349 = vpop.permute.xlu0 %348
        %v350 = vlaneseq
        %v351 = vshrl.u32 %v350, 7
        %v352 = vsub.s32 7, %v351
        %v353 = vrot.slane %v242, %v352
        %355 = vbcast.lane.b32.xlu0 %v353, 256
        %v356 = vpop.permute.xlu0 %355
        %s358 = sor.u32 256, 8
        %359 = vbcast.lane.b32.xlu0 %v353, %s358
        %v360 = vpop.permute.xlu0 %359
        %s362 = sor.u32 256, 16
        %363 = vbcast.lane.b32.xlu0 %v353, %s362
        %v364 = vpop.permute.xlu0 %363
        %vm365 = vcmp.eq.s32.totalorder %v251, %v244
        %vm366 = vcmp.eq.s32.totalorder %v255, %v244
        %vm367 = vcmp.eq.s32.totalorder %v259, %v244
        %vm368 = vcmp.eq.s32.totalorder %v266, %v244
        %vm369 = vcmp.eq.s32.totalorder %v270, %v244
        %vm370 = vcmp.eq.s32.totalorder %v274, %v244
        %vm371 = vcmp.eq.s32.totalorder %v281, %v244
        %vm372 = vcmp.eq.s32.totalorder %v285, %v244
        %vm373 = vcmp.eq.s32.totalorder %v289, %v244
        %vm374 = vcmp.eq.s32.totalorder %v296, %v244
        %vm375 = vcmp.eq.s32.totalorder %v300, %v244
        %vm376 = vcmp.eq.s32.totalorder %v304, %v244
        %vm377 = vcmp.eq.s32.totalorder %v311, %v244
        %vm378 = vcmp.eq.s32.totalorder %v315, %v244
        %vm379 = vcmp.eq.s32.totalorder %v319, %v244
        %vm380 = vcmp.eq.s32.totalorder %v326, %v244
        %vm381 = vcmp.eq.s32.totalorder %v330, %v244
        %vm382 = vcmp.eq.s32.totalorder %v334, %v244
        %vm383 = vcmp.eq.s32.totalorder %v341, %v244
        %vm384 = vcmp.eq.s32.totalorder %v345, %v244
        %vm385 = vcmp.eq.s32.totalorder %v349, %v244
        %vm386 = vcmp.eq.s32.totalorder %v356, %v244
        %vm387 = vcmp.eq.s32.totalorder %v360, %v244
        %vm388 = vcmp.eq.s32.totalorder %v364, %v244
        %v389 = vsel %vm365, 1, 0
        %v390 = vsel %vm366, 1, 0
        %v391 = vsel %vm367, 1, 0
        %v392 = vsel %vm368, 1, 0
        %v393 = vsel %vm369, 1, 0
        %v394 = vsel %vm370, 1, 0
        %v395 = vsel %vm371, 1, 0
        %v396 = vsel %vm372, 1, 0
        %v397 = vsel %vm373, 1, 0
        %v398 = vsel %vm374, 1, 0
        %v399 = vsel %vm375, 1, 0
        %v400 = vsel %vm376, 1, 0
        %v401 = vsel %vm377, 1, 0
        %v402 = vsel %vm378, 1, 0
        %v403 = vsel %vm379, 1, 0
        %v404 = vsel %vm380, 1, 0
        %v405 = vsel %vm381, 1, 0
        %v406 = vsel %vm382, 1, 0
        %v407 = vsel %vm383, 1, 0
        %v408 = vsel %vm384, 1, 0
        %v409 = vsel %vm385, 1, 0
        %v410 = vsel %vm386, 1, 0
        %v411 = vsel %vm387, 1, 0
        %v412 = vsel %vm388, 1, 0
        %v413 = vcvt.s32.f32 %v389
        %v414 = vcvt.s32.f32 %v390
        %v415 = vcvt.s32.f32 %v391
        %v416 = vcvt.s32.f32 %v392
        %v417 = vcvt.s32.f32 %v393
        %v418 = vcvt.s32.f32 %v394
        %v419 = vcvt.s32.f32 %v395
        %v420 = vcvt.s32.f32 %v396
        %v421 = vcvt.s32.f32 %v397
        %v422 = vcvt.s32.f32 %v398
        %v423 = vcvt.s32.f32 %v399
        %v424 = vcvt.s32.f32 %v400
        %v425 = vcvt.s32.f32 %v401
        %v426 = vcvt.s32.f32 %v402
        %v427 = vcvt.s32.f32 %v403
        %v428 = vcvt.s32.f32 %v404
        %v429 = vcvt.s32.f32 %v405
        %v430 = vcvt.s32.f32 %v406
        %v431 = vcvt.s32.f32 %v407
        %v432 = vcvt.s32.f32 %v408
        %v433 = vcvt.s32.f32 %v409
        %v434 = vcvt.s32.f32 %v410
        %v435 = vcvt.s32.f32 %v411
        %v436 = vcvt.s32.f32 %v412
        %v437 = vld [vmem:[#allocation5] sm:$0xff]
        %v438 = vld [vmem:[#allocation5 + $0x8] sm:$0xff]
        %v439 = vld [vmem:[#allocation5 + $0x10] sm:$0xff]
        %v440 = vld [vmem:[#allocation5 + $0x18] sm:$0xff]
        %v441 = vld [vmem:[#allocation5 + $0x20] sm:$0xff]
        %v442 = vld [vmem:[#allocation5 + $0x28] sm:$0xff]
        %v443 = vld [vmem:[#allocation5 + $0x30] sm:$0xff]
        %v444 = vld [vmem:[#allocation5 + $0x38] sm:$0xff]
        %v445 = vld [vmem:[#allocation5 + $0x40] sm:$0xff]
        %v446 = vld [vmem:[#allocation5 + $0x48] sm:$0xff]
        %v447 = vld [vmem:[#allocation5 + $0x50] sm:$0xff]
        %v448 = vld [vmem:[#allocation5 + $0x58] sm:$0xff]
        %v449 = vld [vmem:[#allocation5 + $0x60] sm:$0xff]
        %v450 = vld [vmem:[#allocation5 + $0x68] sm:$0xff]
        %v451 = vld [vmem:[#allocation5 + $0x70] sm:$0xff]
        %v452 = vld [vmem:[#allocation5 + $0x78] sm:$0xff]
        %v453 = vld [vmem:[#allocation5 + $0x80] sm:$0xff]
        %v454 = vld [vmem:[#allocation5 + $0x88] sm:$0xff]
        %v455 = vld [vmem:[#allocation5 + $0x90] sm:$0xff]
        %v456 = vld [vmem:[#allocation5 + $0x98] sm:$0xff]
        %v457 = vld [vmem:[#allocation5 + $0xa0] sm:$0xff]
        %v458 = vld [vmem:[#allocation5 + $0xa8] sm:$0xff]
        %v459 = vld [vmem:[#allocation5 + $0xb0] sm:$0xff]
        %v460 = vld [vmem:[#allocation5 + $0xb8] sm:$0xff]
        %v461 = vld [vmem:[#allocation5 + $0xc0] sm:$0xff]
        %v462 = vld [vmem:[#allocation5 + $0xc8] sm:$0xff]
        %v463 = vld [vmem:[#allocation5 + $0xd0] sm:$0xff]
        %v464 = vld [vmem:[#allocation5 + $0xd8] sm:$0xff]
        %v465 = vld [vmem:[#allocation5 + $0xe0] sm:$0xff]
        %v466 = vld [vmem:[#allocation5 + $0xe8] sm:$0xff]
        %v467 = vld [vmem:[#allocation5 + $0xf0] sm:$0xff]
        %v468 = vld [vmem:[#allocation5 + $0xf8] sm:$0xff]
        %v469 = vld [vmem:[#allocation5 + $0x100] sm:$0xff]
        %v470 = vld [vmem:[#allocation5 + $0x108] sm:$0xff]
        %v471 = vld [vmem:[#allocation5 + $0x110] sm:$0xff]
        %v472 = vld [vmem:[#allocation5 + $0x118] sm:$0xff]
        %v473 = vld [vmem:[#allocation5 + $0x120] sm:$0xff]
        %v474 = vld [vmem:[#allocation5 + $0x128] sm:$0xff]
        %v475 = vld [vmem:[#allocation5 + $0x130] sm:$0xff]
        %v476 = vld [vmem:[#allocation5 + $0x138] sm:$0xff]
        %v477 = vld [vmem:[#allocation5 + $0x140] sm:$0xff]
        %v478 = vld [vmem:[#allocation5 + $0x148] sm:$0xff]
        %v479 = vld [vmem:[#allocation5 + $0x150] sm:$0xff]
        %v480 = vld [vmem:[#allocation5 + $0x158] sm:$0xff]
        %v481 = vld [vmem:[#allocation5 + $0x160] sm:$0xff]
        %v482 = vld [vmem:[#allocation5 + $0x168] sm:$0xff]
        %v483 = vld [vmem:[#allocation5 + $0x170] sm:$0xff]
        %v484 = vld [vmem:[#allocation5 + $0x178] sm:$0xff]
        %v485 = vld [vmem:[#allocation5 + $0x180] sm:$0xff]
        %v486 = vld [vmem:[#allocation5 + $0x188] sm:$0xff]
        %v487 = vld [vmem:[#allocation5 + $0x190] sm:$0xff]
        %v488 = vld [vmem:[#allocation5 + $0x198] sm:$0xff]
        %v489 = vld [vmem:[#allocation5 + $0x1a0] sm:$0xff]
        %v490 = vld [vmem:[#allocation5 + $0x1a8] sm:$0xff]
        %v491 = vld [vmem:[#allocation5 + $0x1b0] sm:$0xff]
        %v492 = vld [vmem:[#allocation5 + $0x1b8] sm:$0xff]
        %v493 = vld [vmem:[#allocation5 + $0x1c0] sm:$0xff]
        %v494 = vld [vmem:[#allocation5 + $0x1c8] sm:$0xff]
        %v495 = vld [vmem:[#allocation5 + $0x1d0] sm:$0xff]
        %v496 = vld [vmem:[#allocation5 + $0x1d8] sm:$0xff]
        %v497 = vld [vmem:[#allocation5 + $0x1e0] sm:$0xff]
        %v498 = vld [vmem:[#allocation5 + $0x1e8] sm:$0xff]
        %v499 = vld [vmem:[#allocation5 + $0x1f0] sm:$0xff]
        %v500 = vld [vmem:[#allocation5 + $0x1f8] sm:$0xff]
        %v501 = vld [vmem:[#allocation5 + $0x200] sm:$0xff]
        %v502 = vld [vmem:[#allocation5 + $0x208] sm:$0xff]
        %v503 = vld [vmem:[#allocation5 + $0x210] sm:$0xff]
        %v504 = vld [vmem:[#allocation5 + $0x218] sm:$0xff]
        %v505 = vld [vmem:[#allocation5 + $0x220] sm:$0xff]
        %v506 = vld [vmem:[#allocation5 + $0x228] sm:$0xff]
        %v507 = vld [vmem:[#allocation5 + $0x230] sm:$0xff]
        %v508 = vld [vmem:[#allocation5 + $0x238] sm:$0xff]
        %v509 = vld [vmem:[#allocation5 + $0x240] sm:$0xff]
        %v510 = vld [vmem:[#allocation5 + $0x248] sm:$0xff]
        %v511 = vld [vmem:[#allocation5 + $0x250] sm:$0xff]
        %v512 = vld [vmem:[#allocation5 + $0x258] sm:$0xff]
        %v513 = vld [vmem:[#allocation5 + $0x260] sm:$0xff]
        %v514 = vld [vmem:[#allocation5 + $0x268] sm:$0xff]
        %v515 = vld [vmem:[#allocation5 + $0x270] sm:$0xff]
        %v516 = vld [vmem:[#allocation5 + $0x278] sm:$0xff]
        %v517 = vld [vmem:[#allocation5 + $0x280] sm:$0xff]
        %v518 = vld [vmem:[#allocation5 + $0x288] sm:$0xff]
        %v519 = vld [vmem:[#allocation5 + $0x290] sm:$0xff]
        %v520 = vld [vmem:[#allocation5 + $0x298] sm:$0xff]
        %v521 = vld [vmem:[#allocation5 + $0x2a0] sm:$0xff]
        %v522 = vld [vmem:[#allocation5 + $0x2a8] sm:$0xff]
        %v523 = vld [vmem:[#allocation5 + $0x2b0] sm:$0xff]
        %v524 = vld [vmem:[#allocation5 + $0x2b8] sm:$0xff]
        %v525 = vld [vmem:[#allocation5 + $0x2c0] sm:$0xff]
        %v526 = vld [vmem:[#allocation5 + $0x2c8] sm:$0xff]
        %v527 = vld [vmem:[#allocation5 + $0x2d0] sm:$0xff]
        %v528 = vld [vmem:[#allocation5 + $0x2d8] sm:$0xff]
        %v529 = vld [vmem:[#allocation5 + $0x2e0] sm:$0xff]
        %v530 = vld [vmem:[#allocation5 + $0x2e8] sm:$0xff]
        %v531 = vld [vmem:[#allocation5 + $0x2f0] sm:$0xff]
        %v532 = vld [vmem:[#allocation5 + $0x2f8] sm:$0xff]
        %v533 = vld [vmem:[#allocation5 + $0x300] sm:$0xff]
        %v534 = vld [vmem:[#allocation5 + $0x308] sm:$0xff]
        %v535 = vld [vmem:[#allocation5 + $0x310] sm:$0xff]
        %v536 = vld [vmem:[#allocation5 + $0x318] sm:$0xff]
        %v537 = vld [vmem:[#allocation5 + $0x320] sm:$0xff]
        %v538 = vld [vmem:[#allocation5 + $0x328] sm:$0xff]
        %v539 = vld [vmem:[#allocation5 + $0x330] sm:$0xff]
        %v540 = vld [vmem:[#allocation5 + $0x338] sm:$0xff]
        %v541 = vld [vmem:[#allocation5 + $0x340] sm:$0xff]
        %v542 = vld [vmem:[#allocation5 + $0x348] sm:$0xff]
        %v543 = vld [vmem:[#allocation5 + $0x350] sm:$0xff]
        %v544 = vld [vmem:[#allocation5 + $0x358] sm:$0xff]
        %v545 = vld [vmem:[#allocation5 + $0x360] sm:$0xff]
        %v546 = vld [vmem:[#allocation5 + $0x368] sm:$0xff]
        %v547 = vld [vmem:[#allocation5 + $0x370] sm:$0xff]
        %v548 = vld [vmem:[#allocation5 + $0x378] sm:$0xff]
        %v549 = vand.u32 %v438, 4294901760
        %550 = vmatprep.subr.mxu0 %v549
        %v551 = vand.u32 %v437, 4294901760
        %552 = vmatpush1.msra.mxu0 %v551
        %v553 = vand.u32 %v445, 4294901760
        %554 = vmatprep.subr.mxu0 %v553
        %v555 = vand.u32 %v444, 4294901760
        %556 = vmatpush1.msra.mxu0 %v555
        %v557 = vand.u32 %v452, 4294901760
        %558 = vmatprep.subr.mxu0 %v557
        %v559 = vand.u32 %v451, 4294901760
        %560 = vmatpush1.msra.mxu0 %v559
        %v561 = vand.u32 %v459, 4294901760
        %562 = vmatprep.subr.mxu0 %v561
        %v563 = vand.u32 %v458, 4294901760
        %564 = vmatpush1.msra.mxu0 %v563
        %v565 = vand.u32 %v466, 4294901760
        %566 = vmatprep.subr.mxu0 %v565
        %v567 = vand.u32 %v465, 4294901760
        %568 = vmatpush1.msra.mxu0 %v567
        %v569 = vand.u32 %v473, 4294901760
        %570 = vmatprep.subr.mxu0 %v569
        %v571 = vand.u32 %v472, 4294901760
        %572 = vmatpush1.msra.mxu0 %v571
        %v573 = vand.u32 %v480, 4294901760
        %574 = vmatprep.subr.mxu0 %v573
        %v575 = vand.u32 %v479, 4294901760
        %576 = vmatpush1.msra.mxu0 %v575
        %v577 = vand.u32 %v487, 4294901760
        %578 = vmatprep.subr.mxu0 %v577
        %v579 = vand.u32 %v486, 4294901760
        %580 = vmatpush1.msra.mxu0 %v579
        %v581 = vand.u32 %v494, 4294901760
        %582 = vmatprep.subr.mxu0 %v581
        %v583 = vand.u32 %v493, 4294901760
        %584 = vmatpush1.msra.mxu0 %v583
        %v585 = vand.u32 %v501, 4294901760
        %586 = vmatprep.subr.mxu0 %v585
        %v587 = vand.u32 %v500, 4294901760
        %588 = vmatpush1.msra.mxu0 %v587
        %v589 = vand.u32 %v508, 4294901760
        %590 = vmatprep.subr.mxu0 %v589
        %v591 = vand.u32 %v507, 4294901760
        %592 = vmatpush1.msra.mxu0 %v591
        %v593 = vand.u32 %v515, 4294901760
        %594 = vmatprep.subr.mxu0 %v593
        %v595 = vand.u32 %v514, 4294901760
        %596 = vmatpush1.msra.mxu0 %v595
        %v597 = vand.u32 %v522, 4294901760
        %598 = vmatprep.subr.mxu0 %v597
        %v599 = vand.u32 %v521, 4294901760
        %600 = vmatpush1.msra.mxu0 %v599
        %v601 = vand.u32 %v529, 4294901760
        %602 = vmatprep.subr.mxu0 %v601
        %v603 = vand.u32 %v528, 4294901760
        %604 = vmatpush1.msra.mxu0 %v603
        %v605 = vand.u32 %v536, 4294901760
        %606 = vmatprep.subr.mxu0 %v605
        %v607 = vand.u32 %v535, 4294901760
        %608 = vmatpush1.msra.mxu0 %v607
        %v609 = vand.u32 %v543, 4294901760
        %610 = vmatprep.subr.mxu0 %v609
        %v611 = vand.u32 %v542, 4294901760
        %612 = vmatpush1.msra.mxu0 %v611
        %613 = vmatprep.subr.mxu0 0.0
        %614 = vmatpush1.msra.mxu0 0.0
        %615 = vmatprep.subr.mxu0 0.0
        %616 = vmatpush1.msra.mxu0 0.0
        %617 = vmatprep.subr.mxu0 0.0
        %618 = vmatpush1.msra.mxu0 0.0
        %619 = vmatprep.subr.mxu0 0.0
        %620 = vmatpush1.msra.mxu0 0.0
        %621 = vmatprep.subr.mxu0 0.0
        %622 = vmatpush1.msra.mxu0 0.0
        %623 = vmatprep.subr.mxu0 0.0
        %624 = vmatpush1.msra.mxu0 0.0
        %625 = vmatprep.subr.mxu0 0.0
        %626 = vmatpush1.msra.mxu0 0.0
        %627 = vmatprep.subr.mxu0 0.0
        %628 = vmatpush1.msra.mxu0 0.0
        %629 = vmatprep.subr.mxu0 0.0
        %630 = vmatpush1.msra.mxu0 0.0
        %631 = vmatprep.subr.mxu0 0.0
        %632 = vmatpush1.msra.mxu0 0.0
        %633 = vmatprep.subr.mxu0 0.0
        %634 = vmatpush1.msra.mxu0 0.0
        %635 = vmatprep.subr.mxu0 0.0
        %636 = vmatpush1.msra.mxu0 0.0
        %637 = vmatprep.subr.mxu0 0.0
        %638 = vmatpush1.msra.mxu0 0.0
        %639 = vmatprep.subr.mxu0 0.0
        %640 = vmatpush1.msra.mxu0 0.0
        %641 = vmatprep.subr.mxu0 0.0
        %642 = vmatpush1.msra.mxu0 0.0
        %643 = vmatprep.subr.mxu0 0.0
        %644 = vmatpush1.msra.mxu0 0.0
        %645 = vmatprep.mubr.f32.mxu0 0.0
        %v646 = vand.u32 %v413, 4294901760
        %v647 = vsub.f32 %v413, %v646
        %v648 = vand.u32 %v647, 4294901760
        %v649 = vsub.f32 %v647, %v648
        %v650 = vand.u32 %v649, 4294901760
        %651 = vmatmul.mubr.f32.gmra.mrb[0].mxu0 %v650
        %v652 = vpop.f32.mrb[0].mxu0
        %v653 = vadd.f32 0.0, %v652
        %v654 = vpop.f32.mrb[0].mxu0
        %v655 = vadd.f32 0.0, %v654
        %656 = vmatprep.mubr.f32.mxu0 0.0
        %v657 = vand.u32 %v414, 4294901760
        %v658 = vsub.f32 %v414, %v657
        %v659 = vand.u32 %v658, 4294901760
        %v660 = vsub.f32 %v658, %v659
        %v661 = vand.u32 %v660, 4294901760
        %662 = vmatmul.mubr.f32.gmra.mrb[0].mxu0 %v661
        %v663 = vpop.f32.mrb[0].mxu0
        %v664 = vadd.f32 0.0, %v663
        %v665 = vpop.f32.mrb[0].mxu0
        %v666 = vadd.f32 0.0, %v665
        %667 = vmatprep.mubr.f32.mxu0 0.0
        %v668 = vand.u32 %v415, 4294901760
        %v669 = vsub.f32 %v415, %v668
        %v670 = vand.u32 %v669, 4294901760
        %v671 = vsub.f32 %v669, %v670
        %v672 = vand.u32 %v671, 4294901760
        %673 = vmatmul.mubr.f32.gmra.mrb[0].mxu0 %v672
        %v674 = vpop.f32.mrb[0].mxu0
        %v675 = vpop.f32.mrb[0].mxu0
        %v676 = vadd.f32 0.0, %v675
        %677 = vmatprep.mubr.f32.mxu0 0.0
        %v678 = vand.u32 %v416, 4294901760
        %v679 = vsub.f32 %v416, %v678
        %v680 = vand.u32 %v679, 4294901760
        %v681 = vsub.f32 %v679, %v680
        %v682 = vand.u32 %v681, 4294901760
        %683 = vmatmul.mubr.f32.gmra.mrb[0].mxu0 %v682
        %v684 = vpop.f32.mrb[0].mxu0
        %v685 = vadd.f32 0.0, %v684
        %v686 = vpop.f32.mrb[0].mxu0
        %v687 = vadd.f32 0.0, %v686
        %688 = vmatprep.mubr.f32.mxu0 0.0
        %v689 = vand.u32 %v417, 4294901760
        %v690 = vsub.f32 %v417, %v689
        %v691 = vand.u32 %v690, 4294901760
        %v692 = vsub.f32 %v690, %v691
        %v693 = vand.u32 %v692, 4294901760
        %694 = vmatmul.mubr.f32.gmra.mrb[0].mxu0 %v693
        %v695 = vpop.f32.mrb[0].mxu0
        %v696 = vadd.f32 0.0, %v695
        %v697 = vpop.f32.mrb[0].mxu0
        %v698 = vadd.f32 0.0, %v697
        %699 = vmatprep.mubr.f32.mxu0 0.0
        %v700 = vand.u32 %v418, 4294901760
        %v701 = vsub.f32 %v418, %v700
        %v702 = vand.u32 %v701, 4294901760
        %v703 = vsub.f32 %v701, %v702
        %v704 = vand.u32 %v703, 4294901760
        %705 = vmatmul.mubr.f32.gmra.mrb[0].mxu0 %v704
        %v706 = vpop.f32.mrb[0].mxu0
        %v707 = vpop.f32.mrb[0].mxu0
        %v708 = vadd.f32 0.0, %v707
        %709 = vmatprep.mubr.f32.mxu0 0.0
        %v710 = vand.u32 %v419, 4294901760
        %v711 = vsub.f32 %v419, %v710
        %v712 = vand.u32 %v711, 4294901760
        %v713 = vsub.f32 %v711, %v712
        %v714 = vand.u32 %v713, 4294901760
        %715 = vmatmul.mubr.f32.gmra.mrb[0].mxu0 %v714
        %v716 = vpop.f32.mrb[0].mxu0
        %v717 = vadd.f32 0.0, %v716
        %v718 = vpop.f32.mrb[0].mxu0
        %v719 = vadd.f32 0.0, %v718
        %720 = vmatprep.mubr.f32.mxu0 0.0
        %v721 = vand.u32 %v420, 4294901760
        %v722 = vsub.f32 %v420, %v721
        %v723 = vand.u32 %v722, 4294901760
        %v724 = vsub.f32 %v722, %v723
        %v725 = vand.u32 %v724, 4294901760
        %726 = vmatmul.mubr.f32.gmra.mrb[0].mxu0 %v725
        %v727 = vpop.f32.mrb[0].mxu0
        %v728 = vadd.f32 0.0, %v727
        %v729 = vpop.f32.mrb[0].mxu0
        %v730 = vadd.f32 0.0, %v729
        %731 = vmatprep.mubr.f32.mxu0 0.0
        %v732 = vand.u32 %v421, 4294901760
        %v733 = vsub.f32 %v421, %v732
        %v734 = vand.u32 %v733, 4294901760
        %v735 = vsub.f32 %v733, %v734
        %v736 = vand.u32 %v735, 4294901760
        %737 = vmatmul.mubr.f32.gmra.mrb[0].mxu0 %v736
        %v738 = vpop.f32.mrb[0].mxu0
        %v739 = vpop.f32.mrb[0].mxu0
        %v740 = vadd.f32 0.0, %v739
        %741 = vmatprep.mubr.f32.mxu0 0.0
        %v742 = vand.u32 %v422, 4294901760
        %v743 = vsub.f32 %v422, %v742
        %v744 = vand.u32 %v743, 4294901760
        %v745 = vsub.f32 %v743, %v744
        %v746 = vand.u32 %v745, 4294901760
        %747 = vmatmul.mubr.f32.gmra.mrb[0].mxu0 %v746
        %v748 = vpop.f32.mrb[0].mxu0
        %v749 = vadd.f32 0.0, %v748
        %v750 = vpop.f32.mrb[0].mxu0
        %v751 = vadd.f32 0.0, %v750
        %752 = vmatprep.mubr.f32.mxu0 0.0
        %v753 = vand.u32 %v423, 4294901760
        %v754 = vsub.f32 %v423, %v753
        %v755 = vand.u32 %v754, 4294901760
        %v756 = vsub.f32 %v754, %v755
        %v757 = vand.u32 %v756, 4294901760
        %758 = vmatmul.mubr.f32.gmra.mrb[0].mxu0 %v757
        %v759 = vpop.f32.mrb[0].mxu0
        %v760 = vadd.f32 0.0, %v759
        %v761 = vpop.f32.mrb[0].mxu0
        %v762 = vadd.f32 0.0, %v761
        %763 = vmatprep.mubr.f32.mxu0 0.0
        %v764 = vand.u32 %v424, 4294901760
        %v765 = vsub.f32 %v424, %v764
        %v766 = vand.u32 %v765, 4294901760
        %v767 = vsub.f32 %v765, %v766
        %v768 = vand.u32 %v767, 4294901760
        %769 = vmatmul.mubr.f32.gmra.mrb[0].mxu0 %v768
        %v770 = vpop.f32.mrb[0].mxu0
        %v771 = vpop.f32.mrb[0].mxu0
        %v772 = vadd.f32 0.0, %v771
        %773 = vmatprep.mubr.f32.mxu0 0.0
        %v774 = vand.u32 %v425, 4294901760
        %v775 = vsub.f32 %v425, %v774
        %v776 = vand.u32 %v775, 4294901760
        %v777 = vsub.f32 %v775, %v776
        %v778 = vand.u32 %v777, 4294901760
        %779 = vmatmul.mubr.f32.gmra.mrb[0].mxu0 %v778
        %v780 = vpop.f32.mrb[0].mxu0
        %v781 = vadd.f32 0.0, %v780
        %v782 = vpop.f32.mrb[0].mxu0
        %v783 = vadd.f32 0.0, %v782
        %784 = vmatprep.mubr.f32.mxu0 0.0
        %v785 = vand.u32 %v426, 4294901760
        %v786 = vsub.f32 %v426, %v785
        %v787 = vand.u32 %v786, 4294901760
        %v788 = vsub.f32 %v786, %v787
        %v789 = vand.u32 %v788, 4294901760
        %790 = vmatmul.mubr.f32.gmra.mrb[0].mxu0 %v789
        %v791 = vpop.f32.mrb[0].mxu0
        %v792 = vadd.f32 0.0, %v791
        %v793 = vpop.f32.mrb[0].mxu0
        %v794 = vadd.f32 0.0, %v793
        %795 = vmatprep.mubr.f32.mxu0 0.0
        %v796 = vand.u32 %v427, 4294901760
        %v797 = vsub.f32 %v427, %v796
        %v798 = vand.u32 %v797, 4294901760
        %v799 = vsub.f32 %v797, %v798
        %v800 = vand.u32 %v799, 4294901760
        %801 = vmatmul.mubr.f32.gmra.mrb[0].mxu0 %v800
        %v802 = vpop.f32.mrb[0].mxu0
        %v803 = vpop.f32.mrb[0].mxu0
        %v804 = vadd.f32 0.0, %v803
        %805 = vmatprep.mubr.f32.mxu0 0.0
        %v806 = vand.u32 %v428, 4294901760
        %v807 = vsub.f32 %v428, %v806
        %v808 = vand.u32 %v807, 4294901760
        %v809 = vsub.f32 %v807, %v808
        %v810 = vand.u32 %v809, 4294901760
        %811 = vmatmul.mubr.f32.gmra.mrb[0].mxu0 %v810
        %v812 = vpop.f32.mrb[0].mxu0
        %v813 = vadd.f32 0.0, %v812
        %v814 = vpop.f32.mrb[0].mxu0
        %v815 = vadd.f32 0.0, %v814
        %816 = vmatprep.mubr.f32.mxu0 0.0
        %v817 = vand.u32 %v429, 4294901760
        %v818 = vsub.f32 %v429, %v817
        %v819 = vand.u32 %v818, 4294901760
        %v820 = vsub.f32 %v818, %v819
        %v821 = vand.u32 %v820, 4294901760
        %822 = vmatmul.mubr.f32.gmra.mrb[0].mxu0 %v821
        %v823 = vpop.f32.mrb[0].mxu0
        %v824 = vadd.f32 0.0, %v823
        %v825 = vpop.f32.mrb[0].mxu0
        %v826 = vadd.f32 0.0, %v825
        %827 = vmatprep.mubr.f32.mxu0 0.0
        %v828 = vand.u32 %v430, 4294901760
        %v829 = vsub.f32 %v430, %v828
        %v830 = vand.u32 %v829, 4294901760
        %v831 = vsub.f32 %v829, %v830
        %v832 = vand.u32 %v831, 4294901760
        %833 = vmatmul.mubr.f32.gmra.mrb[0].mxu0 %v832
        %v834 = vpop.f32.mrb[0].mxu0
        %v835 = vpop.f32.mrb[0].mxu0
        %v836 = vadd.f32 0.0, %v835
        %837 = vmatprep.mubr.f32.mxu0 0.0
        %v838 = vand.u32 %v431, 4294901760
        %v839 = vsub.f32 %v431, %v838
        %v840 = vand.u32 %v839, 4294901760
        %v841 = vsub.f32 %v839, %v840
        %v842 = vand.u32 %v841, 4294901760
        %843 = vmatmul.mubr.f32.gmra.mrb[0].mxu0 %v842
        %v844 = vpop.f32.mrb[0].mxu0
        %v845 = vadd.f32 0.0, %v844
        %v846 = vpop.f32.mrb[0].mxu0
        %v847 = vadd.f32 0.0, %v846
        %848 = vmatprep.mubr.f32.mxu0 0.0
        %v849 = vand.u32 %v432, 4294901760
        %v850 = vsub.f32 %v432, %v849
        %v851 = vand.u32 %v850, 4294901760
        %v852 = vsub.f32 %v850, %v851
        %v853 = vand.u32 %v852, 4294901760
        %854 = vmatmul.mubr.f32.gmra.mrb[0].mxu0 %v853
        %v855 = vpop.f32.mrb[0].mxu0
        %v856 = vadd.f32 0.0, %v855
        %v857 = vpop.f32.mrb[0].mxu0
        %v858 = vadd.f32 0.0, %v857
        %859 = vmatprep.mubr.f32.mxu0 0.0
        %v860 = vand.u32 %v433, 4294901760
        %v861 = vsub.f32 %v433, %v860
        %v862 = vand.u32 %v861, 4294901760
        %v863 = vsub.f32 %v861, %v862
        %v864 = vand.u32 %v863, 4294901760
        %865 = vmatmul.mubr.f32.gmra.mrb[0].mxu0 %v864
        %v866 = vpop.f32.mrb[0].mxu0
        %v867 = vpop.f32.mrb[0].mxu0
        %v868 = vadd.f32 0.0, %v867
        %869 = vmatprep.mubr.f32.mxu0 0.0
        %v870 = vand.u32 %v434, 4294901760
        %v871 = vsub.f32 %v434, %v870
        %v872 = vand.u32 %v871, 4294901760
        %v873 = vsub.f32 %v871, %v872
        %v874 = vand.u32 %v873, 4294901760
        %875 = vmatmul.mubr.f32.gmra.mrb[0].mxu0 %v874
        %v876 = vpop.f32.mrb[0].mxu0
        %v877 = vadd.f32 0.0, %v876
        %v878 = vpop.f32.mrb[0].mxu0
        %v879 = vadd.f32 0.0, %v878
        %880 = vmatprep.mubr.f32.mxu0 0.0
        %v881 = vand.u32 %v435, 4294901760
        %v882 = vsub.f32 %v435, %v881
        %v883 = vand.u32 %v882, 4294901760
        %v884 = vsub.f32 %v882, %v883
        %v885 = vand.u32 %v884, 4294901760
        %886 = vmatmul.mubr.f32.gmra.mrb[0].mxu0 %v885
        %v887 = vpop.f32.mrb[0].mxu0
        %v888 = vadd.f32 0.0, %v887
        %v889 = vpop.f32.mrb[0].mxu0
        %v890 = vadd.f32 0.0, %v889
        %891 = vmatprep.mubr.f32.mxu0 0.0
        %v892 = vand.u32 %v436, 4294901760
        %v893 = vsub.f32 %v436, %v892
        %v894 = vand.u32 %v893, 4294901760
        %v895 = vsub.f32 %v893, %v894
        %v896 = vand.u32 %v895, 4294901760
        %897 = vmatmul.mubr.f32.gmra.mrb[0].mxu0 %v896
        %v898 = vpop.f32.mrb[0].mxu0
        %v899 = vpop.f32.mrb[0].mxu0
        %v900 = vadd.f32 0.0, %v899
        %901 = vdwg.mxu0
        %v902 = vand.u32 %v438, 4294901760
        %v903 = vsub.f32 %v438, %v902
        %v904 = vand.u32 %v903, 4294901760
        %v905 = vsub.f32 %v903, %v904
        %v906 = vand.u32 %v905, 4294901760
        %907 = vmatprep.subr.mxu0 %v906
        %v908 = vand.u32 %v437, 4294901760
        %v909 = vsub.f32 %v437, %v908
        %v910 = vand.u32 %v909, 4294901760
        %v911 = vsub.f32 %v909, %v910
        %v912 = vand.u32 %v911, 4294901760
        %913 = vmatpush1.msra.mxu0 %v912
        %v914 = vand.u32 %v445, 4294901760
        %v915 = vsub.f32 %v445, %v914
        %v916 = vand.u32 %v915, 4294901760
        %v917 = vsub.f32 %v915, %v916
        %v918 = vand.u32 %v917, 4294901760
        %919 = vmatprep.subr.mxu0 %v918
        %v920 = vand.u32 %v444, 4294901760
        %v921 = vsub.f32 %v444, %v920
        %v922 = vand.u32 %v921, 4294901760
        %v923 = vsub.f32 %v921, %v922
        %v924 = vand.u32 %v923, 4294901760
        %925 = vmatpush1.msra.mxu0 %v924
        %v926 = vand.u32 %v452, 4294901760
        %v927 = vsub.f32 %v452, %v926
        %v928 = vand.u32 %v927, 4294901760
        %v929 = vsub.f32 %v927, %v928
        %v930 = vand.u32 %v929, 4294901760
        %931 = vmatprep.subr.mxu0 %v930
        %v932 = vand.u32 %v451, 4294901760
        %v933 = vsub.f32 %v451, %v932
        %v934 = vand.u32 %v933, 4294901760
        %v935 = vsub.f32 %v933, %v934
        %v936 = vand.u32 %v935, 4294901760
        %937 = vmatpush1.msra.mxu0 %v936
        %v938 = vand.u32 %v459, 4294901760
        %v939 = vsub.f32 %v459, %v938
        %v940 = vand.u32 %v939, 4294901760
        %v941 = vsub.f32 %v939, %v940
        %v942 = vand.u32 %v941, 4294901760
        %943 = vmatprep.subr.mxu0 %v942
        %v944 = vand.u32 %v458, 4294901760
        %v945 = vsub.f32 %v458, %v944
        %v946 = vand.u32 %v945, 4294901760
        %v947 = vsub.f32 %v945, %v946
        %v948 = vand.u32 %v947, 4294901760
        %949 = vmatpush1.msra.mxu0 %v948
        %v950 = vand.u32 %v466, 4294901760
        %v951 = vsub.f32 %v466, %v950
        %v952 = vand.u32 %v951, 4294901760
        %v953 = vsub.f32 %v951, %v952
        %v954 = vand.u32 %v953, 4294901760
        %955 = vmatprep.subr.mxu0 %v954
        %v956 = vand.u32 %v465, 4294901760
        %v957 = vsub.f32 %v465, %v956
        %v958 = vand.u32 %v957, 4294901760
        %v959 = vsub.f32 %v957, %v958
        %v960 = vand.u32 %v959, 4294901760
        %961 = vmatpush1.msra.mxu0 %v960
        %v962 = vand.u32 %v473, 4294901760
        %v963 = vsub.f32 %v473, %v962
        %v964 = vand.u32 %v963, 4294901760
        %v965 = vsub.f32 %v963, %v964
        %v966 = vand.u32 %v965, 4294901760
        %967 = vmatprep.subr.mxu0 %v966
        %v968 = vand.u32 %v472, 4294901760
        %v969 = vsub.f32 %v472, %v968
        %v970 = vand.u32 %v969, 4294901760
        %v971 = vsub.f32 %v969, %v970
        %v972 = vand.u32 %v971, 4294901760
        %973 = vmatpush1.msra.mxu0 %v972
        %v974 = vand.u32 %v480, 4294901760
        %v975 = vsub.f32 %v480, %v974
        %v976 = vand.u32 %v975, 4294901760
        %v977 = vsub.f32 %v975, %v976
        %v978 = vand.u32 %v977, 4294901760
        %979 = vmatprep.subr.mxu0 %v978
        %v980 = vand.u32 %v479, 4294901760
        %v981 = vsub.f32 %v479, %v980
        %v982 = vand.u32 %v981, 4294901760
        %v983 = vsub.f32 %v981, %v982
        %v984 = vand.u32 %v983, 4294901760
        %985 = vmatpush1.msra.mxu0 %v984
        %v986 = vand.u32 %v487, 4294901760
        %v987 = vsub.f32 %v487, %v986
        %v988 = vand.u32 %v987, 4294901760
        %v989 = vsub.f32 %v987, %v988
        %v990 = vand.u32 %v989, 4294901760
        %991 = vmatprep.subr.mxu0 %v990
        %v992 = vand.u32 %v486, 4294901760
        %v993 = vsub.f32 %v486, %v992
        %v994 = vand.u32 %v993, 4294901760
        %v995 = vsub.f32 %v993, %v994
        %v996 = vand.u32 %v995, 4294901760
        %997 = vmatpush1.msra.mxu0 %v996
        %v998 = vand.u32 %v494, 4294901760
        %v999 = vsub.f32 %v494, %v998
        %v1000 = vand.u32 %v999, 4294901760
        %v1001 = vsub.f32 %v999, %v1000
        %v1002 = vand.u32 %v1001, 4294901760
        %1003 = vmatprep.subr.mxu0 %v1002
        %v1004 = vand.u32 %v493, 4294901760
        %v1005 = vsub.f32 %v493, %v1004
        %v1006 = vand.u32 %v1005, 4294901760
        %v1007 = vsub.f32 %v1005, %v1006
        %v1008 = vand.u32 %v1007, 4294901760
        %1009 = vmatpush1.msra.mxu0 %v1008
        %v1010 = vand.u32 %v501, 4294901760
        %v1011 = vsub.f32 %v501, %v1010
        %v1012 = vand.u32 %v1011, 4294901760
        %v1013 = vsub.f32 %v1011, %v1012
        %v1014 = vand.u32 %v1013, 4294901760
        %1015 = vmatprep.subr.mxu0 %v1014
        %v1016 = vand.u32 %v500, 4294901760
        %v1017 = vsub.f32 %v500, %v1016
        %v1018 = vand.u32 %v1017, 4294901760
        %v1019 = vsub.f32 %v1017, %v1018
        %v1020 = vand.u32 %v1019, 4294901760
        %1021 = vmatpush1.msra.mxu0 %v1020
        %v1022 = vand.u32 %v508, 4294901760
        %v1023 = vsub.f32 %v508, %v1022
        %v1024 = vand.u32 %v1023, 4294901760
        %v1025 = vsub.f32 %v1023, %v1024
        %v1026 = vand.u32 %v1025, 4294901760
        %1027 = vmatprep.subr.mxu0 %v1026
        %v1028 = vand.u32 %v507, 4294901760
        %v1029 = vsub.f32 %v507, %v1028
        %v1030 = vand.u32 %v1029, 4294901760
        %v1031 = vsub.f32 %v1029, %v1030
        %v1032 = vand.u32 %v1031, 4294901760
        %1033 = vmatpush1.msra.mxu0 %v1032
        %v1034 = vand.u32 %v515, 4294901760
        %v1035 = vsub.f32 %v515, %v1034
        %v1036 = vand.u32 %v1035, 4294901760
        %v1037 = vsub.f32 %v1035, %v1036
        %v1038 = vand.u32 %v1037, 4294901760
        %1039 = vmatprep.subr.mxu0 %v1038
        %v1040 = vand.u32 %v514, 4294901760
        %v1041 = vsub.f32 %v514, %v1040
        %v1042 = vand.u32 %v1041, 4294901760
        %v1043 = vsub.f32 %v1041, %v1042
        %v1044 = vand.u32 %v1043, 4294901760
        %1045 = vmatpush1.msra.mxu0 %v1044
        %v1046 = vand.u32 %v522, 4294901760
        %v1047 = vsub.f32 %v522, %v1046
        %v1048 = vand.u32 %v1047, 4294901760
        %v1049 = vsub.f32 %v1047, %v1048
        %v1050 = vand.u32 %v1049, 4294901760
        %1051 = vmatprep.subr.mxu0 %v1050
        %v1052 = vand.u32 %v521, 4294901760
        %v1053 = vsub.f32 %v521, %v1052
        %v1054 = vand.u32 %v1053, 4294901760
        %v1055 = vsub.f32 %v1053, %v1054
        %v1056 = vand.u32 %v1055, 4294901760
        %1057 = vmatpush1.msra.mxu0 %v1056
        %v1058 = vand.u32 %v529, 4294901760
        %v1059 = vsub.f32 %v529, %v1058
        %v1060 = vand.u32 %v1059, 4294901760
        %v1061 = vsub.f32 %v1059, %v1060
        %v1062 = vand.u32 %v1061, 4294901760
        %1063 = vmatprep.subr.mxu0 %v1062
        %v1064 = vand.u32 %v528, 4294901760
        %v1065 = vsub.f32 %v528, %v1064
        %v1066 = vand.u32 %v1065, 4294901760
        %v1067 = vsub.f32 %v1065, %v1066
        %v1068 = vand.u32 %v1067, 4294901760
        %1069 = vmatpush1.msra.mxu0 %v1068
        %v1070 = vand.u32 %v536, 4294901760
        %v1071 = vsub.f32 %v536, %v1070
        %v1072 = vand.u32 %v1071, 4294901760
        %v1073 = vsub.f32 %v1071, %v1072
        %v1074 = vand.u32 %v1073, 4294901760
        %1075 = vmatprep.subr.mxu0 %v1074
        %v1076 = vand.u32 %v535, 4294901760
        %v1077 = vsub.f32 %v535, %v1076
        %v1078 = vand.u32 %v1077, 4294901760
        %v1079 = vsub.f32 %v1077, %v1078
        %v1080 = vand.u32 %v1079, 4294901760
        %1081 = vmatpush1.msra.mxu0 %v1080
        %v1082 = vand.u32 %v543, 4294901760
        %v1083 = vsub.f32 %v543, %v1082
        %v1084 = vand.u32 %v1083, 4294901760
        %v1085 = vsub.f32 %v1083, %v1084
        %v1086 = vand.u32 %v1085, 4294901760
        %1087 = vmatprep.subr.mxu0 %v1086
        %v1088 = vand.u32 %v542, 4294901760
        %v1089 = vsub.f32 %v542, %v1088
        %v1090 = vand.u32 %v1089, 4294901760
        %v1091 = vsub.f32 %v1089, %v1090
        %v1092 = vand.u32 %v1091, 4294901760
        %1093 = vmatpush1.msra.mxu0 %v1092
        %1094 = vmatprep.subr.mxu0 0.0
        %1095 = vmatpush1.msra.mxu0 0.0
        %1096 = vmatprep.subr.mxu0 0.0
        %1097 = vmatpush1.msra.mxu0 0.0
        %1098 = vmatprep.subr.mxu0 0.0
        %1099 = vmatpush1.msra.mxu0 0.0
        %1100 = vmatprep.subr.mxu0 0.0
        %1101 = vmatpush1.msra.mxu0 0.0
        %1102 = vmatprep.subr.mxu0 0.0
        %1103 = vmatpush1.msra.mxu0 0.0
        %1104 = vmatprep.subr.mxu0 0.0
        %1105 = vmatpush1.msra.mxu0 0.0
        %1106 = vmatprep.subr.mxu0 0.0
        %1107 = vmatpush1.msra.mxu0 0.0
        %1108 = vmatprep.subr.mxu0 0.0
        %1109 = vmatpush1.msra.mxu0 0.0
        %1110 = vmatprep.subr.mxu0 0.0
        %1111 = vmatpush1.msra.mxu0 0.0
        %1112 = vmatprep.subr.mxu0 0.0
        %1113 = vmatpush1.msra.mxu0 0.0
        %1114 = vmatprep.subr.mxu0 0.0
        %1115 = vmatpush1.msra.mxu0 0.0
        %1116 = vmatprep.subr.mxu0 0.0
        %1117 = vmatpush1.msra.mxu0 0.0
        %1118 = vmatprep.subr.mxu0 0.0
        %1119 = vmatpush1.msra.mxu0 0.0
        %1120 = vmatprep.subr.mxu0 0.0
        %1121 = vmatpush1.msra.mxu0 0.0
        %1122 = vmatprep.subr.mxu0 0.0
        %1123 = vmatpush1.msra.mxu0 0.0
        %1124 = vmatprep.subr.mxu0 0.0
        %1125 = vmatpush1.msra.mxu0 0.0
        %1126 = vmatprep.mubr.f32.mxu0 0.0
        %v1127 = vand.u32 %v413, 4294901760
        %1128 = vmatmul.mubr.f32.gmra.mrb[0].mxu0 %v1127
        %v1129 = vpop.f32.mrb[0].mxu0
        %v1130 = vadd.f32 %v653, %v1129
        %v1131 = vpop.f32.mrb[0].mxu0
        %v1132 = vadd.f32 %v655, %v1131
        %1133 = vmatprep.mubr.f32.mxu0 0.0
        %v1134 = vand.u32 %v414, 4294901760
        %1135 = vmatmul.mubr.f32.gmra.mrb[0].mxu0 %v1134
        %v1136 = vpop.f32.mrb[0].mxu0
        %v1137 = vadd.f32 %v664, %v1136
        %v1138 = vpop.f32.mrb[0].mxu0
        %v1139 = vadd.f32 %v666, %v1138
        %1140 = vmatprep.mubr.f32.mxu0 0.0
        %v1141 = vand.u32 %v415, 4294901760
        %1142 = vmatmul.mubr.f32.gmra.mrb[0].mxu0 %v1141
        %v1143 = vpop.f32.mrb[0].mxu0
        %v1144 = vpop.f32.mrb[0].mxu0
        %v1145 = vadd.f32 %v676, %v1144
        %1146 = vmatprep.mubr.f32.mxu0 0.0
        %v1147 = vand.u32 %v416, 4294901760
        %1148 = vmatmul.mubr.f32.gmra.mrb[0].mxu0 %v1147
        %v1149 = vpop.f32.mrb[0].mxu0
        %v1150 = vadd.f32 %v685, %v1149
        %v1151 = vpop.f32.mrb[0].mxu0
        %v1152 = vadd.f32 %v687, %v1151
        %1153 = vmatprep.mubr.f32.mxu0 0.0
        %v1154 = vand.u32 %v417, 4294901760
        %1155 = vmatmul.mubr.f32.gmra.mrb[0].mxu0 %v1154
        %v1156 = vpop.f32.mrb[0].mxu0
        %v1157 = vadd.f32 %v696, %v1156
        %v1158 = vpop.f32.mrb[0].mxu0
        %v1159 = vadd.f32 %v698, %v1158
        %1160 = vmatprep.mubr.f32.mxu0 0.0
        %v1161 = vand.u32 %v418, 4294901760
        %1162 = vmatmul.mubr.f32.gmra.mrb[0].mxu0 %v1161
        %v1163 = vpop.f32.mrb[0].mxu0
        %v1164 = vpop.f32.mrb[0].mxu0
        %v1165 = vadd.f32 %v708, %v1164
        %1166 = vmatprep.mubr.f32.mxu0 0.0
        %v1167 = vand.u32 %v419, 4294901760
        %1168 = vmatmul.mubr.f32.gmra.mrb[0].mxu0 %v1167
        %v1169 = vpop.f32.mrb[0].mxu0
        %v1170 = vadd.f32 %v717, %v1169
        %v1171 = vpop.f32.mrb[0].mxu0
        %v1172 = vadd.f32 %v719, %v1171
        %1173 = vmatprep.mubr.f32.mxu0 0.0
        %v1174 = vand.u32 %v420, 4294901760
        %1175 = vmatmul.mubr.f32.gmra.mrb[0].mxu0 %v1174
        %v1176 = vpop.f32.mrb[0].mxu0
        %v1177 = vadd.f32 %v728, %v1176
        %v1178 = vpop.f32.mrb[0].mxu0
        %v1179 = vadd.f32 %v730, %v1178
        %1180 = vmatprep.mubr.f32.mxu0 0.0
        %v1181 = vand.u32 %v421, 4294901760
        %1182 = vmatmul.mubr.f32.gmra.mrb[0].mxu0 %v1181
        %v1183 = vpop.f32.mrb[0].mxu0
        %v1184 = vpop.f32.mrb[0].mxu0
        %v1185 = vadd.f32 %v740, %v1184
        %1186 = vmatprep.mubr.f32.mxu0 0.0
        %v1187 = vand.u32 %v422, 4294901760
        %1188 = vmatmul.mubr.f32.gmra.mrb[0].mxu0 %v1187
        %v1189 = vpop.f32.mrb[0].mxu0
        %v1190 = vadd.f32 %v749, %v1189
        %v1191 = vpop.f32.mrb[0].mxu0
        %v1192 = vadd.f32 %v751, %v1191
        %1193 = vmatprep.mubr.f32.mxu0 0.0
        %v1194 = vand.u32 %v423, 4294901760
        %1195 = vmatmul.mubr.f32.gmra.mrb[0].mxu0 %v1194
        %v1196 = vpop.f32.mrb[0].mxu0
        %v1197 = vadd.f32 %v760, %v1196
        %v1198 = vpop.f32.mrb[0].mxu0
        %v1199 = vadd.f32 %v762, %v1198
        %1200 = vmatprep.mubr.f32.mxu0 0.0
        %v1201 = vand.u32 %v424, 4294901760
        %1202 = vmatmul.mubr.f32.gmra.mrb[0].mxu0 %v1201
        %v1203 = vpop.f32.mrb[0].mxu0
        %v1204 = vpop.f32.mrb[0].mxu0
        %v1205 = vadd.f32 %v772, %v1204
        %1206 = vmatprep.mubr.f32.mxu0 0.0
        %v1207 = vand.u32 %v425, 4294901760
        %1208 = vmatmul.mubr.f32.gmra.mrb[0].mxu0 %v1207
        %v1209 = vpop.f32.mrb[0].mxu0
        %v1210 = vadd.f32 %v781, %v1209
        %v1211 = vpop.f32.mrb[0].mxu0
        %v1212 = vadd.f32 %v783, %v1211
        %1213 = vmatprep.mubr.f32.mxu0 0.0
        %v1214 = vand.u32 %v426, 4294901760
        %1215 = vmatmul.mubr.f32.gmra.mrb[0].mxu0 %v1214
        %v1216 = vpop.f32.mrb[0].mxu0
        %v1217 = vadd.f32 %v792, %v1216
        %v1218 = vpop.f32.mrb[0].mxu0
        %v1219 = vadd.f32 %v794, %v1218
        %1220 = vmatprep.mubr.f32.mxu0 0.0
        %v1221 = vand.u32 %v427, 4294901760
        %1222 = vmatmul.mubr.f32.gmra.mrb[0].mxu0 %v1221
        %v1223 = vpop.f32.mrb[0].mxu0
        %v1224 = vpop.f32.mrb[0].mxu0
        %v1225 = vadd.f32 %v804, %v1224
        %1226 = vmatprep.mubr.f32.mxu0 0.0
        %v1227 = vand.u32 %v428, 4294901760
        %1228 = vmatmul.mubr.f32.gmra.mrb[0].mxu0 %v1227
        %v1229 = vpop.f32.mrb[0].mxu0
        %v1230 = vadd.f32 %v813, %v1229
        %v1231 = vpop.f32.mrb[0].mxu0
        %v1232 = vadd.f32 %v815, %v1231
        %1233 = vmatprep.mubr.f32.mxu0 0.0
        %v1234 = vand.u32 %v429, 4294901760
        %1235 = vmatmul.mubr.f32.gmra.mrb[0].mxu0 %v1234
        %v1236 = vpop.f32.mrb[0].mxu0
        %v1237 = vadd.f32 %v824, %v1236
        %v1238 = vpop.f32.mrb[0].mxu0
        %v1239 = vadd.f32 %v826, %v1238
        %1240 = vmatprep.mubr.f32.mxu0 0.0
        %v1241 = vand.u32 %v430, 4294901760
        %1242 = vmatmul.mubr.f32.gmra.mrb[0].mxu0 %v1241
        %v1243 = vpop.f32.mrb[0].mxu0
        %v1244 = vpop.f32.mrb[0].mxu0
        %v1245 = vadd.f32 %v836, %v1244
        %1246 = vmatprep.mubr.f32.mxu0 0.0
        %v1247 = vand.u32 %v431, 4294901760
        %1248 = vmatmul.mubr.f32.gmra.mrb[0].mxu0 %v1247
        %v1249 = vpop.f32.mrb[0].mxu0
        %v1250 = vadd.f32 %v845, %v1249
        %v1251 = vpop.f32.mrb[0].mxu0
        %v1252 = vadd.f32 %v847, %v1251
        %1253 = vmatprep.mubr.f32.mxu0 0.0
        %v1254 = vand.u32 %v432, 4294901760
        %1255 = vmatmul.mubr.f32.gmra.mrb[0].mxu0 %v1254
        %v1256 = vpop.f32.mrb[0].mxu0
        %v1257 = vadd.f32 %v856, %v1256
        %v1258 = vpop.f32.mrb[0].mxu0
        %v1259 = vadd.f32 %v858, %v1258
        %1260 = vmatprep.mubr.f32.mxu0 0.0
        %v1261 = vand.u32 %v433, 4294901760
        %1262 = vmatmul.mubr.f32.gmra.mrb[0].mxu0 %v1261
        %v1263 = vpop.f32.mrb[0].mxu0
        %v1264 = vpop.f32.mrb[0].mxu0
        %v1265 = vadd.f32 %v868, %v1264
        %1266 = vmatprep.mubr.f32.mxu0 0.0
        %v1267 = vand.u32 %v434, 4294901760
        %1268 = vmatmul.mubr.f32.gmra.mrb[0].mxu0 %v1267
        %v1269 = vpop.f32.mrb[0].mxu0
        %v1270 = vadd.f32 %v877, %v1269
        %v1271 = vpop.f32.mrb[0].mxu0
        %v1272 = vadd.f32 %v879, %v1271
        %1273 = vmatprep.mubr.f32.mxu0 0.0
        %v1274 = vand.u32 %v435, 4294901760
        %1275 = vmatmul.mubr.f32.gmra.mrb[0].mxu0 %v1274
        %v1276 = vpop.f32.mrb[0].mxu0
        %v1277 = vadd.f32 %v888, %v1276
        %v1278 = vpop.f32.mrb[0].mxu0
        %v1279 = vadd.f32 %v890, %v1278
        %1280 = vmatprep.mubr.f32.mxu0 0.0
        %v1281 = vand.u32 %v436, 4294901760
        %1282 = vmatmul.mubr.f32.gmra.mrb[0].mxu0 %v1281
        %v1283 = vpop.f32.mrb[0].mxu0
        %v1284 = vpop.f32.mrb[0].mxu0
        %v1285 = vadd.f32 %v900, %v1284
        %1286 = vdwg.mxu0
        %v1287 = vand.u32 %v438, 4294901760
        %v1288 = vsub.f32 %v438, %v1287
        %1289 = vmatprep.subr.mxu0 %v1288
        %v1290 = vand.u32 %v437, 4294901760
        %v1291 = vsub.f32 %v437, %v1290
        %1292 = vmatpush1.msra.mxu0 %v1291
        %v1293 = vand.u32 %v445, 4294901760
        %v1294 = vsub.f32 %v445, %v1293
        %1295 = vmatprep.subr.mxu0 %v1294
        %v1296 = vand.u32 %v444, 4294901760
        %v1297 = vsub.f32 %v444, %v1296
        %1298 = vmatpush1.msra.mxu0 %v1297
        %v1299 = vand.u32 %v452, 4294901760
        %v1300 = vsub.f32 %v452, %v1299
        %1301 = vmatprep.subr.mxu0 %v1300
        %v1302 = vand.u32 %v451, 4294901760
        %v1303 = vsub.f32 %v451, %v1302
        %1304 = vmatpush1.msra.mxu0 %v1303
        %v1305 = vand.u32 %v459, 4294901760
        %v1306 = vsub.f32 %v459, %v1305
        %1307 = vmatprep.subr.mxu0 %v1306
        %v1308 = vand.u32 %v458, 4294901760
        %v1309 = vsub.f32 %v458, %v1308
        %1310 = vmatpush1.msra.mxu0 %v1309
        %v1311 = vand.u32 %v466, 4294901760
        %v1312 = vsub.f32 %v466, %v1311
        %1313 = vmatprep.subr.mxu0 %v1312
        %v1314 = vand.u32 %v465, 4294901760
        %v1315 = vsub.f32 %v465, %v1314
        %1316 = vmatpush1.msra.mxu0 %v1315
        %v1317 = vand.u32 %v473, 4294901760
        %v1318 = vsub.f32 %v473, %v1317
        %1319 = vmatprep.subr.mxu0 %v1318
        %v1320 = vand.u32 %v472, 4294901760
        %v1321 = vsub.f32 %v472, %v1320
        %1322 = vmatpush1.msra.mxu0 %v1321
        %v1323 = vand.u32 %v480, 4294901760
        %v1324 = vsub.f32 %v480, %v1323
        %1325 = vmatprep.subr.mxu0 %v1324
        %v1326 = vand.u32 %v479, 4294901760
        %v1327 = vsub.f32 %v479, %v1326
        %1328 = vmatpush1.msra.mxu0 %v1327
        %v1329 = vand.u32 %v487, 4294901760
        %v1330 = vsub.f32 %v487, %v1329
        %1331 = vmatprep.subr.mxu0 %v1330
        %v1332 = vand.u32 %v486, 4294901760
        %v1333 = vsub.f32 %v486, %v1332
        %1334 = vmatpush1.msra.mxu0 %v1333
        %v1335 = vand.u32 %v494, 4294901760
        %v1336 = vsub.f32 %v494, %v1335
        %1337 = vmatprep.subr.mxu0 %v1336
        %v1338 = vand.u32 %v493, 4294901760
        %v1339 = vsub.f32 %v493, %v1338
        %1340 = vmatpush1.msra.mxu0 %v1339
        %v1341 = vand.u32 %v501, 4294901760
        %v1342 = vsub.f32 %v501, %v1341
        %1343 = vmatprep.subr.mxu0 %v1342
        %v1344 = vand.u32 %v500, 4294901760
        %v1345 = vsub.f32 %v500, %v1344
        %1346 = vmatpush1.msra.mxu0 %v1345
        %v1347 = vand.u32 %v508, 4294901760
        %v1348 = vsub.f32 %v508, %v1347
        %1349 = vmatprep.subr.mxu0 %v1348
        %v1350 = vand.u32 %v507, 4294901760
        %v1351 = vsub.f32 %v507, %v1350
        %1352 = vmatpush1.msra.mxu0 %v1351
        %v1353 = vand.u32 %v515, 4294901760
        %v1354 = vsub.f32 %v515, %v1353
        %1355 = vmatprep.subr.mxu0 %v1354
        %v1356 = vand.u32 %v514, 4294901760
        %v1357 = vsub.f32 %v514, %v1356
        %1358 = vmatpush1.msra.mxu0 %v1357
        %v1359 = vand.u32 %v522, 4294901760
        %v1360 = vsub.f32 %v522, %v1359
        %1361 = vmatprep.subr.mxu0 %v1360
        %v1362 = vand.u32 %v521, 4294901760
        %v1363 = vsub.f32 %v521, %v1362
        %1364 = vmatpush1.msra.mxu0 %v1363
        %v1365 = vand.u32 %v529, 4294901760
        %v1366 = vsub.f32 %v529, %v1365
        %1367 = vmatprep.subr.mxu0 %v1366
        %v1368 = vand.u32 %v528, 4294901760
        %v1369 = vsub.f32 %v528, %v1368
        %1370 = vmatpush1.msra.mxu0 %v1369
        %v1371 = vand.u32 %v536, 4294901760
        %v1372 = vsub.f32 %v536, %v1371
        %1373 = vmatprep.subr.mxu0 %v1372
        %v1374 = vand.u32 %v535, 4294901760
        %v1375 = vsub.f32 %v535, %v1374
        %1376 = vmatpush1.msra.mxu0 %v1375
        %v1377 = vand.u32 %v543, 4294901760
        %v1378 = vsub.f32 %v543, %v1377
        %1379 = vmatprep.subr.mxu0 %v1378
        %v1380 = vand.u32 %v542, 4294901760
        %v1381 = vsub.f32 %v542, %v1380
        %1382 = vmatpush1.msra.mxu0 %v1381
        %1383 = vmatprep.subr.mxu0 0.0
        %1384 = vmatpush1.msra.mxu0 0.0
        %1385 = vmatprep.subr.mxu0 0.0
        %1386 = vmatpush1.msra.mxu0 0.0
        %1387 = vmatprep.subr.mxu0 0.0
        %1388 = vmatpush1.msra.mxu0 0.0
        %1389 = vmatprep.subr.mxu0 0.0
        %1390 = vmatpush1.msra.mxu0 0.0
        %1391 = vmatprep.subr.mxu0 0.0
        %1392 = vmatpush1.msra.mxu0 0.0
        %1393 = vmatprep.subr.mxu0 0.0
        %1394 = vmatpush1.msra.mxu0 0.0
        %1395 = vmatprep.subr.mxu0 0.0
        %1396 = vmatpush1.msra.mxu0 0.0
        %1397 = vmatprep.subr.mxu0 0.0
        %1398 = vmatpush1.msra.mxu0 0.0
        %1399 = vmatprep.subr.mxu0 0.0
        %1400 = vmatpush1.msra.mxu0 0.0
        %1401 = vmatprep.subr.mxu0 0.0
        %1402 = vmatpush1.msra.mxu0 0.0
        %1403 = vmatprep.subr.mxu0 0.0
        %1404 = vmatpush1.msra.mxu0 0.0
        %1405 = vmatprep.subr.mxu0 0.0
        %1406 = vmatpush1.msra.mxu0 0.0
        %1407 = vmatprep.subr.mxu0 0.0
        %1408 = vmatpush1.msra.mxu0 0.0
        %1409 = vmatprep.subr.mxu0 0.0
        %1410 = vmatpush1.msra.mxu0 0.0
        %1411 = vmatprep.subr.mxu0 0.0
        %1412 = vmatpush1.msra.mxu0 0.0
        %1413 = vmatprep.subr.mxu0 0.0
        %1414 = vmatpush1.msra.mxu0 0.0
        %1415 = vmatprep.mubr.f32.mxu0 0.0
        %v1416 = vand.u32 %v413, 4294901760
        %v1417 = vsub.f32 %v413, %v1416
        %1418 = vmatmul.mubr.f32.gmra.mrb[0].mxu0 %v1417
        %v1419 = vpop.f32.mrb[0].mxu0
        %v1420 = vadd.f32 %v1130, %v1419
        %v1421 = vpop.f32.mrb[0].mxu0
        %v1422 = vadd.f32 %v1132, %v1421
        %1423 = vmatprep.mubr.f32.mxu0 0.0
        %v1424 = vand.u32 %v414, 4294901760
        %v1425 = vsub.f32 %v414, %v1424
        %1426 = vmatmul.mubr.f32.gmra.mrb[0].mxu0 %v1425
        %v1427 = vpop.f32.mrb[0].mxu0
        %v1428 = vadd.f32 %v1137, %v1427
        %v1429 = vpop.f32.mrb[0].mxu0
        %v1430 = vadd.f32 %v1139, %v1429
        %1431 = vmatprep.mubr.f32.mxu0 0.0
        %v1432 = vand.u32 %v415, 4294901760
        %v1433 = vsub.f32 %v415, %v1432
        %1434 = vmatmul.mubr.f32.gmra.mrb[0].mxu0 %v1433
        %v1435 = vpop.f32.mrb[0].mxu0
        %v1436 = vpop.f32.mrb[0].mxu0
        %v1437 = vadd.f32 %v1145, %v1436
        %1438 = vmatprep.mubr.f32.mxu0 0.0
        %v1439 = vand.u32 %v416, 4294901760
        %v1440 = vsub.f32 %v416, %v1439
        %1441 = vmatmul.mubr.f32.gmra.mrb[0].mxu0 %v1440
        %v1442 = vpop.f32.mrb[0].mxu0
        %v1443 = vadd.f32 %v1150, %v1442
        %v1444 = vpop.f32.mrb[0].mxu0
        %v1445 = vadd.f32 %v1152, %v1444
        %1446 = vmatprep.mubr.f32.mxu0 0.0
        %v1447 = vand.u32 %v417, 4294901760
        %v1448 = vsub.f32 %v417, %v1447
        %1449 = vmatmul.mubr.f32.gmra.mrb[0].mxu0 %v1448
        %v1450 = vpop.f32.mrb[0].mxu0
        %v1451 = vadd.f32 %v1157, %v1450
        %v1452 = vpop.f32.mrb[0].mxu0
        %v1453 = vadd.f32 %v1159, %v1452
        %1454 = vmatprep.mubr.f32.mxu0 0.0
        %v1455 = vand.u32 %v418, 4294901760
        %v1456 = vsub.f32 %v418, %v1455
        %1457 = vmatmul.mubr.f32.gmra.mrb[0].mxu0 %v1456
        %v1458 = vpop.f32.mrb[0].mxu0
        %v1459 = vpop.f32.mrb[0].mxu0
        %v1460 = vadd.f32 %v1165, %v1459
        %1461 = vmatprep.mubr.f32.mxu0 0.0
        %v1462 = vand.u32 %v419, 4294901760
        %v1463 = vsub.f32 %v419, %v1462
        %1464 = vmatmul.mubr.f32.gmra.mrb[0].mxu0 %v1463
        %v1465 = vpop.f32.mrb[0].mxu0
        %v1466 = vadd.f32 %v1170, %v1465
        %v1467 = vpop.f32.mrb[0].mxu0
        %v1468 = vadd.f32 %v1172, %v1467
        %1469 = vmatprep.mubr.f32.mxu0 0.0
        %v1470 = vand.u32 %v420, 4294901760
        %v1471 = vsub.f32 %v420, %v1470
        %1472 = vmatmul.mubr.f32.gmra.mrb[0].mxu0 %v1471
        %v1473 = vpop.f32.mrb[0].mxu0
        %v1474 = vadd.f32 %v1177, %v1473
        %v1475 = vpop.f32.mrb[0].mxu0
        %v1476 = vadd.f32 %v1179, %v1475
        %1477 = vmatprep.mubr.f32.mxu0 0.0
        %v1478 = vand.u32 %v421, 4294901760
        %v1479 = vsub.f32 %v421, %v1478
        %1480 = vmatmul.mubr.f32.gmra.mrb[0].mxu0 %v1479
        %v1481 = vpop.f32.mrb[0].mxu0
        %v1482 = vpop.f32.mrb[0].mxu0
        %v1483 = vadd.f32 %v1185, %v1482
        %1484 = vmatprep.mubr.f32.mxu0 0.0
        %v1485 = vand.u32 %v422, 4294901760
        %v1486 = vsub.f32 %v422, %v1485
        %1487 = vmatmul.mubr.f32.gmra.mrb[0].mxu0 %v1486
        %v1488 = vpop.f32.mrb[0].mxu0
        %v1489 = vadd.f32 %v1190, %v1488
        %v1490 = vpop.f32.mrb[0].mxu0
        %v1491 = vadd.f32 %v1192, %v1490
        %1492 = vmatprep.mubr.f32.mxu0 0.0
        %v1493 = vand.u32 %v423, 4294901760
        %v1494 = vsub.f32 %v423, %v1493
        %1495 = vmatmul.mubr.f32.gmra.mrb[0].mxu0 %v1494
        %v1496 = vpop.f32.mrb[0].mxu0
        %v1497 = vadd.f32 %v1197, %v1496
        %v1498 = vpop.f32.mrb[0].mxu0
        %v1499 = vadd.f32 %v1199, %v1498
        %1500 = vmatprep.mubr.f32.mxu0 0.0
        %v1501 = vand.u32 %v424, 4294901760
        %v1502 = vsub.f32 %v424, %v1501
        %1503 = vmatmul.mubr.f32.gmra.mrb[0].mxu0 %v1502
        %v1504 = vpop.f32.mrb[0].mxu0
        %v1505 = vpop.f32.mrb[0].mxu0
        %v1506 = vadd.f32 %v1205, %v1505
        %1507 = vmatprep.mubr.f32.mxu0 0.0
        %v1508 = vand.u32 %v425, 4294901760
        %v1509 = vsub.f32 %v425, %v1508
        %1510 = vmatmul.mubr.f32.gmra.mrb[0].mxu0 %v1509
        %v1511 = vpop.f32.mrb[0].mxu0
        %v1512 = vadd.f32 %v1210, %v1511
        %v1513 = vpop.f32.mrb[0].mxu0
        %v1514 = vadd.f32 %v1212, %v1513
        %1515 = vmatprep.mubr.f32.mxu0 0.0
        %v1516 = vand.u32 %v426, 4294901760
        %v1517 = vsub.f32 %v426, %v1516
        %1518 = vmatmul.mubr.f32.gmra.mrb[0].mxu0 %v1517
        %v1519 = vpop.f32.mrb[0].mxu0
        %v1520 = vadd.f32 %v1217, %v1519
        %v1521 = vpop.f32.mrb[0].mxu0
        %v1522 = vadd.f32 %v1219, %v1521
        %1523 = vmatprep.mubr.f32.mxu0 0.0
        %v1524 = vand.u32 %v427, 4294901760
        %v1525 = vsub.f32 %v427, %v1524
        %1526 = vmatmul.mubr.f32.gmra.mrb[0].mxu0 %v1525
        %v1527 = vpop.f32.mrb[0].mxu0
        %v1528 = vpop.f32.mrb[0].mxu0
        %v1529 = vadd.f32 %v1225, %v1528
        %1530 = vmatprep.mubr.f32.mxu0 0.0
        %v1531 = vand.u32 %v428, 4294901760
        %v1532 = vsub.f32 %v428, %v1531
        %1533 = vmatmul.mubr.f32.gmra.mrb[0].mxu0 %v1532
        %v1534 = vpop.f32.mrb[0].mxu0
        %v1535 = vadd.f32 %v1230, %v1534
        %v1536 = vpop.f32.mrb[0].mxu0
        %v1537 = vadd.f32 %v1232, %v1536
        %1538 = vmatprep.mubr.f32.mxu0 0.0
        %v1539 = vand.u32 %v429, 4294901760
        %v1540 = vsub.f32 %v429, %v1539
        %1541 = vmatmul.mubr.f32.gmra.mrb[0].mxu0 %v1540
        %v1542 = vpop.f32.mrb[0].mxu0
        %v1543 = vadd.f32 %v1237, %v1542
        %v1544 = vpop.f32.mrb[0].mxu0
        %v1545 = vadd.f32 %v1239, %v1544
        %1546 = vmatprep.mubr.f32.mxu0 0.0
        %v1547 = vand.u32 %v430, 4294901760
        %v1548 = vsub.f32 %v430, %v1547
        %1549 = vmatmul.mubr.f32.gmra.mrb[0].mxu0 %v1548
        %v1550 = vpop.f32.mrb[0].mxu0
        %v1551 = vpop.f32.mrb[0].mxu0
        %v1552 = vadd.f32 %v1245, %v1551
        %1553 = vmatprep.mubr.f32.mxu0 0.0
        %v1554 = vand.u32 %v431, 4294901760
        %v1555 = vsub.f32 %v431, %v1554
        %1556 = vmatmul.mubr.f32.gmra.mrb[0].mxu0 %v1555
        %v1557 = vpop.f32.mrb[0].mxu0
        %v1558 = vadd.f32 %v1250, %v1557
        %v1559 = vpop.f32.mrb[0].mxu0
        %v1560 = vadd.f32 %v1252, %v1559
        %1561 = vmatprep.mubr.f32.mxu0 0.0
        %v1562 = vand.u32 %v432, 4294901760
        %v1563 = vsub.f32 %v432, %v1562
        %1564 = vmatmul.mubr.f32.gmra.mrb[0].mxu0 %v1563
        %v1565 = vpop.f32.mrb[0].mxu0
        %v1566 = vadd.f32 %v1257, %v1565
        %v1567 = vpop.f32.mrb[0].mxu0
        %v1568 = vadd.f32 %v1259, %v1567
        %1569 = vmatprep.mubr.f32.mxu0 0.0
        %v1570 = vand.u32 %v433, 4294901760
        %v1571 = vsub.f32 %v433, %v1570
        %1572 = vmatmul.mubr.f32.gmra.mrb[0].mxu0 %v1571
        %v1573 = vpop.f32.mrb[0].mxu0
        %v1574 = vpop.f32.mrb[0].mxu0
        %v1575 = vadd.f32 %v1265, %v1574
        %1576 = vmatprep.mubr.f32.mxu0 0.0
        %v1577 = vand.u32 %v434, 4294901760
        %v1578 = vsub.f32 %v434, %v1577
        %1579 = vmatmul.mubr.f32.gmra.mrb[0].mxu0 %v1578
        %v1580 = vpop.f32.mrb[0].mxu0
        %v1581 = vadd.f32 %v1270, %v1580
        %v1582 = vpop.f32.mrb[0].mxu0
        %v1583 = vadd.f32 %v1272, %v1582
        %1584 = vmatprep.mubr.f32.mxu0 0.0
        %v1585 = vand.u32 %v435, 4294901760
        %v1586 = vsub.f32 %v435, %v1585
        %1587 = vmatmul.mubr.f32.gmra.mrb[0].mxu0 %v1586
        %v1588 = vpop.f32.mrb[0].mxu0
        %v1589 = vadd.f32 %v1277, %v1588
        %v1590 = vpop.f32.mrb[0].mxu0
        %v1591 = vadd.f32 %v1279, %v1590
        %1592 = vmatprep.mubr.f32.mxu0 0.0
        %v1593 = vand.u32 %v436, 4294901760
        %v1594 = vsub.f32 %v436, %v1593
        %1595 = vmatmul.mubr.f32.gmra.mrb[0].mxu0 %v1594
        %v1596 = vpop.f32.mrb[0].mxu0
        %v1597 = vpop.f32.mrb[0].mxu0
        %v1598 = vadd.f32 %v1285, %v1597
        %1599 = vdwg.mxu0
        %v1600 = vand.u32 %v438, 4294901760
        %1601 = vmatprep.subr.mxu0 %v1600
        %v1602 = vand.u32 %v437, 4294901760
        %1603 = vmatpush1.msra.mxu0 %v1602
        %v1604 = vand.u32 %v445, 4294901760
        %1605 = vmatprep.subr.mxu0 %v1604
        %v1606 = vand.u32 %v444, 4294901760
        %1607 = vmatpush1.msra.mxu0 %v1606
        %v1608 = vand.u32 %v452, 4294901760
        %1609 = vmatprep.subr.mxu0 %v1608
        %v1610 = vand.u32 %v451, 4294901760
        %1611 = vmatpush1.msra.mxu0 %v1610
        %v1612 = vand.u32 %v459, 4294901760
        %1613 = vmatprep.subr.mxu0 %v1612
        %v1614 = vand.u32 %v458, 4294901760
        %1615 = vmatpush1.msra.mxu0 %v1614
        %v1616 = vand.u32 %v466, 4294901760
        %1617 = vmatprep.subr.mxu0 %v1616
        %v1618 = vand.u32 %v465, 4294901760
        %1619 = vmatpush1.msra.mxu0 %v1618
        %v1620 = vand.u32 %v473, 4294901760
        %1621 = vmatprep.subr.mxu0 %v1620
        %v1622 = vand.u32 %v472, 4294901760
        %1623 = vmatpush1.msra.mxu0 %v1622
        %v1624 = vand.u32 %v480, 4294901760
        %1625 = vmatprep.subr.mxu0 %v1624
        %v1626 = vand.u32 %v479, 4294901760
        %1627 = vmatpush1.msra.mxu0 %v1626
        %v1628 = vand.u32 %v487, 4294901760
        %1629 = vmatprep.subr.mxu0 %v1628
        %v1630 = vand.u32 %v486, 4294901760
        %1631 = vmatpush1.msra.mxu0 %v1630
        %v1632 = vand.u32 %v494, 4294901760
        %1633 = vmatprep.subr.mxu0 %v1632
        %v1634 = vand.u32 %v493, 4294901760
        %1635 = vmatpush1.msra.mxu0 %v1634
        %v1636 = vand.u32 %v501, 4294901760
        %1637 = vmatprep.subr.mxu0 %v1636
        %v1638 = vand.u32 %v500, 4294901760
        %1639 = vmatpush1.msra.mxu0 %v1638
        %v1640 = vand.u32 %v508, 4294901760
        %1641 = vmatprep.subr.mxu0 %v1640
        %v1642 = vand.u32 %v507, 4294901760
        %1643 = vmatpush1.msra.mxu0 %v1642
        %v1644 = vand.u32 %v515, 4294901760
        %1645 = vmatprep.subr.mxu0 %v1644
        %v1646 = vand.u32 %v514, 4294901760
        %1647 = vmatpush1.msra.mxu0 %v1646
        %v1648 = vand.u32 %v522, 4294901760
        %1649 = vmatprep.subr.mxu0 %v1648
        %v1650 = vand.u32 %v521, 4294901760
        %1651 = vmatpush1.msra.mxu0 %v1650
        %v1652 = vand.u32 %v529, 4294901760
        %1653 = vmatprep.subr.mxu0 %v1652
        %v1654 = vand.u32 %v528, 4294901760
        %1655 = vmatpush1.msra.mxu0 %v1654
        %v1656 = vand.u32 %v536, 4294901760
        %1657 = vmatprep.subr.mxu0 %v1656
        %v1658 = vand.u32 %v535, 4294901760
        %1659 = vmatpush1.msra.mxu0 %v1658
        %v1660 = vand.u32 %v543, 4294901760
        %1661 = vmatprep.subr.mxu0 %v1660
        %v1662 = vand.u32 %v542, 4294901760
        %1663 = vmatpush1.msra.mxu0 %v1662
        %1664 = vmatprep.subr.mxu0 0.0
        %1665 = vmatpush1.msra.mxu0 0.0
        %1666 = vmatprep.subr.mxu0 0.0
        %1667 = vmatpush1.msra.mxu0 0.0
        %1668 = vmatprep.subr.mxu0 0.0
        %1669 = vmatpush1.msra.mxu0 0.0
        %1670 = vmatprep.subr.mxu0 0.0
        %1671 = vmatpush1.msra.mxu0 0.0
        %1672 = vmatprep.subr.mxu0 0.0
        %1673 = vmatpush1.msra.mxu0 0.0
        %1674 = vmatprep.subr.mxu0 0.0
        %1675 = vmatpush1.msra.mxu0 0.0
        %1676 = vmatprep.subr.mxu0 0.0
        %1677 = vmatpush1.msra.mxu0 0.0
        %1678 = vmatprep.subr.mxu0 0.0
        %1679 = vmatpush1.msra.mxu0 0.0
        %1680 = vmatprep.subr.mxu0 0.0
        %1681 = vmatpush1.msra.mxu0 0.0
        %1682 = vmatprep.subr.mxu0 0.0
        %1683 = vmatpush1.msra.mxu0 0.0
        %1684 = vmatprep.subr.mxu0 0.0
        %1685 = vmatpush1.msra.mxu0 0.0
        %1686 = vmatprep.subr.mxu0 0.0
        %1687 = vmatpush1.msra.mxu0 0.0
        %1688 = vmatprep.subr.mxu0 0.0
        %1689 = vmatpush1.msra.mxu0 0.0
        %1690 = vmatprep.subr.mxu0 0.0
        %1691 = vmatpush1.msra.mxu0 0.0
        %1692 = vmatprep.subr.mxu0 0.0
        %1693 = vmatpush1.msra.mxu0 0.0
        %1694 = vmatprep.subr.mxu0 0.0
        %1695 = vmatpush1.msra.mxu0 0.0
        %1696 = vmatprep.mubr.f32.mxu0 0.0
        %v1697 = vand.u32 %v413, 4294901760
        %v1698 = vsub.f32 %v413, %v1697
        %v1699 = vand.u32 %v1698, 4294901760
        %1700 = vmatmul.mubr.f32.gmra.mrb[0].mxu0 %v1699
        %v1701 = vpop.f32.mrb[0].mxu0
        %v1702 = vadd.f32 %v1420, %v1701
        %v1703 = vpop.f32.mrb[0].mxu0
        %v1704 = vadd.f32 %v1422, %v1703
        %1705 = vmatprep.mubr.f32.mxu0 0.0
        %v1706 = vand.u32 %v414, 4294901760
        %v1707 = vsub.f32 %v414, %v1706
        %v1708 = vand.u32 %v1707, 4294901760
        %1709 = vmatmul.mubr.f32.gmra.mrb[0].mxu0 %v1708
        %v1710 = vpop.f32.mrb[0].mxu0
        %v1711 = vadd.f32 %v1428, %v1710
        %v1712 = vpop.f32.mrb[0].mxu0
        %v1713 = vadd.f32 %v1430, %v1712
        %1714 = vmatprep.mubr.f32.mxu0 0.0
        %v1715 = vand.u32 %v415, 4294901760
        %v1716 = vsub.f32 %v415, %v1715
        %v1717 = vand.u32 %v1716, 4294901760
        %1718 = vmatmul.mubr.f32.gmra.mrb[0].mxu0 %v1717
        %v1719 = vpop.f32.mrb[0].mxu0
        %v1720 = vpop.f32.mrb[0].mxu0
        %v1721 = vadd.f32 %v1437, %v1720
        %1722 = vmatprep.mubr.f32.mxu0 0.0
        %v1723 = vand.u32 %v416, 4294901760
        %v1724 = vsub.f32 %v416, %v1723
        %v1725 = vand.u32 %v1724, 4294901760
        %1726 = vmatmul.mubr.f32.gmra.mrb[0].mxu0 %v1725
        %v1727 = vpop.f32.mrb[0].mxu0
        %v1728 = vadd.f32 %v1443, %v1727
        %v1729 = vpop.f32.mrb[0].mxu0
        %v1730 = vadd.f32 %v1445, %v1729
        %1731 = vmatprep.mubr.f32.mxu0 0.0
        %v1732 = vand.u32 %v417, 4294901760
        %v1733 = vsub.f32 %v417, %v1732
        %v1734 = vand.u32 %v1733, 4294901760
        %1735 = vmatmul.mubr.f32.gmra.mrb[0].mxu0 %v1734
        %v1736 = vpop.f32.mrb[0].mxu0
        %v1737 = vadd.f32 %v1451, %v1736
        %v1738 = vpop.f32.mrb[0].mxu0
        %v1739 = vadd.f32 %v1453, %v1738
        %1740 = vmatprep.mubr.f32.mxu0 0.0
        %v1741 = vand.u32 %v418, 4294901760
        %v1742 = vsub.f32 %v418, %v1741
        %v1743 = vand.u32 %v1742, 4294901760
        %1744 = vmatmul.mubr.f32.gmra.mrb[0].mxu0 %v1743
        %v1745 = vpop.f32.mrb[0].mxu0
        %v1746 = vpop.f32.mrb[0].mxu0
        %v1747 = vadd.f32 %v1460, %v1746
        %1748 = vmatprep.mubr.f32.mxu0 0.0
        %v1749 = vand.u32 %v419, 4294901760
        %v1750 = vsub.f32 %v419, %v1749
        %v1751 = vand.u32 %v1750, 4294901760
        %1752 = vmatmul.mubr.f32.gmra.mrb[0].mxu0 %v1751
        %v1753 = vpop.f32.mrb[0].mxu0
        %v1754 = vadd.f32 %v1466, %v1753
        %v1755 = vpop.f32.mrb[0].mxu0
        %v1756 = vadd.f32 %v1468, %v1755
        %1757 = vmatprep.mubr.f32.mxu0 0.0
        %v1758 = vand.u32 %v420, 4294901760
        %v1759 = vsub.f32 %v420, %v1758
        %v1760 = vand.u32 %v1759, 4294901760
        %1761 = vmatmul.mubr.f32.gmra.mrb[0].mxu0 %v1760
        %v1762 = vpop.f32.mrb[0].mxu0
        %v1763 = vadd.f32 %v1474, %v1762
        %v1764 = vpop.f32.mrb[0].mxu0
        %v1765 = vadd.f32 %v1476, %v1764
        %1766 = vmatprep.mubr.f32.mxu0 0.0
        %v1767 = vand.u32 %v421, 4294901760
        %v1768 = vsub.f32 %v421, %v1767
        %v1769 = vand.u32 %v1768, 4294901760
        %1770 = vmatmul.mubr.f32.gmra.mrb[0].mxu0 %v1769
        %v1771 = vpop.f32.mrb[0].mxu0
        %v1772 = vpop.f32.mrb[0].mxu0
        %v1773 = vadd.f32 %v1483, %v1772
        %1774 = vmatprep.mubr.f32.mxu0 0.0
        %v1775 = vand.u32 %v422, 4294901760
        %v1776 = vsub.f32 %v422, %v1775
        %v1777 = vand.u32 %v1776, 4294901760
        %1778 = vmatmul.mubr.f32.gmra.mrb[0].mxu0 %v1777
        %v1779 = vpop.f32.mrb[0].mxu0
        %v1780 = vadd.f32 %v1489, %v1779
        %v1781 = vpop.f32.mrb[0].mxu0
        %v1782 = vadd.f32 %v1491, %v1781
        %1783 = vmatprep.mubr.f32.mxu0 0.0
        %v1784 = vand.u32 %v423, 4294901760
        %v1785 = vsub.f32 %v423, %v1784
        %v1786 = vand.u32 %v1785, 4294901760
        %1787 = vmatmul.mubr.f32.gmra.mrb[0].mxu0 %v1786
        %v1788 = vpop.f32.mrb[0].mxu0
        %v1789 = vadd.f32 %v1497, %v1788
        %v1790 = vpop.f32.mrb[0].mxu0
        %v1791 = vadd.f32 %v1499, %v1790
        %1792 = vmatprep.mubr.f32.mxu0 0.0
        %v1793 = vand.u32 %v424, 4294901760
        %v1794 = vsub.f32 %v424, %v1793
        %v1795 = vand.u32 %v1794, 4294901760
        %1796 = vmatmul.mubr.f32.gmra.mrb[0].mxu0 %v1795
        %v1797 = vpop.f32.mrb[0].mxu0
        %v1798 = vpop.f32.mrb[0].mxu0
        %v1799 = vadd.f32 %v1506, %v1798
        %1800 = vmatprep.mubr.f32.mxu0 0.0
        %v1801 = vand.u32 %v425, 4294901760
        %v1802 = vsub.f32 %v425, %v1801
        %v1803 = vand.u32 %v1802, 4294901760
        %1804 = vmatmul.mubr.f32.gmra.mrb[0].mxu0 %v1803
        %v1805 = vpop.f32.mrb[0].mxu0
        %v1806 = vadd.f32 %v1512, %v1805
        %v1807 = vpop.f32.mrb[0].mxu0
        %v1808 = vadd.f32 %v1514, %v1807
        %1809 = vmatprep.mubr.f32.mxu0 0.0
        %v1810 = vand.u32 %v426, 4294901760
        %v1811 = vsub.f32 %v426, %v1810
        %v1812 = vand.u32 %v1811, 4294901760
        %1813 = vmatmul.mubr.f32.gmra.mrb[0].mxu0 %v1812
        %v1814 = vpop.f32.mrb[0].mxu0
        %v1815 = vadd.f32 %v1520, %v1814
        %v1816 = vpop.f32.mrb[0].mxu0
        %v1817 = vadd.f32 %v1522, %v1816
        %1818 = vmatprep.mubr.f32.mxu0 0.0
        %v1819 = vand.u32 %v427, 4294901760
        %v1820 = vsub.f32 %v427, %v1819
        %v1821 = vand.u32 %v1820, 4294901760
        %1822 = vmatmul.mubr.f32.gmra.mrb[0].mxu0 %v1821
        %v1823 = vpop.f32.mrb[0].mxu0
        %v1824 = vpop.f32.mrb[0].mxu0
        %v1825 = vadd.f32 %v1529, %v1824
        %1826 = vmatprep.mubr.f32.mxu0 0.0
        %v1827 = vand.u32 %v428, 4294901760
        %v1828 = vsub.f32 %v428, %v1827
        %v1829 = vand.u32 %v1828, 4294901760
        %1830 = vmatmul.mubr.f32.gmra.mrb[0].mxu0 %v1829
        %v1831 = vpop.f32.mrb[0].mxu0
        %v1832 = vadd.f32 %v1535, %v1831
        %v1833 = vpop.f32.mrb[0].mxu0
        %v1834 = vadd.f32 %v1537, %v1833
        %1835 = vmatprep.mubr.f32.mxu0 0.0
        %v1836 = vand.u32 %v429, 4294901760
        %v1837 = vsub.f32 %v429, %v1836
        %v1838 = vand.u32 %v1837, 4294901760
        %1839 = vmatmul.mubr.f32.gmra.mrb[0].mxu0 %v1838
        %v1840 = vpop.f32.mrb[0].mxu0
        %v1841 = vadd.f32 %v1543, %v1840
        %v1842 = vpop.f32.mrb[0].mxu0
        %v1843 = vadd.f32 %v1545, %v1842
        %1844 = vmatprep.mubr.f32.mxu0 0.0
        %v1845 = vand.u32 %v430, 4294901760
        %v1846 = vsub.f32 %v430, %v1845
        %v1847 = vand.u32 %v1846, 4294901760
        %1848 = vmatmul.mubr.f32.gmra.mrb[0].mxu0 %v1847
        %v1849 = vpop.f32.mrb[0].mxu0
        %v1850 = vpop.f32.mrb[0].mxu0
        %v1851 = vadd.f32 %v1552, %v1850
        %1852 = vmatprep.mubr.f32.mxu0 0.0
        %v1853 = vand.u32 %v431, 4294901760
        %v1854 = vsub.f32 %v431, %v1853
        %v1855 = vand.u32 %v1854, 4294901760
        %1856 = vmatmul.mubr.f32.gmra.mrb[0].mxu0 %v1855
        %v1857 = vpop.f32.mrb[0].mxu0
        %v1858 = vadd.f32 %v1558, %v1857
        %v1859 = vpop.f32.mrb[0].mxu0
        %v1860 = vadd.f32 %v1560, %v1859
        %1861 = vmatprep.mubr.f32.mxu0 0.0
        %v1862 = vand.u32 %v432, 4294901760
        %v1863 = vsub.f32 %v432, %v1862
        %v1864 = vand.u32 %v1863, 4294901760
        %1865 = vmatmul.mubr.f32.gmra.mrb[0].mxu0 %v1864
        %v1866 = vpop.f32.mrb[0].mxu0
        %v1867 = vadd.f32 %v1566, %v1866
        %v1868 = vpop.f32.mrb[0].mxu0
        %v1869 = vadd.f32 %v1568, %v1868
        %1870 = vmatprep.mubr.f32.mxu0 0.0
        %v1871 = vand.u32 %v433, 4294901760
        %v1872 = vsub.f32 %v433, %v1871
        %v1873 = vand.u32 %v1872, 4294901760
        %1874 = vmatmul.mubr.f32.gmra.mrb[0].mxu0 %v1873
        %v1875 = vpop.f32.mrb[0].mxu0
        %v1876 = vpop.f32.mrb[0].mxu0
        %v1877 = vadd.f32 %v1575, %v1876
        %1878 = vmatprep.mubr.f32.mxu0 0.0
        %v1879 = vand.u32 %v434, 4294901760
        %v1880 = vsub.f32 %v434, %v1879
        %v1881 = vand.u32 %v1880, 4294901760
        %1882 = vmatmul.mubr.f32.gmra.mrb[0].mxu0 %v1881
        %v1883 = vpop.f32.mrb[0].mxu0
        %v1884 = vadd.f32 %v1581, %v1883
        %v1885 = vpop.f32.mrb[0].mxu0
        %v1886 = vadd.f32 %v1583, %v1885
        %1887 = vmatprep.mubr.f32.mxu0 0.0
        %v1888 = vand.u32 %v435, 4294901760
        %v1889 = vsub.f32 %v435, %v1888
        %v1890 = vand.u32 %v1889, 4294901760
        %1891 = vmatmul.mubr.f32.gmra.mrb[0].mxu0 %v1890
        %v1892 = vpop.f32.mrb[0].mxu0
        %v1893 = vadd.f32 %v1589, %v1892
        %v1894 = vpop.f32.mrb[0].mxu0
        %v1895 = vadd.f32 %v1591, %v1894
        %1896 = vmatprep.mubr.f32.mxu0 0.0
        %v1897 = vand.u32 %v436, 4294901760
        %v1898 = vsub.f32 %v436, %v1897
        %v1899 = vand.u32 %v1898, 4294901760
        %1900 = vmatmul.mubr.f32.gmra.mrb[0].mxu0 %v1899
        %v1901 = vpop.f32.mrb[0].mxu0
        %v1902 = vpop.f32.mrb[0].mxu0
        %v1903 = vadd.f32 %v1598, %v1902
        %1904 = vdwg.mxu0
        %v1905 = vand.u32 %v438, 4294901760
        %v1906 = vsub.f32 %v438, %v1905
        %v1907 = vand.u32 %v1906, 4294901760
        %1908 = vmatprep.subr.mxu0 %v1907
        %v1909 = vand.u32 %v437, 4294901760
        %v1910 = vsub.f32 %v437, %v1909
        %v1911 = vand.u32 %v1910, 4294901760
        %1912 = vmatpush1.msra.mxu0 %v1911
        %v1913 = vand.u32 %v445, 4294901760
        %v1914 = vsub.f32 %v445, %v1913
        %v1915 = vand.u32 %v1914, 4294901760
        %1916 = vmatprep.subr.mxu0 %v1915
        %v1917 = vand.u32 %v444, 4294901760
        %v1918 = vsub.f32 %v444, %v1917
        %v1919 = vand.u32 %v1918, 4294901760
        %1920 = vmatpush1.msra.mxu0 %v1919
        %v1921 = vand.u32 %v452, 4294901760
        %v1922 = vsub.f32 %v452, %v1921
        %v1923 = vand.u32 %v1922, 4294901760
        %1924 = vmatprep.subr.mxu0 %v1923
        %v1925 = vand.u32 %v451, 4294901760
        %v1926 = vsub.f32 %v451, %v1925
        %v1927 = vand.u32 %v1926, 4294901760
        %1928 = vmatpush1.msra.mxu0 %v1927
        %v1929 = vand.u32 %v459, 4294901760
        %v1930 = vsub.f32 %v459, %v1929
        %v1931 = vand.u32 %v1930, 4294901760
        %1932 = vmatprep.subr.mxu0 %v1931
        %v1933 = vand.u32 %v458, 4294901760
        %v1934 = vsub.f32 %v458, %v1933
        %v1935 = vand.u32 %v1934, 4294901760
        %1936 = vmatpush1.msra.mxu0 %v1935
        %v1937 = vand.u32 %v466, 4294901760
        %v1938 = vsub.f32 %v466, %v1937
        %v1939 = vand.u32 %v1938, 4294901760
        %1940 = vmatprep.subr.mxu0 %v1939
        %v1941 = vand.u32 %v465, 4294901760
        %v1942 = vsub.f32 %v465, %v1941
        %v1943 = vand.u32 %v1942, 4294901760
        %1944 = vmatpush1.msra.mxu0 %v1943
        %v1945 = vand.u32 %v473, 4294901760
        %v1946 = vsub.f32 %v473, %v1945
        %v1947 = vand.u32 %v1946, 4294901760
        %1948 = vmatprep.subr.mxu0 %v1947
        %v1949 = vand.u32 %v472, 4294901760
        %v1950 = vsub.f32 %v472, %v1949
        %v1951 = vand.u32 %v1950, 4294901760
        %1952 = vmatpush1.msra.mxu0 %v1951
        %v1953 = vand.u32 %v480, 4294901760
        %v1954 = vsub.f32 %v480, %v1953
        %v1955 = vand.u32 %v1954, 4294901760
        %1956 = vmatprep.subr.mxu0 %v1955
        %v1957 = vand.u32 %v479, 4294901760
        %v1958 = vsub.f32 %v479, %v1957
        %v1959 = vand.u32 %v1958, 4294901760
        %1960 = vmatpush1.msra.mxu0 %v1959
        %v1961 = vand.u32 %v487, 4294901760
        %v1962 = vsub.f32 %v487, %v1961
        %v1963 = vand.u32 %v1962, 4294901760
        %1964 = vmatprep.subr.mxu0 %v1963
        %v1965 = vand.u32 %v486, 4294901760
        %v1966 = vsub.f32 %v486, %v1965
        %v1967 = vand.u32 %v1966, 4294901760
        %1968 = vmatpush1.msra.mxu0 %v1967
        %v1969 = vand.u32 %v494, 4294901760
        %v1970 = vsub.f32 %v494, %v1969
        %v1971 = vand.u32 %v1970, 4294901760
        %1972 = vmatprep.subr.mxu0 %v1971
        %v1973 = vand.u32 %v493, 4294901760
        %v1974 = vsub.f32 %v493, %v1973
        %v1975 = vand.u32 %v1974, 4294901760
        %1976 = vmatpush1.msra.mxu0 %v1975
        %v1977 = vand.u32 %v501, 4294901760
        %v1978 = vsub.f32 %v501, %v1977
        %v1979 = vand.u32 %v1978, 4294901760
        %1980 = vmatprep.subr.mxu0 %v1979
        %v1981 = vand.u32 %v500, 4294901760
        %v1982 = vsub.f32 %v500, %v1981
        %v1983 = vand.u32 %v1982, 4294901760
        %1984 = vmatpush1.msra.mxu0 %v1983
        %v1985 = vand.u32 %v508, 4294901760
        %v1986 = vsub.f32 %v508, %v1985
        %v1987 = vand.u32 %v1986, 4294901760
        %1988 = vmatprep.subr.mxu0 %v1987
        %v1989 = vand.u32 %v507, 4294901760
        %v1990 = vsub.f32 %v507, %v1989
        %v1991 = vand.u32 %v1990, 4294901760
        %1992 = vmatpush1.msra.mxu0 %v1991
        %v1993 = vand.u32 %v515, 4294901760
        %v1994 = vsub.f32 %v515, %v1993
        %v1995 = vand.u32 %v1994, 4294901760
        %1996 = vmatprep.subr.mxu0 %v1995
        %v1997 = vand.u32 %v514, 4294901760
        %v1998 = vsub.f32 %v514, %v1997
        %v1999 = vand.u32 %v1998, 4294901760
        %2000 = vmatpush1.msra.mxu0 %v1999
        %v2001 = vand.u32 %v522, 4294901760
        %v2002 = vsub.f32 %v522, %v2001
        %v2003 = vand.u32 %v2002, 4294901760
        %2004 = vmatprep.subr.mxu0 %v2003
        %v2005 = vand.u32 %v521, 4294901760
        %v2006 = vsub.f32 %v521, %v2005
        %v2007 = vand.u32 %v2006, 4294901760
        %2008 = vmatpush1.msra.mxu0 %v2007
        %v2009 = vand.u32 %v529, 4294901760
        %v2010 = vsub.f32 %v529, %v2009
        %v2011 = vand.u32 %v2010, 4294901760
        %2012 = vmatprep.subr.mxu0 %v2011
        %v2013 = vand.u32 %v528, 4294901760
        %v2014 = vsub.f32 %v528, %v2013
        %v2015 = vand.u32 %v2014, 4294901760
        %2016 = vmatpush1.msra.mxu0 %v2015
        %v2017 = vand.u32 %v536, 4294901760
        %v2018 = vsub.f32 %v536, %v2017
        %v2019 = vand.u32 %v2018, 4294901760
        %2020 = vmatprep.subr.mxu0 %v2019
        %v2021 = vand.u32 %v535, 4294901760
        %v2022 = vsub.f32 %v535, %v2021
        %v2023 = vand.u32 %v2022, 4294901760
        %2024 = vmatpush1.msra.mxu0 %v2023
        %v2025 = vand.u32 %v543, 4294901760
        %v2026 = vsub.f32 %v543, %v2025
        %v2027 = vand.u32 %v2026, 4294901760
        %2028 = vmatprep.subr.mxu0 %v2027
        %v2029 = vand.u32 %v542, 4294901760
        %v2030 = vsub.f32 %v542, %v2029
        %v2031 = vand.u32 %v2030, 4294901760
        %2032 = vmatpush1.msra.mxu0 %v2031
        %2033 = vmatprep.subr.mxu0 0.0
        %2034 = vmatpush1.msra.mxu0 0.0
        %2035 = vmatprep.subr.mxu0 0.0
        %2036 = vmatpush1.msra.mxu0 0.0
        %2037 = vmatprep.subr.mxu0 0.0
        %2038 = vmatpush1.msra.mxu0 0.0
        %2039 = vmatprep.subr.mxu0 0.0
        %2040 = vmatpush1.msra.mxu0 0.0
        %2041 = vmatprep.subr.mxu0 0.0
        %2042 = vmatpush1.msra.mxu0 0.0
        %2043 = vmatprep.subr.mxu0 0.0
        %2044 = vmatpush1.msra.mxu0 0.0
        %2045 = vmatprep.subr.mxu0 0.0
        %2046 = vmatpush1.msra.mxu0 0.0
        %2047 = vmatprep.subr.mxu0 0.0
        %2048 = vmatpush1.msra.mxu0 0.0
        %2049 = vmatprep.subr.mxu0 0.0
        %2050 = vmatpush1.msra.mxu0 0.0
        %2051 = vmatprep.subr.mxu0 0.0
        %2052 = vmatpush1.msra.mxu0 0.0
        %2053 = vmatprep.subr.mxu0 0.0
        %2054 = vmatpush1.msra.mxu0 0.0
        %2055 = vmatprep.subr.mxu0 0.0
        %2056 = vmatpush1.msra.mxu0 0.0
        %2057 = vmatprep.subr.mxu0 0.0
        %2058 = vmatpush1.msra.mxu0 0.0
        %2059 = vmatprep.subr.mxu0 0.0
        %2060 = vmatpush1.msra.mxu0 0.0
        %2061 = vmatprep.subr.mxu0 0.0
        %2062 = vmatpush1.msra.mxu0 0.0
        %2063 = vmatprep.subr.mxu0 0.0
        %2064 = vmatpush1.msra.mxu0 0.0
        %2065 = vmatprep.mubr.f32.mxu0 0.0
        %v2066 = vand.u32 %v413, 4294901760
        %2067 = vmatmul.mubr.f32.gmra.mrb[0].mxu0 %v2066
        %v2068 = vpop.f32.mrb[0].mxu0
        %v2069 = vadd.f32 %v1702, %v2068
        %v2070 = vpop.f32.mrb[0].mxu0
        %v2071 = vadd.f32 %v1704, %v2070
        %2072 = vmatprep.mubr.f32.mxu0 0.0
        %v2073 = vand.u32 %v414, 4294901760
        %2074 = vmatmul.mubr.f32.gmra.mrb[0].mxu0 %v2073
        %v2075 = vpop.f32.mrb[0].mxu0
        %v2076 = vadd.f32 %v1711, %v2075
        %v2077 = vpop.f32.mrb[0].mxu0
        %v2078 = vadd.f32 %v1713, %v2077
        %2079 = vmatprep.mubr.f32.mxu0 0.0
        %v2080 = vand.u32 %v415, 4294901760
        %2081 = vmatmul.mubr.f32.gmra.mrb[0].mxu0 %v2080
        %v2082 = vpop.f32.mrb[0].mxu0
        %v2083 = vpop.f32.mrb[0].mxu0
        %v2084 = vadd.f32 %v1721, %v2083
        %2085 = vmatprep.mubr.f32.mxu0 0.0
        %v2086 = vand.u32 %v416, 4294901760
        %2087 = vmatmul.mubr.f32.gmra.mrb[0].mxu0 %v2086
        %v2088 = vpop.f32.mrb[0].mxu0
        %v2089 = vadd.f32 %v1728, %v2088
        %v2090 = vpop.f32.mrb[0].mxu0
        %v2091 = vadd.f32 %v1730, %v2090
        %2092 = vmatprep.mubr.f32.mxu0 0.0
        %v2093 = vand.u32 %v417, 4294901760
        %2094 = vmatmul.mubr.f32.gmra.mrb[0].mxu0 %v2093
        %v2095 = vpop.f32.mrb[0].mxu0
        %v2096 = vadd.f32 %v1737, %v2095
        %v2097 = vpop.f32.mrb[0].mxu0
        %v2098 = vadd.f32 %v1739, %v2097
        %2099 = vmatprep.mubr.f32.mxu0 0.0
        %v2100 = vand.u32 %v418, 4294901760
        %2101 = vmatmul.mubr.f32.gmra.mrb[0].mxu0 %v2100
        %v2102 = vpop.f32.mrb[0].mxu0
        %v2103 = vpop.f32.mrb[0].mxu0
        %v2104 = vadd.f32 %v1747, %v2103
        %2105 = vmatprep.mubr.f32.mxu0 0.0
        %v2106 = vand.u32 %v419, 4294901760
        %2107 = vmatmul.mubr.f32.gmra.mrb[0].mxu0 %v2106
        %v2108 = vpop.f32.mrb[0].mxu0
        %v2109 = vadd.f32 %v1754, %v2108
        %v2110 = vpop.f32.mrb[0].mxu0
        %v2111 = vadd.f32 %v1756, %v2110
        %2112 = vmatprep.mubr.f32.mxu0 0.0
        %v2113 = vand.u32 %v420, 4294901760
        %2114 = vmatmul.mubr.f32.gmra.mrb[0].mxu0 %v2113
        %v2115 = vpop.f32.mrb[0].mxu0
        %v2116 = vadd.f32 %v1763, %v2115
        %v2117 = vpop.f32.mrb[0].mxu0
        %v2118 = vadd.f32 %v1765, %v2117
        %2119 = vmatprep.mubr.f32.mxu0 0.0
        %v2120 = vand.u32 %v421, 4294901760
        %2121 = vmatmul.mubr.f32.gmra.mrb[0].mxu0 %v2120
        %v2122 = vpop.f32.mrb[0].mxu0
        %v2123 = vpop.f32.mrb[0].mxu0
        %v2124 = vadd.f32 %v1773, %v2123
        %2125 = vmatprep.mubr.f32.mxu0 0.0
        %v2126 = vand.u32 %v422, 4294901760
        %2127 = vmatmul.mubr.f32.gmra.mrb[0].mxu0 %v2126
        %v2128 = vpop.f32.mrb[0].mxu0
        %v2129 = vadd.f32 %v1780, %v2128
        %v2130 = vpop.f32.mrb[0].mxu0
        %v2131 = vadd.f32 %v1782, %v2130
        %2132 = vmatprep.mubr.f32.mxu0 0.0
        %v2133 = vand.u32 %v423, 4294901760
        %2134 = vmatmul.mubr.f32.gmra.mrb[0].mxu0 %v2133
        %v2135 = vpop.f32.mrb[0].mxu0
        %v2136 = vadd.f32 %v1789, %v2135
        %v2137 = vpop.f32.mrb[0].mxu0
        %v2138 = vadd.f32 %v1791, %v2137
        %2139 = vmatprep.mubr.f32.mxu0 0.0
        %v2140 = vand.u32 %v424, 4294901760
        %2141 = vmatmul.mubr.f32.gmra.mrb[0].mxu0 %v2140
        %v2142 = vpop.f32.mrb[0].mxu0
        %v2143 = vpop.f32.mrb[0].mxu0
        %v2144 = vadd.f32 %v1799, %v2143
        %2145 = vmatprep.mubr.f32.mxu0 0.0
        %v2146 = vand.u32 %v425, 4294901760
        %2147 = vmatmul.mubr.f32.gmra.mrb[0].mxu0 %v2146
        %v2148 = vpop.f32.mrb[0].mxu0
        %v2149 = vadd.f32 %v1806, %v2148
        %v2150 = vpop.f32.mrb[0].mxu0
        %v2151 = vadd.f32 %v1808, %v2150
        %2152 = vmatprep.mubr.f32.mxu0 0.0
        %v2153 = vand.u32 %v426, 4294901760
        %2154 = vmatmul.mubr.f32.gmra.mrb[0].mxu0 %v2153
        %v2155 = vpop.f32.mrb[0].mxu0
        %v2156 = vadd.f32 %v1815, %v2155
        %v2157 = vpop.f32.mrb[0].mxu0
        %v2158 = vadd.f32 %v1817, %v2157
        %2159 = vmatprep.mubr.f32.mxu0 0.0
        %v2160 = vand.u32 %v427, 4294901760
        %2161 = vmatmul.mubr.f32.gmra.mrb[0].mxu0 %v2160
        %v2162 = vpop.f32.mrb[0].mxu0
        %v2163 = vpop.f32.mrb[0].mxu0
        %v2164 = vadd.f32 %v1825, %v2163
        %2165 = vmatprep.mubr.f32.mxu0 0.0
        %v2166 = vand.u32 %v428, 4294901760
        %2167 = vmatmul.mubr.f32.gmra.mrb[0].mxu0 %v2166
        %v2168 = vpop.f32.mrb[0].mxu0
        %v2169 = vadd.f32 %v1832, %v2168
        %v2170 = vpop.f32.mrb[0].mxu0
        %v2171 = vadd.f32 %v1834, %v2170
        %2172 = vmatprep.mubr.f32.mxu0 0.0
        %v2173 = vand.u32 %v429, 4294901760
        %2174 = vmatmul.mubr.f32.gmra.mrb[0].mxu0 %v2173
        %v2175 = vpop.f32.mrb[0].mxu0
        %v2176 = vadd.f32 %v1841, %v2175
        %v2177 = vpop.f32.mrb[0].mxu0
        %v2178 = vadd.f32 %v1843, %v2177
        %2179 = vmatprep.mubr.f32.mxu0 0.0
        %v2180 = vand.u32 %v430, 4294901760
        %2181 = vmatmul.mubr.f32.gmra.mrb[0].mxu0 %v2180
        %v2182 = vpop.f32.mrb[0].mxu0
        %v2183 = vpop.f32.mrb[0].mxu0
        %v2184 = vadd.f32 %v1851, %v2183
        %2185 = vmatprep.mubr.f32.mxu0 0.0
        %v2186 = vand.u32 %v431, 4294901760
        %2187 = vmatmul.mubr.f32.gmra.mrb[0].mxu0 %v2186
        %v2188 = vpop.f32.mrb[0].mxu0
        %v2189 = vadd.f32 %v1858, %v2188
        %v2190 = vpop.f32.mrb[0].mxu0
        %v2191 = vadd.f32 %v1860, %v2190
        %2192 = vmatprep.mubr.f32.mxu0 0.0
        %v2193 = vand.u32 %v432, 4294901760
        %2194 = vmatmul.mubr.f32.gmra.mrb[0].mxu0 %v2193
        %v2195 = vpop.f32.mrb[0].mxu0
        %v2196 = vadd.f32 %v1867, %v2195
        %v2197 = vpop.f32.mrb[0].mxu0
        %v2198 = vadd.f32 %v1869, %v2197
        %2199 = vmatprep.mubr.f32.mxu0 0.0
        %v2200 = vand.u32 %v433, 4294901760
        %2201 = vmatmul.mubr.f32.gmra.mrb[0].mxu0 %v2200
        %v2202 = vpop.f32.mrb[0].mxu0
        %v2203 = vpop.f32.mrb[0].mxu0
        %v2204 = vadd.f32 %v1877, %v2203
        %2205 = vmatprep.mubr.f32.mxu0 0.0
        %v2206 = vand.u32 %v434, 4294901760
        %2207 = vmatmul.mubr.f32.gmra.mrb[0].mxu0 %v2206
        %v2208 = vpop.f32.mrb[0].mxu0
        %v2209 = vadd.f32 %v1884, %v2208
        %v2210 = vpop.f32.mrb[0].mxu0
        %v2211 = vadd.f32 %v1886, %v2210
        %2212 = vmatprep.mubr.f32.mxu0 0.0
        %v2213 = vand.u32 %v435, 4294901760
        %2214 = vmatmul.mubr.f32.gmra.mrb[0].mxu0 %v2213
        %v2215 = vpop.f32.mrb[0].mxu0
        %v2216 = vadd.f32 %v1893, %v2215
        %v2217 = vpop.f32.mrb[0].mxu0
        %v2218 = vadd.f32 %v1895, %v2217
        %2219 = vmatprep.mubr.f32.mxu0 0.0
        %v2220 = vand.u32 %v436, 4294901760
        %2221 = vmatmul.mubr.f32.gmra.mrb[0].mxu0 %v2220
        %v2222 = vpop.f32.mrb[0].mxu0
        %v2223 = vpop.f32.mrb[0].mxu0
        %v2224 = vadd.f32 %v1903, %v2223
        %2225 = vdwg.mxu0
        %v2226 = vand.u32 %v438, 4294901760
        %2227 = vmatprep.subr.mxu0 %v2226
        %v2228 = vand.u32 %v437, 4294901760
        %2229 = vmatpush1.msra.mxu0 %v2228
        %v2230 = vand.u32 %v445, 4294901760
        %2231 = vmatprep.subr.mxu0 %v2230
        %v2232 = vand.u32 %v444, 4294901760
        %2233 = vmatpush1.msra.mxu0 %v2232
        %v2234 = vand.u32 %v452, 4294901760
        %2235 = vmatprep.subr.mxu0 %v2234
        %v2236 = vand.u32 %v451, 4294901760
        %2237 = vmatpush1.msra.mxu0 %v2236
        %v2238 = vand.u32 %v459, 4294901760
        %2239 = vmatprep.subr.mxu0 %v2238
        %v2240 = vand.u32 %v458, 4294901760
        %2241 = vmatpush1.msra.mxu0 %v2240
        %v2242 = vand.u32 %v466, 4294901760
        %2243 = vmatprep.subr.mxu0 %v2242
        %v2244 = vand.u32 %v465, 4294901760
        %2245 = vmatpush1.msra.mxu0 %v2244
        %v2246 = vand.u32 %v473, 4294901760
        %2247 = vmatprep.subr.mxu0 %v2246
        %v2248 = vand.u32 %v472, 4294901760
        %2249 = vmatpush1.msra.mxu0 %v2248
        %v2250 = vand.u32 %v480, 4294901760
        %2251 = vmatprep.subr.mxu0 %v2250
        %v2252 = vand.u32 %v479, 4294901760
        %2253 = vmatpush1.msra.mxu0 %v2252
        %v2254 = vand.u32 %v487, 4294901760
        %2255 = vmatprep.subr.mxu0 %v2254
        %v2256 = vand.u32 %v486, 4294901760
        %2257 = vmatpush1.msra.mxu0 %v2256
        %v2258 = vand.u32 %v494, 4294901760
        %2259 = vmatprep.subr.mxu0 %v2258
        %v2260 = vand.u32 %v493, 4294901760
        %2261 = vmatpush1.msra.mxu0 %v2260
        %v2262 = vand.u32 %v501, 4294901760
        %2263 = vmatprep.subr.mxu0 %v2262
        %v2264 = vand.u32 %v500, 4294901760
        %2265 = vmatpush1.msra.mxu0 %v2264
        %v2266 = vand.u32 %v508, 4294901760
        %2267 = vmatprep.subr.mxu0 %v2266
        %v2268 = vand.u32 %v507, 4294901760
        %2269 = vmatpush1.msra.mxu0 %v2268
        %v2270 = vand.u32 %v515, 4294901760
        %2271 = vmatprep.subr.mxu0 %v2270
        %v2272 = vand.u32 %v514, 4294901760
        %2273 = vmatpush1.msra.mxu0 %v2272
        %v2274 = vand.u32 %v522, 4294901760
        %2275 = vmatprep.subr.mxu0 %v2274
        %v2276 = vand.u32 %v521, 4294901760
        %2277 = vmatpush1.msra.mxu0 %v2276
        %v2278 = vand.u32 %v529, 4294901760
        %2279 = vmatprep.subr.mxu0 %v2278
        %v2280 = vand.u32 %v528, 4294901760
        %2281 = vmatpush1.msra.mxu0 %v2280
        %v2282 = vand.u32 %v536, 4294901760
        %2283 = vmatprep.subr.mxu0 %v2282
        %v2284 = vand.u32 %v535, 4294901760
        %2285 = vmatpush1.msra.mxu0 %v2284
        %v2286 = vand.u32 %v543, 4294901760
        %2287 = vmatprep.subr.mxu0 %v2286
        %v2288 = vand.u32 %v542, 4294901760
        %2289 = vmatpush1.msra.mxu0 %v2288
        %2290 = vmatprep.subr.mxu0 0.0
        %2291 = vmatpush1.msra.mxu0 0.0
        %2292 = vmatprep.subr.mxu0 0.0
        %2293 = vmatpush1.msra.mxu0 0.0
        %2294 = vmatprep.subr.mxu0 0.0
        %2295 = vmatpush1.msra.mxu0 0.0
        %2296 = vmatprep.subr.mxu0 0.0
        %2297 = vmatpush1.msra.mxu0 0.0
        %2298 = vmatprep.subr.mxu0 0.0
        %2299 = vmatpush1.msra.mxu0 0.0
        %2300 = vmatprep.subr.mxu0 0.0
        %2301 = vmatpush1.msra.mxu0 0.0
        %2302 = vmatprep.subr.mxu0 0.0
        %2303 = vmatpush1.msra.mxu0 0.0
        %2304 = vmatprep.subr.mxu0 0.0
        %2305 = vmatpush1.msra.mxu0 0.0
        %2306 = vmatprep.subr.mxu0 0.0
        %2307 = vmatpush1.msra.mxu0 0.0
        %2308 = vmatprep.subr.mxu0 0.0
        %2309 = vmatpush1.msra.mxu0 0.0
        %2310 = vmatprep.subr.mxu0 0.0
        %2311 = vmatpush1.msra.mxu0 0.0
        %2312 = vmatprep.subr.mxu0 0.0
        %2313 = vmatpush1.msra.mxu0 0.0
        %2314 = vmatprep.subr.mxu0 0.0
        %2315 = vmatpush1.msra.mxu0 0.0
        %2316 = vmatprep.subr.mxu0 0.0
        %2317 = vmatpush1.msra.mxu0 0.0
        %2318 = vmatprep.subr.mxu0 0.0
        %2319 = vmatpush1.msra.mxu0 0.0
        %2320 = vmatprep.subr.mxu0 0.0
        %2321 = vmatpush1.msra.mxu0 0.0
        %2322 = vmatprep.mubr.f32.mxu0 0.0
        %v2323 = vand.u32 %v413, 4294901760
        %2324 = vmatmul.mubr.f32.gmra.mrb[0].mxu0 %v2323
        %v2325 = vpop.f32.mrb[0].mxu0
        %v2326 = vadd.f32 %v2069, %v2325
        %v2327 = vpop.f32.mrb[0].mxu0
        %v2328 = vadd.f32 %v2071, %v2327
        %2329 = vmatprep.mubr.f32.mxu0 0.0
        %v2330 = vand.u32 %v414, 4294901760
        %2331 = vmatmul.mubr.f32.gmra.mrb[0].mxu0 %v2330
        %v2332 = vpop.f32.mrb[0].mxu0
        %v2333 = vadd.f32 %v2076, %v2332
        %v2334 = vpop.f32.mrb[0].mxu0
        %v2335 = vadd.f32 %v2078, %v2334
        %2336 = vmatprep.mubr.f32.mxu0 0.0
        %v2337 = vand.u32 %v415, 4294901760
        %2338 = vmatmul.mubr.f32.gmra.mrb[0].mxu0 %v2337
        %v2339 = vpop.f32.mrb[0].mxu0
        %v2340 = vpop.f32.mrb[0].mxu0
        %v2341 = vadd.f32 %v2084, %v2340
        %2342 = vmatprep.mubr.f32.mxu0 0.0
        %v2343 = vand.u32 %v416, 4294901760
        %2344 = vmatmul.mubr.f32.gmra.mrb[0].mxu0 %v2343
        %v2345 = vpop.f32.mrb[0].mxu0
        %v2346 = vadd.f32 %v2089, %v2345
        %v2347 = vpop.f32.mrb[0].mxu0
        %v2348 = vadd.f32 %v2091, %v2347
        %2349 = vmatprep.mubr.f32.mxu0 0.0
        %v2350 = vand.u32 %v417, 4294901760
        %2351 = vmatmul.mubr.f32.gmra.mrb[0].mxu0 %v2350
        %v2352 = vpop.f32.mrb[0].mxu0
        %v2353 = vadd.f32 %v2096, %v2352
        %v2354 = vpop.f32.mrb[0].mxu0
        %v2355 = vadd.f32 %v2098, %v2354
        %2356 = vmatprep.mubr.f32.mxu0 0.0
        %v2357 = vand.u32 %v418, 4294901760
        %2358 = vmatmul.mubr.f32.gmra.mrb[0].mxu0 %v2357
        %v2359 = vpop.f32.mrb[0].mxu0
        %v2360 = vpop.f32.mrb[0].mxu0
        %v2361 = vadd.f32 %v2104, %v2360
        %2362 = vmatprep.mubr.f32.mxu0 0.0
        %v2363 = vand.u32 %v419, 4294901760
        %2364 = vmatmul.mubr.f32.gmra.mrb[0].mxu0 %v2363
        %v2365 = vpop.f32.mrb[0].mxu0
        %v2366 = vadd.f32 %v2109, %v2365
        %v2367 = vpop.f32.mrb[0].mxu0
        %v2368 = vadd.f32 %v2111, %v2367
        %2369 = vmatprep.mubr.f32.mxu0 0.0
        %v2370 = vand.u32 %v420, 4294901760
        %2371 = vmatmul.mubr.f32.gmra.mrb[0].mxu0 %v2370
        %v2372 = vpop.f32.mrb[0].mxu0
        %v2373 = vadd.f32 %v2116, %v2372
        %v2374 = vpop.f32.mrb[0].mxu0
        %v2375 = vadd.f32 %v2118, %v2374
        %2376 = vmatprep.mubr.f32.mxu0 0.0
        %v2377 = vand.u32 %v421, 4294901760
        %2378 = vmatmul.mubr.f32.gmra.mrb[0].mxu0 %v2377
        %v2379 = vpop.f32.mrb[0].mxu0
        %v2380 = vpop.f32.mrb[0].mxu0
        %v2381 = vadd.f32 %v2124, %v2380
        %2382 = vmatprep.mubr.f32.mxu0 0.0
        %v2383 = vand.u32 %v422, 4294901760
        %2384 = vmatmul.mubr.f32.gmra.mrb[0].mxu0 %v2383
        %v2385 = vpop.f32.mrb[0].mxu0
        %v2386 = vadd.f32 %v2129, %v2385
        %v2387 = vpop.f32.mrb[0].mxu0
        %v2388 = vadd.f32 %v2131, %v2387
        %2389 = vmatprep.mubr.f32.mxu0 0.0
        %v2390 = vand.u32 %v423, 4294901760
        %2391 = vmatmul.mubr.f32.gmra.mrb[0].mxu0 %v2390
        %v2392 = vpop.f32.mrb[0].mxu0
        %v2393 = vadd.f32 %v2136, %v2392
        %v2394 = vpop.f32.mrb[0].mxu0
        %v2395 = vadd.f32 %v2138, %v2394
        %2396 = vmatprep.mubr.f32.mxu0 0.0
        %v2397 = vand.u32 %v424, 4294901760
        %2398 = vmatmul.mubr.f32.gmra.mrb[0].mxu0 %v2397
        %v2399 = vpop.f32.mrb[0].mxu0
        %v2400 = vpop.f32.mrb[0].mxu0
        %v2401 = vadd.f32 %v2144, %v2400
        %2402 = vmatprep.mubr.f32.mxu0 0.0
        %v2403 = vand.u32 %v425, 4294901760
        %2404 = vmatmul.mubr.f32.gmra.mrb[0].mxu0 %v2403
        %v2405 = vpop.f32.mrb[0].mxu0
        %v2406 = vadd.f32 %v2149, %v2405
        %v2407 = vpop.f32.mrb[0].mxu0
        %v2408 = vadd.f32 %v2151, %v2407
        %2409 = vmatprep.mubr.f32.mxu0 0.0
        %v2410 = vand.u32 %v426, 4294901760
        %2411 = vmatmul.mubr.f32.gmra.mrb[0].mxu0 %v2410
        %v2412 = vpop.f32.mrb[0].mxu0
        %v2413 = vadd.f32 %v2156, %v2412
        %v2414 = vpop.f32.mrb[0].mxu0
        %v2415 = vadd.f32 %v2158, %v2414
        %2416 = vmatprep.mubr.f32.mxu0 0.0
        %v2417 = vand.u32 %v427, 4294901760
        %2418 = vmatmul.mubr.f32.gmra.mrb[0].mxu0 %v2417
        %v2419 = vpop.f32.mrb[0].mxu0
        %v2420 = vpop.f32.mrb[0].mxu0
        %v2421 = vadd.f32 %v2164, %v2420
        %2422 = vmatprep.mubr.f32.mxu0 0.0
        %v2423 = vand.u32 %v428, 4294901760
        %2424 = vmatmul.mubr.f32.gmra.mrb[0].mxu0 %v2423
        %v2425 = vpop.f32.mrb[0].mxu0
        %v2426 = vadd.f32 %v2169, %v2425
        %v2427 = vpop.f32.mrb[0].mxu0
        %v2428 = vadd.f32 %v2171, %v2427
        %2429 = vmatprep.mubr.f32.mxu0 0.0
        %v2430 = vand.u32 %v429, 4294901760
        %2431 = vmatmul.mubr.f32.gmra.mrb[0].mxu0 %v2430
        %v2432 = vpop.f32.mrb[0].mxu0
        %v2433 = vadd.f32 %v2176, %v2432
        %v2434 = vpop.f32.mrb[0].mxu0
        %v2435 = vadd.f32 %v2178, %v2434
        %2436 = vmatprep.mubr.f32.mxu0 0.0
        %v2437 = vand.u32 %v430, 4294901760
        %2438 = vmatmul.mubr.f32.gmra.mrb[0].mxu0 %v2437
        %v2439 = vpop.f32.mrb[0].mxu0
        %v2440 = vpop.f32.mrb[0].mxu0
        %v2441 = vadd.f32 %v2184, %v2440
        %2442 = vmatprep.mubr.f32.mxu0 0.0
        %v2443 = vand.u32 %v431, 4294901760
        %2444 = vmatmul.mubr.f32.gmra.mrb[0].mxu0 %v2443
        %v2445 = vpop.f32.mrb[0].mxu0
        %v2446 = vadd.f32 %v2189, %v2445
        %v2447 = vpop.f32.mrb[0].mxu0
        %v2448 = vadd.f32 %v2191, %v2447
        %2449 = vmatprep.mubr.f32.mxu0 0.0
        %v2450 = vand.u32 %v432, 4294901760
        %2451 = vmatmul.mubr.f32.gmra.mrb[0].mxu0 %v2450
        %v2452 = vpop.f32.mrb[0].mxu0
        %v2453 = vadd.f32 %v2196, %v2452
        %v2454 = vpop.f32.mrb[0].mxu0
        %v2455 = vadd.f32 %v2198, %v2454
        %2456 = vmatprep.mubr.f32.mxu0 0.0
        %v2457 = vand.u32 %v433, 4294901760
        %2458 = vmatmul.mubr.f32.gmra.mrb[0].mxu0 %v2457
        %v2459 = vpop.f32.mrb[0].mxu0
        %v2460 = vpop.f32.mrb[0].mxu0
        %v2461 = vadd.f32 %v2204, %v2460
        %2462 = vmatprep.mubr.f32.mxu0 0.0
        %v2463 = vand.u32 %v434, 4294901760
        %2464 = vmatmul.mubr.f32.gmra.mrb[0].mxu0 %v2463
        %v2465 = vpop.f32.mrb[0].mxu0
        %v2466 = vadd.f32 %v2209, %v2465
        %v2467 = vpop.f32.mrb[0].mxu0
        %v2468 = vadd.f32 %v2211, %v2467
        %2469 = vmatprep.mubr.f32.mxu0 0.0
        %v2470 = vand.u32 %v435, 4294901760
        %2471 = vmatmul.mubr.f32.gmra.mrb[0].mxu0 %v2470
        %v2472 = vpop.f32.mrb[0].mxu0
        %v2473 = vadd.f32 %v2216, %v2472
        %v2474 = vpop.f32.mrb[0].mxu0
        %v2475 = vadd.f32 %v2218, %v2474
        %2476 = vmatprep.mubr.f32.mxu0 0.0
        %v2477 = vand.u32 %v436, 4294901760
        %2478 = vmatmul.mubr.f32.gmra.mrb[0].mxu0 %v2477
        %v2479 = vpop.f32.mrb[0].mxu0
        %v2480 = vpop.f32.mrb[0].mxu0
        %v2481 = vadd.f32 %v2224, %v2480
        %2482 = vdwg.mxu0
        %v2483 = vand.u32 %v440, 4294901760
        %2484 = vmatprep.subr.mxu0 %v2483
        %v2485 = vand.u32 %v439, 4294901760
        %2486 = vmatpush1.msra.mxu0 %v2485
        %v2487 = vand.u32 %v447, 4294901760
        %2488 = vmatprep.subr.mxu0 %v2487
        %v2489 = vand.u32 %v446, 4294901760
        %2490 = vmatpush1.msra.mxu0 %v2489
        %v2491 = vand.u32 %v454, 4294901760
        %2492 = vmatprep.subr.mxu0 %v2491
        %v2493 = vand.u32 %v453, 4294901760
        %2494 = vmatpush1.msra.mxu0 %v2493
        %v2495 = vand.u32 %v461, 4294901760
        %2496 = vmatprep.subr.mxu0 %v2495
        %v2497 = vand.u32 %v460, 4294901760
        %2498 = vmatpush1.msra.mxu0 %v2497
        %v2499 = vand.u32 %v468, 4294901760
        %2500 = vmatprep.subr.mxu0 %v2499
        %v2501 = vand.u32 %v467, 4294901760
        %2502 = vmatpush1.msra.mxu0 %v2501
        %v2503 = vand.u32 %v475, 4294901760
        %2504 = vmatprep.subr.mxu0 %v2503
        %v2505 = vand.u32 %v474, 4294901760
        %2506 = vmatpush1.msra.mxu0 %v2505
        %v2507 = vand.u32 %v482, 4294901760
        %2508 = vmatprep.subr.mxu0 %v2507
        %v2509 = vand.u32 %v481, 4294901760
        %2510 = vmatpush1.msra.mxu0 %v2509
        %v2511 = vand.u32 %v489, 4294901760
        %2512 = vmatprep.subr.mxu0 %v2511
        %v2513 = vand.u32 %v488, 4294901760
        %2514 = vmatpush1.msra.mxu0 %v2513
        %v2515 = vand.u32 %v496, 4294901760
        %2516 = vmatprep.subr.mxu0 %v2515
        %v2517 = vand.u32 %v495, 4294901760
        %2518 = vmatpush1.msra.mxu0 %v2517
        %v2519 = vand.u32 %v503, 4294901760
        %2520 = vmatprep.subr.mxu0 %v2519
        %v2521 = vand.u32 %v502, 4294901760
        %2522 = vmatpush1.msra.mxu0 %v2521
        %v2523 = vand.u32 %v510, 4294901760
        %2524 = vmatprep.subr.mxu0 %v2523
        %v2525 = vand.u32 %v509, 4294901760
        %2526 = vmatpush1.msra.mxu0 %v2525
        %v2527 = vand.u32 %v517, 4294901760
        %2528 = vmatprep.subr.mxu0 %v2527
        %v2529 = vand.u32 %v516, 4294901760
        %2530 = vmatpush1.msra.mxu0 %v2529
        %v2531 = vand.u32 %v524, 4294901760
        %2532 = vmatprep.subr.mxu0 %v2531
        %v2533 = vand.u32 %v523, 4294901760
        %2534 = vmatpush1.msra.mxu0 %v2533
        %v2535 = vand.u32 %v531, 4294901760
        %2536 = vmatprep.subr.mxu0 %v2535
        %v2537 = vand.u32 %v530, 4294901760
        %2538 = vmatpush1.msra.mxu0 %v2537
        %v2539 = vand.u32 %v538, 4294901760
        %2540 = vmatprep.subr.mxu0 %v2539
        %v2541 = vand.u32 %v537, 4294901760
        %2542 = vmatpush1.msra.mxu0 %v2541
        %v2543 = vand.u32 %v545, 4294901760
        %2544 = vmatprep.subr.mxu0 %v2543
        %v2545 = vand.u32 %v544, 4294901760
        %2546 = vmatpush1.msra.mxu0 %v2545
        %2547 = vmatprep.subr.mxu0 0.0
        %2548 = vmatpush1.msra.mxu0 0.0
        %2549 = vmatprep.subr.mxu0 0.0
        %2550 = vmatpush1.msra.mxu0 0.0
        %2551 = vmatprep.subr.mxu0 0.0
        %2552 = vmatpush1.msra.mxu0 0.0
        %2553 = vmatprep.subr.mxu0 0.0
        %2554 = vmatpush1.msra.mxu0 0.0
        %2555 = vmatprep.subr.mxu0 0.0
        %2556 = vmatpush1.msra.mxu0 0.0
        %2557 = vmatprep.subr.mxu0 0.0
        %2558 = vmatpush1.msra.mxu0 0.0
        %2559 = vmatprep.subr.mxu0 0.0
        %2560 = vmatpush1.msra.mxu0 0.0
        %2561 = vmatprep.subr.mxu0 0.0
        %2562 = vmatpush1.msra.mxu0 0.0
        %2563 = vmatprep.subr.mxu0 0.0
        %2564 = vmatpush1.msra.mxu0 0.0
        %2565 = vmatprep.subr.mxu0 0.0
        %2566 = vmatpush1.msra.mxu0 0.0
        %2567 = vmatprep.subr.mxu0 0.0
        %2568 = vmatpush1.msra.mxu0 0.0
        %2569 = vmatprep.subr.mxu0 0.0
        %2570 = vmatpush1.msra.mxu0 0.0
        %2571 = vmatprep.subr.mxu0 0.0
        %2572 = vmatpush1.msra.mxu0 0.0
        %2573 = vmatprep.subr.mxu0 0.0
        %2574 = vmatpush1.msra.mxu0 0.0
        %2575 = vmatprep.subr.mxu0 0.0
        %2576 = vmatpush1.msra.mxu0 0.0
        %2577 = vmatprep.subr.mxu0 0.0
        %2578 = vmatpush1.msra.mxu0 0.0
        %2579 = vmatprep.mubr.f32.mxu0 0.0
        %v2580 = vand.u32 %v413, 4294901760
        %v2581 = vsub.f32 %v413, %v2580
        %v2582 = vand.u32 %v2581, 4294901760
        %v2583 = vsub.f32 %v2581, %v2582
        %v2584 = vand.u32 %v2583, 4294901760
        %2585 = vmatmul.mubr.f32.gmra.mrb[0].mxu0 %v2584
        %v2586 = vpop.f32.mrb[0].mxu0
        %v2587 = vadd.f32 0.0, %v2586
        %v2588 = vpop.f32.mrb[0].mxu0
        %v2589 = vadd.f32 0.0, %v2588
        %2590 = vmatprep.mubr.f32.mxu0 0.0
        %v2591 = vand.u32 %v414, 4294901760
        %v2592 = vsub.f32 %v414, %v2591
        %v2593 = vand.u32 %v2592, 4294901760
        %v2594 = vsub.f32 %v2592, %v2593
        %v2595 = vand.u32 %v2594, 4294901760
        %2596 = vmatmul.mubr.f32.gmra.mrb[0].mxu0 %v2595
        %v2597 = vpop.f32.mrb[0].mxu0
        %v2598 = vadd.f32 0.0, %v2597
        %v2599 = vpop.f32.mrb[0].mxu0
        %v2600 = vadd.f32 0.0, %v2599
        %2601 = vmatprep.mubr.f32.mxu0 0.0
        %v2602 = vand.u32 %v415, 4294901760
        %v2603 = vsub.f32 %v415, %v2602
        %v2604 = vand.u32 %v2603, 4294901760
        %v2605 = vsub.f32 %v2603, %v2604
        %v2606 = vand.u32 %v2605, 4294901760
        %2607 = vmatmul.mubr.f32.gmra.mrb[0].mxu0 %v2606
        %v2608 = vpop.f32.mrb[0].mxu0
        %v2609 = vadd.f32 0.0, %v2608
        %v2610 = vpop.f32.mrb[0].mxu0
        %v2611 = vadd.f32 0.0, %v2610
        %2612 = vmatprep.mubr.f32.mxu0 0.0
        %v2613 = vand.u32 %v416, 4294901760
        %v2614 = vsub.f32 %v416, %v2613
        %v2615 = vand.u32 %v2614, 4294901760
        %v2616 = vsub.f32 %v2614, %v2615
        %v2617 = vand.u32 %v2616, 4294901760
        %2618 = vmatmul.mubr.f32.gmra.mrb[0].mxu0 %v2617
        %v2619 = vpop.f32.mrb[0].mxu0
        %v2620 = vadd.f32 0.0, %v2619
        %v2621 = vpop.f32.mrb[0].mxu0
        %v2622 = vadd.f32 0.0, %v2621
        %2623 = vmatprep.mubr.f32.mxu0 0.0
        %v2624 = vand.u32 %v417, 4294901760
        %v2625 = vsub.f32 %v417, %v2624
        %v2626 = vand.u32 %v2625, 4294901760
        %v2627 = vsub.f32 %v2625, %v2626
        %v2628 = vand.u32 %v2627, 4294901760
        %2629 = vmatmul.mubr.f32.gmra.mrb[0].mxu0 %v2628
        %v2630 = vpop.f32.mrb[0].mxu0
        %v2631 = vadd.f32 0.0, %v2630
        %v2632 = vpop.f32.mrb[0].mxu0
        %v2633 = vadd.f32 0.0, %v2632
        %2634 = vmatprep.mubr.f32.mxu0 0.0
        %v2635 = vand.u32 %v418, 4294901760
        %v2636 = vsub.f32 %v418, %v2635
        %v2637 = vand.u32 %v2636, 4294901760
        %v2638 = vsub.f32 %v2636, %v2637
        %v2639 = vand.u32 %v2638, 4294901760
        %2640 = vmatmul.mubr.f32.gmra.mrb[0].mxu0 %v2639
        %v2641 = vpop.f32.mrb[0].mxu0
        %v2642 = vadd.f32 0.0, %v2641
        %v2643 = vpop.f32.mrb[0].mxu0
        %v2644 = vadd.f32 0.0, %v2643
        %2645 = vmatprep.mubr.f32.mxu0 0.0
        %v2646 = vand.u32 %v419, 4294901760
        %v2647 = vsub.f32 %v419, %v2646
        %v2648 = vand.u32 %v2647, 4294901760
        %v2649 = vsub.f32 %v2647, %v2648
        %v2650 = vand.u32 %v2649, 4294901760
        %2651 = vmatmul.mubr.f32.gmra.mrb[0].mxu0 %v2650
        %v2652 = vpop.f32.mrb[0].mxu0
        %v2653 = vadd.f32 0.0, %v2652
        %v2654 = vpop.f32.mrb[0].mxu0
        %v2655 = vadd.f32 0.0, %v2654
        %2656 = vmatprep.mubr.f32.mxu0 0.0
        %v2657 = vand.u32 %v420, 4294901760
        %v2658 = vsub.f32 %v420, %v2657
        %v2659 = vand.u32 %v2658, 4294901760
        %v2660 = vsub.f32 %v2658, %v2659
        %v2661 = vand.u32 %v2660, 4294901760
        %2662 = vmatmul.mubr.f32.gmra.mrb[0].mxu0 %v2661
        %v2663 = vpop.f32.mrb[0].mxu0
        %v2664 = vadd.f32 0.0, %v2663
        %v2665 = vpop.f32.mrb[0].mxu0
        %v2666 = vadd.f32 0.0, %v2665
        %2667 = vmatprep.mubr.f32.mxu0 0.0
        %v2668 = vand.u32 %v421, 4294901760
        %v2669 = vsub.f32 %v421, %v2668
        %v2670 = vand.u32 %v2669, 4294901760
        %v2671 = vsub.f32 %v2669, %v2670
        %v2672 = vand.u32 %v2671, 4294901760
        %2673 = vmatmul.mubr.f32.gmra.mrb[0].mxu0 %v2672
        %v2674 = vpop.f32.mrb[0].mxu0
        %v2675 = vadd.f32 0.0, %v2674
        %v2676 = vpop.f32.mrb[0].mxu0
        %v2677 = vadd.f32 0.0, %v2676
        %2678 = vmatprep.mubr.f32.mxu0 0.0
        %v2679 = vand.u32 %v422, 4294901760
        %v2680 = vsub.f32 %v422, %v2679
        %v2681 = vand.u32 %v2680, 4294901760
        %v2682 = vsub.f32 %v2680, %v2681
        %v2683 = vand.u32 %v2682, 4294901760
        %2684 = vmatmul.mubr.f32.gmra.mrb[0].mxu0 %v2683
        %v2685 = vpop.f32.mrb[0].mxu0
        %v2686 = vadd.f32 0.0, %v2685
        %v2687 = vpop.f32.mrb[0].mxu0
        %v2688 = vadd.f32 0.0, %v2687
        %2689 = vmatprep.mubr.f32.mxu0 0.0
        %v2690 = vand.u32 %v423, 4294901760
        %v2691 = vsub.f32 %v423, %v2690
        %v2692 = vand.u32 %v2691, 4294901760
        %v2693 = vsub.f32 %v2691, %v2692
        %v2694 = vand.u32 %v2693, 4294901760
        %2695 = vmatmul.mubr.f32.gmra.mrb[0].mxu0 %v2694
        %v2696 = vpop.f32.mrb[0].mxu0
        %v2697 = vadd.f32 0.0, %v2696
        %v2698 = vpop.f32.mrb[0].mxu0
        %v2699 = vadd.f32 0.0, %v2698
        %2700 = vmatprep.mubr.f32.mxu0 0.0
        %v2701 = vand.u32 %v424, 4294901760
        %v2702 = vsub.f32 %v424, %v2701
        %v2703 = vand.u32 %v2702, 4294901760
        %v2704 = vsub.f32 %v2702, %v2703
        %v2705 = vand.u32 %v2704, 4294901760
        %2706 = vmatmul.mubr.f32.gmra.mrb[0].mxu0 %v2705
        %v2707 = vpop.f32.mrb[0].mxu0
        %v2708 = vadd.f32 0.0, %v2707
        %v2709 = vpop.f32.mrb[0].mxu0
        %v2710 = vadd.f32 0.0, %v2709
        %2711 = vmatprep.mubr.f32.mxu0 0.0
        %v2712 = vand.u32 %v425, 4294901760
        %v2713 = vsub.f32 %v425, %v2712
        %v2714 = vand.u32 %v2713, 4294901760
        %v2715 = vsub.f32 %v2713, %v2714
        %v2716 = vand.u32 %v2715, 4294901760
        %2717 = vmatmul.mubr.f32.gmra.mrb[0].mxu0 %v2716
        %v2718 = vpop.f32.mrb[0].mxu0
        %v2719 = vadd.f32 0.0, %v2718
        %v2720 = vpop.f32.mrb[0].mxu0
        %v2721 = vadd.f32 0.0, %v2720
        %2722 = vmatprep.mubr.f32.mxu0 0.0
        %v2723 = vand.u32 %v426, 4294901760
        %v2724 = vsub.f32 %v426, %v2723
        %v2725 = vand.u32 %v2724, 4294901760
        %v2726 = vsub.f32 %v2724, %v2725
        %v2727 = vand.u32 %v2726, 4294901760
        %2728 = vmatmul.mubr.f32.gmra.mrb[0].mxu0 %v2727
        %v2729 = vpop.f32.mrb[0].mxu0
        %v2730 = vadd.f32 0.0, %v2729
        %v2731 = vpop.f32.mrb[0].mxu0
        %v2732 = vadd.f32 0.0, %v2731
        %2733 = vmatprep.mubr.f32.mxu0 0.0
        %v2734 = vand.u32 %v427, 4294901760
        %v2735 = vsub.f32 %v427, %v2734
        %v2736 = vand.u32 %v2735, 4294901760
        %v2737 = vsub.f32 %v2735, %v2736
        %v2738 = vand.u32 %v2737, 4294901760
        %2739 = vmatmul.mubr.f32.gmra.mrb[0].mxu0 %v2738
        %v2740 = vpop.f32.mrb[0].mxu0
        %v2741 = vadd.f32 0.0, %v2740
        %v2742 = vpop.f32.mrb[0].mxu0
        %v2743 = vadd.f32 0.0, %v2742
        %2744 = vmatprep.mubr.f32.mxu0 0.0
        %v2745 = vand.u32 %v428, 4294901760
        %v2746 = vsub.f32 %v428, %v2745
        %v2747 = vand.u32 %v2746, 4294901760
        %v2748 = vsub.f32 %v2746, %v2747
        %v2749 = vand.u32 %v2748, 4294901760
        %2750 = vmatmul.mubr.f32.gmra.mrb[0].mxu0 %v2749
        %v2751 = vpop.f32.mrb[0].mxu0
        %v2752 = vadd.f32 0.0, %v2751
        %v2753 = vpop.f32.mrb[0].mxu0
        %v2754 = vadd.f32 0.0, %v2753
        %2755 = vmatprep.mubr.f32.mxu0 0.0
        %v2756 = vand.u32 %v429, 4294901760
        %v2757 = vsub.f32 %v429, %v2756
        %v2758 = vand.u32 %v2757, 4294901760
        %v2759 = vsub.f32 %v2757, %v2758
        %v2760 = vand.u32 %v2759, 4294901760
        %2761 = vmatmul.mubr.f32.gmra.mrb[0].mxu0 %v2760
        %v2762 = vpop.f32.mrb[0].mxu0
        %v2763 = vadd.f32 0.0, %v2762
        %v2764 = vpop.f32.mrb[0].mxu0
        %v2765 = vadd.f32 0.0, %v2764
        %2766 = vmatprep.mubr.f32.mxu0 0.0
        %v2767 = vand.u32 %v430, 4294901760
        %v2768 = vsub.f32 %v430, %v2767
        %v2769 = vand.u32 %v2768, 4294901760
        %v2770 = vsub.f32 %v2768, %v2769
        %v2771 = vand.u32 %v2770, 4294901760
        %2772 = vmatmul.mubr.f32.gmra.mrb[0].mxu0 %v2771
        %v2773 = vpop.f32.mrb[0].mxu0
        %v2774 = vadd.f32 0.0, %v2773
        %v2775 = vpop.f32.mrb[0].mxu0
        %v2776 = vadd.f32 0.0, %v2775
        %2777 = vmatprep.mubr.f32.mxu0 0.0
        %v2778 = vand.u32 %v431, 4294901760
        %v2779 = vsub.f32 %v431, %v2778
        %v2780 = vand.u32 %v2779, 4294901760
        %v2781 = vsub.f32 %v2779, %v2780
        %v2782 = vand.u32 %v2781, 4294901760
        %2783 = vmatmul.mubr.f32.gmra.mrb[0].mxu0 %v2782
        %v2784 = vpop.f32.mrb[0].mxu0
        %v2785 = vadd.f32 0.0, %v2784
        %v2786 = vpop.f32.mrb[0].mxu0
        %v2787 = vadd.f32 0.0, %v2786
        %2788 = vmatprep.mubr.f32.mxu0 0.0
        %v2789 = vand.u32 %v432, 4294901760
        %v2790 = vsub.f32 %v432, %v2789
        %v2791 = vand.u32 %v2790, 4294901760
        %v2792 = vsub.f32 %v2790, %v2791
        %v2793 = vand.u32 %v2792, 4294901760
        %2794 = vmatmul.mubr.f32.gmra.mrb[0].mxu0 %v2793
        %v2795 = vpop.f32.mrb[0].mxu0
        %v2796 = vadd.f32 0.0, %v2795
        %v2797 = vpop.f32.mrb[0].mxu0
        %v2798 = vadd.f32 0.0, %v2797
        %2799 = vmatprep.mubr.f32.mxu0 0.0
        %v2800 = vand.u32 %v433, 4294901760
        %v2801 = vsub.f32 %v433, %v2800
        %v2802 = vand.u32 %v2801, 4294901760
        %v2803 = vsub.f32 %v2801, %v2802
        %v2804 = vand.u32 %v2803, 4294901760
        %2805 = vmatmul.mubr.f32.gmra.mrb[0].mxu0 %v2804
        %v2806 = vpop.f32.mrb[0].mxu0
        %v2807 = vadd.f32 0.0, %v2806
        %v2808 = vpop.f32.mrb[0].mxu0
        %v2809 = vadd.f32 0.0, %v2808
        %2810 = vmatprep.mubr.f32.mxu0 0.0
        %v2811 = vand.u32 %v434, 4294901760
        %v2812 = vsub.f32 %v434, %v2811
        %v2813 = vand.u32 %v2812, 4294901760
        %v2814 = vsub.f32 %v2812, %v2813
        %v2815 = vand.u32 %v2814, 4294901760
        %2816 = vmatmul.mubr.f32.gmra.mrb[0].mxu0 %v2815
        %v2817 = vpop.f32.mrb[0].mxu0
        %v2818 = vadd.f32 0.0, %v2817
        %v2819 = vpop.f32.mrb[0].mxu0
        %v2820 = vadd.f32 0.0, %v2819
        %2821 = vmatprep.mubr.f32.mxu0 0.0
        %v2822 = vand.u32 %v435, 4294901760
        %v2823 = vsub.f32 %v435, %v2822
        %v2824 = vand.u32 %v2823, 4294901760
        %v2825 = vsub.f32 %v2823, %v2824
        %v2826 = vand.u32 %v2825, 4294901760
        %2827 = vmatmul.mubr.f32.gmra.mrb[0].mxu0 %v2826
        %v2828 = vpop.f32.mrb[0].mxu0
        %v2829 = vadd.f32 0.0, %v2828
        %v2830 = vpop.f32.mrb[0].mxu0
        %v2831 = vadd.f32 0.0, %v2830
        %2832 = vmatprep.mubr.f32.mxu0 0.0
        %v2833 = vand.u32 %v436, 4294901760
        %v2834 = vsub.f32 %v436, %v2833
        %v2835 = vand.u32 %v2834, 4294901760
        %v2836 = vsub.f32 %v2834, %v2835
        %v2837 = vand.u32 %v2836, 4294901760
        %2838 = vmatmul.mubr.f32.gmra.mrb[0].mxu0 %v2837
        %v2839 = vpop.f32.mrb[0].mxu0
        %v2840 = vadd.f32 0.0, %v2839
        %v2841 = vpop.f32.mrb[0].mxu0
        %v2842 = vadd.f32 0.0, %v2841
        %2843 = vdwg.mxu0
        %v2844 = vand.u32 %v440, 4294901760
        %v2845 = vsub.f32 %v440, %v2844
        %v2846 = vand.u32 %v2845, 4294901760
        %v2847 = vsub.f32 %v2845, %v2846
        %v2848 = vand.u32 %v2847, 4294901760
        %2849 = vmatprep.subr.mxu0 %v2848
        %v2850 = vand.u32 %v439, 4294901760
        %v2851 = vsub.f32 %v439, %v2850
        %v2852 = vand.u32 %v2851, 4294901760
        %v2853 = vsub.f32 %v2851, %v2852
        %v2854 = vand.u32 %v2853, 4294901760
        %2855 = vmatpush1.msra.mxu0 %v2854
        %v2856 = vand.u32 %v447, 4294901760
        %v2857 = vsub.f32 %v447, %v2856
        %v2858 = vand.u32 %v2857, 4294901760
        %v2859 = vsub.f32 %v2857, %v2858
        %v2860 = vand.u32 %v2859, 4294901760
        %2861 = vmatprep.subr.mxu0 %v2860
        %v2862 = vand.u32 %v446, 4294901760
        %v2863 = vsub.f32 %v446, %v2862
        %v2864 = vand.u32 %v2863, 4294901760
        %v2865 = vsub.f32 %v2863, %v2864
        %v2866 = vand.u32 %v2865, 4294901760
        %2867 = vmatpush1.msra.mxu0 %v2866
        %v2868 = vand.u32 %v454, 4294901760
        %v2869 = vsub.f32 %v454, %v2868
        %v2870 = vand.u32 %v2869, 4294901760
        %v2871 = vsub.f32 %v2869, %v2870
        %v2872 = vand.u32 %v2871, 4294901760
        %2873 = vmatprep.subr.mxu0 %v2872
        %v2874 = vand.u32 %v453, 4294901760
        %v2875 = vsub.f32 %v453, %v2874
        %v2876 = vand.u32 %v2875, 4294901760
        %v2877 = vsub.f32 %v2875, %v2876
        %v2878 = vand.u32 %v2877, 4294901760
        %2879 = vmatpush1.msra.mxu0 %v2878
        %v2880 = vand.u32 %v461, 4294901760
        %v2881 = vsub.f32 %v461, %v2880
        %v2882 = vand.u32 %v2881, 4294901760
        %v2883 = vsub.f32 %v2881, %v2882
        %v2884 = vand.u32 %v2883, 4294901760
        %2885 = vmatprep.subr.mxu0 %v2884
        %v2886 = vand.u32 %v460, 4294901760
        %v2887 = vsub.f32 %v460, %v2886
        %v2888 = vand.u32 %v2887, 4294901760
        %v2889 = vsub.f32 %v2887, %v2888
        %v2890 = vand.u32 %v2889, 4294901760
        %2891 = vmatpush1.msra.mxu0 %v2890
        %v2892 = vand.u32 %v468, 4294901760
        %v2893 = vsub.f32 %v468, %v2892
        %v2894 = vand.u32 %v2893, 4294901760
        %v2895 = vsub.f32 %v2893, %v2894
        %v2896 = vand.u32 %v2895, 4294901760
        %2897 = vmatprep.subr.mxu0 %v2896
        %v2898 = vand.u32 %v467, 4294901760
        %v2899 = vsub.f32 %v467, %v2898
        %v2900 = vand.u32 %v2899, 4294901760
        %v2901 = vsub.f32 %v2899, %v2900
        %v2902 = vand.u32 %v2901, 4294901760
        %2903 = vmatpush1.msra.mxu0 %v2902
        %v2904 = vand.u32 %v475, 4294901760
        %v2905 = vsub.f32 %v475, %v2904
        %v2906 = vand.u32 %v2905, 4294901760
        %v2907 = vsub.f32 %v2905, %v2906
        %v2908 = vand.u32 %v2907, 4294901760
        %2909 = vmatprep.subr.mxu0 %v2908
        %v2910 = vand.u32 %v474, 4294901760
        %v2911 = vsub.f32 %v474, %v2910
        %v2912 = vand.u32 %v2911, 4294901760
        %v2913 = vsub.f32 %v2911, %v2912
        %v2914 = vand.u32 %v2913, 4294901760
        %2915 = vmatpush1.msra.mxu0 %v2914
        %v2916 = vand.u32 %v482, 4294901760
        %v2917 = vsub.f32 %v482, %v2916
        %v2918 = vand.u32 %v2917, 4294901760
        %v2919 = vsub.f32 %v2917, %v2918
        %v2920 = vand.u32 %v2919, 4294901760
        %2921 = vmatprep.subr.mxu0 %v2920
        %v2922 = vand.u32 %v481, 4294901760
        %v2923 = vsub.f32 %v481, %v2922
        %v2924 = vand.u32 %v2923, 4294901760
        %v2925 = vsub.f32 %v2923, %v2924
        %v2926 = vand.u32 %v2925, 4294901760
        %2927 = vmatpush1.msra.mxu0 %v2926
        %v2928 = vand.u32 %v489, 4294901760
        %v2929 = vsub.f32 %v489, %v2928
        %v2930 = vand.u32 %v2929, 4294901760
        %v2931 = vsub.f32 %v2929, %v2930
        %v2932 = vand.u32 %v2931, 4294901760
        %2933 = vmatprep.subr.mxu0 %v2932
        %v2934 = vand.u32 %v488, 4294901760
        %v2935 = vsub.f32 %v488, %v2934
        %v2936 = vand.u32 %v2935, 4294901760
        %v2937 = vsub.f32 %v2935, %v2936
        %v2938 = vand.u32 %v2937, 4294901760
        %2939 = vmatpush1.msra.mxu0 %v2938
        %v2940 = vand.u32 %v496, 4294901760
        %v2941 = vsub.f32 %v496, %v2940
        %v2942 = vand.u32 %v2941, 4294901760
        %v2943 = vsub.f32 %v2941, %v2942
        %v2944 = vand.u32 %v2943, 4294901760
        %2945 = vmatprep.subr.mxu0 %v2944
        %v2946 = vand.u32 %v495, 4294901760
        %v2947 = vsub.f32 %v495, %v2946
        %v2948 = vand.u32 %v2947, 4294901760
        %v2949 = vsub.f32 %v2947, %v2948
        %v2950 = vand.u32 %v2949, 4294901760
        %2951 = vmatpush1.msra.mxu0 %v2950
        %v2952 = vand.u32 %v503, 4294901760
        %v2953 = vsub.f32 %v503, %v2952
        %v2954 = vand.u32 %v2953, 4294901760
        %v2955 = vsub.f32 %v2953, %v2954
        %v2956 = vand.u32 %v2955, 4294901760
        %2957 = vmatprep.subr.mxu0 %v2956
        %v2958 = vand.u32 %v502, 4294901760
        %v2959 = vsub.f32 %v502, %v2958
        %v2960 = vand.u32 %v2959, 4294901760
        %v2961 = vsub.f32 %v2959, %v2960
        %v2962 = vand.u32 %v2961, 4294901760
        %2963 = vmatpush1.msra.mxu0 %v2962
        %v2964 = vand.u32 %v510, 4294901760
        %v2965 = vsub.f32 %v510, %v2964
        %v2966 = vand.u32 %v2965, 4294901760
        %v2967 = vsub.f32 %v2965, %v2966
        %v2968 = vand.u32 %v2967, 4294901760
        %2969 = vmatprep.subr.mxu0 %v2968
        %v2970 = vand.u32 %v509, 4294901760
        %v2971 = vsub.f32 %v509, %v2970
        %v2972 = vand.u32 %v2971, 4294901760
        %v2973 = vsub.f32 %v2971, %v2972
        %v2974 = vand.u32 %v2973, 4294901760
        %2975 = vmatpush1.msra.mxu0 %v2974
        %v2976 = vand.u32 %v517, 4294901760
        %v2977 = vsub.f32 %v517, %v2976
        %v2978 = vand.u32 %v2977, 4294901760
        %v2979 = vsub.f32 %v2977, %v2978
        %v2980 = vand.u32 %v2979, 4294901760
        %2981 = vmatprep.subr.mxu0 %v2980
        %v2982 = vand.u32 %v516, 4294901760
        %v2983 = vsub.f32 %v516, %v2982
        %v2984 = vand.u32 %v2983, 4294901760
        %v2985 = vsub.f32 %v2983, %v2984
        %v2986 = vand.u32 %v2985, 4294901760
        %2987 = vmatpush1.msra.mxu0 %v2986
        %v2988 = vand.u32 %v524, 4294901760
        %v2989 = vsub.f32 %v524, %v2988
        %v2990 = vand.u32 %v2989, 4294901760
        %v2991 = vsub.f32 %v2989, %v2990
        %v2992 = vand.u32 %v2991, 4294901760
        %2993 = vmatprep.subr.mxu0 %v2992
        %v2994 = vand.u32 %v523, 4294901760
        %v2995 = vsub.f32 %v523, %v2994
        %v2996 = vand.u32 %v2995, 4294901760
        %v2997 = vsub.f32 %v2995, %v2996
        %v2998 = vand.u32 %v2997, 4294901760
        %2999 = vmatpush1.msra.mxu0 %v2998
        %v3000 = vand.u32 %v531, 4294901760
        %v3001 = vsub.f32 %v531, %v3000
        %v3002 = vand.u32 %v3001, 4294901760
        %v3003 = vsub.f32 %v3001, %v3002
        %v3004 = vand.u32 %v3003, 4294901760
        %3005 = vmatprep.subr.mxu0 %v3004
        %v3006 = vand.u32 %v530, 4294901760
        %v3007 = vsub.f32 %v530, %v3006
        %v3008 = vand.u32 %v3007, 4294901760
        %v3009 = vsub.f32 %v3007, %v3008
        %v3010 = vand.u32 %v3009, 4294901760
        %3011 = vmatpush1.msra.mxu0 %v3010
        %v3012 = vand.u32 %v538, 4294901760
        %v3013 = vsub.f32 %v538, %v3012
        %v3014 = vand.u32 %v3013, 4294901760
        %v3015 = vsub.f32 %v3013, %v3014
        %v3016 = vand.u32 %v3015, 4294901760
        %3017 = vmatprep.subr.mxu0 %v3016
        %v3018 = vand.u32 %v537, 4294901760
        %v3019 = vsub.f32 %v537, %v3018
        %v3020 = vand.u32 %v3019, 4294901760
        %v3021 = vsub.f32 %v3019, %v3020
        %v3022 = vand.u32 %v3021, 4294901760
        %3023 = vmatpush1.msra.mxu0 %v3022
        %v3024 = vand.u32 %v545, 4294901760
        %v3025 = vsub.f32 %v545, %v3024
        %v3026 = vand.u32 %v3025, 4294901760
        %v3027 = vsub.f32 %v3025, %v3026
        %v3028 = vand.u32 %v3027, 4294901760
        %3029 = vmatprep.subr.mxu0 %v3028
        %v3030 = vand.u32 %v544, 4294901760
        %v3031 = vsub.f32 %v544, %v3030
        %v3032 = vand.u32 %v3031, 4294901760
        %v3033 = vsub.f32 %v3031, %v3032
        %v3034 = vand.u32 %v3033, 4294901760
        %3035 = vmatpush1.msra.mxu0 %v3034
        %3036 = vmatprep.subr.mxu0 0.0
        %3037 = vmatpush1.msra.mxu0 0.0
        %3038 = vmatprep.subr.mxu0 0.0
        %3039 = vmatpush1.msra.mxu0 0.0
        %3040 = vmatprep.subr.mxu0 0.0
        %3041 = vmatpush1.msra.mxu0 0.0
        %3042 = vmatprep.subr.mxu0 0.0
        %3043 = vmatpush1.msra.mxu0 0.0
        %3044 = vmatprep.subr.mxu0 0.0
        %3045 = vmatpush1.msra.mxu0 0.0
        %3046 = vmatprep.subr.mxu0 0.0
        %3047 = vmatpush1.msra.mxu0 0.0
        %3048 = vmatprep.subr.mxu0 0.0
        %3049 = vmatpush1.msra.mxu0 0.0
        %3050 = vmatprep.subr.mxu0 0.0
        %3051 = vmatpush1.msra.mxu0 0.0
        %3052 = vmatprep.subr.mxu0 0.0
        %3053 = vmatpush1.msra.mxu0 0.0
        %3054 = vmatprep.subr.mxu0 0.0
        %3055 = vmatpush1.msra.mxu0 0.0
        %3056 = vmatprep.subr.mxu0 0.0
        %3057 = vmatpush1.msra.mxu0 0.0
        %3058 = vmatprep.subr.mxu0 0.0
        %3059 = vmatpush1.msra.mxu0 0.0
        %3060 = vmatprep.subr.mxu0 0.0
        %3061 = vmatpush1.msra.mxu0 0.0
        %3062 = vmatprep.subr.mxu0 0.0
        %3063 = vmatpush1.msra.mxu0 0.0
        %3064 = vmatprep.subr.mxu0 0.0
        %3065 = vmatpush1.msra.mxu0 0.0
        %3066 = vmatprep.subr.mxu0 0.0
        %3067 = vmatpush1.msra.mxu0 0.0
        %3068 = vmatprep.mubr.f32.mxu0 0.0
        %v3069 = vand.u32 %v413, 4294901760
        %3070 = vmatmul.mubr.f32.gmra.mrb[0].mxu0 %v3069
        %v3071 = vpop.f32.mrb[0].mxu0
        %v3072 = vadd.f32 %v2587, %v3071
        %v3073 = vpop.f32.mrb[0].mxu0
        %v3074 = vadd.f32 %v2589, %v3073
        %3075 = vmatprep.mubr.f32.mxu0 0.0
        %v3076 = vand.u32 %v414, 4294901760
        %3077 = vmatmul.mubr.f32.gmra.mrb[0].mxu0 %v3076
        %v3078 = vpop.f32.mrb[0].mxu0
        %v3079 = vadd.f32 %v2598, %v3078
        %v3080 = vpop.f32.mrb[0].mxu0
        %v3081 = vadd.f32 %v2600, %v3080
        %3082 = vmatprep.mubr.f32.mxu0 0.0
        %v3083 = vand.u32 %v415, 4294901760
        %3084 = vmatmul.mubr.f32.gmra.mrb[0].mxu0 %v3083
        %v3085 = vpop.f32.mrb[0].mxu0
        %v3086 = vadd.f32 %v2609, %v3085
        %v3087 = vpop.f32.mrb[0].mxu0
        %v3088 = vadd.f32 %v2611, %v3087
        %3089 = vmatprep.mubr.f32.mxu0 0.0
        %v3090 = vand.u32 %v416, 4294901760
        %3091 = vmatmul.mubr.f32.gmra.mrb[0].mxu0 %v3090
        %v3092 = vpop.f32.mrb[0].mxu0
        %v3093 = vadd.f32 %v2620, %v3092
        %v3094 = vpop.f32.mrb[0].mxu0
        %v3095 = vadd.f32 %v2622, %v3094
        %3096 = vmatprep.mubr.f32.mxu0 0.0
        %v3097 = vand.u32 %v417, 4294901760
        %3098 = vmatmul.mubr.f32.gmra.mrb[0].mxu0 %v3097
        %v3099 = vpop.f32.mrb[0].mxu0
        %v3100 = vadd.f32 %v2631, %v3099
        %v3101 = vpop.f32.mrb[0].mxu0
        %v3102 = vadd.f32 %v2633, %v3101
        %3103 = vmatprep.mubr.f32.mxu0 0.0
        %v3104 = vand.u32 %v418, 4294901760
        %3105 = vmatmul.mubr.f32.gmra.mrb[0].mxu0 %v3104
        %v3106 = vpop.f32.mrb[0].mxu0
        %v3107 = vadd.f32 %v2642, %v3106
        %v3108 = vpop.f32.mrb[0].mxu0
        %v3109 = vadd.f32 %v2644, %v3108
        %3110 = vmatprep.mubr.f32.mxu0 0.0
        %v3111 = vand.u32 %v419, 4294901760
        %3112 = vmatmul.mubr.f32.gmra.mrb[0].mxu0 %v3111
        %v3113 = vpop.f32.mrb[0].mxu0
        %v3114 = vadd.f32 %v2653, %v3113
        %v3115 = vpop.f32.mrb[0].mxu0
        %v3116 = vadd.f32 %v2655, %v3115
        %3117 = vmatprep.mubr.f32.mxu0 0.0
        %v3118 = vand.u32 %v420, 4294901760
        %3119 = vmatmul.mubr.f32.gmra.mrb[0].mxu0 %v3118
        %v3120 = vpop.f32.mrb[0].mxu0
        %v3121 = vadd.f32 %v2664, %v3120
        %v3122 = vpop.f32.mrb[0].mxu0
        %v3123 = vadd.f32 %v2666, %v3122
        %3124 = vmatprep.mubr.f32.mxu0 0.0
        %v3125 = vand.u32 %v421, 4294901760
        %3126 = vmatmul.mubr.f32.gmra.mrb[0].mxu0 %v3125
        %v3127 = vpop.f32.mrb[0].mxu0
        %v3128 = vadd.f32 %v2675, %v3127
        %v3129 = vpop.f32.mrb[0].mxu0
        %v3130 = vadd.f32 %v2677, %v3129
        %3131 = vmatprep.mubr.f32.mxu0 0.0
        %v3132 = vand.u32 %v422, 4294901760
        %3133 = vmatmul.mubr.f32.gmra.mrb[0].mxu0 %v3132
        %v3134 = vpop.f32.mrb[0].mxu0
        %v3135 = vadd.f32 %v2686, %v3134
        %v3136 = vpop.f32.mrb[0].mxu0
        %v3137 = vadd.f32 %v2688, %v3136
        %3138 = vmatprep.mubr.f32.mxu0 0.0
        %v3139 = vand.u32 %v423, 4294901760
        %3140 = vmatmul.mubr.f32.gmra.mrb[0].mxu0 %v3139
        %v3141 = vpop.f32.mrb[0].mxu0
        %v3142 = vadd.f32 %v2697, %v3141
        %v3143 = vpop.f32.mrb[0].mxu0
        %v3144 = vadd.f32 %v2699, %v3143
        %3145 = vmatprep.mubr.f32.mxu0 0.0
        %v3146 = vand.u32 %v424, 4294901760
        %3147 = vmatmul.mubr.f32.gmra.mrb[0].mxu0 %v3146
        %v3148 = vpop.f32.mrb[0].mxu0
        %v3149 = vadd.f32 %v2708, %v3148
        %v3150 = vpop.f32.mrb[0].mxu0
        %v3151 = vadd.f32 %v2710, %v3150
        %3152 = vmatprep.mubr.f32.mxu0 0.0
        %v3153 = vand.u32 %v425, 4294901760
        %3154 = vmatmul.mubr.f32.gmra.mrb[0].mxu0 %v3153
        %v3155 = vpop.f32.mrb[0].mxu0
        %v3156 = vadd.f32 %v2719, %v3155
        %v3157 = vpop.f32.mrb[0].mxu0
        %v3158 = vadd.f32 %v2721, %v3157
        %3159 = vmatprep.mubr.f32.mxu0 0.0
        %v3160 = vand.u32 %v426, 4294901760
        %3161 = vmatmul.mubr.f32.gmra.mrb[0].mxu0 %v3160
        %v3162 = vpop.f32.mrb[0].mxu0
        %v3163 = vadd.f32 %v2730, %v3162
        %v3164 = vpop.f32.mrb[0].mxu0
        %v3165 = vadd.f32 %v2732, %v3164
        %3166 = vmatprep.mubr.f32.mxu0 0.0
        %v3167 = vand.u32 %v427, 4294901760
        %3168 = vmatmul.mubr.f32.gmra.mrb[0].mxu0 %v3167
        %v3169 = vpop.f32.mrb[0].mxu0
        %v3170 = vadd.f32 %v2741, %v3169
        %v3171 = vpop.f32.mrb[0].mxu0
        %v3172 = vadd.f32 %v2743, %v3171
        %3173 = vmatprep.mubr.f32.mxu0 0.0
        %v3174 = vand.u32 %v428, 4294901760
        %3175 = vmatmul.mubr.f32.gmra.mrb[0].mxu0 %v3174
        %v3176 = vpop.f32.mrb[0].mxu0
        %v3177 = vadd.f32 %v2752, %v3176
        %v3178 = vpop.f32.mrb[0].mxu0
        %v3179 = vadd.f32 %v2754, %v3178
        %3180 = vmatprep.mubr.f32.mxu0 0.0
        %v3181 = vand.u32 %v429, 4294901760
        %3182 = vmatmul.mubr.f32.gmra.mrb[0].mxu0 %v3181
        %v3183 = vpop.f32.mrb[0].mxu0
        %v3184 = vadd.f32 %v2763, %v3183
        %v3185 = vpop.f32.mrb[0].mxu0
        %v3186 = vadd.f32 %v2765, %v3185
        %3187 = vmatprep.mubr.f32.mxu0 0.0
        %v3188 = vand.u32 %v430, 4294901760
        %3189 = vmatmul.mubr.f32.gmra.mrb[0].mxu0 %v3188
        %v3190 = vpop.f32.mrb[0].mxu0
        %v3191 = vadd.f32 %v2774, %v3190
        %v3192 = vpop.f32.mrb[0].mxu0
        %v3193 = vadd.f32 %v2776, %v3192
        %3194 = vmatprep.mubr.f32.mxu0 0.0
        %v3195 = vand.u32 %v431, 4294901760
        %3196 = vmatmul.mubr.f32.gmra.mrb[0].mxu0 %v3195
        %v3197 = vpop.f32.mrb[0].mxu0
        %v3198 = vadd.f32 %v2785, %v3197
        %v3199 = vpop.f32.mrb[0].mxu0
        %v3200 = vadd.f32 %v2787, %v3199
        %3201 = vmatprep.mubr.f32.mxu0 0.0
        %v3202 = vand.u32 %v432, 4294901760
        %3203 = vmatmul.mubr.f32.gmra.mrb[0].mxu0 %v3202
        %v3204 = vpop.f32.mrb[0].mxu0
        %v3205 = vadd.f32 %v2796, %v3204
        %v3206 = vpop.f32.mrb[0].mxu0
        %v3207 = vadd.f32 %v2798, %v3206
        %3208 = vmatprep.mubr.f32.mxu0 0.0
        %v3209 = vand.u32 %v433, 4294901760
        %3210 = vmatmul.mubr.f32.gmra.mrb[0].mxu0 %v3209
        %v3211 = vpop.f32.mrb[0].mxu0
        %v3212 = vadd.f32 %v2807, %v3211
        %v3213 = vpop.f32.mrb[0].mxu0
        %v3214 = vadd.f32 %v2809, %v3213
        %3215 = vmatprep.mubr.f32.mxu0 0.0
        %v3216 = vand.u32 %v434, 4294901760
        %3217 = vmatmul.mubr.f32.gmra.mrb[0].mxu0 %v3216
        %v3218 = vpop.f32.mrb[0].mxu0
        %v3219 = vadd.f32 %v2818, %v3218
        %v3220 = vpop.f32.mrb[0].mxu0
        %v3221 = vadd.f32 %v2820, %v3220
        %3222 = vmatprep.mubr.f32.mxu0 0.0
        %v3223 = vand.u32 %v435, 4294901760
        %3224 = vmatmul.mubr.f32.gmra.mrb[0].mxu0 %v3223
        %v3225 = vpop.f32.mrb[0].mxu0
        %v3226 = vadd.f32 %v2829, %v3225
        %v3227 = vpop.f32.mrb[0].mxu0
        %v3228 = vadd.f32 %v2831, %v3227
        %3229 = vmatprep.mubr.f32.mxu0 0.0
        %v3230 = vand.u32 %v436, 4294901760
        %3231 = vmatmul.mubr.f32.gmra.mrb[0].mxu0 %v3230
        %v3232 = vpop.f32.mrb[0].mxu0
        %v3233 = vadd.f32 %v2840, %v3232
        %v3234 = vpop.f32.mrb[0].mxu0
        %v3235 = vadd.f32 %v2842, %v3234
        %3236 = vdwg.mxu0
        %v3237 = vand.u32 %v440, 4294901760
        %v3238 = vsub.f32 %v440, %v3237
        %3239 = vmatprep.subr.mxu0 %v3238
        %v3240 = vand.u32 %v439, 4294901760
        %v3241 = vsub.f32 %v439, %v3240
        %3242 = vmatpush1.msra.mxu0 %v3241
        %v3243 = vand.u32 %v447, 4294901760
        %v3244 = vsub.f32 %v447, %v3243
        %3245 = vmatprep.subr.mxu0 %v3244
        %v3246 = vand.u32 %v446, 4294901760
        %v3247 = vsub.f32 %v446, %v3246
        %3248 = vmatpush1.msra.mxu0 %v3247
        %v3249 = vand.u32 %v454, 4294901760
        %v3250 = vsub.f32 %v454, %v3249
        %3251 = vmatprep.subr.mxu0 %v3250
        %v3252 = vand.u32 %v453, 4294901760
        %v3253 = vsub.f32 %v453, %v3252
        %3254 = vmatpush1.msra.mxu0 %v3253
        %v3255 = vand.u32 %v461, 4294901760
        %v3256 = vsub.f32 %v461, %v3255
        %3257 = vmatprep.subr.mxu0 %v3256
        %v3258 = vand.u32 %v460, 4294901760
        %v3259 = vsub.f32 %v460, %v3258
        %3260 = vmatpush1.msra.mxu0 %v3259
        %v3261 = vand.u32 %v468, 4294901760
        %v3262 = vsub.f32 %v468, %v3261
        %3263 = vmatprep.subr.mxu0 %v3262
        %v3264 = vand.u32 %v467, 4294901760
        %v3265 = vsub.f32 %v467, %v3264
        %3266 = vmatpush1.msra.mxu0 %v3265
        %v3267 = vand.u32 %v475, 4294901760
        %v3268 = vsub.f32 %v475, %v3267
        %3269 = vmatprep.subr.mxu0 %v3268
        %v3270 = vand.u32 %v474, 4294901760
        %v3271 = vsub.f32 %v474, %v3270
        %3272 = vmatpush1.msra.mxu0 %v3271
        %v3273 = vand.u32 %v482, 4294901760
        %v3274 = vsub.f32 %v482, %v3273
        %3275 = vmatprep.subr.mxu0 %v3274
        %v3276 = vand.u32 %v481, 4294901760
        %v3277 = vsub.f32 %v481, %v3276
        %3278 = vmatpush1.msra.mxu0 %v3277
        %v3279 = vand.u32 %v489, 4294901760
        %v3280 = vsub.f32 %v489, %v3279
        %3281 = vmatprep.subr.mxu0 %v3280
        %v3282 = vand.u32 %v488, 4294901760
        %v3283 = vsub.f32 %v488, %v3282
        %3284 = vmatpush1.msra.mxu0 %v3283
        %v3285 = vand.u32 %v496, 4294901760
        %v3286 = vsub.f32 %v496, %v3285
        %3287 = vmatprep.subr.mxu0 %v3286
        %v3288 = vand.u32 %v495, 4294901760
        %v3289 = vsub.f32 %v495, %v3288
        %3290 = vmatpush1.msra.mxu0 %v3289
        %v3291 = vand.u32 %v503, 4294901760
        %v3292 = vsub.f32 %v503, %v3291
        %3293 = vmatprep.subr.mxu0 %v3292
        %v3294 = vand.u32 %v502, 4294901760
        %v3295 = vsub.f32 %v502, %v3294
        %3296 = vmatpush1.msra.mxu0 %v3295
        %v3297 = vand.u32 %v510, 4294901760
        %v3298 = vsub.f32 %v510, %v3297
        %3299 = vmatprep.subr.mxu0 %v3298
        %v3300 = vand.u32 %v509, 4294901760
        %v3301 = vsub.f32 %v509, %v3300
        %3302 = vmatpush1.msra.mxu0 %v3301
        %v3303 = vand.u32 %v517, 4294901760
        %v3304 = vsub.f32 %v517, %v3303
        %3305 = vmatprep.subr.mxu0 %v3304
        %v3306 = vand.u32 %v516, 4294901760
        %v3307 = vsub.f32 %v516, %v3306
        %3308 = vmatpush1.msra.mxu0 %v3307
        %v3309 = vand.u32 %v524, 4294901760
        %v3310 = vsub.f32 %v524, %v3309
        %3311 = vmatprep.subr.mxu0 %v3310
        %v3312 = vand.u32 %v523, 4294901760
        %v3313 = vsub.f32 %v523, %v3312
        %3314 = vmatpush1.msra.mxu0 %v3313
        %v3315 = vand.u32 %v531, 4294901760
        %v3316 = vsub.f32 %v531, %v3315
        %3317 = vmatprep.subr.mxu0 %v3316
        %v3318 = vand.u32 %v530, 4294901760
        %v3319 = vsub.f32 %v530, %v3318
        %3320 = vmatpush1.msra.mxu0 %v3319
        %v3321 = vand.u32 %v538, 4294901760
        %v3322 = vsub.f32 %v538, %v3321
        %3323 = vmatprep.subr.mxu0 %v3322
        %v3324 = vand.u32 %v537, 4294901760
        %v3325 = vsub.f32 %v537, %v3324
        %3326 = vmatpush1.msra.mxu0 %v3325
        %v3327 = vand.u32 %v545, 4294901760
        %v3328 = vsub.f32 %v545, %v3327
        %3329 = vmatprep.subr.mxu0 %v3328
        %v3330 = vand.u32 %v544, 4294901760
        %v3331 = vsub.f32 %v544, %v3330
        %3332 = vmatpush1.msra.mxu0 %v3331
        %3333 = vmatprep.subr.mxu0 0.0
        %3334 = vmatpush1.msra.mxu0 0.0
        %3335 = vmatprep.subr.mxu0 0.0
        %3336 = vmatpush1.msra.mxu0 0.0
        %3337 = vmatprep.subr.mxu0 0.0
        %3338 = vmatpush1.msra.mxu0 0.0
        %3339 = vmatprep.subr.mxu0 0.0
        %3340 = vmatpush1.msra.mxu0 0.0
        %3341 = vmatprep.subr.mxu0 0.0
        %3342 = vmatpush1.msra.mxu0 0.0
        %3343 = vmatprep.subr.mxu0 0.0
        %3344 = vmatpush1.msra.mxu0 0.0
        %3345 = vmatprep.subr.mxu0 0.0
        %3346 = vmatpush1.msra.mxu0 0.0
        %3347 = vmatprep.subr.mxu0 0.0
        %3348 = vmatpush1.msra.mxu0 0.0
        %3349 = vmatprep.subr.mxu0 0.0
        %3350 = vmatpush1.msra.mxu0 0.0
        %3351 = vmatprep.subr.mxu0 0.0
        %3352 = vmatpush1.msra.mxu0 0.0
        %3353 = vmatprep.subr.mxu0 0.0
        %3354 = vmatpush1.msra.mxu0 0.0
        %3355 = vmatprep.subr.mxu0 0.0
        %3356 = vmatpush1.msra.mxu0 0.0
        %3357 = vmatprep.subr.mxu0 0.0
        %3358 = vmatpush1.msra.mxu0 0.0
        %3359 = vmatprep.subr.mxu0 0.0
        %3360 = vmatpush1.msra.mxu0 0.0
        %3361 = vmatprep.subr.mxu0 0.0
        %3362 = vmatpush1.msra.mxu0 0.0
        %3363 = vmatprep.subr.mxu0 0.0
        %3364 = vmatpush1.msra.mxu0 0.0
        %3365 = vmatprep.mubr.f32.mxu0 0.0
        %v3366 = vand.u32 %v413, 4294901760
        %v3367 = vsub.f32 %v413, %v3366
        %3368 = vmatmul.mubr.f32.gmra.mrb[0].mxu0 %v3367
        %v3369 = vpop.f32.mrb[0].mxu0
        %v3370 = vadd.f32 %v3072, %v3369
        %v3371 = vpop.f32.mrb[0].mxu0
        %v3372 = vadd.f32 %v3074, %v3371
        %3373 = vmatprep.mubr.f32.mxu0 0.0
        %v3374 = vand.u32 %v414, 4294901760
        %v3375 = vsub.f32 %v414, %v3374
        %3376 = vmatmul.mubr.f32.gmra.mrb[0].mxu0 %v3375
        %v3377 = vpop.f32.mrb[0].mxu0
        %v3378 = vadd.f32 %v3079, %v3377
        %v3379 = vpop.f32.mrb[0].mxu0
        %v3380 = vadd.f32 %v3081, %v3379
        %3381 = vmatprep.mubr.f32.mxu0 0.0
        %v3382 = vand.u32 %v415, 4294901760
        %v3383 = vsub.f32 %v415, %v3382
        %3384 = vmatmul.mubr.f32.gmra.mrb[0].mxu0 %v3383
        %v3385 = vpop.f32.mrb[0].mxu0
        %v3386 = vadd.f32 %v3086, %v3385
        %v3387 = vpop.f32.mrb[0].mxu0
        %v3388 = vadd.f32 %v3088, %v3387
        %3389 = vmatprep.mubr.f32.mxu0 0.0
        %v3390 = vand.u32 %v416, 4294901760
        %v3391 = vsub.f32 %v416, %v3390
        %3392 = vmatmul.mubr.f32.gmra.mrb[0].mxu0 %v3391
        %v3393 = vpop.f32.mrb[0].mxu0
        %v3394 = vadd.f32 %v3093, %v3393
        %v3395 = vpop.f32.mrb[0].mxu0
        %v3396 = vadd.f32 %v3095, %v3395
        %3397 = vmatprep.mubr.f32.mxu0 0.0
        %v3398 = vand.u32 %v417, 4294901760
        %v3399 = vsub.f32 %v417, %v3398
        %3400 = vmatmul.mubr.f32.gmra.mrb[0].mxu0 %v3399
        %v3401 = vpop.f32.mrb[0].mxu0
        %v3402 = vadd.f32 %v3100, %v3401
        %v3403 = vpop.f32.mrb[0].mxu0
        %v3404 = vadd.f32 %v3102, %v3403
        %3405 = vmatprep.mubr.f32.mxu0 0.0
        %v3406 = vand.u32 %v418, 4294901760
        %v3407 = vsub.f32 %v418, %v3406
        %3408 = vmatmul.mubr.f32.gmra.mrb[0].mxu0 %v3407
        %v3409 = vpop.f32.mrb[0].mxu0
        %v3410 = vadd.f32 %v3107, %v3409
        %v3411 = vpop.f32.mrb[0].mxu0
        %v3412 = vadd.f32 %v3109, %v3411
        %3413 = vmatprep.mubr.f32.mxu0 0.0
        %v3414 = vand.u32 %v419, 4294901760
        %v3415 = vsub.f32 %v419, %v3414
        %3416 = vmatmul.mubr.f32.gmra.mrb[0].mxu0 %v3415
        %v3417 = vpop.f32.mrb[0].mxu0
        %v3418 = vadd.f32 %v3114, %v3417
        %v3419 = vpop.f32.mrb[0].mxu0
        %v3420 = vadd.f32 %v3116, %v3419
        %3421 = vmatprep.mubr.f32.mxu0 0.0
        %v3422 = vand.u32 %v420, 4294901760
        %v3423 = vsub.f32 %v420, %v3422
        %3424 = vmatmul.mubr.f32.gmra.mrb[0].mxu0 %v3423
        %v3425 = vpop.f32.mrb[0].mxu0
        %v3426 = vadd.f32 %v3121, %v3425
        %v3427 = vpop.f32.mrb[0].mxu0
        %v3428 = vadd.f32 %v3123, %v3427
        %3429 = vmatprep.mubr.f32.mxu0 0.0
        %v3430 = vand.u32 %v421, 4294901760
        %v3431 = vsub.f32 %v421, %v3430
        %3432 = vmatmul.mubr.f32.gmra.mrb[0].mxu0 %v3431
        %v3433 = vpop.f32.mrb[0].mxu0
        %v3434 = vadd.f32 %v3128, %v3433
        %v3435 = vpop.f32.mrb[0].mxu0
        %v3436 = vadd.f32 %v3130, %v3435
        %3437 = vmatprep.mubr.f32.mxu0 0.0
        %v3438 = vand.u32 %v422, 4294901760
        %v3439 = vsub.f32 %v422, %v3438
        %3440 = vmatmul.mubr.f32.gmra.mrb[0].mxu0 %v3439
        %v3441 = vpop.f32.mrb[0].mxu0
        %v3442 = vadd.f32 %v3135, %v3441
        %v3443 = vpop.f32.mrb[0].mxu0
        %v3444 = vadd.f32 %v3137, %v3443
        %3445 = vmatprep.mubr.f32.mxu0 0.0
        %v3446 = vand.u32 %v423, 4294901760
        %v3447 = vsub.f32 %v423, %v3446
        %3448 = vmatmul.mubr.f32.gmra.mrb[0].mxu0 %v3447
        %v3449 = vpop.f32.mrb[0].mxu0
        %v3450 = vadd.f32 %v3142, %v3449
        %v3451 = vpop.f32.mrb[0].mxu0
        %v3452 = vadd.f32 %v3144, %v3451
        %3453 = vmatprep.mubr.f32.mxu0 0.0
        %v3454 = vand.u32 %v424, 4294901760
        %v3455 = vsub.f32 %v424, %v3454
        %3456 = vmatmul.mubr.f32.gmra.mrb[0].mxu0 %v3455
        %v3457 = vpop.f32.mrb[0].mxu0
        %v3458 = vadd.f32 %v3149, %v3457
        %v3459 = vpop.f32.mrb[0].mxu0
        %v3460 = vadd.f32 %v3151, %v3459
        %3461 = vmatprep.mubr.f32.mxu0 0.0
        %v3462 = vand.u32 %v425, 4294901760
        %v3463 = vsub.f32 %v425, %v3462
        %3464 = vmatmul.mubr.f32.gmra.mrb[0].mxu0 %v3463
        %v3465 = vpop.f32.mrb[0].mxu0
        %v3466 = vadd.f32 %v3156, %v3465
        %v3467 = vpop.f32.mrb[0].mxu0
        %v3468 = vadd.f32 %v3158, %v3467
        %3469 = vmatprep.mubr.f32.mxu0 0.0
        %v3470 = vand.u32 %v426, 4294901760
        %v3471 = vsub.f32 %v426, %v3470
        %3472 = vmatmul.mubr.f32.gmra.mrb[0].mxu0 %v3471
        %v3473 = vpop.f32.mrb[0].mxu0
        %v3474 = vadd.f32 %v3163, %v3473
        %v3475 = vpop.f32.mrb[0].mxu0
        %v3476 = vadd.f32 %v3165, %v3475
        %3477 = vmatprep.mubr.f32.mxu0 0.0
        %v3478 = vand.u32 %v427, 4294901760
        %v3479 = vsub.f32 %v427, %v3478
        %3480 = vmatmul.mubr.f32.gmra.mrb[0].mxu0 %v3479
        %v3481 = vpop.f32.mrb[0].mxu0
        %v3482 = vadd.f32 %v3170, %v3481
        %v3483 = vpop.f32.mrb[0].mxu0
        %v3484 = vadd.f32 %v3172, %v3483
        %3485 = vmatprep.mubr.f32.mxu0 0.0
        %v3486 = vand.u32 %v428, 4294901760
        %v3487 = vsub.f32 %v428, %v3486
        %3488 = vmatmul.mubr.f32.gmra.mrb[0].mxu0 %v3487
        %v3489 = vpop.f32.mrb[0].mxu0
        %v3490 = vadd.f32 %v3177, %v3489
        %v3491 = vpop.f32.mrb[0].mxu0
        %v3492 = vadd.f32 %v3179, %v3491
        %3493 = vmatprep.mubr.f32.mxu0 0.0
        %v3494 = vand.u32 %v429, 4294901760
        %v3495 = vsub.f32 %v429, %v3494
        %3496 = vmatmul.mubr.f32.gmra.mrb[0].mxu0 %v3495
        %v3497 = vpop.f32.mrb[0].mxu0
        %v3498 = vadd.f32 %v3184, %v3497
        %v3499 = vpop.f32.mrb[0].mxu0
        %v3500 = vadd.f32 %v3186, %v3499
        %3501 = vmatprep.mubr.f32.mxu0 0.0
        %v3502 = vand.u32 %v430, 4294901760
        %v3503 = vsub.f32 %v430, %v3502
        %3504 = vmatmul.mubr.f32.gmra.mrb[0].mxu0 %v3503
        %v3505 = vpop.f32.mrb[0].mxu0
        %v3506 = vadd.f32 %v3191, %v3505
        %v3507 = vpop.f32.mrb[0].mxu0
        %v3508 = vadd.f32 %v3193, %v3507
        %3509 = vmatprep.mubr.f32.mxu0 0.0
        %v3510 = vand.u32 %v431, 4294901760
        %v3511 = vsub.f32 %v431, %v3510
        %3512 = vmatmul.mubr.f32.gmra.mrb[0].mxu0 %v3511
        %v3513 = vpop.f32.mrb[0].mxu0
        %v3514 = vadd.f32 %v3198, %v3513
        %v3515 = vpop.f32.mrb[0].mxu0
        %v3516 = vadd.f32 %v3200, %v3515
        %3517 = vmatprep.mubr.f32.mxu0 0.0
        %v3518 = vand.u32 %v432, 4294901760
        %v3519 = vsub.f32 %v432, %v3518
        %3520 = vmatmul.mubr.f32.gmra.mrb[0].mxu0 %v3519
        %v3521 = vpop.f32.mrb[0].mxu0
        %v3522 = vadd.f32 %v3205, %v3521
        %v3523 = vpop.f32.mrb[0].mxu0
        %v3524 = vadd.f32 %v3207, %v3523
        %3525 = vmatprep.mubr.f32.mxu0 0.0
        %v3526 = vand.u32 %v433, 4294901760
        %v3527 = vsub.f32 %v433, %v3526
        %3528 = vmatmul.mubr.f32.gmra.mrb[0].mxu0 %v3527
        %v3529 = vpop.f32.mrb[0].mxu0
        %v3530 = vadd.f32 %v3212, %v3529
        %v3531 = vpop.f32.mrb[0].mxu0
        %v3532 = vadd.f32 %v3214, %v3531
        %3533 = vmatprep.mubr.f32.mxu0 0.0
        %v3534 = vand.u32 %v434, 4294901760
        %v3535 = vsub.f32 %v434, %v3534
        %3536 = vmatmul.mubr.f32.gmra.mrb[0].mxu0 %v3535
        %v3537 = vpop.f32.mrb[0].mxu0
        %v3538 = vadd.f32 %v3219, %v3537
        %v3539 = vpop.f32.mrb[0].mxu0
        %v3540 = vadd.f32 %v3221, %v3539
        %3541 = vmatprep.mubr.f32.mxu0 0.0
        %v3542 = vand.u32 %v435, 4294901760
        %v3543 = vsub.f32 %v435, %v3542
        %3544 = vmatmul.mubr.f32.gmra.mrb[0].mxu0 %v3543
        %v3545 = vpop.f32.mrb[0].mxu0
        %v3546 = vadd.f32 %v3226, %v3545
        %v3547 = vpop.f32.mrb[0].mxu0
        %v3548 = vadd.f32 %v3228, %v3547
        %3549 = vmatprep.mubr.f32.mxu0 0.0
        %v3550 = vand.u32 %v436, 4294901760
        %v3551 = vsub.f32 %v436, %v3550
        %3552 = vmatmul.mubr.f32.gmra.mrb[0].mxu0 %v3551
        %v3553 = vpop.f32.mrb[0].mxu0
        %v3554 = vadd.f32 %v3233, %v3553
        %v3555 = vpop.f32.mrb[0].mxu0
        %v3556 = vadd.f32 %v3235, %v3555
        %3557 = vdwg.mxu0
        %v3558 = vand.u32 %v440, 4294901760
        %3559 = vmatprep.subr.mxu0 %v3558
        %v3560 = vand.u32 %v439, 4294901760
        %3561 = vmatpush1.msra.mxu0 %v3560
        %v3562 = vand.u32 %v447, 4294901760
        %3563 = vmatprep.subr.mxu0 %v3562
        %v3564 = vand.u32 %v446, 4294901760
        %3565 = vmatpush1.msra.mxu0 %v3564
        %v3566 = vand.u32 %v454, 4294901760
        %3567 = vmatprep.subr.mxu0 %v3566
        %v3568 = vand.u32 %v453, 4294901760
        %3569 = vmatpush1.msra.mxu0 %v3568
        %v3570 = vand.u32 %v461, 4294901760
        %3571 = vmatprep.subr.mxu0 %v3570
        %v3572 = vand.u32 %v460, 4294901760
        %3573 = vmatpush1.msra.mxu0 %v3572
        %v3574 = vand.u32 %v468, 4294901760
        %3575 = vmatprep.subr.mxu0 %v3574
        %v3576 = vand.u32 %v467, 4294901760
        %3577 = vmatpush1.msra.mxu0 %v3576
        %v3578 = vand.u32 %v475, 4294901760
        %3579 = vmatprep.subr.mxu0 %v3578
        %v3580 = vand.u32 %v474, 4294901760
        %3581 = vmatpush1.msra.mxu0 %v3580
        %v3582 = vand.u32 %v482, 4294901760
        %3583 = vmatprep.subr.mxu0 %v3582
        %v3584 = vand.u32 %v481, 4294901760
        %3585 = vmatpush1.msra.mxu0 %v3584
        %v3586 = vand.u32 %v489, 4294901760
        %3587 = vmatprep.subr.mxu0 %v3586
        %v3588 = vand.u32 %v488, 4294901760
        %3589 = vmatpush1.msra.mxu0 %v3588
        %v3590 = vand.u32 %v496, 4294901760
        %3591 = vmatprep.subr.mxu0 %v3590
        %v3592 = vand.u32 %v495, 4294901760
        %3593 = vmatpush1.msra.mxu0 %v3592
        %v3594 = vand.u32 %v503, 4294901760
        %3595 = vmatprep.subr.mxu0 %v3594
        %v3596 = vand.u32 %v502, 4294901760
        %3597 = vmatpush1.msra.mxu0 %v3596
        %v3598 = vand.u32 %v510, 4294901760
        %3599 = vmatprep.subr.mxu0 %v3598
        %v3600 = vand.u32 %v509, 4294901760
        %3601 = vmatpush1.msra.mxu0 %v3600
        %v3602 = vand.u32 %v517, 4294901760
        %3603 = vmatprep.subr.mxu0 %v3602
        %v3604 = vand.u32 %v516, 4294901760
        %3605 = vmatpush1.msra.mxu0 %v3604
        %v3606 = vand.u32 %v524, 4294901760
        %3607 = vmatprep.subr.mxu0 %v3606
        %v3608 = vand.u32 %v523, 4294901760
        %3609 = vmatpush1.msra.mxu0 %v3608
        %v3610 = vand.u32 %v531, 4294901760
        %3611 = vmatprep.subr.mxu0 %v3610
        %v3612 = vand.u32 %v530, 4294901760
        %3613 = vmatpush1.msra.mxu0 %v3612
        %v3614 = vand.u32 %v538, 4294901760
        %3615 = vmatprep.subr.mxu0 %v3614
        %v3616 = vand.u32 %v537, 4294901760
        %3617 = vmatpush1.msra.mxu0 %v3616
        %v3618 = vand.u32 %v545, 4294901760
        %3619 = vmatprep.subr.mxu0 %v3618
        %v3620 = vand.u32 %v544, 4294901760
        %3621 = vmatpush1.msra.mxu0 %v3620
        %3622 = vmatprep.subr.mxu0 0.0
        %3623 = vmatpush1.msra.mxu0 0.0
        %3624 = vmatprep.subr.mxu0 0.0
        %3625 = vmatpush1.msra.mxu0 0.0
        %3626 = vmatprep.subr.mxu0 0.0
        %3627 = vmatpush1.msra.mxu0 0.0
        %3628 = vmatprep.subr.mxu0 0.0
        %3629 = vmatpush1.msra.mxu0 0.0
        %3630 = vmatprep.subr.mxu0 0.0
        %3631 = vmatpush1.msra.mxu0 0.0
        %3632 = vmatprep.subr.mxu0 0.0
        %3633 = vmatpush1.msra.mxu0 0.0
        %3634 = vmatprep.subr.mxu0 0.0
        %3635 = vmatpush1.msra.mxu0 0.0
        %3636 = vmatprep.subr.mxu0 0.0
        %3637 = vmatpush1.msra.mxu0 0.0
        %3638 = vmatprep.subr.mxu0 0.0
        %3639 = vmatpush1.msra.mxu0 0.0
        %3640 = vmatprep.subr.mxu0 0.0
        %3641 = vmatpush1.msra.mxu0 0.0
        %3642 = vmatprep.subr.mxu0 0.0
        %3643 = vmatpush1.msra.mxu0 0.0
        %3644 = vmatprep.subr.mxu0 0.0
        %3645 = vmatpush1.msra.mxu0 0.0
        %3646 = vmatprep.subr.mxu0 0.0
        %3647 = vmatpush1.msra.mxu0 0.0
        %3648 = vmatprep.subr.mxu0 0.0
        %3649 = vmatpush1.msra.mxu0 0.0
        %3650 = vmatprep.subr.mxu0 0.0
        %3651 = vmatpush1.msra.mxu0 0.0
        %3652 = vmatprep.subr.mxu0 0.0
        %3653 = vmatpush1.msra.mxu0 0.0
        %3654 = vmatprep.mubr.f32.mxu0 0.0
        %v3655 = vand.u32 %v413, 4294901760
        %v3656 = vsub.f32 %v413, %v3655
        %v3657 = vand.u32 %v3656, 4294901760
        %3658 = vmatmul.mubr.f32.gmra.mrb[0].mxu0 %v3657
        %v3659 = vpop.f32.mrb[0].mxu0
        %v3660 = vadd.f32 %v3370, %v3659
        %v3661 = vpop.f32.mrb[0].mxu0
        %v3662 = vadd.f32 %v3372, %v3661
        %3663 = vmatprep.mubr.f32.mxu0 0.0
        %v3664 = vand.u32 %v414, 4294901760
        %v3665 = vsub.f32 %v414, %v3664
        %v3666 = vand.u32 %v3665, 4294901760
        %3667 = vmatmul.mubr.f32.gmra.mrb[0].mxu0 %v3666
        %v3668 = vpop.f32.mrb[0].mxu0
        %v3669 = vadd.f32 %v3378, %v3668
        %v3670 = vpop.f32.mrb[0].mxu0
        %v3671 = vadd.f32 %v3380, %v3670
        %3672 = vmatprep.mubr.f32.mxu0 0.0
        %v3673 = vand.u32 %v415, 4294901760
        %v3674 = vsub.f32 %v415, %v3673
        %v3675 = vand.u32 %v3674, 4294901760
        %3676 = vmatmul.mubr.f32.gmra.mrb[0].mxu0 %v3675
        %v3677 = vpop.f32.mrb[0].mxu0
        %v3678 = vadd.f32 %v3386, %v3677
        %v3679 = vpop.f32.mrb[0].mxu0
        %v3680 = vadd.f32 %v3388, %v3679
        %3681 = vmatprep.mubr.f32.mxu0 0.0
        %v3682 = vand.u32 %v416, 4294901760
        %v3683 = vsub.f32 %v416, %v3682
        %v3684 = vand.u32 %v3683, 4294901760
        %3685 = vmatmul.mubr.f32.gmra.mrb[0].mxu0 %v3684
        %v3686 = vpop.f32.mrb[0].mxu0
        %v3687 = vadd.f32 %v3394, %v3686
        %v3688 = vpop.f32.mrb[0].mxu0
        %v3689 = vadd.f32 %v3396, %v3688
        %3690 = vmatprep.mubr.f32.mxu0 0.0
        %v3691 = vand.u32 %v417, 4294901760
        %v3692 = vsub.f32 %v417, %v3691
        %v3693 = vand.u32 %v3692, 4294901760
        %3694 = vmatmul.mubr.f32.gmra.mrb[0].mxu0 %v3693
        %v3695 = vpop.f32.mrb[0].mxu0
        %v3696 = vadd.f32 %v3402, %v3695
        %v3697 = vpop.f32.mrb[0].mxu0
        %v3698 = vadd.f32 %v3404, %v3697
        %3699 = vmatprep.mubr.f32.mxu0 0.0
        %v3700 = vand.u32 %v418, 4294901760
        %v3701 = vsub.f32 %v418, %v3700
        %v3702 = vand.u32 %v3701, 4294901760
        %3703 = vmatmul.mubr.f32.gmra.mrb[0].mxu0 %v3702
        %v3704 = vpop.f32.mrb[0].mxu0
        %v3705 = vadd.f32 %v3410, %v3704
        %v3706 = vpop.f32.mrb[0].mxu0
        %v3707 = vadd.f32 %v3412, %v3706
        %3708 = vmatprep.mubr.f32.mxu0 0.0
        %v3709 = vand.u32 %v419, 4294901760
        %v3710 = vsub.f32 %v419, %v3709
        %v3711 = vand.u32 %v3710, 4294901760
        %3712 = vmatmul.mubr.f32.gmra.mrb[0].mxu0 %v3711
        %v3713 = vpop.f32.mrb[0].mxu0
        %v3714 = vadd.f32 %v3418, %v3713
        %v3715 = vpop.f32.mrb[0].mxu0
        %v3716 = vadd.f32 %v3420, %v3715
        %3717 = vmatprep.mubr.f32.mxu0 0.0
        %v3718 = vand.u32 %v420, 4294901760
        %v3719 = vsub.f32 %v420, %v3718
        %v3720 = vand.u32 %v3719, 4294901760
        %3721 = vmatmul.mubr.f32.gmra.mrb[0].mxu0 %v3720
        %v3722 = vpop.f32.mrb[0].mxu0
        %v3723 = vadd.f32 %v3426, %v3722
        %v3724 = vpop.f32.mrb[0].mxu0
        %v3725 = vadd.f32 %v3428, %v3724
        %3726 = vmatprep.mubr.f32.mxu0 0.0
        %v3727 = vand.u32 %v421, 4294901760
        %v3728 = vsub.f32 %v421, %v3727
        %v3729 = vand.u32 %v3728, 4294901760
        %3730 = vmatmul.mubr.f32.gmra.mrb[0].mxu0 %v3729
        %v3731 = vpop.f32.mrb[0].mxu0
        %v3732 = vadd.f32 %v3434, %v3731
        %v3733 = vpop.f32.mrb[0].mxu0
        %v3734 = vadd.f32 %v3436, %v3733
        %3735 = vmatprep.mubr.f32.mxu0 0.0
        %v3736 = vand.u32 %v422, 4294901760
        %v3737 = vsub.f32 %v422, %v3736
        %v3738 = vand.u32 %v3737, 4294901760
        %3739 = vmatmul.mubr.f32.gmra.mrb[0].mxu0 %v3738
        %v3740 = vpop.f32.mrb[0].mxu0
        %v3741 = vadd.f32 %v3442, %v3740
        %v3742 = vpop.f32.mrb[0].mxu0
        %v3743 = vadd.f32 %v3444, %v3742
        %3744 = vmatprep.mubr.f32.mxu0 0.0
        %v3745 = vand.u32 %v423, 4294901760
        %v3746 = vsub.f32 %v423, %v3745
        %v3747 = vand.u32 %v3746, 4294901760
        %3748 = vmatmul.mubr.f32.gmra.mrb[0].mxu0 %v3747
        %v3749 = vpop.f32.mrb[0].mxu0
        %v3750 = vadd.f32 %v3450, %v3749
        %v3751 = vpop.f32.mrb[0].mxu0
        %v3752 = vadd.f32 %v3452, %v3751
        %3753 = vmatprep.mubr.f32.mxu0 0.0
        %v3754 = vand.u32 %v424, 4294901760
        %v3755 = vsub.f32 %v424, %v3754
        %v3756 = vand.u32 %v3755, 4294901760
        %3757 = vmatmul.mubr.f32.gmra.mrb[0].mxu0 %v3756
        %v3758 = vpop.f32.mrb[0].mxu0
        %v3759 = vadd.f32 %v3458, %v3758
        %v3760 = vpop.f32.mrb[0].mxu0
        %v3761 = vadd.f32 %v3460, %v3760
        %3762 = vmatprep.mubr.f32.mxu0 0.0
        %v3763 = vand.u32 %v425, 4294901760
        %v3764 = vsub.f32 %v425, %v3763
        %v3765 = vand.u32 %v3764, 4294901760
        %3766 = vmatmul.mubr.f32.gmra.mrb[0].mxu0 %v3765
        %v3767 = vpop.f32.mrb[0].mxu0
        %v3768 = vadd.f32 %v3466, %v3767
        %v3769 = vpop.f32.mrb[0].mxu0
        %v3770 = vadd.f32 %v3468, %v3769
        %3771 = vmatprep.mubr.f32.mxu0 0.0
        %v3772 = vand.u32 %v426, 4294901760
        %v3773 = vsub.f32 %v426, %v3772
        %v3774 = vand.u32 %v3773, 4294901760
        %3775 = vmatmul.mubr.f32.gmra.mrb[0].mxu0 %v3774
        %v3776 = vpop.f32.mrb[0].mxu0
        %v3777 = vadd.f32 %v3474, %v3776
        %v3778 = vpop.f32.mrb[0].mxu0
        %v3779 = vadd.f32 %v3476, %v3778
        %3780 = vmatprep.mubr.f32.mxu0 0.0
        %v3781 = vand.u32 %v427, 4294901760
        %v3782 = vsub.f32 %v427, %v3781
        %v3783 = vand.u32 %v3782, 4294901760
        %3784 = vmatmul.mubr.f32.gmra.mrb[0].mxu0 %v3783
        %v3785 = vpop.f32.mrb[0].mxu0
        %v3786 = vadd.f32 %v3482, %v3785
        %v3787 = vpop.f32.mrb[0].mxu0
        %v3788 = vadd.f32 %v3484, %v3787
        %3789 = vmatprep.mubr.f32.mxu0 0.0
        %v3790 = vand.u32 %v428, 4294901760
        %v3791 = vsub.f32 %v428, %v3790
        %v3792 = vand.u32 %v3791, 4294901760
        %3793 = vmatmul.mubr.f32.gmra.mrb[0].mxu0 %v3792
        %v3794 = vpop.f32.mrb[0].mxu0
        %v3795 = vadd.f32 %v3490, %v3794
        %v3796 = vpop.f32.mrb[0].mxu0
        %v3797 = vadd.f32 %v3492, %v3796
        %3798 = vmatprep.mubr.f32.mxu0 0.0
        %v3799 = vand.u32 %v429, 4294901760
        %v3800 = vsub.f32 %v429, %v3799
        %v3801 = vand.u32 %v3800, 4294901760
        %3802 = vmatmul.mubr.f32.gmra.mrb[0].mxu0 %v3801
        %v3803 = vpop.f32.mrb[0].mxu0
        %v3804 = vadd.f32 %v3498, %v3803
        %v3805 = vpop.f32.mrb[0].mxu0
        %v3806 = vadd.f32 %v3500, %v3805
        %3807 = vmatprep.mubr.f32.mxu0 0.0
        %v3808 = vand.u32 %v430, 4294901760
        %v3809 = vsub.f32 %v430, %v3808
        %v3810 = vand.u32 %v3809, 4294901760
        %3811 = vmatmul.mubr.f32.gmra.mrb[0].mxu0 %v3810
        %v3812 = vpop.f32.mrb[0].mxu0
        %v3813 = vadd.f32 %v3506, %v3812
        %v3814 = vpop.f32.mrb[0].mxu0
        %v3815 = vadd.f32 %v3508, %v3814
        %3816 = vmatprep.mubr.f32.mxu0 0.0
        %v3817 = vand.u32 %v431, 4294901760
        %v3818 = vsub.f32 %v431, %v3817
        %v3819 = vand.u32 %v3818, 4294901760
        %3820 = vmatmul.mubr.f32.gmra.mrb[0].mxu0 %v3819
        %v3821 = vpop.f32.mrb[0].mxu0
        %v3822 = vadd.f32 %v3514, %v3821
        %v3823 = vpop.f32.mrb[0].mxu0
        %v3824 = vadd.f32 %v3516, %v3823
        %3825 = vmatprep.mubr.f32.mxu0 0.0
        %v3826 = vand.u32 %v432, 4294901760
        %v3827 = vsub.f32 %v432, %v3826
        %v3828 = vand.u32 %v3827, 4294901760
        %3829 = vmatmul.mubr.f32.gmra.mrb[0].mxu0 %v3828
        %v3830 = vpop.f32.mrb[0].mxu0
        %v3831 = vadd.f32 %v3522, %v3830
        %v3832 = vpop.f32.mrb[0].mxu0
        %v3833 = vadd.f32 %v3524, %v3832
        %3834 = vmatprep.mubr.f32.mxu0 0.0
        %v3835 = vand.u32 %v433, 4294901760
        %v3836 = vsub.f32 %v433, %v3835
        %v3837 = vand.u32 %v3836, 4294901760
        %3838 = vmatmul.mubr.f32.gmra.mrb[0].mxu0 %v3837
        %v3839 = vpop.f32.mrb[0].mxu0
        %v3840 = vadd.f32 %v3530, %v3839
        %v3841 = vpop.f32.mrb[0].mxu0
        %v3842 = vadd.f32 %v3532, %v3841
        %3843 = vmatprep.mubr.f32.mxu0 0.0
        %v3844 = vand.u32 %v434, 4294901760
        %v3845 = vsub.f32 %v434, %v3844
        %v3846 = vand.u32 %v3845, 4294901760
        %3847 = vmatmul.mubr.f32.gmra.mrb[0].mxu0 %v3846
        %v3848 = vpop.f32.mrb[0].mxu0
        %v3849 = vadd.f32 %v3538, %v3848
        %v3850 = vpop.f32.mrb[0].mxu0
        %v3851 = vadd.f32 %v3540, %v3850
        %3852 = vmatprep.mubr.f32.mxu0 0.0
        %v3853 = vand.u32 %v435, 4294901760
        %v3854 = vsub.f32 %v435, %v3853
        %v3855 = vand.u32 %v3854, 4294901760
        %3856 = vmatmul.mubr.f32.gmra.mrb[0].mxu0 %v3855
        %v3857 = vpop.f32.mrb[0].mxu0
        %v3858 = vadd.f32 %v3546, %v3857
        %v3859 = vpop.f32.mrb[0].mxu0
        %v3860 = vadd.f32 %v3548, %v3859
        %3861 = vmatprep.mubr.f32.mxu0 0.0
        %v3862 = vand.u32 %v436, 4294901760
        %v3863 = vsub.f32 %v436, %v3862
        %v3864 = vand.u32 %v3863, 4294901760
        %3865 = vmatmul.mubr.f32.gmra.mrb[0].mxu0 %v3864
        %v3866 = vpop.f32.mrb[0].mxu0
        %v3867 = vadd.f32 %v3554, %v3866
        %v3868 = vpop.f32.mrb[0].mxu0
        %v3869 = vadd.f32 %v3556, %v3868
        %3870 = vdwg.mxu0
        %v3871 = vand.u32 %v440, 4294901760
        %v3872 = vsub.f32 %v440, %v3871
        %v3873 = vand.u32 %v3872, 4294901760
        %3874 = vmatprep.subr.mxu0 %v3873
        %v3875 = vand.u32 %v439, 4294901760
        %v3876 = vsub.f32 %v439, %v3875
        %v3877 = vand.u32 %v3876, 4294901760
        %3878 = vmatpush1.msra.mxu0 %v3877
        %v3879 = vand.u32 %v447, 4294901760
        %v3880 = vsub.f32 %v447, %v3879
        %v3881 = vand.u32 %v3880, 4294901760
        %3882 = vmatprep.subr.mxu0 %v3881
        %v3883 = vand.u32 %v446, 4294901760
        %v3884 = vsub.f32 %v446, %v3883
        %v3885 = vand.u32 %v3884, 4294901760
        %3886 = vmatpush1.msra.mxu0 %v3885
        %v3887 = vand.u32 %v454, 4294901760
        %v3888 = vsub.f32 %v454, %v3887
        %v3889 = vand.u32 %v3888, 4294901760
        %3890 = vmatprep.subr.mxu0 %v3889
        %v3891 = vand.u32 %v453, 4294901760
        %v3892 = vsub.f32 %v453, %v3891
        %v3893 = vand.u32 %v3892, 4294901760
        %3894 = vmatpush1.msra.mxu0 %v3893
        %v3895 = vand.u32 %v461, 4294901760
        %v3896 = vsub.f32 %v461, %v3895
        %v3897 = vand.u32 %v3896, 4294901760
        %3898 = vmatprep.subr.mxu0 %v3897
        %v3899 = vand.u32 %v460, 4294901760
        %v3900 = vsub.f32 %v460, %v3899
        %v3901 = vand.u32 %v3900, 4294901760
        %3902 = vmatpush1.msra.mxu0 %v3901
        %v3903 = vand.u32 %v468, 4294901760
        %v3904 = vsub.f32 %v468, %v3903
        %v3905 = vand.u32 %v3904, 4294901760
        %3906 = vmatprep.subr.mxu0 %v3905
        %v3907 = vand.u32 %v467, 4294901760
        %v3908 = vsub.f32 %v467, %v3907
        %v3909 = vand.u32 %v3908, 4294901760
        %3910 = vmatpush1.msra.mxu0 %v3909
        %v3911 = vand.u32 %v475, 4294901760
        %v3912 = vsub.f32 %v475, %v3911
        %v3913 = vand.u32 %v3912, 4294901760
        %3914 = vmatprep.subr.mxu0 %v3913
        %v3915 = vand.u32 %v474, 4294901760
        %v3916 = vsub.f32 %v474, %v3915
        %v3917 = vand.u32 %v3916, 4294901760
        %3918 = vmatpush1.msra.mxu0 %v3917
        %v3919 = vand.u32 %v482, 4294901760
        %v3920 = vsub.f32 %v482, %v3919
        %v3921 = vand.u32 %v3920, 4294901760
        %3922 = vmatprep.subr.mxu0 %v3921
        %v3923 = vand.u32 %v481, 4294901760
        %v3924 = vsub.f32 %v481, %v3923
        %v3925 = vand.u32 %v3924, 4294901760
        %3926 = vmatpush1.msra.mxu0 %v3925
        %v3927 = vand.u32 %v489, 4294901760
        %v3928 = vsub.f32 %v489, %v3927
        %v3929 = vand.u32 %v3928, 4294901760
        %3930 = vmatprep.subr.mxu0 %v3929
        %v3931 = vand.u32 %v488, 4294901760
        %v3932 = vsub.f32 %v488, %v3931
        %v3933 = vand.u32 %v3932, 4294901760
        %3934 = vmatpush1.msra.mxu0 %v3933
        %v3935 = vand.u32 %v496, 4294901760
        %v3936 = vsub.f32 %v496, %v3935
        %v3937 = vand.u32 %v3936, 4294901760
        %3938 = vmatprep.subr.mxu0 %v3937
        %v3939 = vand.u32 %v495, 4294901760
        %v3940 = vsub.f32 %v495, %v3939
        %v3941 = vand.u32 %v3940, 4294901760
        %3942 = vmatpush1.msra.mxu0 %v3941
        %v3943 = vand.u32 %v503, 4294901760
        %v3944 = vsub.f32 %v503, %v3943
        %v3945 = vand.u32 %v3944, 4294901760
        %3946 = vmatprep.subr.mxu0 %v3945
        %v3947 = vand.u32 %v502, 4294901760
        %v3948 = vsub.f32 %v502, %v3947
        %v3949 = vand.u32 %v3948, 4294901760
        %3950 = vmatpush1.msra.mxu0 %v3949
        %v3951 = vand.u32 %v510, 4294901760
        %v3952 = vsub.f32 %v510, %v3951
        %v3953 = vand.u32 %v3952, 4294901760
        %3954 = vmatprep.subr.mxu0 %v3953
        %v3955 = vand.u32 %v509, 4294901760
        %v3956 = vsub.f32 %v509, %v3955
        %v3957 = vand.u32 %v3956, 4294901760
        %3958 = vmatpush1.msra.mxu0 %v3957
        %v3959 = vand.u32 %v517, 4294901760
        %v3960 = vsub.f32 %v517, %v3959
        %v3961 = vand.u32 %v3960, 4294901760
        %3962 = vmatprep.subr.mxu0 %v3961
        %v3963 = vand.u32 %v516, 4294901760
        %v3964 = vsub.f32 %v516, %v3963
        %v3965 = vand.u32 %v3964, 4294901760
        %3966 = vmatpush1.msra.mxu0 %v3965
        %v3967 = vand.u32 %v524, 4294901760
        %v3968 = vsub.f32 %v524, %v3967
        %v3969 = vand.u32 %v3968, 4294901760
        %3970 = vmatprep.subr.mxu0 %v3969
        %v3971 = vand.u32 %v523, 4294901760
        %v3972 = vsub.f32 %v523, %v3971
        %v3973 = vand.u32 %v3972, 4294901760
        %3974 = vmatpush1.msra.mxu0 %v3973
        %v3975 = vand.u32 %v531, 4294901760
        %v3976 = vsub.f32 %v531, %v3975
        %v3977 = vand.u32 %v3976, 4294901760
        %3978 = vmatprep.subr.mxu0 %v3977
        %v3979 = vand.u32 %v530, 4294901760
        %v3980 = vsub.f32 %v530, %v3979
        %v3981 = vand.u32 %v3980, 4294901760
        %3982 = vmatpush1.msra.mxu0 %v3981
        %v3983 = vand.u32 %v538, 4294901760
        %v3984 = vsub.f32 %v538, %v3983
        %v3985 = vand.u32 %v3984, 4294901760
        %3986 = vmatprep.subr.mxu0 %v3985
        %v3987 = vand.u32 %v537, 4294901760
        %v3988 = vsub.f32 %v537, %v3987
        %v3989 = vand.u32 %v3988, 4294901760
        %3990 = vmatpush1.msra.mxu0 %v3989
        %v3991 = vand.u32 %v545, 4294901760
        %v3992 = vsub.f32 %v545, %v3991
        %v3993 = vand.u32 %v3992, 4294901760
        %3994 = vmatprep.subr.mxu0 %v3993
        %v3995 = vand.u32 %v544, 4294901760
        %v3996 = vsub.f32 %v544, %v3995
        %v3997 = vand.u32 %v3996, 4294901760
        %3998 = vmatpush1.msra.mxu0 %v3997
        %3999 = vmatprep.subr.mxu0 0.0
        %4000 = vmatpush1.msra.mxu0 0.0
        %4001 = vmatprep.subr.mxu0 0.0
        %4002 = vmatpush1.msra.mxu0 0.0
        %4003 = vmatprep.subr.mxu0 0.0
        %4004 = vmatpush1.msra.mxu0 0.0
        %4005 = vmatprep.subr.mxu0 0.0
        %4006 = vmatpush1.msra.mxu0 0.0
        %4007 = vmatprep.subr.mxu0 0.0
        %4008 = vmatpush1.msra.mxu0 0.0
        %4009 = vmatprep.subr.mxu0 0.0
        %4010 = vmatpush1.msra.mxu0 0.0
        %4011 = vmatprep.subr.mxu0 0.0
        %4012 = vmatpush1.msra.mxu0 0.0
        %4013 = vmatprep.subr.mxu0 0.0
        %4014 = vmatpush1.msra.mxu0 0.0
        %4015 = vmatprep.subr.mxu0 0.0
        %4016 = vmatpush1.msra.mxu0 0.0
        %4017 = vmatprep.subr.mxu0 0.0
        %4018 = vmatpush1.msra.mxu0 0.0
        %4019 = vmatprep.subr.mxu0 0.0
        %4020 = vmatpush1.msra.mxu0 0.0
        %4021 = vmatprep.subr.mxu0 0.0
        %4022 = vmatpush1.msra.mxu0 0.0
        %4023 = vmatprep.subr.mxu0 0.0
        %4024 = vmatpush1.msra.mxu0 0.0
        %4025 = vmatprep.subr.mxu0 0.0
        %4026 = vmatpush1.msra.mxu0 0.0
        %4027 = vmatprep.subr.mxu0 0.0
        %4028 = vmatpush1.msra.mxu0 0.0
        %4029 = vmatprep.subr.mxu0 0.0
        %4030 = vmatpush1.msra.mxu0 0.0
        %4031 = vmatprep.mubr.f32.mxu0 0.0
        %v4032 = vand.u32 %v413, 4294901760
        %4033 = vmatmul.mubr.f32.gmra.mrb[0].mxu0 %v4032
        %v4034 = vpop.f32.mrb[0].mxu0
        %v4035 = vadd.f32 %v3660, %v4034
        %v4036 = vpop.f32.mrb[0].mxu0
        %v4037 = vadd.f32 %v3662, %v4036
        %4038 = vmatprep.mubr.f32.mxu0 0.0
        %v4039 = vand.u32 %v414, 4294901760
        %4040 = vmatmul.mubr.f32.gmra.mrb[0].mxu0 %v4039
        %v4041 = vpop.f32.mrb[0].mxu0
        %v4042 = vadd.f32 %v3669, %v4041
        %v4043 = vpop.f32.mrb[0].mxu0
        %v4044 = vadd.f32 %v3671, %v4043
        %4045 = vmatprep.mubr.f32.mxu0 0.0
        %v4046 = vand.u32 %v415, 4294901760
        %4047 = vmatmul.mubr.f32.gmra.mrb[0].mxu0 %v4046
        %v4048 = vpop.f32.mrb[0].mxu0
        %v4049 = vadd.f32 %v3678, %v4048
        %v4050 = vpop.f32.mrb[0].mxu0
        %v4051 = vadd.f32 %v3680, %v4050
        %4052 = vmatprep.mubr.f32.mxu0 0.0
        %v4053 = vand.u32 %v416, 4294901760
        %4054 = vmatmul.mubr.f32.gmra.mrb[0].mxu0 %v4053
        %v4055 = vpop.f32.mrb[0].mxu0
        %v4056 = vadd.f32 %v3687, %v4055
        %v4057 = vpop.f32.mrb[0].mxu0
        %v4058 = vadd.f32 %v3689, %v4057
        %4059 = vmatprep.mubr.f32.mxu0 0.0
        %v4060 = vand.u32 %v417, 4294901760
        %4061 = vmatmul.mubr.f32.gmra.mrb[0].mxu0 %v4060
        %v4062 = vpop.f32.mrb[0].mxu0
        %v4063 = vadd.f32 %v3696, %v4062
        %v4064 = vpop.f32.mrb[0].mxu0
        %v4065 = vadd.f32 %v3698, %v4064
        %4066 = vmatprep.mubr.f32.mxu0 0.0
        %v4067 = vand.u32 %v418, 4294901760
        %4068 = vmatmul.mubr.f32.gmra.mrb[0].mxu0 %v4067
        %v4069 = vpop.f32.mrb[0].mxu0
        %v4070 = vadd.f32 %v3705, %v4069
        %v4071 = vpop.f32.mrb[0].mxu0
        %v4072 = vadd.f32 %v3707, %v4071
        %4073 = vmatprep.mubr.f32.mxu0 0.0
        %v4074 = vand.u32 %v419, 4294901760
        %4075 = vmatmul.mubr.f32.gmra.mrb[0].mxu0 %v4074
        %v4076 = vpop.f32.mrb[0].mxu0
        %v4077 = vadd.f32 %v3714, %v4076
        %v4078 = vpop.f32.mrb[0].mxu0
        %v4079 = vadd.f32 %v3716, %v4078
        %4080 = vmatprep.mubr.f32.mxu0 0.0
        %v4081 = vand.u32 %v420, 4294901760
        %4082 = vmatmul.mubr.f32.gmra.mrb[0].mxu0 %v4081
        %v4083 = vpop.f32.mrb[0].mxu0
        %v4084 = vadd.f32 %v3723, %v4083
        %v4085 = vpop.f32.mrb[0].mxu0
        %v4086 = vadd.f32 %v3725, %v4085
        %4087 = vmatprep.mubr.f32.mxu0 0.0
        %v4088 = vand.u32 %v421, 4294901760
        %4089 = vmatmul.mubr.f32.gmra.mrb[0].mxu0 %v4088
        %v4090 = vpop.f32.mrb[0].mxu0
        %v4091 = vadd.f32 %v3732, %v4090
        %v4092 = vpop.f32.mrb[0].mxu0
        %v4093 = vadd.f32 %v3734, %v4092
        %4094 = vmatprep.mubr.f32.mxu0 0.0
        %v4095 = vand.u32 %v422, 4294901760
        %4096 = vmatmul.mubr.f32.gmra.mrb[0].mxu0 %v4095
        %v4097 = vpop.f32.mrb[0].mxu0
        %v4098 = vadd.f32 %v3741, %v4097
        %v4099 = vpop.f32.mrb[0].mxu0
        %v4100 = vadd.f32 %v3743, %v4099
        %4101 = vmatprep.mubr.f32.mxu0 0.0
        %v4102 = vand.u32 %v423, 4294901760
        %4103 = vmatmul.mubr.f32.gmra.mrb[0].mxu0 %v4102
        %v4104 = vpop.f32.mrb[0].mxu0
        %v4105 = vadd.f32 %v3750, %v4104
        %v4106 = vpop.f32.mrb[0].mxu0
        %v4107 = vadd.f32 %v3752, %v4106
        %4108 = vmatprep.mubr.f32.mxu0 0.0
        %v4109 = vand.u32 %v424, 4294901760
        %4110 = vmatmul.mubr.f32.gmra.mrb[0].mxu0 %v4109
        %v4111 = vpop.f32.mrb[0].mxu0
        %v4112 = vadd.f32 %v3759, %v4111
        %v4113 = vpop.f32.mrb[0].mxu0
        %v4114 = vadd.f32 %v3761, %v4113
        %4115 = vmatprep.mubr.f32.mxu0 0.0
        %v4116 = vand.u32 %v425, 4294901760
        %4117 = vmatmul.mubr.f32.gmra.mrb[0].mxu0 %v4116
        %v4118 = vpop.f32.mrb[0].mxu0
        %v4119 = vadd.f32 %v3768, %v4118
        %v4120 = vpop.f32.mrb[0].mxu0
        %v4121 = vadd.f32 %v3770, %v4120
        %4122 = vmatprep.mubr.f32.mxu0 0.0
        %v4123 = vand.u32 %v426, 4294901760
        %4124 = vmatmul.mubr.f32.gmra.mrb[0].mxu0 %v4123
        %v4125 = vpop.f32.mrb[0].mxu0
        %v4126 = vadd.f32 %v3777, %v4125
        %v4127 = vpop.f32.mrb[0].mxu0
        %v4128 = vadd.f32 %v3779, %v4127
        %4129 = vmatprep.mubr.f32.mxu0 0.0
        %v4130 = vand.u32 %v427, 4294901760
        %4131 = vmatmul.mubr.f32.gmra.mrb[0].mxu0 %v4130
        %v4132 = vpop.f32.mrb[0].mxu0
        %v4133 = vadd.f32 %v3786, %v4132
        %v4134 = vpop.f32.mrb[0].mxu0
        %v4135 = vadd.f32 %v3788, %v4134
        %4136 = vmatprep.mubr.f32.mxu0 0.0
        %v4137 = vand.u32 %v428, 4294901760
        %4138 = vmatmul.mubr.f32.gmra.mrb[0].mxu0 %v4137
        %v4139 = vpop.f32.mrb[0].mxu0
        %v4140 = vadd.f32 %v3795, %v4139
        %v4141 = vpop.f32.mrb[0].mxu0
        %v4142 = vadd.f32 %v3797, %v4141
        %4143 = vmatprep.mubr.f32.mxu0 0.0
        %v4144 = vand.u32 %v429, 4294901760
        %4145 = vmatmul.mubr.f32.gmra.mrb[0].mxu0 %v4144
        %v4146 = vpop.f32.mrb[0].mxu0
        %v4147 = vadd.f32 %v3804, %v4146
        %v4148 = vpop.f32.mrb[0].mxu0
        %v4149 = vadd.f32 %v3806, %v4148
        %4150 = vmatprep.mubr.f32.mxu0 0.0
        %v4151 = vand.u32 %v430, 4294901760
        %4152 = vmatmul.mubr.f32.gmra.mrb[0].mxu0 %v4151
        %v4153 = vpop.f32.mrb[0].mxu0
        %v4154 = vadd.f32 %v3813, %v4153
        %v4155 = vpop.f32.mrb[0].mxu0
        %v4156 = vadd.f32 %v3815, %v4155
        %4157 = vmatprep.mubr.f32.mxu0 0.0
        %v4158 = vand.u32 %v431, 4294901760
        %4159 = vmatmul.mubr.f32.gmra.mrb[0].mxu0 %v4158
        %v4160 = vpop.f32.mrb[0].mxu0
        %v4161 = vadd.f32 %v3822, %v4160
        %v4162 = vpop.f32.mrb[0].mxu0
        %v4163 = vadd.f32 %v3824, %v4162
        %4164 = vmatprep.mubr.f32.mxu0 0.0
        %v4165 = vand.u32 %v432, 4294901760
        %4166 = vmatmul.mubr.f32.gmra.mrb[0].mxu0 %v4165
        %v4167 = vpop.f32.mrb[0].mxu0
        %v4168 = vadd.f32 %v3831, %v4167
        %v4169 = vpop.f32.mrb[0].mxu0
        %v4170 = vadd.f32 %v3833, %v4169
        %4171 = vmatprep.mubr.f32.mxu0 0.0
        %v4172 = vand.u32 %v433, 4294901760
        %4173 = vmatmul.mubr.f32.gmra.mrb[0].mxu0 %v4172
        %v4174 = vpop.f32.mrb[0].mxu0
        %v4175 = vadd.f32 %v3840, %v4174
        %v4176 = vpop.f32.mrb[0].mxu0
        %v4177 = vadd.f32 %v3842, %v4176
        %4178 = vmatprep.mubr.f32.mxu0 0.0
        %v4179 = vand.u32 %v434, 4294901760
        %4180 = vmatmul.mubr.f32.gmra.mrb[0].mxu0 %v4179
        %v4181 = vpop.f32.mrb[0].mxu0
        %v4182 = vadd.f32 %v3849, %v4181
        %v4183 = vpop.f32.mrb[0].mxu0
        %v4184 = vadd.f32 %v3851, %v4183
        %4185 = vmatprep.mubr.f32.mxu0 0.0
        %v4186 = vand.u32 %v435, 4294901760
        %4187 = vmatmul.mubr.f32.gmra.mrb[0].mxu0 %v4186
        %v4188 = vpop.f32.mrb[0].mxu0
        %v4189 = vadd.f32 %v3858, %v4188
        %v4190 = vpop.f32.mrb[0].mxu0
        %v4191 = vadd.f32 %v3860, %v4190
        %4192 = vmatprep.mubr.f32.mxu0 0.0
        %v4193 = vand.u32 %v436, 4294901760
        %4194 = vmatmul.mubr.f32.gmra.mrb[0].mxu0 %v4193
        %v4195 = vpop.f32.mrb[0].mxu0
        %v4196 = vadd.f32 %v3867, %v4195
        %v4197 = vpop.f32.mrb[0].mxu0
        %v4198 = vadd.f32 %v3869, %v4197
        %4199 = vdwg.mxu0
        %v4200 = vand.u32 %v440, 4294901760
        %4201 = vmatprep.subr.mxu0 %v4200
        %v4202 = vand.u32 %v439, 4294901760
        %4203 = vmatpush1.msra.mxu0 %v4202
        %v4204 = vand.u32 %v447, 4294901760
        %4205 = vmatprep.subr.mxu0 %v4204
        %v4206 = vand.u32 %v446, 4294901760
        %4207 = vmatpush1.msra.mxu0 %v4206
        %v4208 = vand.u32 %v454, 4294901760
        %4209 = vmatprep.subr.mxu0 %v4208
        %v4210 = vand.u32 %v453, 4294901760
        %4211 = vmatpush1.msra.mxu0 %v4210
        %v4212 = vand.u32 %v461, 4294901760
        %4213 = vmatprep.subr.mxu0 %v4212
        %v4214 = vand.u32 %v460, 4294901760
        %4215 = vmatpush1.msra.mxu0 %v4214
        %v4216 = vand.u32 %v468, 4294901760
        %4217 = vmatprep.subr.mxu0 %v4216
        %v4218 = vand.u32 %v467, 4294901760
        %4219 = vmatpush1.msra.mxu0 %v4218
        %v4220 = vand.u32 %v475, 4294901760
        %4221 = vmatprep.subr.mxu0 %v4220
        %v4222 = vand.u32 %v474, 4294901760
        %4223 = vmatpush1.msra.mxu0 %v4222
        %v4224 = vand.u32 %v482, 4294901760
        %4225 = vmatprep.subr.mxu0 %v4224
        %v4226 = vand.u32 %v481, 4294901760
        %4227 = vmatpush1.msra.mxu0 %v4226
        %v4228 = vand.u32 %v489, 4294901760
        %4229 = vmatprep.subr.mxu0 %v4228
        %v4230 = vand.u32 %v488, 4294901760
        %4231 = vmatpush1.msra.mxu0 %v4230
        %v4232 = vand.u32 %v496, 4294901760
        %4233 = vmatprep.subr.mxu0 %v4232
        %v4234 = vand.u32 %v495, 4294901760
        %4235 = vmatpush1.msra.mxu0 %v4234
        %v4236 = vand.u32 %v503, 4294901760
        %4237 = vmatprep.subr.mxu0 %v4236
        %v4238 = vand.u32 %v502, 4294901760
        %4239 = vmatpush1.msra.mxu0 %v4238
        %v4240 = vand.u32 %v510, 4294901760
        %4241 = vmatprep.subr.mxu0 %v4240
        %v4242 = vand.u32 %v509, 4294901760
        %4243 = vmatpush1.msra.mxu0 %v4242
        %v4244 = vand.u32 %v517, 4294901760
        %4245 = vmatprep.subr.mxu0 %v4244
        %v4246 = vand.u32 %v516, 4294901760
        %4247 = vmatpush1.msra.mxu0 %v4246
        %v4248 = vand.u32 %v524, 4294901760
        %4249 = vmatprep.subr.mxu0 %v4248
        %v4250 = vand.u32 %v523, 4294901760
        %4251 = vmatpush1.msra.mxu0 %v4250
        %v4252 = vand.u32 %v531, 4294901760
        %4253 = vmatprep.subr.mxu0 %v4252
        %v4254 = vand.u32 %v530, 4294901760
        %4255 = vmatpush1.msra.mxu0 %v4254
        %v4256 = vand.u32 %v538, 4294901760
        %4257 = vmatprep.subr.mxu0 %v4256
        %v4258 = vand.u32 %v537, 4294901760
        %4259 = vmatpush1.msra.mxu0 %v4258
        %v4260 = vand.u32 %v545, 4294901760
        %4261 = vmatprep.subr.mxu0 %v4260
        %v4262 = vand.u32 %v544, 4294901760
        %4263 = vmatpush1.msra.mxu0 %v4262
        %4264 = vmatprep.subr.mxu0 0.0
        %4265 = vmatpush1.msra.mxu0 0.0
        %4266 = vmatprep.subr.mxu0 0.0
        %4267 = vmatpush1.msra.mxu0 0.0
        %4268 = vmatprep.subr.mxu0 0.0
        %4269 = vmatpush1.msra.mxu0 0.0
        %4270 = vmatprep.subr.mxu0 0.0
        %4271 = vmatpush1.msra.mxu0 0.0
        %4272 = vmatprep.subr.mxu0 0.0
        %4273 = vmatpush1.msra.mxu0 0.0
        %4274 = vmatprep.subr.mxu0 0.0
        %4275 = vmatpush1.msra.mxu0 0.0
        %4276 = vmatprep.subr.mxu0 0.0
        %4277 = vmatpush1.msra.mxu0 0.0
        %4278 = vmatprep.subr.mxu0 0.0
        %4279 = vmatpush1.msra.mxu0 0.0
        %4280 = vmatprep.subr.mxu0 0.0
        %4281 = vmatpush1.msra.mxu0 0.0
        %4282 = vmatprep.subr.mxu0 0.0
        %4283 = vmatpush1.msra.mxu0 0.0
        %4284 = vmatprep.subr.mxu0 0.0
        %4285 = vmatpush1.msra.mxu0 0.0
        %4286 = vmatprep.subr.mxu0 0.0
        %4287 = vmatpush1.msra.mxu0 0.0
        %4288 = vmatprep.subr.mxu0 0.0
        %4289 = vmatpush1.msra.mxu0 0.0
        %4290 = vmatprep.subr.mxu0 0.0
        %4291 = vmatpush1.msra.mxu0 0.0
        %4292 = vmatprep.subr.mxu0 0.0
        %4293 = vmatpush1.msra.mxu0 0.0
        %4294 = vmatprep.subr.mxu0 0.0
        %4295 = vmatpush1.msra.mxu0 0.0
        %4296 = vmatprep.mubr.f32.mxu0 0.0
        %v4297 = vand.u32 %v413, 4294901760
        %4298 = vmatmul.mubr.f32.gmra.mrb[0].mxu0 %v4297
        %v4299 = vpop.f32.mrb[0].mxu0
        %v4300 = vadd.f32 %v4035, %v4299
        %v4301 = vpop.f32.mrb[0].mxu0
        %v4302 = vadd.f32 %v4037, %v4301
        %4303 = vmatprep.mubr.f32.mxu0 0.0
        %v4304 = vand.u32 %v414, 4294901760
        %4305 = vmatmul.mubr.f32.gmra.mrb[0].mxu0 %v4304
        %v4306 = vpop.f32.mrb[0].mxu0
        %v4307 = vadd.f32 %v4042, %v4306
        %v4308 = vpop.f32.mrb[0].mxu0
        %v4309 = vadd.f32 %v4044, %v4308
        %4310 = vmatprep.mubr.f32.mxu0 0.0
        %v4311 = vand.u32 %v415, 4294901760
        %4312 = vmatmul.mubr.f32.gmra.mrb[0].mxu0 %v4311
        %v4313 = vpop.f32.mrb[0].mxu0
        %v4314 = vadd.f32 %v4049, %v4313
        %v4315 = vpop.f32.mrb[0].mxu0
        %v4316 = vadd.f32 %v4051, %v4315
        %4317 = vmatprep.mubr.f32.mxu0 0.0
        %v4318 = vand.u32 %v416, 4294901760
        %4319 = vmatmul.mubr.f32.gmra.mrb[0].mxu0 %v4318
        %v4320 = vpop.f32.mrb[0].mxu0
        %v4321 = vadd.f32 %v4056, %v4320
        %v4322 = vpop.f32.mrb[0].mxu0
        %v4323 = vadd.f32 %v4058, %v4322
        %4324 = vmatprep.mubr.f32.mxu0 0.0
        %v4325 = vand.u32 %v417, 4294901760
        %4326 = vmatmul.mubr.f32.gmra.mrb[0].mxu0 %v4325
        %v4327 = vpop.f32.mrb[0].mxu0
        %v4328 = vadd.f32 %v4063, %v4327
        %v4329 = vpop.f32.mrb[0].mxu0
        %v4330 = vadd.f32 %v4065, %v4329
        %4331 = vmatprep.mubr.f32.mxu0 0.0
        %v4332 = vand.u32 %v418, 4294901760
        %4333 = vmatmul.mubr.f32.gmra.mrb[0].mxu0 %v4332
        %v4334 = vpop.f32.mrb[0].mxu0
        %v4335 = vadd.f32 %v4070, %v4334
        %v4336 = vpop.f32.mrb[0].mxu0
        %v4337 = vadd.f32 %v4072, %v4336
        %4338 = vmatprep.mubr.f32.mxu0 0.0
        %v4339 = vand.u32 %v419, 4294901760
        %4340 = vmatmul.mubr.f32.gmra.mrb[0].mxu0 %v4339
        %v4341 = vpop.f32.mrb[0].mxu0
        %v4342 = vadd.f32 %v4077, %v4341
        %v4343 = vpop.f32.mrb[0].mxu0
        %v4344 = vadd.f32 %v4079, %v4343
        %4345 = vmatprep.mubr.f32.mxu0 0.0
        %v4346 = vand.u32 %v420, 4294901760
        %4347 = vmatmul.mubr.f32.gmra.mrb[0].mxu0 %v4346
        %v4348 = vpop.f32.mrb[0].mxu0
        %v4349 = vadd.f32 %v4084, %v4348
        %v4350 = vpop.f32.mrb[0].mxu0
        %v4351 = vadd.f32 %v4086, %v4350
        %4352 = vmatprep.mubr.f32.mxu0 0.0
        %v4353 = vand.u32 %v421, 4294901760
        %4354 = vmatmul.mubr.f32.gmra.mrb[0].mxu0 %v4353
        %v4355 = vpop.f32.mrb[0].mxu0
        %v4356 = vadd.f32 %v4091, %v4355
        %v4357 = vpop.f32.mrb[0].mxu0
        %v4358 = vadd.f32 %v4093, %v4357
        %4359 = vmatprep.mubr.f32.mxu0 0.0
        %v4360 = vand.u32 %v422, 4294901760
        %4361 = vmatmul.mubr.f32.gmra.mrb[0].mxu0 %v4360
        %v4362 = vpop.f32.mrb[0].mxu0
        %v4363 = vadd.f32 %v4098, %v4362
        %v4364 = vpop.f32.mrb[0].mxu0
        %v4365 = vadd.f32 %v4100, %v4364
        %4366 = vmatprep.mubr.f32.mxu0 0.0
        %v4367 = vand.u32 %v423, 4294901760
        %4368 = vmatmul.mubr.f32.gmra.mrb[0].mxu0 %v4367
        %v4369 = vpop.f32.mrb[0].mxu0
        %v4370 = vadd.f32 %v4105, %v4369
        %v4371 = vpop.f32.mrb[0].mxu0
        %v4372 = vadd.f32 %v4107, %v4371
        %4373 = vmatprep.mubr.f32.mxu0 0.0
        %v4374 = vand.u32 %v424, 4294901760
        %4375 = vmatmul.mubr.f32.gmra.mrb[0].mxu0 %v4374
        %v4376 = vpop.f32.mrb[0].mxu0
        %v4377 = vadd.f32 %v4112, %v4376
        %v4378 = vpop.f32.mrb[0].mxu0
        %v4379 = vadd.f32 %v4114, %v4378
        %4380 = vmatprep.mubr.f32.mxu0 0.0
        %v4381 = vand.u32 %v425, 4294901760
        %4382 = vmatmul.mubr.f32.gmra.mrb[0].mxu0 %v4381
        %v4383 = vpop.f32.mrb[0].mxu0
        %v4384 = vadd.f32 %v4119, %v4383
        %v4385 = vpop.f32.mrb[0].mxu0
        %v4386 = vadd.f32 %v4121, %v4385
        %4387 = vmatprep.mubr.f32.mxu0 0.0
        %v4388 = vand.u32 %v426, 4294901760
        %4389 = vmatmul.mubr.f32.gmra.mrb[0].mxu0 %v4388
        %v4390 = vpop.f32.mrb[0].mxu0
        %v4391 = vadd.f32 %v4126, %v4390
        %v4392 = vpop.f32.mrb[0].mxu0
        %v4393 = vadd.f32 %v4128, %v4392
        %4394 = vmatprep.mubr.f32.mxu0 0.0
        %v4395 = vand.u32 %v427, 4294901760
        %4396 = vmatmul.mubr.f32.gmra.mrb[0].mxu0 %v4395
        %v4397 = vpop.f32.mrb[0].mxu0
        %v4398 = vadd.f32 %v4133, %v4397
        %v4399 = vpop.f32.mrb[0].mxu0
        %v4400 = vadd.f32 %v4135, %v4399
        %4401 = vmatprep.mubr.f32.mxu0 0.0
        %v4402 = vand.u32 %v428, 4294901760
        %4403 = vmatmul.mubr.f32.gmra.mrb[0].mxu0 %v4402
        %v4404 = vpop.f32.mrb[0].mxu0
        %v4405 = vadd.f32 %v4140, %v4404
        %v4406 = vpop.f32.mrb[0].mxu0
        %v4407 = vadd.f32 %v4142, %v4406
        %4408 = vmatprep.mubr.f32.mxu0 0.0
        %v4409 = vand.u32 %v429, 4294901760
        %4410 = vmatmul.mubr.f32.gmra.mrb[0].mxu0 %v4409
        %v4411 = vpop.f32.mrb[0].mxu0
        %v4412 = vadd.f32 %v4147, %v4411
        %v4413 = vpop.f32.mrb[0].mxu0
        %v4414 = vadd.f32 %v4149, %v4413
        %4415 = vmatprep.mubr.f32.mxu0 0.0
        %v4416 = vand.u32 %v430, 4294901760
        %4417 = vmatmul.mubr.f32.gmra.mrb[0].mxu0 %v4416
        %v4418 = vpop.f32.mrb[0].mxu0
        %v4419 = vadd.f32 %v4154, %v4418
        %v4420 = vpop.f32.mrb[0].mxu0
        %v4421 = vadd.f32 %v4156, %v4420
        %4422 = vmatprep.mubr.f32.mxu0 0.0
        %v4423 = vand.u32 %v431, 4294901760
        %4424 = vmatmul.mubr.f32.gmra.mrb[0].mxu0 %v4423
        %v4425 = vpop.f32.mrb[0].mxu0
        %v4426 = vadd.f32 %v4161, %v4425
        %v4427 = vpop.f32.mrb[0].mxu0
        %v4428 = vadd.f32 %v4163, %v4427
        %4429 = vmatprep.mubr.f32.mxu0 0.0
        %v4430 = vand.u32 %v432, 4294901760
        %4431 = vmatmul.mubr.f32.gmra.mrb[0].mxu0 %v4430
        %v4432 = vpop.f32.mrb[0].mxu0
        %v4433 = vadd.f32 %v4168, %v4432
        %v4434 = vpop.f32.mrb[0].mxu0
        %v4435 = vadd.f32 %v4170, %v4434
        %4436 = vmatprep.mubr.f32.mxu0 0.0
        %v4437 = vand.u32 %v433, 4294901760
        %4438 = vmatmul.mubr.f32.gmra.mrb[0].mxu0 %v4437
        %v4439 = vpop.f32.mrb[0].mxu0
        %v4440 = vadd.f32 %v4175, %v4439
        %v4441 = vpop.f32.mrb[0].mxu0
        %v4442 = vadd.f32 %v4177, %v4441
        %4443 = vmatprep.mubr.f32.mxu0 0.0
        %v4444 = vand.u32 %v434, 4294901760
        %4445 = vmatmul.mubr.f32.gmra.mrb[0].mxu0 %v4444
        %v4446 = vpop.f32.mrb[0].mxu0
        %v4447 = vadd.f32 %v4182, %v4446
        %v4448 = vpop.f32.mrb[0].mxu0
        %v4449 = vadd.f32 %v4184, %v4448
        %4450 = vmatprep.mubr.f32.mxu0 0.0
        %v4451 = vand.u32 %v435, 4294901760
        %4452 = vmatmul.mubr.f32.gmra.mrb[0].mxu0 %v4451
        %v4453 = vpop.f32.mrb[0].mxu0
        %v4454 = vadd.f32 %v4189, %v4453
        %v4455 = vpop.f32.mrb[0].mxu0
        %v4456 = vadd.f32 %v4191, %v4455
        %4457 = vmatprep.mubr.f32.mxu0 0.0
        %v4458 = vand.u32 %v436, 4294901760
        %4459 = vmatmul.mubr.f32.gmra.mrb[0].mxu0 %v4458
        %v4460 = vpop.f32.mrb[0].mxu0
        %v4461 = vadd.f32 %v4196, %v4460
        %v4462 = vpop.f32.mrb[0].mxu0
        %v4463 = vadd.f32 %v4198, %v4462
        %4464 = vdwg.mxu0
        %v4465 = vand.u32 %v442, 4294901760
        %4466 = vmatprep.subr.mxu0 %v4465
        %v4467 = vand.u32 %v441, 4294901760
        %4468 = vmatpush1.msra.mxu0 %v4467
        %v4469 = vand.u32 %v449, 4294901760
        %4470 = vmatprep.subr.mxu0 %v4469
        %v4471 = vand.u32 %v448, 4294901760
        %4472 = vmatpush1.msra.mxu0 %v4471
        %v4473 = vand.u32 %v456, 4294901760
        %4474 = vmatprep.subr.mxu0 %v4473
        %v4475 = vand.u32 %v455, 4294901760
        %4476 = vmatpush1.msra.mxu0 %v4475
        %v4477 = vand.u32 %v463, 4294901760
        %4478 = vmatprep.subr.mxu0 %v4477
        %v4479 = vand.u32 %v462, 4294901760
        %4480 = vmatpush1.msra.mxu0 %v4479
        %v4481 = vand.u32 %v470, 4294901760
        %4482 = vmatprep.subr.mxu0 %v4481
        %v4483 = vand.u32 %v469, 4294901760
        %4484 = vmatpush1.msra.mxu0 %v4483
        %v4485 = vand.u32 %v477, 4294901760
        %4486 = vmatprep.subr.mxu0 %v4485
        %v4487 = vand.u32 %v476, 4294901760
        %4488 = vmatpush1.msra.mxu0 %v4487
        %v4489 = vand.u32 %v484, 4294901760
        %4490 = vmatprep.subr.mxu0 %v4489
        %v4491 = vand.u32 %v483, 4294901760
        %4492 = vmatpush1.msra.mxu0 %v4491
        %v4493 = vand.u32 %v491, 4294901760
        %4494 = vmatprep.subr.mxu0 %v4493
        %v4495 = vand.u32 %v490, 4294901760
        %4496 = vmatpush1.msra.mxu0 %v4495
        %v4497 = vand.u32 %v498, 4294901760
        %4498 = vmatprep.subr.mxu0 %v4497
        %v4499 = vand.u32 %v497, 4294901760
        %4500 = vmatpush1.msra.mxu0 %v4499
        %v4501 = vand.u32 %v505, 4294901760
        %4502 = vmatprep.subr.mxu0 %v4501
        %v4503 = vand.u32 %v504, 4294901760
        %4504 = vmatpush1.msra.mxu0 %v4503
        %v4505 = vand.u32 %v512, 4294901760
        %4506 = vmatprep.subr.mxu0 %v4505
        %v4507 = vand.u32 %v511, 4294901760
        %4508 = vmatpush1.msra.mxu0 %v4507
        %v4509 = vand.u32 %v519, 4294901760
        %4510 = vmatprep.subr.mxu0 %v4509
        %v4511 = vand.u32 %v518, 4294901760
        %4512 = vmatpush1.msra.mxu0 %v4511
        %v4513 = vand.u32 %v526, 4294901760
        %4514 = vmatprep.subr.mxu0 %v4513
        %v4515 = vand.u32 %v525, 4294901760
        %4516 = vmatpush1.msra.mxu0 %v4515
        %v4517 = vand.u32 %v533, 4294901760
        %4518 = vmatprep.subr.mxu0 %v4517
        %v4519 = vand.u32 %v532, 4294901760
        %4520 = vmatpush1.msra.mxu0 %v4519
        %v4521 = vand.u32 %v540, 4294901760
        %4522 = vmatprep.subr.mxu0 %v4521
        %v4523 = vand.u32 %v539, 4294901760
        %4524 = vmatpush1.msra.mxu0 %v4523
        %v4525 = vand.u32 %v547, 4294901760
        %4526 = vmatprep.subr.mxu0 %v4525
        %v4527 = vand.u32 %v546, 4294901760
        %4528 = vmatpush1.msra.mxu0 %v4527
        %4529 = vmatprep.subr.mxu0 0.0
        %4530 = vmatpush1.msra.mxu0 0.0
        %4531 = vmatprep.subr.mxu0 0.0
        %4532 = vmatpush1.msra.mxu0 0.0
        %4533 = vmatprep.subr.mxu0 0.0
        %4534 = vmatpush1.msra.mxu0 0.0
        %4535 = vmatprep.subr.mxu0 0.0
        %4536 = vmatpush1.msra.mxu0 0.0
        %4537 = vmatprep.subr.mxu0 0.0
        %4538 = vmatpush1.msra.mxu0 0.0
        %4539 = vmatprep.subr.mxu0 0.0
        %4540 = vmatpush1.msra.mxu0 0.0
        %4541 = vmatprep.subr.mxu0 0.0
        %4542 = vmatpush1.msra.mxu0 0.0
        %4543 = vmatprep.subr.mxu0 0.0
        %4544 = vmatpush1.msra.mxu0 0.0
        %4545 = vmatprep.subr.mxu0 0.0
        %4546 = vmatpush1.msra.mxu0 0.0
        %4547 = vmatprep.subr.mxu0 0.0
        %4548 = vmatpush1.msra.mxu0 0.0
        %4549 = vmatprep.subr.mxu0 0.0
        %4550 = vmatpush1.msra.mxu0 0.0
        %4551 = vmatprep.subr.mxu0 0.0
        %4552 = vmatpush1.msra.mxu0 0.0
        %4553 = vmatprep.subr.mxu0 0.0
        %4554 = vmatpush1.msra.mxu0 0.0
        %4555 = vmatprep.subr.mxu0 0.0
        %4556 = vmatpush1.msra.mxu0 0.0
        %4557 = vmatprep.subr.mxu0 0.0
        %4558 = vmatpush1.msra.mxu0 0.0
        %4559 = vmatprep.subr.mxu0 0.0
        %4560 = vmatpush1.msra.mxu0 0.0
        %4561 = vmatprep.mubr.f32.mxu0 0.0
        %v4562 = vand.u32 %v413, 4294901760
        %v4563 = vsub.f32 %v413, %v4562
        %v4564 = vand.u32 %v4563, 4294901760
        %v4565 = vsub.f32 %v4563, %v4564
        %v4566 = vand.u32 %v4565, 4294901760
        %4567 = vmatmul.mubr.f32.gmra.mrb[0].mxu0 %v4566
        %v4568 = vpop.f32.mrb[0].mxu0
        %v4569 = vadd.f32 0.0, %v4568
        %v4570 = vpop.f32.mrb[0].mxu0
        %v4571 = vadd.f32 0.0, %v4570
        %4572 = vmatprep.mubr.f32.mxu0 0.0
        %v4573 = vand.u32 %v414, 4294901760
        %v4574 = vsub.f32 %v414, %v4573
        %v4575 = vand.u32 %v4574, 4294901760
        %v4576 = vsub.f32 %v4574, %v4575
        %v4577 = vand.u32 %v4576, 4294901760
        %4578 = vmatmul.mubr.f32.gmra.mrb[0].mxu0 %v4577
        %v4579 = vpop.f32.mrb[0].mxu0
        %v4580 = vadd.f32 0.0, %v4579
        %v4581 = vpop.f32.mrb[0].mxu0
        %v4582 = vadd.f32 0.0, %v4581
        %4583 = vmatprep.mubr.f32.mxu0 0.0
        %v4584 = vand.u32 %v415, 4294901760
        %v4585 = vsub.f32 %v415, %v4584
        %v4586 = vand.u32 %v4585, 4294901760
        %v4587 = vsub.f32 %v4585, %v4586
        %v4588 = vand.u32 %v4587, 4294901760
        %4589 = vmatmul.mubr.f32.gmra.mrb[0].mxu0 %v4588
        %v4590 = vpop.f32.mrb[0].mxu0
        %v4591 = vadd.f32 0.0, %v4590
        %v4592 = vpop.f32.mrb[0].mxu0
        %v4593 = vadd.f32 0.0, %v4592
        %4594 = vmatprep.mubr.f32.mxu0 0.0
        %v4595 = vand.u32 %v416, 4294901760
        %v4596 = vsub.f32 %v416, %v4595
        %v4597 = vand.u32 %v4596, 4294901760
        %v4598 = vsub.f32 %v4596, %v4597
        %v4599 = vand.u32 %v4598, 4294901760
        %4600 = vmatmul.mubr.f32.gmra.mrb[0].mxu0 %v4599
        %v4601 = vpop.f32.mrb[0].mxu0
        %v4602 = vadd.f32 0.0, %v4601
        %v4603 = vpop.f32.mrb[0].mxu0
        %v4604 = vadd.f32 0.0, %v4603
        %4605 = vmatprep.mubr.f32.mxu0 0.0
        %v4606 = vand.u32 %v417, 4294901760
        %v4607 = vsub.f32 %v417, %v4606
        %v4608 = vand.u32 %v4607, 4294901760
        %v4609 = vsub.f32 %v4607, %v4608
        %v4610 = vand.u32 %v4609, 4294901760
        %4611 = vmatmul.mubr.f32.gmra.mrb[0].mxu0 %v4610
        %v4612 = vpop.f32.mrb[0].mxu0
        %v4613 = vadd.f32 0.0, %v4612
        %v4614 = vpop.f32.mrb[0].mxu0
        %v4615 = vadd.f32 0.0, %v4614
        %4616 = vmatprep.mubr.f32.mxu0 0.0
        %v4617 = vand.u32 %v418, 4294901760
        %v4618 = vsub.f32 %v418, %v4617
        %v4619 = vand.u32 %v4618, 4294901760
        %v4620 = vsub.f32 %v4618, %v4619
        %v4621 = vand.u32 %v4620, 4294901760
        %4622 = vmatmul.mubr.f32.gmra.mrb[0].mxu0 %v4621
        %v4623 = vpop.f32.mrb[0].mxu0
        %v4624 = vadd.f32 0.0, %v4623
        %v4625 = vpop.f32.mrb[0].mxu0
        %v4626 = vadd.f32 0.0, %v4625
        %4627 = vmatprep.mubr.f32.mxu0 0.0
        %v4628 = vand.u32 %v419, 4294901760
        %v4629 = vsub.f32 %v419, %v4628
        %v4630 = vand.u32 %v4629, 4294901760
        %v4631 = vsub.f32 %v4629, %v4630
        %v4632 = vand.u32 %v4631, 4294901760
        %4633 = vmatmul.mubr.f32.gmra.mrb[0].mxu0 %v4632
        %v4634 = vpop.f32.mrb[0].mxu0
        %v4635 = vadd.f32 0.0, %v4634
        %v4636 = vpop.f32.mrb[0].mxu0
        %v4637 = vadd.f32 0.0, %v4636
        %4638 = vmatprep.mubr.f32.mxu0 0.0
        %v4639 = vand.u32 %v420, 4294901760
        %v4640 = vsub.f32 %v420, %v4639
        %v4641 = vand.u32 %v4640, 4294901760
        %v4642 = vsub.f32 %v4640, %v4641
        %v4643 = vand.u32 %v4642, 4294901760
        %4644 = vmatmul.mubr.f32.gmra.mrb[0].mxu0 %v4643
        %v4645 = vpop.f32.mrb[0].mxu0
        %v4646 = vadd.f32 0.0, %v4645
        %v4647 = vpop.f32.mrb[0].mxu0
        %v4648 = vadd.f32 0.0, %v4647
        %4649 = vmatprep.mubr.f32.mxu0 0.0
        %v4650 = vand.u32 %v421, 4294901760
        %v4651 = vsub.f32 %v421, %v4650
        %v4652 = vand.u32 %v4651, 4294901760
        %v4653 = vsub.f32 %v4651, %v4652
        %v4654 = vand.u32 %v4653, 4294901760
        %4655 = vmatmul.mubr.f32.gmra.mrb[0].mxu0 %v4654
        %v4656 = vpop.f32.mrb[0].mxu0
        %v4657 = vadd.f32 0.0, %v4656
        %v4658 = vpop.f32.mrb[0].mxu0
        %v4659 = vadd.f32 0.0, %v4658
        %4660 = vmatprep.mubr.f32.mxu0 0.0
        %v4661 = vand.u32 %v422, 4294901760
        %v4662 = vsub.f32 %v422, %v4661
        %v4663 = vand.u32 %v4662, 4294901760
        %v4664 = vsub.f32 %v4662, %v4663
        %v4665 = vand.u32 %v4664, 4294901760
        %4666 = vmatmul.mubr.f32.gmra.mrb[0].mxu0 %v4665
        %v4667 = vpop.f32.mrb[0].mxu0
        %v4668 = vadd.f32 0.0, %v4667
        %v4669 = vpop.f32.mrb[0].mxu0
        %v4670 = vadd.f32 0.0, %v4669
        %4671 = vmatprep.mubr.f32.mxu0 0.0
        %v4672 = vand.u32 %v423, 4294901760
        %v4673 = vsub.f32 %v423, %v4672
        %v4674 = vand.u32 %v4673, 4294901760
        %v4675 = vsub.f32 %v4673, %v4674
        %v4676 = vand.u32 %v4675, 4294901760
        %4677 = vmatmul.mubr.f32.gmra.mrb[0].mxu0 %v4676
        %v4678 = vpop.f32.mrb[0].mxu0
        %v4679 = vadd.f32 0.0, %v4678
        %v4680 = vpop.f32.mrb[0].mxu0
        %v4681 = vadd.f32 0.0, %v4680
        %4682 = vmatprep.mubr.f32.mxu0 0.0
        %v4683 = vand.u32 %v424, 4294901760
        %v4684 = vsub.f32 %v424, %v4683
        %v4685 = vand.u32 %v4684, 4294901760
        %v4686 = vsub.f32 %v4684, %v4685
        %v4687 = vand.u32 %v4686, 4294901760
        %4688 = vmatmul.mubr.f32.gmra.mrb[0].mxu0 %v4687
        %v4689 = vpop.f32.mrb[0].mxu0
        %v4690 = vadd.f32 0.0, %v4689
        %v4691 = vpop.f32.mrb[0].mxu0
        %v4692 = vadd.f32 0.0, %v4691
        %4693 = vmatprep.mubr.f32.mxu0 0.0
        %v4694 = vand.u32 %v425, 4294901760
        %v4695 = vsub.f32 %v425, %v4694
        %v4696 = vand.u32 %v4695, 4294901760
        %v4697 = vsub.f32 %v4695, %v4696
        %v4698 = vand.u32 %v4697, 4294901760
        %4699 = vmatmul.mubr.f32.gmra.mrb[0].mxu0 %v4698
        %v4700 = vpop.f32.mrb[0].mxu0
        %v4701 = vadd.f32 0.0, %v4700
        %v4702 = vpop.f32.mrb[0].mxu0
        %v4703 = vadd.f32 0.0, %v4702
        %4704 = vmatprep.mubr.f32.mxu0 0.0
        %v4705 = vand.u32 %v426, 4294901760
        %v4706 = vsub.f32 %v426, %v4705
        %v4707 = vand.u32 %v4706, 4294901760
        %v4708 = vsub.f32 %v4706, %v4707
        %v4709 = vand.u32 %v4708, 4294901760
        %4710 = vmatmul.mubr.f32.gmra.mrb[0].mxu0 %v4709
        %v4711 = vpop.f32.mrb[0].mxu0
        %v4712 = vadd.f32 0.0, %v4711
        %v4713 = vpop.f32.mrb[0].mxu0
        %v4714 = vadd.f32 0.0, %v4713
        %4715 = vmatprep.mubr.f32.mxu0 0.0
        %v4716 = vand.u32 %v427, 4294901760
        %v4717 = vsub.f32 %v427, %v4716
        %v4718 = vand.u32 %v4717, 4294901760
        %v4719 = vsub.f32 %v4717, %v4718
        %v4720 = vand.u32 %v4719, 4294901760
        %4721 = vmatmul.mubr.f32.gmra.mrb[0].mxu0 %v4720
        %v4722 = vpop.f32.mrb[0].mxu0
        %v4723 = vadd.f32 0.0, %v4722
        %v4724 = vpop.f32.mrb[0].mxu0
        %v4725 = vadd.f32 0.0, %v4724
        %4726 = vmatprep.mubr.f32.mxu0 0.0
        %v4727 = vand.u32 %v428, 4294901760
        %v4728 = vsub.f32 %v428, %v4727
        %v4729 = vand.u32 %v4728, 4294901760
        %v4730 = vsub.f32 %v4728, %v4729
        %v4731 = vand.u32 %v4730, 4294901760
        %4732 = vmatmul.mubr.f32.gmra.mrb[0].mxu0 %v4731
        %v4733 = vpop.f32.mrb[0].mxu0
        %v4734 = vadd.f32 0.0, %v4733
        %v4735 = vpop.f32.mrb[0].mxu0
        %v4736 = vadd.f32 0.0, %v4735
        %4737 = vmatprep.mubr.f32.mxu0 0.0
        %v4738 = vand.u32 %v429, 4294901760
        %v4739 = vsub.f32 %v429, %v4738
        %v4740 = vand.u32 %v4739, 4294901760
        %v4741 = vsub.f32 %v4739, %v4740
        %v4742 = vand.u32 %v4741, 4294901760
        %4743 = vmatmul.mubr.f32.gmra.mrb[0].mxu0 %v4742
        %v4744 = vpop.f32.mrb[0].mxu0
        %v4745 = vadd.f32 0.0, %v4744
        %v4746 = vpop.f32.mrb[0].mxu0
        %v4747 = vadd.f32 0.0, %v4746
        %4748 = vmatprep.mubr.f32.mxu0 0.0
        %v4749 = vand.u32 %v430, 4294901760
        %v4750 = vsub.f32 %v430, %v4749
        %v4751 = vand.u32 %v4750, 4294901760
        %v4752 = vsub.f32 %v4750, %v4751
        %v4753 = vand.u32 %v4752, 4294901760
        %4754 = vmatmul.mubr.f32.gmra.mrb[0].mxu0 %v4753
        %v4755 = vpop.f32.mrb[0].mxu0
        %v4756 = vadd.f32 0.0, %v4755
        %v4757 = vpop.f32.mrb[0].mxu0
        %v4758 = vadd.f32 0.0, %v4757
        %4759 = vmatprep.mubr.f32.mxu0 0.0
        %v4760 = vand.u32 %v431, 4294901760
        %v4761 = vsub.f32 %v431, %v4760
        %v4762 = vand.u32 %v4761, 4294901760
        %v4763 = vsub.f32 %v4761, %v4762
        %v4764 = vand.u32 %v4763, 4294901760
        %4765 = vmatmul.mubr.f32.gmra.mrb[0].mxu0 %v4764
        %v4766 = vpop.f32.mrb[0].mxu0
        %v4767 = vadd.f32 0.0, %v4766
        %v4768 = vpop.f32.mrb[0].mxu0
        %v4769 = vadd.f32 0.0, %v4768
        %4770 = vmatprep.mubr.f32.mxu0 0.0
        %v4771 = vand.u32 %v432, 4294901760
        %v4772 = vsub.f32 %v432, %v4771
        %v4773 = vand.u32 %v4772, 4294901760
        %v4774 = vsub.f32 %v4772, %v4773
        %v4775 = vand.u32 %v4774, 4294901760
        %4776 = vmatmul.mubr.f32.gmra.mrb[0].mxu0 %v4775
        %v4777 = vpop.f32.mrb[0].mxu0
        %v4778 = vadd.f32 0.0, %v4777
        %v4779 = vpop.f32.mrb[0].mxu0
        %v4780 = vadd.f32 0.0, %v4779
        %4781 = vmatprep.mubr.f32.mxu0 0.0
        %v4782 = vand.u32 %v433, 4294901760
        %v4783 = vsub.f32 %v433, %v4782
        %v4784 = vand.u32 %v4783, 4294901760
        %v4785 = vsub.f32 %v4783, %v4784
        %v4786 = vand.u32 %v4785, 4294901760
        %4787 = vmatmul.mubr.f32.gmra.mrb[0].mxu0 %v4786
        %v4788 = vpop.f32.mrb[0].mxu0
        %v4789 = vadd.f32 0.0, %v4788
        %v4790 = vpop.f32.mrb[0].mxu0
        %v4791 = vadd.f32 0.0, %v4790
        %4792 = vmatprep.mubr.f32.mxu0 0.0
        %v4793 = vand.u32 %v434, 4294901760
        %v4794 = vsub.f32 %v434, %v4793
        %v4795 = vand.u32 %v4794, 4294901760
        %v4796 = vsub.f32 %v4794, %v4795
        %v4797 = vand.u32 %v4796, 4294901760
        %4798 = vmatmul.mubr.f32.gmra.mrb[0].mxu0 %v4797
        %v4799 = vpop.f32.mrb[0].mxu0
        %v4800 = vadd.f32 0.0, %v4799
        %v4801 = vpop.f32.mrb[0].mxu0
        %v4802 = vadd.f32 0.0, %v4801
        %4803 = vmatprep.mubr.f32.mxu0 0.0
        %v4804 = vand.u32 %v435, 4294901760
        %v4805 = vsub.f32 %v435, %v4804
        %v4806 = vand.u32 %v4805, 4294901760
        %v4807 = vsub.f32 %v4805, %v4806
        %v4808 = vand.u32 %v4807, 4294901760
        %4809 = vmatmul.mubr.f32.gmra.mrb[0].mxu0 %v4808
        %v4810 = vpop.f32.mrb[0].mxu0
        %v4811 = vadd.f32 0.0, %v4810
        %v4812 = vpop.f32.mrb[0].mxu0
        %v4813 = vadd.f32 0.0, %v4812
        %4814 = vmatprep.mubr.f32.mxu0 0.0
        %v4815 = vand.u32 %v436, 4294901760
        %v4816 = vsub.f32 %v436, %v4815
        %v4817 = vand.u32 %v4816, 4294901760
        %v4818 = vsub.f32 %v4816, %v4817
        %v4819 = vand.u32 %v4818, 4294901760
        %4820 = vmatmul.mubr.f32.gmra.mrb[0].mxu0 %v4819
        %v4821 = vpop.f32.mrb[0].mxu0
        %v4822 = vadd.f32 0.0, %v4821
        %v4823 = vpop.f32.mrb[0].mxu0
        %v4824 = vadd.f32 0.0, %v4823
        %4825 = vdwg.mxu0
        %v4826 = vand.u32 %v442, 4294901760
        %v4827 = vsub.f32 %v442, %v4826
        %v4828 = vand.u32 %v4827, 4294901760
        %v4829 = vsub.f32 %v4827, %v4828
        %v4830 = vand.u32 %v4829, 4294901760
        %4831 = vmatprep.subr.mxu0 %v4830
        %v4832 = vand.u32 %v441, 4294901760
        %v4833 = vsub.f32 %v441, %v4832
        %v4834 = vand.u32 %v4833, 4294901760
        %v4835 = vsub.f32 %v4833, %v4834
        %v4836 = vand.u32 %v4835, 4294901760
        %4837 = vmatpush1.msra.mxu0 %v4836
        %v4838 = vand.u32 %v449, 4294901760
        %v4839 = vsub.f32 %v449, %v4838
        %v4840 = vand.u32 %v4839, 4294901760
        %v4841 = vsub.f32 %v4839, %v4840
        %v4842 = vand.u32 %v4841, 4294901760
        %4843 = vmatprep.subr.mxu0 %v4842
        %v4844 = vand.u32 %v448, 4294901760
        %v4845 = vsub.f32 %v448, %v4844
        %v4846 = vand.u32 %v4845, 4294901760
        %v4847 = vsub.f32 %v4845, %v4846
        %v4848 = vand.u32 %v4847, 4294901760
        %4849 = vmatpush1.msra.mxu0 %v4848
        %v4850 = vand.u32 %v456, 4294901760
        %v4851 = vsub.f32 %v456, %v4850
        %v4852 = vand.u32 %v4851, 4294901760
        %v4853 = vsub.f32 %v4851, %v4852
        %v4854 = vand.u32 %v4853, 4294901760
        %4855 = vmatprep.subr.mxu0 %v4854
        %v4856 = vand.u32 %v455, 4294901760
        %v4857 = vsub.f32 %v455, %v4856
        %v4858 = vand.u32 %v4857, 4294901760
        %v4859 = vsub.f32 %v4857, %v4858
        %v4860 = vand.u32 %v4859, 4294901760
        %4861 = vmatpush1.msra.mxu0 %v4860
        %v4862 = vand.u32 %v463, 4294901760
        %v4863 = vsub.f32 %v463, %v4862
        %v4864 = vand.u32 %v4863, 4294901760
        %v4865 = vsub.f32 %v4863, %v4864
        %v4866 = vand.u32 %v4865, 4294901760
        %4867 = vmatprep.subr.mxu0 %v4866
        %v4868 = vand.u32 %v462, 4294901760
        %v4869 = vsub.f32 %v462, %v4868
        %v4870 = vand.u32 %v4869, 4294901760
        %v4871 = vsub.f32 %v4869, %v4870
        %v4872 = vand.u32 %v4871, 4294901760
        %4873 = vmatpush1.msra.mxu0 %v4872
        %v4874 = vand.u32 %v470, 4294901760
        %v4875 = vsub.f32 %v470, %v4874
        %v4876 = vand.u32 %v4875, 4294901760
        %v4877 = vsub.f32 %v4875, %v4876
        %v4878 = vand.u32 %v4877, 4294901760
        %4879 = vmatprep.subr.mxu0 %v4878
        %v4880 = vand.u32 %v469, 4294901760
        %v4881 = vsub.f32 %v469, %v4880
        %v4882 = vand.u32 %v4881, 4294901760
        %v4883 = vsub.f32 %v4881, %v4882
        %v4884 = vand.u32 %v4883, 4294901760
        %4885 = vmatpush1.msra.mxu0 %v4884
        %v4886 = vand.u32 %v477, 4294901760
        %v4887 = vsub.f32 %v477, %v4886
        %v4888 = vand.u32 %v4887, 4294901760
        %v4889 = vsub.f32 %v4887, %v4888
        %v4890 = vand.u32 %v4889, 4294901760
        %4891 = vmatprep.subr.mxu0 %v4890
        %v4892 = vand.u32 %v476, 4294901760
        %v4893 = vsub.f32 %v476, %v4892
        %v4894 = vand.u32 %v4893, 4294901760
        %v4895 = vsub.f32 %v4893, %v4894
        %v4896 = vand.u32 %v4895, 4294901760
        %4897 = vmatpush1.msra.mxu0 %v4896
        %v4898 = vand.u32 %v484, 4294901760
        %v4899 = vsub.f32 %v484, %v4898
        %v4900 = vand.u32 %v4899, 4294901760
        %v4901 = vsub.f32 %v4899, %v4900
        %v4902 = vand.u32 %v4901, 4294901760
        %4903 = vmatprep.subr.mxu0 %v4902
        %v4904 = vand.u32 %v483, 4294901760
        %v4905 = vsub.f32 %v483, %v4904
        %v4906 = vand.u32 %v4905, 4294901760
        %v4907 = vsub.f32 %v4905, %v4906
        %v4908 = vand.u32 %v4907, 4294901760
        %4909 = vmatpush1.msra.mxu0 %v4908
        %v4910 = vand.u32 %v491, 4294901760
        %v4911 = vsub.f32 %v491, %v4910
        %v4912 = vand.u32 %v4911, 4294901760
        %v4913 = vsub.f32 %v4911, %v4912
        %v4914 = vand.u32 %v4913, 4294901760
        %4915 = vmatprep.subr.mxu0 %v4914
        %v4916 = vand.u32 %v490, 4294901760
        %v4917 = vsub.f32 %v490, %v4916
        %v4918 = vand.u32 %v4917, 4294901760
        %v4919 = vsub.f32 %v4917, %v4918
        %v4920 = vand.u32 %v4919, 4294901760
        %4921 = vmatpush1.msra.mxu0 %v4920
        %v4922 = vand.u32 %v498, 4294901760
        %v4923 = vsub.f32 %v498, %v4922
        %v4924 = vand.u32 %v4923, 4294901760
        %v4925 = vsub.f32 %v4923, %v4924
        %v4926 = vand.u32 %v4925, 4294901760
        %4927 = vmatprep.subr.mxu0 %v4926
        %v4928 = vand.u32 %v497, 4294901760
        %v4929 = vsub.f32 %v497, %v4928
        %v4930 = vand.u32 %v4929, 4294901760
        %v4931 = vsub.f32 %v4929, %v4930
        %v4932 = vand.u32 %v4931, 4294901760
        %4933 = vmatpush1.msra.mxu0 %v4932
        %v4934 = vand.u32 %v505, 4294901760
        %v4935 = vsub.f32 %v505, %v4934
        %v4936 = vand.u32 %v4935, 4294901760
        %v4937 = vsub.f32 %v4935, %v4936
        %v4938 = vand.u32 %v4937, 4294901760
        %4939 = vmatprep.subr.mxu0 %v4938
        %v4940 = vand.u32 %v504, 4294901760
        %v4941 = vsub.f32 %v504, %v4940
        %v4942 = vand.u32 %v4941, 4294901760
        %v4943 = vsub.f32 %v4941, %v4942
        %v4944 = vand.u32 %v4943, 4294901760
        %4945 = vmatpush1.msra.mxu0 %v4944
        %v4946 = vand.u32 %v512, 4294901760
        %v4947 = vsub.f32 %v512, %v4946
        %v4948 = vand.u32 %v4947, 4294901760
        %v4949 = vsub.f32 %v4947, %v4948
        %v4950 = vand.u32 %v4949, 4294901760
        %4951 = vmatprep.subr.mxu0 %v4950
        %v4952 = vand.u32 %v511, 4294901760
        %v4953 = vsub.f32 %v511, %v4952
        %v4954 = vand.u32 %v4953, 4294901760
        %v4955 = vsub.f32 %v4953, %v4954
        %v4956 = vand.u32 %v4955, 4294901760
        %4957 = vmatpush1.msra.mxu0 %v4956
        %v4958 = vand.u32 %v519, 4294901760
        %v4959 = vsub.f32 %v519, %v4958
        %v4960 = vand.u32 %v4959, 4294901760
        %v4961 = vsub.f32 %v4959, %v4960
        %v4962 = vand.u32 %v4961, 4294901760
        %4963 = vmatprep.subr.mxu0 %v4962
        %v4964 = vand.u32 %v518, 4294901760
        %v4965 = vsub.f32 %v518, %v4964
        %v4966 = vand.u32 %v4965, 4294901760
        %v4967 = vsub.f32 %v4965, %v4966
        %v4968 = vand.u32 %v4967, 4294901760
        %4969 = vmatpush1.msra.mxu0 %v4968
        %v4970 = vand.u32 %v526, 4294901760
        %v4971 = vsub.f32 %v526, %v4970
        %v4972 = vand.u32 %v4971, 4294901760
        %v4973 = vsub.f32 %v4971, %v4972
        %v4974 = vand.u32 %v4973, 4294901760
        %4975 = vmatprep.subr.mxu0 %v4974
        %v4976 = vand.u32 %v525, 4294901760
        %v4977 = vsub.f32 %v525, %v4976
        %v4978 = vand.u32 %v4977, 4294901760
        %v4979 = vsub.f32 %v4977, %v4978
        %v4980 = vand.u32 %v4979, 4294901760
        %4981 = vmatpush1.msra.mxu0 %v4980
        %v4982 = vand.u32 %v533, 4294901760
        %v4983 = vsub.f32 %v533, %v4982
        %v4984 = vand.u32 %v4983, 4294901760
        %v4985 = vsub.f32 %v4983, %v4984
        %v4986 = vand.u32 %v4985, 4294901760
        %4987 = vmatprep.subr.mxu0 %v4986
        %v4988 = vand.u32 %v532, 4294901760
        %v4989 = vsub.f32 %v532, %v4988
        %v4990 = vand.u32 %v4989, 4294901760
        %v4991 = vsub.f32 %v4989, %v4990
        %v4992 = vand.u32 %v4991, 4294901760
        %4993 = vmatpush1.msra.mxu0 %v4992
        %v4994 = vand.u32 %v540, 4294901760
        %v4995 = vsub.f32 %v540, %v4994
        %v4996 = vand.u32 %v4995, 4294901760
        %v4997 = vsub.f32 %v4995, %v4996
        %v4998 = vand.u32 %v4997, 4294901760
        %4999 = vmatprep.subr.mxu0 %v4998
        %v5000 = vand.u32 %v539, 4294901760
        %v5001 = vsub.f32 %v539, %v5000
        %v5002 = vand.u32 %v5001, 4294901760
        %v5003 = vsub.f32 %v5001, %v5002
        %v5004 = vand.u32 %v5003, 4294901760
        %5005 = vmatpush1.msra.mxu0 %v5004
        %v5006 = vand.u32 %v547, 4294901760
        %v5007 = vsub.f32 %v547, %v5006
        %v5008 = vand.u32 %v5007, 4294901760
        %v5009 = vsub.f32 %v5007, %v5008
        %v5010 = vand.u32 %v5009, 4294901760
        %5011 = vmatprep.subr.mxu0 %v5010
        %v5012 = vand.u32 %v546, 4294901760
        %v5013 = vsub.f32 %v546, %v5012
        %v5014 = vand.u32 %v5013, 4294901760
        %v5015 = vsub.f32 %v5013, %v5014
        %v5016 = vand.u32 %v5015, 4294901760
        %5017 = vmatpush1.msra.mxu0 %v5016
        %5018 = vmatprep.subr.mxu0 0.0
        %5019 = vmatpush1.msra.mxu0 0.0
        %5020 = vmatprep.subr.mxu0 0.0
        %5021 = vmatpush1.msra.mxu0 0.0
        %5022 = vmatprep.subr.mxu0 0.0
        %5023 = vmatpush1.msra.mxu0 0.0
        %5024 = vmatprep.subr.mxu0 0.0
        %5025 = vmatpush1.msra.mxu0 0.0
        %5026 = vmatprep.subr.mxu0 0.0
        %5027 = vmatpush1.msra.mxu0 0.0
        %5028 = vmatprep.subr.mxu0 0.0
        %5029 = vmatpush1.msra.mxu0 0.0
        %5030 = vmatprep.subr.mxu0 0.0
        %5031 = vmatpush1.msra.mxu0 0.0
        %5032 = vmatprep.subr.mxu0 0.0
        %5033 = vmatpush1.msra.mxu0 0.0
        %5034 = vmatprep.subr.mxu0 0.0
        %5035 = vmatpush1.msra.mxu0 0.0
        %5036 = vmatprep.subr.mxu0 0.0
        %5037 = vmatpush1.msra.mxu0 0.0
        %5038 = vmatprep.subr.mxu0 0.0
        %5039 = vmatpush1.msra.mxu0 0.0
        %5040 = vmatprep.subr.mxu0 0.0
        %5041 = vmatpush1.msra.mxu0 0.0
        %5042 = vmatprep.subr.mxu0 0.0
        %5043 = vmatpush1.msra.mxu0 0.0
        %5044 = vmatprep.subr.mxu0 0.0
        %5045 = vmatpush1.msra.mxu0 0.0
        %5046 = vmatprep.subr.mxu0 0.0
        %5047 = vmatpush1.msra.mxu0 0.0
        %5048 = vmatprep.subr.mxu0 0.0
        %5049 = vmatpush1.msra.mxu0 0.0
        %5050 = vmatprep.mubr.f32.mxu0 0.0
        %v5051 = vand.u32 %v413, 4294901760
        %5052 = vmatmul.mubr.f32.gmra.mrb[0].mxu0 %v5051
        %v5053 = vpop.f32.mrb[0].mxu0
        %v5054 = vadd.f32 %v4569, %v5053
        %v5055 = vpop.f32.mrb[0].mxu0
        %v5056 = vadd.f32 %v4571, %v5055
        %5057 = vmatprep.mubr.f32.mxu0 0.0
        %v5058 = vand.u32 %v414, 4294901760
        %5059 = vmatmul.mubr.f32.gmra.mrb[0].mxu0 %v5058
        %v5060 = vpop.f32.mrb[0].mxu0
        %v5061 = vadd.f32 %v4580, %v5060
        %v5062 = vpop.f32.mrb[0].mxu0
        %v5063 = vadd.f32 %v4582, %v5062
        %5064 = vmatprep.mubr.f32.mxu0 0.0
        %v5065 = vand.u32 %v415, 4294901760
        %5066 = vmatmul.mubr.f32.gmra.mrb[0].mxu0 %v5065
        %v5067 = vpop.f32.mrb[0].mxu0
        %v5068 = vadd.f32 %v4591, %v5067
        %v5069 = vpop.f32.mrb[0].mxu0
        %v5070 = vadd.f32 %v4593, %v5069
        %5071 = vmatprep.mubr.f32.mxu0 0.0
        %v5072 = vand.u32 %v416, 4294901760
        %5073 = vmatmul.mubr.f32.gmra.mrb[0].mxu0 %v5072
        %v5074 = vpop.f32.mrb[0].mxu0
        %v5075 = vadd.f32 %v4602, %v5074
        %v5076 = vpop.f32.mrb[0].mxu0
        %v5077 = vadd.f32 %v4604, %v5076
        %5078 = vmatprep.mubr.f32.mxu0 0.0
        %v5079 = vand.u32 %v417, 4294901760
        %5080 = vmatmul.mubr.f32.gmra.mrb[0].mxu0 %v5079
        %v5081 = vpop.f32.mrb[0].mxu0
        %v5082 = vadd.f32 %v4613, %v5081
        %v5083 = vpop.f32.mrb[0].mxu0
        %v5084 = vadd.f32 %v4615, %v5083
        %5085 = vmatprep.mubr.f32.mxu0 0.0
        %v5086 = vand.u32 %v418, 4294901760
        %5087 = vmatmul.mubr.f32.gmra.mrb[0].mxu0 %v5086
        %v5088 = vpop.f32.mrb[0].mxu0
        %v5089 = vadd.f32 %v4624, %v5088
        %v5090 = vpop.f32.mrb[0].mxu0
        %v5091 = vadd.f32 %v4626, %v5090
        %5092 = vmatprep.mubr.f32.mxu0 0.0
        %v5093 = vand.u32 %v419, 4294901760
        %5094 = vmatmul.mubr.f32.gmra.mrb[0].mxu0 %v5093
        %v5095 = vpop.f32.mrb[0].mxu0
        %v5096 = vadd.f32 %v4635, %v5095
        %v5097 = vpop.f32.mrb[0].mxu0
        %v5098 = vadd.f32 %v4637, %v5097
        %5099 = vmatprep.mubr.f32.mxu0 0.0
        %v5100 = vand.u32 %v420, 4294901760
        %5101 = vmatmul.mubr.f32.gmra.mrb[0].mxu0 %v5100
        %v5102 = vpop.f32.mrb[0].mxu0
        %v5103 = vadd.f32 %v4646, %v5102
        %v5104 = vpop.f32.mrb[0].mxu0
        %v5105 = vadd.f32 %v4648, %v5104
        %5106 = vmatprep.mubr.f32.mxu0 0.0
        %v5107 = vand.u32 %v421, 4294901760
        %5108 = vmatmul.mubr.f32.gmra.mrb[0].mxu0 %v5107
        %v5109 = vpop.f32.mrb[0].mxu0
        %v5110 = vadd.f32 %v4657, %v5109
        %v5111 = vpop.f32.mrb[0].mxu0
        %v5112 = vadd.f32 %v4659, %v5111
        %5113 = vmatprep.mubr.f32.mxu0 0.0
        %v5114 = vand.u32 %v422, 4294901760
        %5115 = vmatmul.mubr.f32.gmra.mrb[0].mxu0 %v5114
        %v5116 = vpop.f32.mrb[0].mxu0
        %v5117 = vadd.f32 %v4668, %v5116
        %v5118 = vpop.f32.mrb[0].mxu0
        %v5119 = vadd.f32 %v4670, %v5118
        %5120 = vmatprep.mubr.f32.mxu0 0.0
        %v5121 = vand.u32 %v423, 4294901760
        %5122 = vmatmul.mubr.f32.gmra.mrb[0].mxu0 %v5121
        %v5123 = vpop.f32.mrb[0].mxu0
        %v5124 = vadd.f32 %v4679, %v5123
        %v5125 = vpop.f32.mrb[0].mxu0
        %v5126 = vadd.f32 %v4681, %v5125
        %5127 = vmatprep.mubr.f32.mxu0 0.0
        %v5128 = vand.u32 %v424, 4294901760
        %5129 = vmatmul.mubr.f32.gmra.mrb[0].mxu0 %v5128
        %v5130 = vpop.f32.mrb[0].mxu0
        %v5131 = vadd.f32 %v4690, %v5130
        %v5132 = vpop.f32.mrb[0].mxu0
        %v5133 = vadd.f32 %v4692, %v5132
        %5134 = vmatprep.mubr.f32.mxu0 0.0
        %v5135 = vand.u32 %v425, 4294901760
        %5136 = vmatmul.mubr.f32.gmra.mrb[0].mxu0 %v5135
        %v5137 = vpop.f32.mrb[0].mxu0
        %v5138 = vadd.f32 %v4701, %v5137
        %v5139 = vpop.f32.mrb[0].mxu0
        %v5140 = vadd.f32 %v4703, %v5139
        %5141 = vmatprep.mubr.f32.mxu0 0.0
        %v5142 = vand.u32 %v426, 4294901760
        %5143 = vmatmul.mubr.f32.gmra.mrb[0].mxu0 %v5142
        %v5144 = vpop.f32.mrb[0].mxu0
        %v5145 = vadd.f32 %v4712, %v5144
        %v5146 = vpop.f32.mrb[0].mxu0
        %v5147 = vadd.f32 %v4714, %v5146
        %5148 = vmatprep.mubr.f32.mxu0 0.0
        %v5149 = vand.u32 %v427, 4294901760
        %5150 = vmatmul.mubr.f32.gmra.mrb[0].mxu0 %v5149
        %v5151 = vpop.f32.mrb[0].mxu0
        %v5152 = vadd.f32 %v4723, %v5151
        %v5153 = vpop.f32.mrb[0].mxu0
        %v5154 = vadd.f32 %v4725, %v5153
        %5155 = vmatprep.mubr.f32.mxu0 0.0
        %v5156 = vand.u32 %v428, 4294901760
        %5157 = vmatmul.mubr.f32.gmra.mrb[0].mxu0 %v5156
        %v5158 = vpop.f32.mrb[0].mxu0
        %v5159 = vadd.f32 %v4734, %v5158
        %v5160 = vpop.f32.mrb[0].mxu0
        %v5161 = vadd.f32 %v4736, %v5160
        %5162 = vmatprep.mubr.f32.mxu0 0.0
        %v5163 = vand.u32 %v429, 4294901760
        %5164 = vmatmul.mubr.f32.gmra.mrb[0].mxu0 %v5163
        %v5165 = vpop.f32.mrb[0].mxu0
        %v5166 = vadd.f32 %v4745, %v5165
        %v5167 = vpop.f32.mrb[0].mxu0
        %v5168 = vadd.f32 %v4747, %v5167
        %5169 = vmatprep.mubr.f32.mxu0 0.0
        %v5170 = vand.u32 %v430, 4294901760
        %5171 = vmatmul.mubr.f32.gmra.mrb[0].mxu0 %v5170
        %v5172 = vpop.f32.mrb[0].mxu0
        %v5173 = vadd.f32 %v4756, %v5172
        %v5174 = vpop.f32.mrb[0].mxu0
        %v5175 = vadd.f32 %v4758, %v5174
        %5176 = vmatprep.mubr.f32.mxu0 0.0
        %v5177 = vand.u32 %v431, 4294901760
        %5178 = vmatmul.mubr.f32.gmra.mrb[0].mxu0 %v5177
        %v5179 = vpop.f32.mrb[0].mxu0
        %v5180 = vadd.f32 %v4767, %v5179
        %v5181 = vpop.f32.mrb[0].mxu0
        %v5182 = vadd.f32 %v4769, %v5181
        %5183 = vmatprep.mubr.f32.mxu0 0.0
        %v5184 = vand.u32 %v432, 4294901760
        %5185 = vmatmul.mubr.f32.gmra.mrb[0].mxu0 %v5184
        %v5186 = vpop.f32.mrb[0].mxu0
        %v5187 = vadd.f32 %v4778, %v5186
        %v5188 = vpop.f32.mrb[0].mxu0
        %v5189 = vadd.f32 %v4780, %v5188
        %5190 = vmatprep.mubr.f32.mxu0 0.0
        %v5191 = vand.u32 %v433, 4294901760
        %5192 = vmatmul.mubr.f32.gmra.mrb[0].mxu0 %v5191
        %v5193 = vpop.f32.mrb[0].mxu0
        %v5194 = vadd.f32 %v4789, %v5193
        %v5195 = vpop.f32.mrb[0].mxu0
        %v5196 = vadd.f32 %v4791, %v5195
        %5197 = vmatprep.mubr.f32.mxu0 0.0
        %v5198 = vand.u32 %v434, 4294901760
        %5199 = vmatmul.mubr.f32.gmra.mrb[0].mxu0 %v5198
        %v5200 = vpop.f32.mrb[0].mxu0
        %v5201 = vadd.f32 %v4800, %v5200
        %v5202 = vpop.f32.mrb[0].mxu0
        %v5203 = vadd.f32 %v4802, %v5202
        %5204 = vmatprep.mubr.f32.mxu0 0.0
        %v5205 = vand.u32 %v435, 4294901760
        %5206 = vmatmul.mubr.f32.gmra.mrb[0].mxu0 %v5205
        %v5207 = vpop.f32.mrb[0].mxu0
        %v5208 = vadd.f32 %v4811, %v5207
        %v5209 = vpop.f32.mrb[0].mxu0
        %v5210 = vadd.f32 %v4813, %v5209
        %5211 = vmatprep.mubr.f32.mxu0 0.0
        %v5212 = vand.u32 %v436, 4294901760
        %5213 = vmatmul.mubr.f32.gmra.mrb[0].mxu0 %v5212
        %v5214 = vpop.f32.mrb[0].mxu0
        %v5215 = vadd.f32 %v4822, %v5214
        %v5216 = vpop.f32.mrb[0].mxu0
        %v5217 = vadd.f32 %v4824, %v5216
        %5218 = vdwg.mxu0
        %v5219 = vand.u32 %v442, 4294901760
        %v5220 = vsub.f32 %v442, %v5219
        %5221 = vmatprep.subr.mxu0 %v5220
        %v5222 = vand.u32 %v441, 4294901760
        %v5223 = vsub.f32 %v441, %v5222
        %5224 = vmatpush1.msra.mxu0 %v5223
        %v5225 = vand.u32 %v449, 4294901760
        %v5226 = vsub.f32 %v449, %v5225
        %5227 = vmatprep.subr.mxu0 %v5226
        %v5228 = vand.u32 %v448, 4294901760
        %v5229 = vsub.f32 %v448, %v5228
        %5230 = vmatpush1.msra.mxu0 %v5229
        %v5231 = vand.u32 %v456, 4294901760
        %v5232 = vsub.f32 %v456, %v5231
        %5233 = vmatprep.subr.mxu0 %v5232
        %v5234 = vand.u32 %v455, 4294901760
        %v5235 = vsub.f32 %v455, %v5234
        %5236 = vmatpush1.msra.mxu0 %v5235
        %v5237 = vand.u32 %v463, 4294901760
        %v5238 = vsub.f32 %v463, %v5237
        %5239 = vmatprep.subr.mxu0 %v5238
        %v5240 = vand.u32 %v462, 4294901760
        %v5241 = vsub.f32 %v462, %v5240
        %5242 = vmatpush1.msra.mxu0 %v5241
        %v5243 = vand.u32 %v470, 4294901760
        %v5244 = vsub.f32 %v470, %v5243
        %5245 = vmatprep.subr.mxu0 %v5244
        %v5246 = vand.u32 %v469, 4294901760
        %v5247 = vsub.f32 %v469, %v5246
        %5248 = vmatpush1.msra.mxu0 %v5247
        %v5249 = vand.u32 %v477, 4294901760
        %v5250 = vsub.f32 %v477, %v5249
        %5251 = vmatprep.subr.mxu0 %v5250
        %v5252 = vand.u32 %v476, 4294901760
        %v5253 = vsub.f32 %v476, %v5252
        %5254 = vmatpush1.msra.mxu0 %v5253
        %v5255 = vand.u32 %v484, 4294901760
        %v5256 = vsub.f32 %v484, %v5255
        %5257 = vmatprep.subr.mxu0 %v5256
        %v5258 = vand.u32 %v483, 4294901760
        %v5259 = vsub.f32 %v483, %v5258
        %5260 = vmatpush1.msra.mxu0 %v5259
        %v5261 = vand.u32 %v491, 4294901760
        %v5262 = vsub.f32 %v491, %v5261
        %5263 = vmatprep.subr.mxu0 %v5262
        %v5264 = vand.u32 %v490, 4294901760
        %v5265 = vsub.f32 %v490, %v5264
        %5266 = vmatpush1.msra.mxu0 %v5265
        %v5267 = vand.u32 %v498, 4294901760
        %v5268 = vsub.f32 %v498, %v5267
        %5269 = vmatprep.subr.mxu0 %v5268
        %v5270 = vand.u32 %v497, 4294901760
        %v5271 = vsub.f32 %v497, %v5270
        %5272 = vmatpush1.msra.mxu0 %v5271
        %v5273 = vand.u32 %v505, 4294901760
        %v5274 = vsub.f32 %v505, %v5273
        %5275 = vmatprep.subr.mxu0 %v5274
        %v5276 = vand.u32 %v504, 4294901760
        %v5277 = vsub.f32 %v504, %v5276
        %5278 = vmatpush1.msra.mxu0 %v5277
        %v5279 = vand.u32 %v512, 4294901760
        %v5280 = vsub.f32 %v512, %v5279
        %5281 = vmatprep.subr.mxu0 %v5280
        %v5282 = vand.u32 %v511, 4294901760
        %v5283 = vsub.f32 %v511, %v5282
        %5284 = vmatpush1.msra.mxu0 %v5283
        %v5285 = vand.u32 %v519, 4294901760
        %v5286 = vsub.f32 %v519, %v5285
        %5287 = vmatprep.subr.mxu0 %v5286
        %v5288 = vand.u32 %v518, 4294901760
        %v5289 = vsub.f32 %v518, %v5288
        %5290 = vmatpush1.msra.mxu0 %v5289
        %v5291 = vand.u32 %v526, 4294901760
        %v5292 = vsub.f32 %v526, %v5291
        %5293 = vmatprep.subr.mxu0 %v5292
        %v5294 = vand.u32 %v525, 4294901760
        %v5295 = vsub.f32 %v525, %v5294
        %5296 = vmatpush1.msra.mxu0 %v5295
        %v5297 = vand.u32 %v533, 4294901760
        %v5298 = vsub.f32 %v533, %v5297
        %5299 = vmatprep.subr.mxu0 %v5298
        %v5300 = vand.u32 %v532, 4294901760
        %v5301 = vsub.f32 %v532, %v5300
        %5302 = vmatpush1.msra.mxu0 %v5301
        %v5303 = vand.u32 %v540, 4294901760
        %v5304 = vsub.f32 %v540, %v5303
        %5305 = vmatprep.subr.mxu0 %v5304
        %v5306 = vand.u32 %v539, 4294901760
        %v5307 = vsub.f32 %v539, %v5306
        %5308 = vmatpush1.msra.mxu0 %v5307
        %v5309 = vand.u32 %v547, 4294901760
        %v5310 = vsub.f32 %v547, %v5309
        %5311 = vmatprep.subr.mxu0 %v5310
        %v5312 = vand.u32 %v546, 4294901760
        %v5313 = vsub.f32 %v546, %v5312
        %5314 = vmatpush1.msra.mxu0 %v5313
        %5315 = vmatprep.subr.mxu0 0.0
        %5316 = vmatpush1.msra.mxu0 0.0
        %5317 = vmatprep.subr.mxu0 0.0
        %5318 = vmatpush1.msra.mxu0 0.0
        %5319 = vmatprep.subr.mxu0 0.0
        %5320 = vmatpush1.msra.mxu0 0.0
        %5321 = vmatprep.subr.mxu0 0.0
        %5322 = vmatpush1.msra.mxu0 0.0
        %5323 = vmatprep.subr.mxu0 0.0
        %5324 = vmatpush1.msra.mxu0 0.0
        %5325 = vmatprep.subr.mxu0 0.0
        %5326 = vmatpush1.msra.mxu0 0.0
        %5327 = vmatprep.subr.mxu0 0.0
        %5328 = vmatpush1.msra.mxu0 0.0
        %5329 = vmatprep.subr.mxu0 0.0
        %5330 = vmatpush1.msra.mxu0 0.0
        %5331 = vmatprep.subr.mxu0 0.0
        %5332 = vmatpush1.msra.mxu0 0.0
        %5333 = vmatprep.subr.mxu0 0.0
        %5334 = vmatpush1.msra.mxu0 0.0
        %5335 = vmatprep.subr.mxu0 0.0
        %5336 = vmatpush1.msra.mxu0 0.0
        %5337 = vmatprep.subr.mxu0 0.0
        %5338 = vmatpush1.msra.mxu0 0.0
        %5339 = vmatprep.subr.mxu0 0.0
        %5340 = vmatpush1.msra.mxu0 0.0
        %5341 = vmatprep.subr.mxu0 0.0
        %5342 = vmatpush1.msra.mxu0 0.0
        %5343 = vmatprep.subr.mxu0 0.0
        %5344 = vmatpush1.msra.mxu0 0.0
        %5345 = vmatprep.subr.mxu0 0.0
        %5346 = vmatpush1.msra.mxu0 0.0
        %5347 = vmatprep.mubr.f32.mxu0 0.0
        %v5348 = vand.u32 %v413, 4294901760
        %v5349 = vsub.f32 %v413, %v5348
        %5350 = vmatmul.mubr.f32.gmra.mrb[0].mxu0 %v5349
        %v5351 = vpop.f32.mrb[0].mxu0
        %v5352 = vadd.f32 %v5054, %v5351
        %v5353 = vpop.f32.mrb[0].mxu0
        %v5354 = vadd.f32 %v5056, %v5353
        %5355 = vmatprep.mubr.f32.mxu0 0.0
        %v5356 = vand.u32 %v414, 4294901760
        %v5357 = vsub.f32 %v414, %v5356
        %5358 = vmatmul.mubr.f32.gmra.mrb[0].mxu0 %v5357
        %v5359 = vpop.f32.mrb[0].mxu0
        %v5360 = vadd.f32 %v5061, %v5359
        %v5361 = vpop.f32.mrb[0].mxu0
        %v5362 = vadd.f32 %v5063, %v5361
        %5363 = vmatprep.mubr.f32.mxu0 0.0
        %v5364 = vand.u32 %v415, 4294901760
        %v5365 = vsub.f32 %v415, %v5364
        %5366 = vmatmul.mubr.f32.gmra.mrb[0].mxu0 %v5365
        %v5367 = vpop.f32.mrb[0].mxu0
        %v5368 = vadd.f32 %v5068, %v5367
        %v5369 = vpop.f32.mrb[0].mxu0
        %v5370 = vadd.f32 %v5070, %v5369
        %5371 = vmatprep.mubr.f32.mxu0 0.0
        %v5372 = vand.u32 %v416, 4294901760
        %v5373 = vsub.f32 %v416, %v5372
        %5374 = vmatmul.mubr.f32.gmra.mrb[0].mxu0 %v5373
        %v5375 = vpop.f32.mrb[0].mxu0
        %v5376 = vadd.f32 %v5075, %v5375
        %v5377 = vpop.f32.mrb[0].mxu0
        %v5378 = vadd.f32 %v5077, %v5377
        %5379 = vmatprep.mubr.f32.mxu0 0.0
        %v5380 = vand.u32 %v417, 4294901760
        %v5381 = vsub.f32 %v417, %v5380
        %5382 = vmatmul.mubr.f32.gmra.mrb[0].mxu0 %v5381
        %v5383 = vpop.f32.mrb[0].mxu0
        %v5384 = vadd.f32 %v5082, %v5383
        %v5385 = vpop.f32.mrb[0].mxu0
        %v5386 = vadd.f32 %v5084, %v5385
        %5387 = vmatprep.mubr.f32.mxu0 0.0
        %v5388 = vand.u32 %v418, 4294901760
        %v5389 = vsub.f32 %v418, %v5388
        %5390 = vmatmul.mubr.f32.gmra.mrb[0].mxu0 %v5389
        %v5391 = vpop.f32.mrb[0].mxu0
        %v5392 = vadd.f32 %v5089, %v5391
        %v5393 = vpop.f32.mrb[0].mxu0
        %v5394 = vadd.f32 %v5091, %v5393
        %5395 = vmatprep.mubr.f32.mxu0 0.0
        %v5396 = vand.u32 %v419, 4294901760
        %v5397 = vsub.f32 %v419, %v5396
        %5398 = vmatmul.mubr.f32.gmra.mrb[0].mxu0 %v5397
        %v5399 = vpop.f32.mrb[0].mxu0
        %v5400 = vadd.f32 %v5096, %v5399
        %v5401 = vpop.f32.mrb[0].mxu0
        %v5402 = vadd.f32 %v5098, %v5401
        %5403 = vmatprep.mubr.f32.mxu0 0.0
        %v5404 = vand.u32 %v420, 4294901760
        %v5405 = vsub.f32 %v420, %v5404
        %5406 = vmatmul.mubr.f32.gmra.mrb[0].mxu0 %v5405
        %v5407 = vpop.f32.mrb[0].mxu0
        %v5408 = vadd.f32 %v5103, %v5407
        %v5409 = vpop.f32.mrb[0].mxu0
        %v5410 = vadd.f32 %v5105, %v5409
        %5411 = vmatprep.mubr.f32.mxu0 0.0
        %v5412 = vand.u32 %v421, 4294901760
        %v5413 = vsub.f32 %v421, %v5412
        %5414 = vmatmul.mubr.f32.gmra.mrb[0].mxu0 %v5413
        %v5415 = vpop.f32.mrb[0].mxu0
        %v5416 = vadd.f32 %v5110, %v5415
        %v5417 = vpop.f32.mrb[0].mxu0
        %v5418 = vadd.f32 %v5112, %v5417
        %5419 = vmatprep.mubr.f32.mxu0 0.0
        %v5420 = vand.u32 %v422, 4294901760
        %v5421 = vsub.f32 %v422, %v5420
        %5422 = vmatmul.mubr.f32.gmra.mrb[0].mxu0 %v5421
        %v5423 = vpop.f32.mrb[0].mxu0
        %v5424 = vadd.f32 %v5117, %v5423
        %v5425 = vpop.f32.mrb[0].mxu0
        %v5426 = vadd.f32 %v5119, %v5425
        %5427 = vmatprep.mubr.f32.mxu0 0.0
        %v5428 = vand.u32 %v423, 4294901760
        %v5429 = vsub.f32 %v423, %v5428
        %5430 = vmatmul.mubr.f32.gmra.mrb[0].mxu0 %v5429
        %v5431 = vpop.f32.mrb[0].mxu0
        %v5432 = vadd.f32 %v5124, %v5431
        %v5433 = vpop.f32.mrb[0].mxu0
        %v5434 = vadd.f32 %v5126, %v5433
        %5435 = vmatprep.mubr.f32.mxu0 0.0
        %v5436 = vand.u32 %v424, 4294901760
        %v5437 = vsub.f32 %v424, %v5436
        %5438 = vmatmul.mubr.f32.gmra.mrb[0].mxu0 %v5437
        %v5439 = vpop.f32.mrb[0].mxu0
        %v5440 = vadd.f32 %v5131, %v5439
        %v5441 = vpop.f32.mrb[0].mxu0
        %v5442 = vadd.f32 %v5133, %v5441
        %5443 = vmatprep.mubr.f32.mxu0 0.0
        %v5444 = vand.u32 %v425, 4294901760
        %v5445 = vsub.f32 %v425, %v5444
        %5446 = vmatmul.mubr.f32.gmra.mrb[0].mxu0 %v5445
        %v5447 = vpop.f32.mrb[0].mxu0
        %v5448 = vadd.f32 %v5138, %v5447
        %v5449 = vpop.f32.mrb[0].mxu0
        %v5450 = vadd.f32 %v5140, %v5449
        %5451 = vmatprep.mubr.f32.mxu0 0.0
        %v5452 = vand.u32 %v426, 4294901760
        %v5453 = vsub.f32 %v426, %v5452
        %5454 = vmatmul.mubr.f32.gmra.mrb[0].mxu0 %v5453
        %v5455 = vpop.f32.mrb[0].mxu0
        %v5456 = vadd.f32 %v5145, %v5455
        %v5457 = vpop.f32.mrb[0].mxu0
        %v5458 = vadd.f32 %v5147, %v5457
        %5459 = vmatprep.mubr.f32.mxu0 0.0
        %v5460 = vand.u32 %v427, 4294901760
        %v5461 = vsub.f32 %v427, %v5460
        %5462 = vmatmul.mubr.f32.gmra.mrb[0].mxu0 %v5461
        %v5463 = vpop.f32.mrb[0].mxu0
        %v5464 = vadd.f32 %v5152, %v5463
        %v5465 = vpop.f32.mrb[0].mxu0
        %v5466 = vadd.f32 %v5154, %v5465
        %5467 = vmatprep.mubr.f32.mxu0 0.0
        %v5468 = vand.u32 %v428, 4294901760
        %v5469 = vsub.f32 %v428, %v5468
        %5470 = vmatmul.mubr.f32.gmra.mrb[0].mxu0 %v5469
        %v5471 = vpop.f32.mrb[0].mxu0
        %v5472 = vadd.f32 %v5159, %v5471
        %v5473 = vpop.f32.mrb[0].mxu0
        %v5474 = vadd.f32 %v5161, %v5473
        %5475 = vmatprep.mubr.f32.mxu0 0.0
        %v5476 = vand.u32 %v429, 4294901760
        %v5477 = vsub.f32 %v429, %v5476
        %5478 = vmatmul.mubr.f32.gmra.mrb[0].mxu0 %v5477
        %v5479 = vpop.f32.mrb[0].mxu0
        %v5480 = vadd.f32 %v5166, %v5479
        %v5481 = vpop.f32.mrb[0].mxu0
        %v5482 = vadd.f32 %v5168, %v5481
        %5483 = vmatprep.mubr.f32.mxu0 0.0
        %v5484 = vand.u32 %v430, 4294901760
        %v5485 = vsub.f32 %v430, %v5484
        %5486 = vmatmul.mubr.f32.gmra.mrb[0].mxu0 %v5485
        %v5487 = vpop.f32.mrb[0].mxu0
        %v5488 = vadd.f32 %v5173, %v5487
        %v5489 = vpop.f32.mrb[0].mxu0
        %v5490 = vadd.f32 %v5175, %v5489
        %5491 = vmatprep.mubr.f32.mxu0 0.0
        %v5492 = vand.u32 %v431, 4294901760
        %v5493 = vsub.f32 %v431, %v5492
        %5494 = vmatmul.mubr.f32.gmra.mrb[0].mxu0 %v5493
        %v5495 = vpop.f32.mrb[0].mxu0
        %v5496 = vadd.f32 %v5180, %v5495
        %v5497 = vpop.f32.mrb[0].mxu0
        %v5498 = vadd.f32 %v5182, %v5497
        %5499 = vmatprep.mubr.f32.mxu0 0.0
        %v5500 = vand.u32 %v432, 4294901760
        %v5501 = vsub.f32 %v432, %v5500
        %5502 = vmatmul.mubr.f32.gmra.mrb[0].mxu0 %v5501
        %v5503 = vpop.f32.mrb[0].mxu0
        %v5504 = vadd.f32 %v5187, %v5503
        %v5505 = vpop.f32.mrb[0].mxu0
        %v5506 = vadd.f32 %v5189, %v5505
        %5507 = vmatprep.mubr.f32.mxu0 0.0
        %v5508 = vand.u32 %v433, 4294901760
        %v5509 = vsub.f32 %v433, %v5508
        %5510 = vmatmul.mubr.f32.gmra.mrb[0].mxu0 %v5509
        %v5511 = vpop.f32.mrb[0].mxu0
        %v5512 = vadd.f32 %v5194, %v5511
        %v5513 = vpop.f32.mrb[0].mxu0
        %v5514 = vadd.f32 %v5196, %v5513
        %5515 = vmatprep.mubr.f32.mxu0 0.0
        %v5516 = vand.u32 %v434, 4294901760
        %v5517 = vsub.f32 %v434, %v5516
        %5518 = vmatmul.mubr.f32.gmra.mrb[0].mxu0 %v5517
        %v5519 = vpop.f32.mrb[0].mxu0
        %v5520 = vadd.f32 %v5201, %v5519
        %v5521 = vpop.f32.mrb[0].mxu0
        %v5522 = vadd.f32 %v5203, %v5521
        %5523 = vmatprep.mubr.f32.mxu0 0.0
        %v5524 = vand.u32 %v435, 4294901760
        %v5525 = vsub.f32 %v435, %v5524
        %5526 = vmatmul.mubr.f32.gmra.mrb[0].mxu0 %v5525
        %v5527 = vpop.f32.mrb[0].mxu0
        %v5528 = vadd.f32 %v5208, %v5527
        %v5529 = vpop.f32.mrb[0].mxu0
        %v5530 = vadd.f32 %v5210, %v5529
        %5531 = vmatprep.mubr.f32.mxu0 0.0
        %v5532 = vand.u32 %v436, 4294901760
        %v5533 = vsub.f32 %v436, %v5532
        %5534 = vmatmul.mubr.f32.gmra.mrb[0].mxu0 %v5533
        %v5535 = vpop.f32.mrb[0].mxu0
        %v5536 = vadd.f32 %v5215, %v5535
        %v5537 = vpop.f32.mrb[0].mxu0
        %v5538 = vadd.f32 %v5217, %v5537
        %5539 = vdwg.mxu0
        %v5540 = vand.u32 %v442, 4294901760
        %5541 = vmatprep.subr.mxu0 %v5540
        %v5542 = vand.u32 %v441, 4294901760
        %5543 = vmatpush1.msra.mxu0 %v5542
        %v5544 = vand.u32 %v449, 4294901760
        %5545 = vmatprep.subr.mxu0 %v5544
        %v5546 = vand.u32 %v448, 4294901760
        %5547 = vmatpush1.msra.mxu0 %v5546
        %v5548 = vand.u32 %v456, 4294901760
        %5549 = vmatprep.subr.mxu0 %v5548
        %v5550 = vand.u32 %v455, 4294901760
        %5551 = vmatpush1.msra.mxu0 %v5550
        %v5552 = vand.u32 %v463, 4294901760
        %5553 = vmatprep.subr.mxu0 %v5552
        %v5554 = vand.u32 %v462, 4294901760
        %5555 = vmatpush1.msra.mxu0 %v5554
        %v5556 = vand.u32 %v470, 4294901760
        %5557 = vmatprep.subr.mxu0 %v5556
        %v5558 = vand.u32 %v469, 4294901760
        %5559 = vmatpush1.msra.mxu0 %v5558
        %v5560 = vand.u32 %v477, 4294901760
        %5561 = vmatprep.subr.mxu0 %v5560
        %v5562 = vand.u32 %v476, 4294901760
        %5563 = vmatpush1.msra.mxu0 %v5562
        %v5564 = vand.u32 %v484, 4294901760
        %5565 = vmatprep.subr.mxu0 %v5564
        %v5566 = vand.u32 %v483, 4294901760
        %5567 = vmatpush1.msra.mxu0 %v5566
        %v5568 = vand.u32 %v491, 4294901760
        %5569 = vmatprep.subr.mxu0 %v5568
        %v5570 = vand.u32 %v490, 4294901760
        %5571 = vmatpush1.msra.mxu0 %v5570
        %v5572 = vand.u32 %v498, 4294901760
        %5573 = vmatprep.subr.mxu0 %v5572
        %v5574 = vand.u32 %v497, 4294901760
        %5575 = vmatpush1.msra.mxu0 %v5574
        %v5576 = vand.u32 %v505, 4294901760
        %5577 = vmatprep.subr.mxu0 %v5576
        %v5578 = vand.u32 %v504, 4294901760
        %5579 = vmatpush1.msra.mxu0 %v5578
        %v5580 = vand.u32 %v512, 4294901760
        %5581 = vmatprep.subr.mxu0 %v5580
        %v5582 = vand.u32 %v511, 4294901760
        %5583 = vmatpush1.msra.mxu0 %v5582
        %v5584 = vand.u32 %v519, 4294901760
        %5585 = vmatprep.subr.mxu0 %v5584
        %v5586 = vand.u32 %v518, 4294901760
        %5587 = vmatpush1.msra.mxu0 %v5586
        %v5588 = vand.u32 %v526, 4294901760
        %5589 = vmatprep.subr.mxu0 %v5588
        %v5590 = vand.u32 %v525, 4294901760
        %5591 = vmatpush1.msra.mxu0 %v5590
        %v5592 = vand.u32 %v533, 4294901760
        %5593 = vmatprep.subr.mxu0 %v5592
        %v5594 = vand.u32 %v532, 4294901760
        %5595 = vmatpush1.msra.mxu0 %v5594
        %v5596 = vand.u32 %v540, 4294901760
        %5597 = vmatprep.subr.mxu0 %v5596
        %v5598 = vand.u32 %v539, 4294901760
        %5599 = vmatpush1.msra.mxu0 %v5598
        %v5600 = vand.u32 %v547, 4294901760
        %5601 = vmatprep.subr.mxu0 %v5600
        %v5602 = vand.u32 %v546, 4294901760
        %5603 = vmatpush1.msra.mxu0 %v5602
        %5604 = vmatprep.subr.mxu0 0.0
        %5605 = vmatpush1.msra.mxu0 0.0
        %5606 = vmatprep.subr.mxu0 0.0
        %5607 = vmatpush1.msra.mxu0 0.0
        %5608 = vmatprep.subr.mxu0 0.0
        %5609 = vmatpush1.msra.mxu0 0.0
        %5610 = vmatprep.subr.mxu0 0.0
        %5611 = vmatpush1.msra.mxu0 0.0
        %5612 = vmatprep.subr.mxu0 0.0
        %5613 = vmatpush1.msra.mxu0 0.0
        %5614 = vmatprep.subr.mxu0 0.0
        %5615 = vmatpush1.msra.mxu0 0.0
        %5616 = vmatprep.subr.mxu0 0.0
        %5617 = vmatpush1.msra.mxu0 0.0
        %5618 = vmatprep.subr.mxu0 0.0
        %5619 = vmatpush1.msra.mxu0 0.0
        %5620 = vmatprep.subr.mxu0 0.0
        %5621 = vmatpush1.msra.mxu0 0.0
        %5622 = vmatprep.subr.mxu0 0.0
        %5623 = vmatpush1.msra.mxu0 0.0
        %5624 = vmatprep.subr.mxu0 0.0
        %5625 = vmatpush1.msra.mxu0 0.0
        %5626 = vmatprep.subr.mxu0 0.0
        %5627 = vmatpush1.msra.mxu0 0.0
        %5628 = vmatprep.subr.mxu0 0.0
        %5629 = vmatpush1.msra.mxu0 0.0
        %5630 = vmatprep.subr.mxu0 0.0
        %5631 = vmatpush1.msra.mxu0 0.0
        %5632 = vmatprep.subr.mxu0 0.0
        %5633 = vmatpush1.msra.mxu0 0.0
        %5634 = vmatprep.subr.mxu0 0.0
        %5635 = vmatpush1.msra.mxu0 0.0
        %5636 = vmatprep.mubr.f32.mxu0 0.0
        %v5637 = vand.u32 %v413, 4294901760
        %v5638 = vsub.f32 %v413, %v5637
        %v5639 = vand.u32 %v5638, 4294901760
        %5640 = vmatmul.mubr.f32.gmra.mrb[0].mxu0 %v5639
        %v5641 = vpop.f32.mrb[0].mxu0
        %v5642 = vadd.f32 %v5352, %v5641
        %v5643 = vpop.f32.mrb[0].mxu0
        %v5644 = vadd.f32 %v5354, %v5643
        %5645 = vmatprep.mubr.f32.mxu0 0.0
        %v5646 = vand.u32 %v414, 4294901760
        %v5647 = vsub.f32 %v414, %v5646
        %v5648 = vand.u32 %v5647, 4294901760
        %5649 = vmatmul.mubr.f32.gmra.mrb[0].mxu0 %v5648
        %v5650 = vpop.f32.mrb[0].mxu0
        %v5651 = vadd.f32 %v5360, %v5650
        %v5652 = vpop.f32.mrb[0].mxu0
        %v5653 = vadd.f32 %v5362, %v5652
        %5654 = vmatprep.mubr.f32.mxu0 0.0
        %v5655 = vand.u32 %v415, 4294901760
        %v5656 = vsub.f32 %v415, %v5655
        %v5657 = vand.u32 %v5656, 4294901760
        %5658 = vmatmul.mubr.f32.gmra.mrb[0].mxu0 %v5657
        %v5659 = vpop.f32.mrb[0].mxu0
        %v5660 = vadd.f32 %v5368, %v5659
        %v5661 = vpop.f32.mrb[0].mxu0
        %v5662 = vadd.f32 %v5370, %v5661
        %5663 = vmatprep.mubr.f32.mxu0 0.0
        %v5664 = vand.u32 %v416, 4294901760
        %v5665 = vsub.f32 %v416, %v5664
        %v5666 = vand.u32 %v5665, 4294901760
        %5667 = vmatmul.mubr.f32.gmra.mrb[0].mxu0 %v5666
        %v5668 = vpop.f32.mrb[0].mxu0
        %v5669 = vadd.f32 %v5376, %v5668
        %v5670 = vpop.f32.mrb[0].mxu0
        %v5671 = vadd.f32 %v5378, %v5670
        %5672 = vmatprep.mubr.f32.mxu0 0.0
        %v5673 = vand.u32 %v417, 4294901760
        %v5674 = vsub.f32 %v417, %v5673
        %v5675 = vand.u32 %v5674, 4294901760
        %5676 = vmatmul.mubr.f32.gmra.mrb[0].mxu0 %v5675
        %v5677 = vpop.f32.mrb[0].mxu0
        %v5678 = vadd.f32 %v5384, %v5677
        %v5679 = vpop.f32.mrb[0].mxu0
        %v5680 = vadd.f32 %v5386, %v5679
        %5681 = vmatprep.mubr.f32.mxu0 0.0
        %v5682 = vand.u32 %v418, 4294901760
        %v5683 = vsub.f32 %v418, %v5682
        %v5684 = vand.u32 %v5683, 4294901760
        %5685 = vmatmul.mubr.f32.gmra.mrb[0].mxu0 %v5684
        %v5686 = vpop.f32.mrb[0].mxu0
        %v5687 = vadd.f32 %v5392, %v5686
        %v5688 = vpop.f32.mrb[0].mxu0
        %v5689 = vadd.f32 %v5394, %v5688
        %5690 = vmatprep.mubr.f32.mxu0 0.0
        %v5691 = vand.u32 %v419, 4294901760
        %v5692 = vsub.f32 %v419, %v5691
        %v5693 = vand.u32 %v5692, 4294901760
        %5694 = vmatmul.mubr.f32.gmra.mrb[0].mxu0 %v5693
        %v5695 = vpop.f32.mrb[0].mxu0
        %v5696 = vadd.f32 %v5400, %v5695
        %v5697 = vpop.f32.mrb[0].mxu0
        %v5698 = vadd.f32 %v5402, %v5697
        %5699 = vmatprep.mubr.f32.mxu0 0.0
        %v5700 = vand.u32 %v420, 4294901760
        %v5701 = vsub.f32 %v420, %v5700
        %v5702 = vand.u32 %v5701, 4294901760
        %5703 = vmatmul.mubr.f32.gmra.mrb[0].mxu0 %v5702
        %v5704 = vpop.f32.mrb[0].mxu0
        %v5705 = vadd.f32 %v5408, %v5704
        %v5706 = vpop.f32.mrb[0].mxu0
        %v5707 = vadd.f32 %v5410, %v5706
        %5708 = vmatprep.mubr.f32.mxu0 0.0
        %v5709 = vand.u32 %v421, 4294901760
        %v5710 = vsub.f32 %v421, %v5709
        %v5711 = vand.u32 %v5710, 4294901760
        %5712 = vmatmul.mubr.f32.gmra.mrb[0].mxu0 %v5711
        %v5713 = vpop.f32.mrb[0].mxu0
        %v5714 = vadd.f32 %v5416, %v5713
        %v5715 = vpop.f32.mrb[0].mxu0
        %v5716 = vadd.f32 %v5418, %v5715
        %5717 = vmatprep.mubr.f32.mxu0 0.0
        %v5718 = vand.u32 %v422, 4294901760
        %v5719 = vsub.f32 %v422, %v5718
        %v5720 = vand.u32 %v5719, 4294901760
        %5721 = vmatmul.mubr.f32.gmra.mrb[0].mxu0 %v5720
        %v5722 = vpop.f32.mrb[0].mxu0
        %v5723 = vadd.f32 %v5424, %v5722
        %v5724 = vpop.f32.mrb[0].mxu0
        %v5725 = vadd.f32 %v5426, %v5724
        %5726 = vmatprep.mubr.f32.mxu0 0.0
        %v5727 = vand.u32 %v423, 4294901760
        %v5728 = vsub.f32 %v423, %v5727
        %v5729 = vand.u32 %v5728, 4294901760
        %5730 = vmatmul.mubr.f32.gmra.mrb[0].mxu0 %v5729
        %v5731 = vpop.f32.mrb[0].mxu0
        %v5732 = vadd.f32 %v5432, %v5731
        %v5733 = vpop.f32.mrb[0].mxu0
        %v5734 = vadd.f32 %v5434, %v5733
        %5735 = vmatprep.mubr.f32.mxu0 0.0
        %v5736 = vand.u32 %v424, 4294901760
        %v5737 = vsub.f32 %v424, %v5736
        %v5738 = vand.u32 %v5737, 4294901760
        %5739 = vmatmul.mubr.f32.gmra.mrb[0].mxu0 %v5738
        %v5740 = vpop.f32.mrb[0].mxu0
        %v5741 = vadd.f32 %v5440, %v5740
        %v5742 = vpop.f32.mrb[0].mxu0
        %v5743 = vadd.f32 %v5442, %v5742
        %5744 = vmatprep.mubr.f32.mxu0 0.0
        %v5745 = vand.u32 %v425, 4294901760
        %v5746 = vsub.f32 %v425, %v5745
        %v5747 = vand.u32 %v5746, 4294901760
        %5748 = vmatmul.mubr.f32.gmra.mrb[0].mxu0 %v5747
        %v5749 = vpop.f32.mrb[0].mxu0
        %v5750 = vadd.f32 %v5448, %v5749
        %v5751 = vpop.f32.mrb[0].mxu0
        %v5752 = vadd.f32 %v5450, %v5751
        %5753 = vmatprep.mubr.f32.mxu0 0.0
        %v5754 = vand.u32 %v426, 4294901760
        %v5755 = vsub.f32 %v426, %v5754
        %v5756 = vand.u32 %v5755, 4294901760
        %5757 = vmatmul.mubr.f32.gmra.mrb[0].mxu0 %v5756
        %v5758 = vpop.f32.mrb[0].mxu0
        %v5759 = vadd.f32 %v5456, %v5758
        %v5760 = vpop.f32.mrb[0].mxu0
        %v5761 = vadd.f32 %v5458, %v5760
        %5762 = vmatprep.mubr.f32.mxu0 0.0
        %v5763 = vand.u32 %v427, 4294901760
        %v5764 = vsub.f32 %v427, %v5763
        %v5765 = vand.u32 %v5764, 4294901760
        %5766 = vmatmul.mubr.f32.gmra.mrb[0].mxu0 %v5765
        %v5767 = vpop.f32.mrb[0].mxu0
        %v5768 = vadd.f32 %v5464, %v5767
        %v5769 = vpop.f32.mrb[0].mxu0
        %v5770 = vadd.f32 %v5466, %v5769
        %5771 = vmatprep.mubr.f32.mxu0 0.0
        %v5772 = vand.u32 %v428, 4294901760
        %v5773 = vsub.f32 %v428, %v5772
        %v5774 = vand.u32 %v5773, 4294901760
        %5775 = vmatmul.mubr.f32.gmra.mrb[0].mxu0 %v5774
        %v5776 = vpop.f32.mrb[0].mxu0
        %v5777 = vadd.f32 %v5472, %v5776
        %v5778 = vpop.f32.mrb[0].mxu0
        %v5779 = vadd.f32 %v5474, %v5778
        %5780 = vmatprep.mubr.f32.mxu0 0.0
        %v5781 = vand.u32 %v429, 4294901760
        %v5782 = vsub.f32 %v429, %v5781
        %v5783 = vand.u32 %v5782, 4294901760
        %5784 = vmatmul.mubr.f32.gmra.mrb[0].mxu0 %v5783
        %v5785 = vpop.f32.mrb[0].mxu0
        %v5786 = vadd.f32 %v5480, %v5785
        %v5787 = vpop.f32.mrb[0].mxu0
        %v5788 = vadd.f32 %v5482, %v5787
        %5789 = vmatprep.mubr.f32.mxu0 0.0
        %v5790 = vand.u32 %v430, 4294901760
        %v5791 = vsub.f32 %v430, %v5790
        %v5792 = vand.u32 %v5791, 4294901760
        %5793 = vmatmul.mubr.f32.gmra.mrb[0].mxu0 %v5792
        %v5794 = vpop.f32.mrb[0].mxu0
        %v5795 = vadd.f32 %v5488, %v5794
        %v5796 = vpop.f32.mrb[0].mxu0
        %v5797 = vadd.f32 %v5490, %v5796
        %5798 = vmatprep.mubr.f32.mxu0 0.0
        %v5799 = vand.u32 %v431, 4294901760
        %v5800 = vsub.f32 %v431, %v5799
        %v5801 = vand.u32 %v5800, 4294901760
        %5802 = vmatmul.mubr.f32.gmra.mrb[0].mxu0 %v5801
        %v5803 = vpop.f32.mrb[0].mxu0
        %v5804 = vadd.f32 %v5496, %v5803
        %v5805 = vpop.f32.mrb[0].mxu0
        %v5806 = vadd.f32 %v5498, %v5805
        %5807 = vmatprep.mubr.f32.mxu0 0.0
        %v5808 = vand.u32 %v432, 4294901760
        %v5809 = vsub.f32 %v432, %v5808
        %v5810 = vand.u32 %v5809, 4294901760
        %5811 = vmatmul.mubr.f32.gmra.mrb[0].mxu0 %v5810
        %v5812 = vpop.f32.mrb[0].mxu0
        %v5813 = vadd.f32 %v5504, %v5812
        %v5814 = vpop.f32.mrb[0].mxu0
        %v5815 = vadd.f32 %v5506, %v5814
        %5816 = vmatprep.mubr.f32.mxu0 0.0
        %v5817 = vand.u32 %v433, 4294901760
        %v5818 = vsub.f32 %v433, %v5817
        %v5819 = vand.u32 %v5818, 4294901760
        %5820 = vmatmul.mubr.f32.gmra.mrb[0].mxu0 %v5819
        %v5821 = vpop.f32.mrb[0].mxu0
        %v5822 = vadd.f32 %v5512, %v5821
        %v5823 = vpop.f32.mrb[0].mxu0
        %v5824 = vadd.f32 %v5514, %v5823
        %5825 = vmatprep.mubr.f32.mxu0 0.0
        %v5826 = vand.u32 %v434, 4294901760
        %v5827 = vsub.f32 %v434, %v5826
        %v5828 = vand.u32 %v5827, 4294901760
        %5829 = vmatmul.mubr.f32.gmra.mrb[0].mxu0 %v5828
        %v5830 = vpop.f32.mrb[0].mxu0
        %v5831 = vadd.f32 %v5520, %v5830
        %v5832 = vpop.f32.mrb[0].mxu0
        %v5833 = vadd.f32 %v5522, %v5832
        %5834 = vmatprep.mubr.f32.mxu0 0.0
        %v5835 = vand.u32 %v435, 4294901760
        %v5836 = vsub.f32 %v435, %v5835
        %v5837 = vand.u32 %v5836, 4294901760
        %5838 = vmatmul.mubr.f32.gmra.mrb[0].mxu0 %v5837
        %v5839 = vpop.f32.mrb[0].mxu0
        %v5840 = vadd.f32 %v5528, %v5839
        %v5841 = vpop.f32.mrb[0].mxu0
        %v5842 = vadd.f32 %v5530, %v5841
        %5843 = vmatprep.mubr.f32.mxu0 0.0
        %v5844 = vand.u32 %v436, 4294901760
        %v5845 = vsub.f32 %v436, %v5844
        %v5846 = vand.u32 %v5845, 4294901760
        %5847 = vmatmul.mubr.f32.gmra.mrb[0].mxu0 %v5846
        %v5848 = vpop.f32.mrb[0].mxu0
        %v5849 = vadd.f32 %v5536, %v5848
        %v5850 = vpop.f32.mrb[0].mxu0
        %v5851 = vadd.f32 %v5538, %v5850
        %5852 = vdwg.mxu0
        %v5853 = vand.u32 %v442, 4294901760
        %v5854 = vsub.f32 %v442, %v5853
        %v5855 = vand.u32 %v5854, 4294901760
        %5856 = vmatprep.subr.mxu0 %v5855
        %v5857 = vand.u32 %v441, 4294901760
        %v5858 = vsub.f32 %v441, %v5857
        %v5859 = vand.u32 %v5858, 4294901760
        %5860 = vmatpush1.msra.mxu0 %v5859
        %v5861 = vand.u32 %v449, 4294901760
        %v5862 = vsub.f32 %v449, %v5861
        %v5863 = vand.u32 %v5862, 4294901760
        %5864 = vmatprep.subr.mxu0 %v5863
        %v5865 = vand.u32 %v448, 4294901760
        %v5866 = vsub.f32 %v448, %v5865
        %v5867 = vand.u32 %v5866, 4294901760
        %5868 = vmatpush1.msra.mxu0 %v5867
        %v5869 = vand.u32 %v456, 4294901760
        %v5870 = vsub.f32 %v456, %v5869
        %v5871 = vand.u32 %v5870, 4294901760
        %5872 = vmatprep.subr.mxu0 %v5871
        %v5873 = vand.u32 %v455, 4294901760
        %v5874 = vsub.f32 %v455, %v5873
        %v5875 = vand.u32 %v5874, 4294901760
        %5876 = vmatpush1.msra.mxu0 %v5875
        %v5877 = vand.u32 %v463, 4294901760
        %v5878 = vsub.f32 %v463, %v5877
        %v5879 = vand.u32 %v5878, 4294901760
        %5880 = vmatprep.subr.mxu0 %v5879
        %v5881 = vand.u32 %v462, 4294901760
        %v5882 = vsub.f32 %v462, %v5881
        %v5883 = vand.u32 %v5882, 4294901760
        %5884 = vmatpush1.msra.mxu0 %v5883
        %v5885 = vand.u32 %v470, 4294901760
        %v5886 = vsub.f32 %v470, %v5885
        %v5887 = vand.u32 %v5886, 4294901760
        %5888 = vmatprep.subr.mxu0 %v5887
        %v5889 = vand.u32 %v469, 4294901760
        %v5890 = vsub.f32 %v469, %v5889
        %v5891 = vand.u32 %v5890, 4294901760
        %5892 = vmatpush1.msra.mxu0 %v5891
        %v5893 = vand.u32 %v477, 4294901760
        %v5894 = vsub.f32 %v477, %v5893
        %v5895 = vand.u32 %v5894, 4294901760
        %5896 = vmatprep.subr.mxu0 %v5895
        %v5897 = vand.u32 %v476, 4294901760
        %v5898 = vsub.f32 %v476, %v5897
        %v5899 = vand.u32 %v5898, 4294901760
        %5900 = vmatpush1.msra.mxu0 %v5899
        %v5901 = vand.u32 %v484, 4294901760
        %v5902 = vsub.f32 %v484, %v5901
        %v5903 = vand.u32 %v5902, 4294901760
        %5904 = vmatprep.subr.mxu0 %v5903
        %v5905 = vand.u32 %v483, 4294901760
        %v5906 = vsub.f32 %v483, %v5905
        %v5907 = vand.u32 %v5906, 4294901760
        %5908 = vmatpush1.msra.mxu0 %v5907
        %v5909 = vand.u32 %v491, 4294901760
        %v5910 = vsub.f32 %v491, %v5909
        %v5911 = vand.u32 %v5910, 4294901760
        %5912 = vmatprep.subr.mxu0 %v5911
        %v5913 = vand.u32 %v490, 4294901760
        %v5914 = vsub.f32 %v490, %v5913
        %v5915 = vand.u32 %v5914, 4294901760
        %5916 = vmatpush1.msra.mxu0 %v5915
        %v5917 = vand.u32 %v498, 4294901760
        %v5918 = vsub.f32 %v498, %v5917
        %v5919 = vand.u32 %v5918, 4294901760
        %5920 = vmatprep.subr.mxu0 %v5919
        %v5921 = vand.u32 %v497, 4294901760
        %v5922 = vsub.f32 %v497, %v5921
        %v5923 = vand.u32 %v5922, 4294901760
        %5924 = vmatpush1.msra.mxu0 %v5923
        %v5925 = vand.u32 %v505, 4294901760
        %v5926 = vsub.f32 %v505, %v5925
        %v5927 = vand.u32 %v5926, 4294901760
        %5928 = vmatprep.subr.mxu0 %v5927
        %v5929 = vand.u32 %v504, 4294901760
        %v5930 = vsub.f32 %v504, %v5929
        %v5931 = vand.u32 %v5930, 4294901760
        %5932 = vmatpush1.msra.mxu0 %v5931
        %v5933 = vand.u32 %v512, 4294901760
        %v5934 = vsub.f32 %v512, %v5933
        %v5935 = vand.u32 %v5934, 4294901760
        %5936 = vmatprep.subr.mxu0 %v5935
        %v5937 = vand.u32 %v511, 4294901760
        %v5938 = vsub.f32 %v511, %v5937
        %v5939 = vand.u32 %v5938, 4294901760
        %5940 = vmatpush1.msra.mxu0 %v5939
        %v5941 = vand.u32 %v519, 4294901760
        %v5942 = vsub.f32 %v519, %v5941
        %v5943 = vand.u32 %v5942, 4294901760
        %5944 = vmatprep.subr.mxu0 %v5943
        %v5945 = vand.u32 %v518, 4294901760
        %v5946 = vsub.f32 %v518, %v5945
        %v5947 = vand.u32 %v5946, 4294901760
        %5948 = vmatpush1.msra.mxu0 %v5947
        %v5949 = vand.u32 %v526, 4294901760
        %v5950 = vsub.f32 %v526, %v5949
        %v5951 = vand.u32 %v5950, 4294901760
        %5952 = vmatprep.subr.mxu0 %v5951
        %v5953 = vand.u32 %v525, 4294901760
        %v5954 = vsub.f32 %v525, %v5953
        %v5955 = vand.u32 %v5954, 4294901760
        %5956 = vmatpush1.msra.mxu0 %v5955
        %v5957 = vand.u32 %v533, 4294901760
        %v5958 = vsub.f32 %v533, %v5957
        %v5959 = vand.u32 %v5958, 4294901760
        %5960 = vmatprep.subr.mxu0 %v5959
        %v5961 = vand.u32 %v532, 4294901760
        %v5962 = vsub.f32 %v532, %v5961
        %v5963 = vand.u32 %v5962, 4294901760
        %5964 = vmatpush1.msra.mxu0 %v5963
        %v5965 = vand.u32 %v540, 4294901760
        %v5966 = vsub.f32 %v540, %v5965
        %v5967 = vand.u32 %v5966, 4294901760
        %5968 = vmatprep.subr.mxu0 %v5967
        %v5969 = vand.u32 %v539, 4294901760
        %v5970 = vsub.f32 %v539, %v5969
        %v5971 = vand.u32 %v5970, 4294901760
        %5972 = vmatpush1.msra.mxu0 %v5971
        %v5973 = vand.u32 %v547, 4294901760
        %v5974 = vsub.f32 %v547, %v5973
        %v5975 = vand.u32 %v5974, 4294901760
        %5976 = vmatprep.subr.mxu0 %v5975
        %v5977 = vand.u32 %v546, 4294901760
        %v5978 = vsub.f32 %v546, %v5977
        %v5979 = vand.u32 %v5978, 4294901760
        %5980 = vmatpush1.msra.mxu0 %v5979
        %5981 = vmatprep.subr.mxu0 0.0
        %5982 = vmatpush1.msra.mxu0 0.0
        %5983 = vmatprep.subr.mxu0 0.0
        %5984 = vmatpush1.msra.mxu0 0.0
        %5985 = vmatprep.subr.mxu0 0.0
        %5986 = vmatpush1.msra.mxu0 0.0
        %5987 = vmatprep.subr.mxu0 0.0
        %5988 = vmatpush1.msra.mxu0 0.0
        %5989 = vmatprep.subr.mxu0 0.0
        %5990 = vmatpush1.msra.mxu0 0.0
        %5991 = vmatprep.subr.mxu0 0.0
        %5992 = vmatpush1.msra.mxu0 0.0
        %5993 = vmatprep.subr.mxu0 0.0
        %5994 = vmatpush1.msra.mxu0 0.0
        %5995 = vmatprep.subr.mxu0 0.0
        %5996 = vmatpush1.msra.mxu0 0.0
        %5997 = vmatprep.subr.mxu0 0.0
        %5998 = vmatpush1.msra.mxu0 0.0
        %5999 = vmatprep.subr.mxu0 0.0
        %6000 = vmatpush1.msra.mxu0 0.0
        %6001 = vmatprep.subr.mxu0 0.0
        %6002 = vmatpush1.msra.mxu0 0.0
        %6003 = vmatprep.subr.mxu0 0.0
        %6004 = vmatpush1.msra.mxu0 0.0
        %6005 = vmatprep.subr.mxu0 0.0
        %6006 = vmatpush1.msra.mxu0 0.0
        %6007 = vmatprep.subr.mxu0 0.0
        %6008 = vmatpush1.msra.mxu0 0.0
        %6009 = vmatprep.subr.mxu0 0.0
        %6010 = vmatpush1.msra.mxu0 0.0
        %6011 = vmatprep.subr.mxu0 0.0
        %6012 = vmatpush1.msra.mxu0 0.0
        %6013 = vmatprep.mubr.f32.mxu0 0.0
        %v6014 = vand.u32 %v413, 4294901760
        %6015 = vmatmul.mubr.f32.gmra.mrb[0].mxu0 %v6014
        %v6016 = vpop.f32.mrb[0].mxu0
        %v6017 = vadd.f32 %v5642, %v6016
        %v6018 = vpop.f32.mrb[0].mxu0
        %v6019 = vadd.f32 %v5644, %v6018
        %6020 = vmatprep.mubr.f32.mxu0 0.0
        %v6021 = vand.u32 %v414, 4294901760
        %6022 = vmatmul.mubr.f32.gmra.mrb[0].mxu0 %v6021
        %v6023 = vpop.f32.mrb[0].mxu0
        %v6024 = vadd.f32 %v5651, %v6023
        %v6025 = vpop.f32.mrb[0].mxu0
        %v6026 = vadd.f32 %v5653, %v6025
        %6027 = vmatprep.mubr.f32.mxu0 0.0
        %v6028 = vand.u32 %v415, 4294901760
        %6029 = vmatmul.mubr.f32.gmra.mrb[0].mxu0 %v6028
        %v6030 = vpop.f32.mrb[0].mxu0
        %v6031 = vadd.f32 %v5660, %v6030
        %v6032 = vpop.f32.mrb[0].mxu0
        %v6033 = vadd.f32 %v5662, %v6032
        %6034 = vmatprep.mubr.f32.mxu0 0.0
        %v6035 = vand.u32 %v416, 4294901760
        %6036 = vmatmul.mubr.f32.gmra.mrb[0].mxu0 %v6035
        %v6037 = vpop.f32.mrb[0].mxu0
        %v6038 = vadd.f32 %v5669, %v6037
        %v6039 = vpop.f32.mrb[0].mxu0
        %v6040 = vadd.f32 %v5671, %v6039
        %6041 = vmatprep.mubr.f32.mxu0 0.0
        %v6042 = vand.u32 %v417, 4294901760
        %6043 = vmatmul.mubr.f32.gmra.mrb[0].mxu0 %v6042
        %v6044 = vpop.f32.mrb[0].mxu0
        %v6045 = vadd.f32 %v5678, %v6044
        %v6046 = vpop.f32.mrb[0].mxu0
        %v6047 = vadd.f32 %v5680, %v6046
        %6048 = vmatprep.mubr.f32.mxu0 0.0
        %v6049 = vand.u32 %v418, 4294901760
        %6050 = vmatmul.mubr.f32.gmra.mrb[0].mxu0 %v6049
        %v6051 = vpop.f32.mrb[0].mxu0
        %v6052 = vadd.f32 %v5687, %v6051
        %v6053 = vpop.f32.mrb[0].mxu0
        %v6054 = vadd.f32 %v5689, %v6053
        %6055 = vmatprep.mubr.f32.mxu0 0.0
        %v6056 = vand.u32 %v419, 4294901760
        %6057 = vmatmul.mubr.f32.gmra.mrb[0].mxu0 %v6056
        %v6058 = vpop.f32.mrb[0].mxu0
        %v6059 = vadd.f32 %v5696, %v6058
        %v6060 = vpop.f32.mrb[0].mxu0
        %v6061 = vadd.f32 %v5698, %v6060
        %6062 = vmatprep.mubr.f32.mxu0 0.0
        %v6063 = vand.u32 %v420, 4294901760
        %6064 = vmatmul.mubr.f32.gmra.mrb[0].mxu0 %v6063
        %v6065 = vpop.f32.mrb[0].mxu0
        %v6066 = vadd.f32 %v5705, %v6065
        %v6067 = vpop.f32.mrb[0].mxu0
        %v6068 = vadd.f32 %v5707, %v6067
        %6069 = vmatprep.mubr.f32.mxu0 0.0
        %v6070 = vand.u32 %v421, 4294901760
        %6071 = vmatmul.mubr.f32.gmra.mrb[0].mxu0 %v6070
        %v6072 = vpop.f32.mrb[0].mxu0
        %v6073 = vadd.f32 %v5714, %v6072
        %v6074 = vpop.f32.mrb[0].mxu0
        %v6075 = vadd.f32 %v5716, %v6074
        %6076 = vmatprep.mubr.f32.mxu0 0.0
        %v6077 = vand.u32 %v422, 4294901760
        %6078 = vmatmul.mubr.f32.gmra.mrb[0].mxu0 %v6077
        %v6079 = vpop.f32.mrb[0].mxu0
        %v6080 = vadd.f32 %v5723, %v6079
        %v6081 = vpop.f32.mrb[0].mxu0
        %v6082 = vadd.f32 %v5725, %v6081
        %6083 = vmatprep.mubr.f32.mxu0 0.0
        %v6084 = vand.u32 %v423, 4294901760
        %6085 = vmatmul.mubr.f32.gmra.mrb[0].mxu0 %v6084
        %v6086 = vpop.f32.mrb[0].mxu0
        %v6087 = vadd.f32 %v5732, %v6086
        %v6088 = vpop.f32.mrb[0].mxu0
        %v6089 = vadd.f32 %v5734, %v6088
        %6090 = vmatprep.mubr.f32.mxu0 0.0
        %v6091 = vand.u32 %v424, 4294901760
        %6092 = vmatmul.mubr.f32.gmra.mrb[0].mxu0 %v6091
        %v6093 = vpop.f32.mrb[0].mxu0
        %v6094 = vadd.f32 %v5741, %v6093
        %v6095 = vpop.f32.mrb[0].mxu0
        %v6096 = vadd.f32 %v5743, %v6095
        %6097 = vmatprep.mubr.f32.mxu0 0.0
        %v6098 = vand.u32 %v425, 4294901760
        %6099 = vmatmul.mubr.f32.gmra.mrb[0].mxu0 %v6098
        %v6100 = vpop.f32.mrb[0].mxu0
        %v6101 = vadd.f32 %v5750, %v6100
        %v6102 = vpop.f32.mrb[0].mxu0
        %v6103 = vadd.f32 %v5752, %v6102
        %6104 = vmatprep.mubr.f32.mxu0 0.0
        %v6105 = vand.u32 %v426, 4294901760
        %6106 = vmatmul.mubr.f32.gmra.mrb[0].mxu0 %v6105
        %v6107 = vpop.f32.mrb[0].mxu0
        %v6108 = vadd.f32 %v5759, %v6107
        %v6109 = vpop.f32.mrb[0].mxu0
        %v6110 = vadd.f32 %v5761, %v6109
        %6111 = vmatprep.mubr.f32.mxu0 0.0
        %v6112 = vand.u32 %v427, 4294901760
        %6113 = vmatmul.mubr.f32.gmra.mrb[0].mxu0 %v6112
        %v6114 = vpop.f32.mrb[0].mxu0
        %v6115 = vadd.f32 %v5768, %v6114
        %v6116 = vpop.f32.mrb[0].mxu0
        %v6117 = vadd.f32 %v5770, %v6116
        %6118 = vmatprep.mubr.f32.mxu0 0.0
        %v6119 = vand.u32 %v428, 4294901760
        %6120 = vmatmul.mubr.f32.gmra.mrb[0].mxu0 %v6119
        %v6121 = vpop.f32.mrb[0].mxu0
        %v6122 = vadd.f32 %v5777, %v6121
        %v6123 = vpop.f32.mrb[0].mxu0
        %v6124 = vadd.f32 %v5779, %v6123
        %6125 = vmatprep.mubr.f32.mxu0 0.0
        %v6126 = vand.u32 %v429, 4294901760
        %6127 = vmatmul.mubr.f32.gmra.mrb[0].mxu0 %v6126
        %v6128 = vpop.f32.mrb[0].mxu0
        %v6129 = vadd.f32 %v5786, %v6128
        %v6130 = vpop.f32.mrb[0].mxu0
        %v6131 = vadd.f32 %v5788, %v6130
        %6132 = vmatprep.mubr.f32.mxu0 0.0
        %v6133 = vand.u32 %v430, 4294901760
        %6134 = vmatmul.mubr.f32.gmra.mrb[0].mxu0 %v6133
        %v6135 = vpop.f32.mrb[0].mxu0
        %v6136 = vadd.f32 %v5795, %v6135
        %v6137 = vpop.f32.mrb[0].mxu0
        %v6138 = vadd.f32 %v5797, %v6137
        %6139 = vmatprep.mubr.f32.mxu0 0.0
        %v6140 = vand.u32 %v431, 4294901760
        %6141 = vmatmul.mubr.f32.gmra.mrb[0].mxu0 %v6140
        %v6142 = vpop.f32.mrb[0].mxu0
        %v6143 = vadd.f32 %v5804, %v6142
        %v6144 = vpop.f32.mrb[0].mxu0
        %v6145 = vadd.f32 %v5806, %v6144
        %6146 = vmatprep.mubr.f32.mxu0 0.0
        %v6147 = vand.u32 %v432, 4294901760
        %6148 = vmatmul.mubr.f32.gmra.mrb[0].mxu0 %v6147
        %v6149 = vpop.f32.mrb[0].mxu0
        %v6150 = vadd.f32 %v5813, %v6149
        %v6151 = vpop.f32.mrb[0].mxu0
        %v6152 = vadd.f32 %v5815, %v6151
        %6153 = vmatprep.mubr.f32.mxu0 0.0
        %v6154 = vand.u32 %v433, 4294901760
        %6155 = vmatmul.mubr.f32.gmra.mrb[0].mxu0 %v6154
        %v6156 = vpop.f32.mrb[0].mxu0
        %v6157 = vadd.f32 %v5822, %v6156
        %v6158 = vpop.f32.mrb[0].mxu0
        %v6159 = vadd.f32 %v5824, %v6158
        %6160 = vmatprep.mubr.f32.mxu0 0.0
        %v6161 = vand.u32 %v434, 4294901760
        %6162 = vmatmul.mubr.f32.gmra.mrb[0].mxu0 %v6161
        %v6163 = vpop.f32.mrb[0].mxu0
        %v6164 = vadd.f32 %v5831, %v6163
        %v6165 = vpop.f32.mrb[0].mxu0
        %v6166 = vadd.f32 %v5833, %v6165
        %6167 = vmatprep.mubr.f32.mxu0 0.0
        %v6168 = vand.u32 %v435, 4294901760
        %6169 = vmatmul.mubr.f32.gmra.mrb[0].mxu0 %v6168
        %v6170 = vpop.f32.mrb[0].mxu0
        %v6171 = vadd.f32 %v5840, %v6170
        %v6172 = vpop.f32.mrb[0].mxu0
        %v6173 = vadd.f32 %v5842, %v6172
        %6174 = vmatprep.mubr.f32.mxu0 0.0
        %v6175 = vand.u32 %v436, 4294901760
        %6176 = vmatmul.mubr.f32.gmra.mrb[0].mxu0 %v6175
        %v6177 = vpop.f32.mrb[0].mxu0
        %v6178 = vadd.f32 %v5849, %v6177
        %v6179 = vpop.f32.mrb[0].mxu0
        %v6180 = vadd.f32 %v5851, %v6179
        %6181 = vdwg.mxu0
        %v6182 = vand.u32 %v442, 4294901760
        %6183 = vmatprep.subr.mxu0 %v6182
        %v6184 = vand.u32 %v441, 4294901760
        %6185 = vmatpush1.msra.mxu0 %v6184
        %v6186 = vand.u32 %v449, 4294901760
        %6187 = vmatprep.subr.mxu0 %v6186
        %v6188 = vand.u32 %v448, 4294901760
        %6189 = vmatpush1.msra.mxu0 %v6188
        %v6190 = vand.u32 %v456, 4294901760
        %6191 = vmatprep.subr.mxu0 %v6190
        %v6192 = vand.u32 %v455, 4294901760
        %6193 = vmatpush1.msra.mxu0 %v6192
        %v6194 = vand.u32 %v463, 4294901760
        %6195 = vmatprep.subr.mxu0 %v6194
        %v6196 = vand.u32 %v462, 4294901760
        %6197 = vmatpush1.msra.mxu0 %v6196
        %v6198 = vand.u32 %v470, 4294901760
        %6199 = vmatprep.subr.mxu0 %v6198
        %v6200 = vand.u32 %v469, 4294901760
        %6201 = vmatpush1.msra.mxu0 %v6200
        %v6202 = vand.u32 %v477, 4294901760
        %6203 = vmatprep.subr.mxu0 %v6202
        %v6204 = vand.u32 %v476, 4294901760
        %6205 = vmatpush1.msra.mxu0 %v6204
        %v6206 = vand.u32 %v484, 4294901760
        %6207 = vmatprep.subr.mxu0 %v6206
        %v6208 = vand.u32 %v483, 4294901760
        %6209 = vmatpush1.msra.mxu0 %v6208
        %v6210 = vand.u32 %v491, 4294901760
        %6211 = vmatprep.subr.mxu0 %v6210
        %v6212 = vand.u32 %v490, 4294901760
        %6213 = vmatpush1.msra.mxu0 %v6212
        %v6214 = vand.u32 %v498, 4294901760
        %6215 = vmatprep.subr.mxu0 %v6214
        %v6216 = vand.u32 %v497, 4294901760
        %6217 = vmatpush1.msra.mxu0 %v6216
        %v6218 = vand.u32 %v505, 4294901760
        %6219 = vmatprep.subr.mxu0 %v6218
        %v6220 = vand.u32 %v504, 4294901760
        %6221 = vmatpush1.msra.mxu0 %v6220
        %v6222 = vand.u32 %v512, 4294901760
        %6223 = vmatprep.subr.mxu0 %v6222
        %v6224 = vand.u32 %v511, 4294901760
        %6225 = vmatpush1.msra.mxu0 %v6224
        %v6226 = vand.u32 %v519, 4294901760
        %6227 = vmatprep.subr.mxu0 %v6226
        %v6228 = vand.u32 %v518, 4294901760
        %6229 = vmatpush1.msra.mxu0 %v6228
        %v6230 = vand.u32 %v526, 4294901760
        %6231 = vmatprep.subr.mxu0 %v6230
        %v6232 = vand.u32 %v525, 4294901760
        %6233 = vmatpush1.msra.mxu0 %v6232
        %v6234 = vand.u32 %v533, 4294901760
        %6235 = vmatprep.subr.mxu0 %v6234
        %v6236 = vand.u32 %v532, 4294901760
        %6237 = vmatpush1.msra.mxu0 %v6236
        %v6238 = vand.u32 %v540, 4294901760
        %6239 = vmatprep.subr.mxu0 %v6238
        %v6240 = vand.u32 %v539, 4294901760
        %6241 = vmatpush1.msra.mxu0 %v6240
        %v6242 = vand.u32 %v547, 4294901760
        %6243 = vmatprep.subr.mxu0 %v6242
        %v6244 = vand.u32 %v546, 4294901760
        %6245 = vmatpush1.msra.mxu0 %v6244
        %6246 = vmatprep.subr.mxu0 0.0
        %6247 = vmatpush1.msra.mxu0 0.0
        %6248 = vmatprep.subr.mxu0 0.0
        %6249 = vmatpush1.msra.mxu0 0.0
        %6250 = vmatprep.subr.mxu0 0.0
        %6251 = vmatpush1.msra.mxu0 0.0
        %6252 = vmatprep.subr.mxu0 0.0
        %6253 = vmatpush1.msra.mxu0 0.0
        %6254 = vmatprep.subr.mxu0 0.0
        %6255 = vmatpush1.msra.mxu0 0.0
        %6256 = vmatprep.subr.mxu0 0.0
        %6257 = vmatpush1.msra.mxu0 0.0
        %6258 = vmatprep.subr.mxu0 0.0
        %6259 = vmatpush1.msra.mxu0 0.0
        %6260 = vmatprep.subr.mxu0 0.0
        %6261 = vmatpush1.msra.mxu0 0.0
        %6262 = vmatprep.subr.mxu0 0.0
        %6263 = vmatpush1.msra.mxu0 0.0
        %6264 = vmatprep.subr.mxu0 0.0
        %6265 = vmatpush1.msra.mxu0 0.0
        %6266 = vmatprep.subr.mxu0 0.0
        %6267 = vmatpush1.msra.mxu0 0.0
        %6268 = vmatprep.subr.mxu0 0.0
        %6269 = vmatpush1.msra.mxu0 0.0
        %6270 = vmatprep.subr.mxu0 0.0
        %6271 = vmatpush1.msra.mxu0 0.0
        %6272 = vmatprep.subr.mxu0 0.0
        %6273 = vmatpush1.msra.mxu0 0.0
        %6274 = vmatprep.subr.mxu0 0.0
        %6275 = vmatpush1.msra.mxu0 0.0
        %6276 = vmatprep.subr.mxu0 0.0
        %6277 = vmatpush1.msra.mxu0 0.0
        %6278 = vmatprep.mubr.f32.mxu0 0.0
        %v6279 = vand.u32 %v413, 4294901760
        %6280 = vmatmul.mubr.f32.gmra.mrb[0].mxu0 %v6279
        %v6281 = vpop.f32.mrb[0].mxu0
        %v6282 = vadd.f32 %v6017, %v6281
        %v6283 = vpop.f32.mrb[0].mxu0
        %v6284 = vadd.f32 %v6019, %v6283
        %6285 = vmatprep.mubr.f32.mxu0 0.0
        %v6286 = vand.u32 %v414, 4294901760
        %6287 = vmatmul.mubr.f32.gmra.mrb[0].mxu0 %v6286
        %v6288 = vpop.f32.mrb[0].mxu0
        %v6289 = vadd.f32 %v6024, %v6288
        %v6290 = vpop.f32.mrb[0].mxu0
        %v6291 = vadd.f32 %v6026, %v6290
        %6292 = vmatprep.mubr.f32.mxu0 0.0
        %v6293 = vand.u32 %v415, 4294901760
        %6294 = vmatmul.mubr.f32.gmra.mrb[0].mxu0 %v6293
        %v6295 = vpop.f32.mrb[0].mxu0
        %v6296 = vadd.f32 %v6031, %v6295
        %v6297 = vpop.f32.mrb[0].mxu0
        %v6298 = vadd.f32 %v6033, %v6297
        %6299 = vmatprep.mubr.f32.mxu0 0.0
        %v6300 = vand.u32 %v416, 4294901760
        %6301 = vmatmul.mubr.f32.gmra.mrb[0].mxu0 %v6300
        %v6302 = vpop.f32.mrb[0].mxu0
        %v6303 = vadd.f32 %v6038, %v6302
        %v6304 = vpop.f32.mrb[0].mxu0
        %v6305 = vadd.f32 %v6040, %v6304
        %6306 = vmatprep.mubr.f32.mxu0 0.0
        %v6307 = vand.u32 %v417, 4294901760
        %6308 = vmatmul.mubr.f32.gmra.mrb[0].mxu0 %v6307
        %v6309 = vpop.f32.mrb[0].mxu0
        %v6310 = vadd.f32 %v6045, %v6309
        %v6311 = vpop.f32.mrb[0].mxu0
        %v6312 = vadd.f32 %v6047, %v6311
        %6313 = vmatprep.mubr.f32.mxu0 0.0
        %v6314 = vand.u32 %v418, 4294901760
        %6315 = vmatmul.mubr.f32.gmra.mrb[0].mxu0 %v6314
        %v6316 = vpop.f32.mrb[0].mxu0
        %v6317 = vadd.f32 %v6052, %v6316
        %v6318 = vpop.f32.mrb[0].mxu0
        %v6319 = vadd.f32 %v6054, %v6318
        %6320 = vmatprep.mubr.f32.mxu0 0.0
        %v6321 = vand.u32 %v419, 4294901760
        %6322 = vmatmul.mubr.f32.gmra.mrb[0].mxu0 %v6321
        %v6323 = vpop.f32.mrb[0].mxu0
        %v6324 = vadd.f32 %v6059, %v6323
        %v6325 = vpop.f32.mrb[0].mxu0
        %v6326 = vadd.f32 %v6061, %v6325
        %6327 = vmatprep.mubr.f32.mxu0 0.0
        %v6328 = vand.u32 %v420, 4294901760
        %6329 = vmatmul.mubr.f32.gmra.mrb[0].mxu0 %v6328
        %v6330 = vpop.f32.mrb[0].mxu0
        %v6331 = vadd.f32 %v6066, %v6330
        %v6332 = vpop.f32.mrb[0].mxu0
        %v6333 = vadd.f32 %v6068, %v6332
        %6334 = vmatprep.mubr.f32.mxu0 0.0
        %v6335 = vand.u32 %v421, 4294901760
        %6336 = vmatmul.mubr.f32.gmra.mrb[0].mxu0 %v6335
        %v6337 = vpop.f32.mrb[0].mxu0
        %v6338 = vadd.f32 %v6073, %v6337
        %v6339 = vpop.f32.mrb[0].mxu0
        %v6340 = vadd.f32 %v6075, %v6339
        %6341 = vmatprep.mubr.f32.mxu0 0.0
        %v6342 = vand.u32 %v422, 4294901760
        %6343 = vmatmul.mubr.f32.gmra.mrb[0].mxu0 %v6342
        %v6344 = vpop.f32.mrb[0].mxu0
        %v6345 = vadd.f32 %v6080, %v6344
        %v6346 = vpop.f32.mrb[0].mxu0
        %v6347 = vadd.f32 %v6082, %v6346
        %6348 = vmatprep.mubr.f32.mxu0 0.0
        %v6349 = vand.u32 %v423, 4294901760
        %6350 = vmatmul.mubr.f32.gmra.mrb[0].mxu0 %v6349
        %v6351 = vpop.f32.mrb[0].mxu0
        %v6352 = vadd.f32 %v6087, %v6351
        %v6353 = vpop.f32.mrb[0].mxu0
        %v6354 = vadd.f32 %v6089, %v6353
        %6355 = vmatprep.mubr.f32.mxu0 0.0
        %v6356 = vand.u32 %v424, 4294901760
        %6357 = vmatmul.mubr.f32.gmra.mrb[0].mxu0 %v6356
        %v6358 = vpop.f32.mrb[0].mxu0
        %v6359 = vadd.f32 %v6094, %v6358
        %v6360 = vpop.f32.mrb[0].mxu0
        %v6361 = vadd.f32 %v6096, %v6360
        %6362 = vmatprep.mubr.f32.mxu0 0.0
        %v6363 = vand.u32 %v425, 4294901760
        %6364 = vmatmul.mubr.f32.gmra.mrb[0].mxu0 %v6363
        %v6365 = vpop.f32.mrb[0].mxu0
        %v6366 = vadd.f32 %v6101, %v6365
        %v6367 = vpop.f32.mrb[0].mxu0
        %v6368 = vadd.f32 %v6103, %v6367
        %6369 = vmatprep.mubr.f32.mxu0 0.0
        %v6370 = vand.u32 %v426, 4294901760
        %6371 = vmatmul.mubr.f32.gmra.mrb[0].mxu0 %v6370
        %v6372 = vpop.f32.mrb[0].mxu0
        %v6373 = vadd.f32 %v6108, %v6372
        %v6374 = vpop.f32.mrb[0].mxu0
        %v6375 = vadd.f32 %v6110, %v6374
        %6376 = vmatprep.mubr.f32.mxu0 0.0
        %v6377 = vand.u32 %v427, 4294901760
        %6378 = vmatmul.mubr.f32.gmra.mrb[0].mxu0 %v6377
        %v6379 = vpop.f32.mrb[0].mxu0
        %v6380 = vadd.f32 %v6115, %v6379
        %v6381 = vpop.f32.mrb[0].mxu0
        %v6382 = vadd.f32 %v6117, %v6381
        %6383 = vmatprep.mubr.f32.mxu0 0.0
        %v6384 = vand.u32 %v428, 4294901760
        %6385 = vmatmul.mubr.f32.gmra.mrb[0].mxu0 %v6384
        %v6386 = vpop.f32.mrb[0].mxu0
        %v6387 = vadd.f32 %v6122, %v6386
        %v6388 = vpop.f32.mrb[0].mxu0
        %v6389 = vadd.f32 %v6124, %v6388
        %6390 = vmatprep.mubr.f32.mxu0 0.0
        %v6391 = vand.u32 %v429, 4294901760
        %6392 = vmatmul.mubr.f32.gmra.mrb[0].mxu0 %v6391
        %v6393 = vpop.f32.mrb[0].mxu0
        %v6394 = vadd.f32 %v6129, %v6393
        %v6395 = vpop.f32.mrb[0].mxu0
        %v6396 = vadd.f32 %v6131, %v6395
        %6397 = vmatprep.mubr.f32.mxu0 0.0
        %v6398 = vand.u32 %v430, 4294901760
        %6399 = vmatmul.mubr.f32.gmra.mrb[0].mxu0 %v6398
        %v6400 = vpop.f32.mrb[0].mxu0
        %v6401 = vadd.f32 %v6136, %v6400
        %v6402 = vpop.f32.mrb[0].mxu0
        %v6403 = vadd.f32 %v6138, %v6402
        %6404 = vmatprep.mubr.f32.mxu0 0.0
        %v6405 = vand.u32 %v431, 4294901760
        %6406 = vmatmul.mubr.f32.gmra.mrb[0].mxu0 %v6405
        %v6407 = vpop.f32.mrb[0].mxu0
        %v6408 = vadd.f32 %v6143, %v6407
        %v6409 = vpop.f32.mrb[0].mxu0
        %v6410 = vadd.f32 %v6145, %v6409
        %6411 = vmatprep.mubr.f32.mxu0 0.0
        %v6412 = vand.u32 %v432, 4294901760
        %6413 = vmatmul.mubr.f32.gmra.mrb[0].mxu0 %v6412
        %v6414 = vpop.f32.mrb[0].mxu0
        %v6415 = vadd.f32 %v6150, %v6414
        %v6416 = vpop.f32.mrb[0].mxu0
        %v6417 = vadd.f32 %v6152, %v6416
        %6418 = vmatprep.mubr.f32.mxu0 0.0
        %v6419 = vand.u32 %v433, 4294901760
        %6420 = vmatmul.mubr.f32.gmra.mrb[0].mxu0 %v6419
        %v6421 = vpop.f32.mrb[0].mxu0
        %v6422 = vadd.f32 %v6157, %v6421
        %v6423 = vpop.f32.mrb[0].mxu0
        %v6424 = vadd.f32 %v6159, %v6423
        %6425 = vmatprep.mubr.f32.mxu0 0.0
        %v6426 = vand.u32 %v434, 4294901760
        %6427 = vmatmul.mubr.f32.gmra.mrb[0].mxu0 %v6426
        %v6428 = vpop.f32.mrb[0].mxu0
        %v6429 = vadd.f32 %v6164, %v6428
        %v6430 = vpop.f32.mrb[0].mxu0
        %v6431 = vadd.f32 %v6166, %v6430
        %6432 = vmatprep.mubr.f32.mxu0 0.0
        %v6433 = vand.u32 %v435, 4294901760
        %6434 = vmatmul.mubr.f32.gmra.mrb[0].mxu0 %v6433
        %v6435 = vpop.f32.mrb[0].mxu0
        %v6436 = vadd.f32 %v6171, %v6435
        %v6437 = vpop.f32.mrb[0].mxu0
        %v6438 = vadd.f32 %v6173, %v6437
        %6439 = vmatprep.mubr.f32.mxu0 0.0
        %v6440 = vand.u32 %v436, 4294901760
        %6441 = vmatmul.mubr.f32.gmra.mrb[0].mxu0 %v6440
        %v6442 = vpop.f32.mrb[0].mxu0
        %v6443 = vadd.f32 %v6178, %v6442
        %v6444 = vpop.f32.mrb[0].mxu0
        %v6445 = vadd.f32 %v6180, %v6444
        %6446 = vdwg.mxu0
        %6447 = vmatprep.subr.mxu0 0.0
        %v6448 = vand.u32 %v443, 4294901760
        %6449 = vmatpush1.msra.mxu0 %v6448
        %6450 = vmatprep.subr.mxu0 0.0
        %v6451 = vand.u32 %v450, 4294901760
        %6452 = vmatpush1.msra.mxu0 %v6451
        %6453 = vmatprep.subr.mxu0 0.0
        %v6454 = vand.u32 %v457, 4294901760
        %6455 = vmatpush1.msra.mxu0 %v6454
        %6456 = vmatprep.subr.mxu0 0.0
        %v6457 = vand.u32 %v464, 4294901760
        %6458 = vmatpush1.msra.mxu0 %v6457
        %6459 = vmatprep.subr.mxu0 0.0
        %v6460 = vand.u32 %v471, 4294901760
        %6461 = vmatpush1.msra.mxu0 %v6460
        %6462 = vmatprep.subr.mxu0 0.0
        %v6463 = vand.u32 %v478, 4294901760
        %6464 = vmatpush1.msra.mxu0 %v6463
        %6465 = vmatprep.subr.mxu0 0.0
        %v6466 = vand.u32 %v485, 4294901760
        %6467 = vmatpush1.msra.mxu0 %v6466
        %6468 = vmatprep.subr.mxu0 0.0
        %v6469 = vand.u32 %v492, 4294901760
        %6470 = vmatpush1.msra.mxu0 %v6469
        %6471 = vmatprep.subr.mxu0 0.0
        %v6472 = vand.u32 %v499, 4294901760
        %6473 = vmatpush1.msra.mxu0 %v6472
        %6474 = vmatprep.subr.mxu0 0.0
        %v6475 = vand.u32 %v506, 4294901760
        %6476 = vmatpush1.msra.mxu0 %v6475
        %6477 = vmatprep.subr.mxu0 0.0
        %v6478 = vand.u32 %v513, 4294901760
        %6479 = vmatpush1.msra.mxu0 %v6478
        %6480 = vmatprep.subr.mxu0 0.0
        %v6481 = vand.u32 %v520, 4294901760
        %6482 = vmatpush1.msra.mxu0 %v6481
        %6483 = vmatprep.subr.mxu0 0.0
        %v6484 = vand.u32 %v527, 4294901760
        %6485 = vmatpush1.msra.mxu0 %v6484
        %6486 = vmatprep.subr.mxu0 0.0
        %v6487 = vand.u32 %v534, 4294901760
        %6488 = vmatpush1.msra.mxu0 %v6487
        %6489 = vmatprep.subr.mxu0 0.0
        %v6490 = vand.u32 %v541, 4294901760
        %6491 = vmatpush1.msra.mxu0 %v6490
        %6492 = vmatprep.subr.mxu0 0.0
        %v6493 = vand.u32 %v548, 4294901760
        %6494 = vmatpush1.msra.mxu0 %v6493
        %6495 = vmatprep.subr.mxu0 0.0
        %6496 = vmatpush1.msra.mxu0 0.0
        %6497 = vmatprep.subr.mxu0 0.0
        %6498 = vmatpush1.msra.mxu0 0.0
        %6499 = vmatprep.subr.mxu0 0.0
        %6500 = vmatpush1.msra.mxu0 0.0
        %6501 = vmatprep.subr.mxu0 0.0
        %6502 = vmatpush1.msra.mxu0 0.0
        %6503 = vmatprep.subr.mxu0 0.0
        %6504 = vmatpush1.msra.mxu0 0.0
        %6505 = vmatprep.subr.mxu0 0.0
        %6506 = vmatpush1.msra.mxu0 0.0
        %6507 = vmatprep.subr.mxu0 0.0
        %6508 = vmatpush1.msra.mxu0 0.0
        %6509 = vmatprep.subr.mxu0 0.0
        %6510 = vmatpush1.msra.mxu0 0.0
        %6511 = vmatprep.subr.mxu0 0.0
        %6512 = vmatpush1.msra.mxu0 0.0
        %6513 = vmatprep.subr.mxu0 0.0
        %6514 = vmatpush1.msra.mxu0 0.0
        %6515 = vmatprep.subr.mxu0 0.0
        %6516 = vmatpush1.msra.mxu0 0.0
        %6517 = vmatprep.subr.mxu0 0.0
        %6518 = vmatpush1.msra.mxu0 0.0
        %6519 = vmatprep.subr.mxu0 0.0
        %6520 = vmatpush1.msra.mxu0 0.0
        %6521 = vmatprep.subr.mxu0 0.0
        %6522 = vmatpush1.msra.mxu0 0.0
        %6523 = vmatprep.subr.mxu0 0.0
        %6524 = vmatpush1.msra.mxu0 0.0
        %6525 = vmatprep.subr.mxu0 0.0
        %6526 = vmatpush1.msra.mxu0 0.0
        %6527 = vmatprep.mubr.f32.mxu0 0.0
        %v6528 = vand.u32 %v413, 4294901760
        %v6529 = vsub.f32 %v413, %v6528
        %v6530 = vand.u32 %v6529, 4294901760
        %v6531 = vsub.f32 %v6529, %v6530
        %v6532 = vand.u32 %v6531, 4294901760
        %6533 = vmatmul.mubr.f32.gmra.mrb[0].mxu0 %v6532
        %v6534 = vpop.f32.mrb[0].mxu0
        %v6535 = vadd.f32 0.0, %v6534
        %v6536 = vpop.f32.mrb[0].mxu0
        %6537 = vmatprep.mubr.f32.mxu0 0.0
        %v6538 = vand.u32 %v414, 4294901760
        %v6539 = vsub.f32 %v414, %v6538
        %v6540 = vand.u32 %v6539, 4294901760
        %v6541 = vsub.f32 %v6539, %v6540
        %v6542 = vand.u32 %v6541, 4294901760
        %6543 = vmatmul.mubr.f32.gmra.mrb[0].mxu0 %v6542
        %v6544 = vpop.f32.mrb[0].mxu0
        %v6545 = vadd.f32 0.0, %v6544
        %v6546 = vpop.f32.mrb[0].mxu0
        %6547 = vmatprep.mubr.f32.mxu0 0.0
        %v6548 = vand.u32 %v415, 4294901760
        %v6549 = vsub.f32 %v415, %v6548
        %v6550 = vand.u32 %v6549, 4294901760
        %v6551 = vsub.f32 %v6549, %v6550
        %v6552 = vand.u32 %v6551, 4294901760
        %6553 = vmatmul.mubr.f32.gmra.mrb[0].mxu0 %v6552
        %v6554 = vpop.f32.mrb[0].mxu0
        %v6555 = vadd.f32 0.0, %v6554
        %v6556 = vpop.f32.mrb[0].mxu0
        %6557 = vmatprep.mubr.f32.mxu0 0.0
        %v6558 = vand.u32 %v416, 4294901760
        %v6559 = vsub.f32 %v416, %v6558
        %v6560 = vand.u32 %v6559, 4294901760
        %v6561 = vsub.f32 %v6559, %v6560
        %v6562 = vand.u32 %v6561, 4294901760
        %6563 = vmatmul.mubr.f32.gmra.mrb[0].mxu0 %v6562
        %v6564 = vpop.f32.mrb[0].mxu0
        %v6565 = vadd.f32 0.0, %v6564
        %v6566 = vpop.f32.mrb[0].mxu0
        %6567 = vmatprep.mubr.f32.mxu0 0.0
        %v6568 = vand.u32 %v417, 4294901760
        %v6569 = vsub.f32 %v417, %v6568
        %v6570 = vand.u32 %v6569, 4294901760
        %v6571 = vsub.f32 %v6569, %v6570
        %v6572 = vand.u32 %v6571, 4294901760
        %6573 = vmatmul.mubr.f32.gmra.mrb[0].mxu0 %v6572
        %v6574 = vpop.f32.mrb[0].mxu0
        %v6575 = vadd.f32 0.0, %v6574
        %v6576 = vpop.f32.mrb[0].mxu0
        %6577 = vmatprep.mubr.f32.mxu0 0.0
        %v6578 = vand.u32 %v418, 4294901760
        %v6579 = vsub.f32 %v418, %v6578
        %v6580 = vand.u32 %v6579, 4294901760
        %v6581 = vsub.f32 %v6579, %v6580
        %v6582 = vand.u32 %v6581, 4294901760
        %6583 = vmatmul.mubr.f32.gmra.mrb[0].mxu0 %v6582
        %v6584 = vpop.f32.mrb[0].mxu0
        %v6585 = vadd.f32 0.0, %v6584
        %v6586 = vpop.f32.mrb[0].mxu0
        %6587 = vmatprep.mubr.f32.mxu0 0.0
        %v6588 = vand.u32 %v419, 4294901760
        %v6589 = vsub.f32 %v419, %v6588
        %v6590 = vand.u32 %v6589, 4294901760
        %v6591 = vsub.f32 %v6589, %v6590
        %v6592 = vand.u32 %v6591, 4294901760
        %6593 = vmatmul.mubr.f32.gmra.mrb[0].mxu0 %v6592
        %v6594 = vpop.f32.mrb[0].mxu0
        %v6595 = vadd.f32 0.0, %v6594
        %v6596 = vpop.f32.mrb[0].mxu0
        %6597 = vmatprep.mubr.f32.mxu0 0.0
        %v6598 = vand.u32 %v420, 4294901760
        %v6599 = vsub.f32 %v420, %v6598
        %v6600 = vand.u32 %v6599, 4294901760
        %v6601 = vsub.f32 %v6599, %v6600
        %v6602 = vand.u32 %v6601, 4294901760
        %6603 = vmatmul.mubr.f32.gmra.mrb[0].mxu0 %v6602
        %v6604 = vpop.f32.mrb[0].mxu0
        %v6605 = vadd.f32 0.0, %v6604
        %v6606 = vpop.f32.mrb[0].mxu0
        %6607 = vmatprep.mubr.f32.mxu0 0.0
        %v6608 = vand.u32 %v421, 4294901760
        %v6609 = vsub.f32 %v421, %v6608
        %v6610 = vand.u32 %v6609, 4294901760
        %v6611 = vsub.f32 %v6609, %v6610
        %v6612 = vand.u32 %v6611, 4294901760
        %6613 = vmatmul.mubr.f32.gmra.mrb[0].mxu0 %v6612
        %v6614 = vpop.f32.mrb[0].mxu0
        %v6615 = vadd.f32 0.0, %v6614
        %v6616 = vpop.f32.mrb[0].mxu0
        %6617 = vmatprep.mubr.f32.mxu0 0.0
        %v6618 = vand.u32 %v422, 4294901760
        %v6619 = vsub.f32 %v422, %v6618
        %v6620 = vand.u32 %v6619, 4294901760
        %v6621 = vsub.f32 %v6619, %v6620
        %v6622 = vand.u32 %v6621, 4294901760
        %6623 = vmatmul.mubr.f32.gmra.mrb[0].mxu0 %v6622
        %v6624 = vpop.f32.mrb[0].mxu0
        %v6625 = vadd.f32 0.0, %v6624
        %v6626 = vpop.f32.mrb[0].mxu0
        %6627 = vmatprep.mubr.f32.mxu0 0.0
        %v6628 = vand.u32 %v423, 4294901760
        %v6629 = vsub.f32 %v423, %v6628
        %v6630 = vand.u32 %v6629, 4294901760
        %v6631 = vsub.f32 %v6629, %v6630
        %v6632 = vand.u32 %v6631, 4294901760
        %6633 = vmatmul.mubr.f32.gmra.mrb[0].mxu0 %v6632
        %v6634 = vpop.f32.mrb[0].mxu0
        %v6635 = vadd.f32 0.0, %v6634
        %v6636 = vpop.f32.mrb[0].mxu0
        %6637 = vmatprep.mubr.f32.mxu0 0.0
        %v6638 = vand.u32 %v424, 4294901760
        %v6639 = vsub.f32 %v424, %v6638
        %v6640 = vand.u32 %v6639, 4294901760
        %v6641 = vsub.f32 %v6639, %v6640
        %v6642 = vand.u32 %v6641, 4294901760
        %6643 = vmatmul.mubr.f32.gmra.mrb[0].mxu0 %v6642
        %v6644 = vpop.f32.mrb[0].mxu0
        %v6645 = vadd.f32 0.0, %v6644
        %v6646 = vpop.f32.mrb[0].mxu0
        %6647 = vmatprep.mubr.f32.mxu0 0.0
        %v6648 = vand.u32 %v425, 4294901760
        %v6649 = vsub.f32 %v425, %v6648
        %v6650 = vand.u32 %v6649, 4294901760
        %v6651 = vsub.f32 %v6649, %v6650
        %v6652 = vand.u32 %v6651, 4294901760
        %6653 = vmatmul.mubr.f32.gmra.mrb[0].mxu0 %v6652
        %v6654 = vpop.f32.mrb[0].mxu0
        %v6655 = vadd.f32 0.0, %v6654
        %v6656 = vpop.f32.mrb[0].mxu0
        %6657 = vmatprep.mubr.f32.mxu0 0.0
        %v6658 = vand.u32 %v426, 4294901760
        %v6659 = vsub.f32 %v426, %v6658
        %v6660 = vand.u32 %v6659, 4294901760
        %v6661 = vsub.f32 %v6659, %v6660
        %v6662 = vand.u32 %v6661, 4294901760
        %6663 = vmatmul.mubr.f32.gmra.mrb[0].mxu0 %v6662
        %v6664 = vpop.f32.mrb[0].mxu0
        %v6665 = vadd.f32 0.0, %v6664
        %v6666 = vpop.f32.mrb[0].mxu0
        %6667 = vmatprep.mubr.f32.mxu0 0.0
        %v6668 = vand.u32 %v427, 4294901760
        %v6669 = vsub.f32 %v427, %v6668
        %v6670 = vand.u32 %v6669, 4294901760
        %v6671 = vsub.f32 %v6669, %v6670
        %v6672 = vand.u32 %v6671, 4294901760
        %6673 = vmatmul.mubr.f32.gmra.mrb[0].mxu0 %v6672
        %v6674 = vpop.f32.mrb[0].mxu0
        %v6675 = vadd.f32 0.0, %v6674
        %v6676 = vpop.f32.mrb[0].mxu0
        %6677 = vmatprep.mubr.f32.mxu0 0.0
        %v6678 = vand.u32 %v428, 4294901760
        %v6679 = vsub.f32 %v428, %v6678
        %v6680 = vand.u32 %v6679, 4294901760
        %v6681 = vsub.f32 %v6679, %v6680
        %v6682 = vand.u32 %v6681, 4294901760
        %6683 = vmatmul.mubr.f32.gmra.mrb[0].mxu0 %v6682
        %v6684 = vpop.f32.mrb[0].mxu0
        %v6685 = vadd.f32 0.0, %v6684
        %v6686 = vpop.f32.mrb[0].mxu0
        %6687 = vmatprep.mubr.f32.mxu0 0.0
        %v6688 = vand.u32 %v429, 4294901760
        %v6689 = vsub.f32 %v429, %v6688
        %v6690 = vand.u32 %v6689, 4294901760
        %v6691 = vsub.f32 %v6689, %v6690
        %v6692 = vand.u32 %v6691, 4294901760
        %6693 = vmatmul.mubr.f32.gmra.mrb[0].mxu0 %v6692
        %v6694 = vpop.f32.mrb[0].mxu0
        %v6695 = vadd.f32 0.0, %v6694
        %v6696 = vpop.f32.mrb[0].mxu0
        %6697 = vmatprep.mubr.f32.mxu0 0.0
        %v6698 = vand.u32 %v430, 4294901760
        %v6699 = vsub.f32 %v430, %v6698
        %v6700 = vand.u32 %v6699, 4294901760
        %v6701 = vsub.f32 %v6699, %v6700
        %v6702 = vand.u32 %v6701, 4294901760
        %6703 = vmatmul.mubr.f32.gmra.mrb[0].mxu0 %v6702
        %v6704 = vpop.f32.mrb[0].mxu0
        %v6705 = vadd.f32 0.0, %v6704
        %v6706 = vpop.f32.mrb[0].mxu0
        %6707 = vmatprep.mubr.f32.mxu0 0.0
        %v6708 = vand.u32 %v431, 4294901760
        %v6709 = vsub.f32 %v431, %v6708
        %v6710 = vand.u32 %v6709, 4294901760
        %v6711 = vsub.f32 %v6709, %v6710
        %v6712 = vand.u32 %v6711, 4294901760
        %6713 = vmatmul.mubr.f32.gmra.mrb[0].mxu0 %v6712
        %v6714 = vpop.f32.mrb[0].mxu0
        %v6715 = vadd.f32 0.0, %v6714
        %v6716 = vpop.f32.mrb[0].mxu0
        %6717 = vmatprep.mubr.f32.mxu0 0.0
        %v6718 = vand.u32 %v432, 4294901760
        %v6719 = vsub.f32 %v432, %v6718
        %v6720 = vand.u32 %v6719, 4294901760
        %v6721 = vsub.f32 %v6719, %v6720
        %v6722 = vand.u32 %v6721, 4294901760
        %6723 = vmatmul.mubr.f32.gmra.mrb[0].mxu0 %v6722
        %v6724 = vpop.f32.mrb[0].mxu0
        %v6725 = vadd.f32 0.0, %v6724
        %v6726 = vpop.f32.mrb[0].mxu0
        %6727 = vmatprep.mubr.f32.mxu0 0.0
        %v6728 = vand.u32 %v433, 4294901760
        %v6729 = vsub.f32 %v433, %v6728
        %v6730 = vand.u32 %v6729, 4294901760
        %v6731 = vsub.f32 %v6729, %v6730
        %v6732 = vand.u32 %v6731, 4294901760
        %6733 = vmatmul.mubr.f32.gmra.mrb[0].mxu0 %v6732
        %v6734 = vpop.f32.mrb[0].mxu0
        %v6735 = vadd.f32 0.0, %v6734
        %v6736 = vpop.f32.mrb[0].mxu0
        %6737 = vmatprep.mubr.f32.mxu0 0.0
        %v6738 = vand.u32 %v434, 4294901760
        %v6739 = vsub.f32 %v434, %v6738
        %v6740 = vand.u32 %v6739, 4294901760
        %v6741 = vsub.f32 %v6739, %v6740
        %v6742 = vand.u32 %v6741, 4294901760
        %6743 = vmatmul.mubr.f32.gmra.mrb[0].mxu0 %v6742
        %v6744 = vpop.f32.mrb[0].mxu0
        %v6745 = vadd.f32 0.0, %v6744
        %v6746 = vpop.f32.mrb[0].mxu0
        %6747 = vmatprep.mubr.f32.mxu0 0.0
        %v6748 = vand.u32 %v435, 4294901760
        %v6749 = vsub.f32 %v435, %v6748
        %v6750 = vand.u32 %v6749, 4294901760
        %v6751 = vsub.f32 %v6749, %v6750
        %v6752 = vand.u32 %v6751, 4294901760
        %6753 = vmatmul.mubr.f32.gmra.mrb[0].mxu0 %v6752
        %v6754 = vpop.f32.mrb[0].mxu0
        %v6755 = vadd.f32 0.0, %v6754
        %v6756 = vpop.f32.mrb[0].mxu0
        %6757 = vmatprep.mubr.f32.mxu0 0.0
        %v6758 = vand.u32 %v436, 4294901760
        %v6759 = vsub.f32 %v436, %v6758
        %v6760 = vand.u32 %v6759, 4294901760
        %v6761 = vsub.f32 %v6759, %v6760
        %v6762 = vand.u32 %v6761, 4294901760
        %6763 = vmatmul.mubr.f32.gmra.mrb[0].mxu0 %v6762
        %v6764 = vpop.f32.mrb[0].mxu0
        %v6765 = vadd.f32 0.0, %v6764
        %v6766 = vpop.f32.mrb[0].mxu0
        %6767 = vdwg.mxu0
        %6768 = vmatprep.subr.mxu0 0.0
        %v6769 = vand.u32 %v443, 4294901760
        %v6770 = vsub.f32 %v443, %v6769
        %v6771 = vand.u32 %v6770, 4294901760
        %v6772 = vsub.f32 %v6770, %v6771
        %v6773 = vand.u32 %v6772, 4294901760
        %6774 = vmatpush1.msra.mxu0 %v6773
        %6775 = vmatprep.subr.mxu0 0.0
        %v6776 = vand.u32 %v450, 4294901760
        %v6777 = vsub.f32 %v450, %v6776
        %v6778 = vand.u32 %v6777, 4294901760
        %v6779 = vsub.f32 %v6777, %v6778
        %v6780 = vand.u32 %v6779, 4294901760
        %6781 = vmatpush1.msra.mxu0 %v6780
        %6782 = vmatprep.subr.mxu0 0.0
        %v6783 = vand.u32 %v457, 4294901760
        %v6784 = vsub.f32 %v457, %v6783
        %v6785 = vand.u32 %v6784, 4294901760
        %v6786 = vsub.f32 %v6784, %v6785
        %v6787 = vand.u32 %v6786, 4294901760
        %6788 = vmatpush1.msra.mxu0 %v6787
        %6789 = vmatprep.subr.mxu0 0.0
        %v6790 = vand.u32 %v464, 4294901760
        %v6791 = vsub.f32 %v464, %v6790
        %v6792 = vand.u32 %v6791, 4294901760
        %v6793 = vsub.f32 %v6791, %v6792
        %v6794 = vand.u32 %v6793, 4294901760
        %6795 = vmatpush1.msra.mxu0 %v6794
        %6796 = vmatprep.subr.mxu0 0.0
        %v6797 = vand.u32 %v471, 4294901760
        %v6798 = vsub.f32 %v471, %v6797
        %v6799 = vand.u32 %v6798, 4294901760
        %v6800 = vsub.f32 %v6798, %v6799
        %v6801 = vand.u32 %v6800, 4294901760
        %6802 = vmatpush1.msra.mxu0 %v6801
        %6803 = vmatprep.subr.mxu0 0.0
        %v6804 = vand.u32 %v478, 4294901760
        %v6805 = vsub.f32 %v478, %v6804
        %v6806 = vand.u32 %v6805, 4294901760
        %v6807 = vsub.f32 %v6805, %v6806
        %v6808 = vand.u32 %v6807, 4294901760
        %6809 = vmatpush1.msra.mxu0 %v6808
        %6810 = vmatprep.subr.mxu0 0.0
        %v6811 = vand.u32 %v485, 4294901760
        %v6812 = vsub.f32 %v485, %v6811
        %v6813 = vand.u32 %v6812, 4294901760
        %v6814 = vsub.f32 %v6812, %v6813
        %v6815 = vand.u32 %v6814, 4294901760
        %6816 = vmatpush1.msra.mxu0 %v6815
        %6817 = vmatprep.subr.mxu0 0.0
        %v6818 = vand.u32 %v492, 4294901760
        %v6819 = vsub.f32 %v492, %v6818
        %v6820 = vand.u32 %v6819, 4294901760
        %v6821 = vsub.f32 %v6819, %v6820
        %v6822 = vand.u32 %v6821, 4294901760
        %6823 = vmatpush1.msra.mxu0 %v6822
        %6824 = vmatprep.subr.mxu0 0.0
        %v6825 = vand.u32 %v499, 4294901760
        %v6826 = vsub.f32 %v499, %v6825
        %v6827 = vand.u32 %v6826, 4294901760
        %v6828 = vsub.f32 %v6826, %v6827
        %v6829 = vand.u32 %v6828, 4294901760
        %6830 = vmatpush1.msra.mxu0 %v6829
        %6831 = vmatprep.subr.mxu0 0.0
        %v6832 = vand.u32 %v506, 4294901760
        %v6833 = vsub.f32 %v506, %v6832
        %v6834 = vand.u32 %v6833, 4294901760
        %v6835 = vsub.f32 %v6833, %v6834
        %v6836 = vand.u32 %v6835, 4294901760
        %6837 = vmatpush1.msra.mxu0 %v6836
        %6838 = vmatprep.subr.mxu0 0.0
        %v6839 = vand.u32 %v513, 4294901760
        %v6840 = vsub.f32 %v513, %v6839
        %v6841 = vand.u32 %v6840, 4294901760
        %v6842 = vsub.f32 %v6840, %v6841
        %v6843 = vand.u32 %v6842, 4294901760
        %6844 = vmatpush1.msra.mxu0 %v6843
        %6845 = vmatprep.subr.mxu0 0.0
        %v6846 = vand.u32 %v520, 4294901760
        %v6847 = vsub.f32 %v520, %v6846
        %v6848 = vand.u32 %v6847, 4294901760
        %v6849 = vsub.f32 %v6847, %v6848
        %v6850 = vand.u32 %v6849, 4294901760
        %6851 = vmatpush1.msra.mxu0 %v6850
        %6852 = vmatprep.subr.mxu0 0.0
        %v6853 = vand.u32 %v527, 4294901760
        %v6854 = vsub.f32 %v527, %v6853
        %v6855 = vand.u32 %v6854, 4294901760
        %v6856 = vsub.f32 %v6854, %v6855
        %v6857 = vand.u32 %v6856, 4294901760
        %6858 = vmatpush1.msra.mxu0 %v6857
        %6859 = vmatprep.subr.mxu0 0.0
        %v6860 = vand.u32 %v534, 4294901760
        %v6861 = vsub.f32 %v534, %v6860
        %v6862 = vand.u32 %v6861, 4294901760
        %v6863 = vsub.f32 %v6861, %v6862
        %v6864 = vand.u32 %v6863, 4294901760
        %6865 = vmatpush1.msra.mxu0 %v6864
        %6866 = vmatprep.subr.mxu0 0.0
        %v6867 = vand.u32 %v541, 4294901760
        %v6868 = vsub.f32 %v541, %v6867
        %v6869 = vand.u32 %v6868, 4294901760
        %v6870 = vsub.f32 %v6868, %v6869
        %v6871 = vand.u32 %v6870, 4294901760
        %6872 = vmatpush1.msra.mxu0 %v6871
        %6873 = vmatprep.subr.mxu0 0.0
        %v6874 = vand.u32 %v548, 4294901760
        %v6875 = vsub.f32 %v548, %v6874
        %v6876 = vand.u32 %v6875, 4294901760
        %v6877 = vsub.f32 %v6875, %v6876
        %v6878 = vand.u32 %v6877, 4294901760
        %6879 = vmatpush1.msra.mxu0 %v6878
        %6880 = vmatprep.subr.mxu0 0.0
        %6881 = vmatpush1.msra.mxu0 0.0
        %6882 = vmatprep.subr.mxu0 0.0
        %6883 = vmatpush1.msra.mxu0 0.0
        %6884 = vmatprep.subr.mxu0 0.0
        %6885 = vmatpush1.msra.mxu0 0.0
        %6886 = vmatprep.subr.mxu0 0.0
        %6887 = vmatpush1.msra.mxu0 0.0
        %6888 = vmatprep.subr.mxu0 0.0
        %6889 = vmatpush1.msra.mxu0 0.0
        %6890 = vmatprep.subr.mxu0 0.0
        %6891 = vmatpush1.msra.mxu0 0.0
        %6892 = vmatprep.subr.mxu0 0.0
        %6893 = vmatpush1.msra.mxu0 0.0
        %6894 = vmatprep.subr.mxu0 0.0
        %6895 = vmatpush1.msra.mxu0 0.0
        %6896 = vmatprep.subr.mxu0 0.0
        %6897 = vmatpush1.msra.mxu0 0.0
        %6898 = vmatprep.subr.mxu0 0.0
        %6899 = vmatpush1.msra.mxu0 0.0
        %6900 = vmatprep.subr.mxu0 0.0
        %6901 = vmatpush1.msra.mxu0 0.0
        %6902 = vmatprep.subr.mxu0 0.0
        %6903 = vmatpush1.msra.mxu0 0.0
        %6904 = vmatprep.subr.mxu0 0.0
        %6905 = vmatpush1.msra.mxu0 0.0
        %6906 = vmatprep.subr.mxu0 0.0
        %6907 = vmatpush1.msra.mxu0 0.0
        %6908 = vmatprep.subr.mxu0 0.0
        %6909 = vmatpush1.msra.mxu0 0.0
        %6910 = vmatprep.subr.mxu0 0.0
        %6911 = vmatpush1.msra.mxu0 0.0
        %6912 = vmatprep.mubr.f32.mxu0 0.0
        %v6913 = vand.u32 %v413, 4294901760
        %6914 = vmatmul.mubr.f32.gmra.mrb[0].mxu0 %v6913
        %v6915 = vpop.f32.mrb[0].mxu0
        %v6916 = vadd.f32 %v6535, %v6915
        %v6917 = vpop.f32.mrb[0].mxu0
        %6918 = vmatprep.mubr.f32.mxu0 0.0
        %v6919 = vand.u32 %v414, 4294901760
        %6920 = vmatmul.mubr.f32.gmra.mrb[0].mxu0 %v6919
        %v6921 = vpop.f32.mrb[0].mxu0
        %v6922 = vadd.f32 %v6545, %v6921
        %v6923 = vpop.f32.mrb[0].mxu0
        %6924 = vmatprep.mubr.f32.mxu0 0.0
        %v6925 = vand.u32 %v415, 4294901760
        %6926 = vmatmul.mubr.f32.gmra.mrb[0].mxu0 %v6925
        %v6927 = vpop.f32.mrb[0].mxu0
        %v6928 = vadd.f32 %v6555, %v6927
        %v6929 = vpop.f32.mrb[0].mxu0
        %6930 = vmatprep.mubr.f32.mxu0 0.0
        %v6931 = vand.u32 %v416, 4294901760
        %6932 = vmatmul.mubr.f32.gmra.mrb[0].mxu0 %v6931
        %v6933 = vpop.f32.mrb[0].mxu0
        %v6934 = vadd.f32 %v6565, %v6933
        %v6935 = vpop.f32.mrb[0].mxu0
        %6936 = vmatprep.mubr.f32.mxu0 0.0
        %v6937 = vand.u32 %v417, 4294901760
        %6938 = vmatmul.mubr.f32.gmra.mrb[0].mxu0 %v6937
        %v6939 = vpop.f32.mrb[0].mxu0
        %v6940 = vadd.f32 %v6575, %v6939
        %v6941 = vpop.f32.mrb[0].mxu0
        %6942 = vmatprep.mubr.f32.mxu0 0.0
        %v6943 = vand.u32 %v418, 4294901760
        %6944 = vmatmul.mubr.f32.gmra.mrb[0].mxu0 %v6943
        %v6945 = vpop.f32.mrb[0].mxu0
        %v6946 = vadd.f32 %v6585, %v6945
        %v6947 = vpop.f32.mrb[0].mxu0
        %6948 = vmatprep.mubr.f32.mxu0 0.0
        %v6949 = vand.u32 %v419, 4294901760
        %6950 = vmatmul.mubr.f32.gmra.mrb[0].mxu0 %v6949
        %v6951 = vpop.f32.mrb[0].mxu0
        %v6952 = vadd.f32 %v6595, %v6951
        %v6953 = vpop.f32.mrb[0].mxu0
        %6954 = vmatprep.mubr.f32.mxu0 0.0
        %v6955 = vand.u32 %v420, 4294901760
        %6956 = vmatmul.mubr.f32.gmra.mrb[0].mxu0 %v6955
        %v6957 = vpop.f32.mrb[0].mxu0
        %v6958 = vadd.f32 %v6605, %v6957
        %v6959 = vpop.f32.mrb[0].mxu0
        %6960 = vmatprep.mubr.f32.mxu0 0.0
        %v6961 = vand.u32 %v421, 4294901760
        %6962 = vmatmul.mubr.f32.gmra.mrb[0].mxu0 %v6961
        %v6963 = vpop.f32.mrb[0].mxu0
        %v6964 = vadd.f32 %v6615, %v6963
        %v6965 = vpop.f32.mrb[0].mxu0
        %6966 = vmatprep.mubr.f32.mxu0 0.0
        %v6967 = vand.u32 %v422, 4294901760
        %6968 = vmatmul.mubr.f32.gmra.mrb[0].mxu0 %v6967
        %v6969 = vpop.f32.mrb[0].mxu0
        %v6970 = vadd.f32 %v6625, %v6969
        %v6971 = vpop.f32.mrb[0].mxu0
        %6972 = vmatprep.mubr.f32.mxu0 0.0
        %v6973 = vand.u32 %v423, 4294901760
        %6974 = vmatmul.mubr.f32.gmra.mrb[0].mxu0 %v6973
        %v6975 = vpop.f32.mrb[0].mxu0
        %v6976 = vadd.f32 %v6635, %v6975
        %v6977 = vpop.f32.mrb[0].mxu0
        %6978 = vmatprep.mubr.f32.mxu0 0.0
        %v6979 = vand.u32 %v424, 4294901760
        %6980 = vmatmul.mubr.f32.gmra.mrb[0].mxu0 %v6979
        %v6981 = vpop.f32.mrb[0].mxu0
        %v6982 = vadd.f32 %v6645, %v6981
        %v6983 = vpop.f32.mrb[0].mxu0
        %6984 = vmatprep.mubr.f32.mxu0 0.0
        %v6985 = vand.u32 %v425, 4294901760
        %6986 = vmatmul.mubr.f32.gmra.mrb[0].mxu0 %v6985
        %v6987 = vpop.f32.mrb[0].mxu0
        %v6988 = vadd.f32 %v6655, %v6987
        %v6989 = vpop.f32.mrb[0].mxu0
        %6990 = vmatprep.mubr.f32.mxu0 0.0
        %v6991 = vand.u32 %v426, 4294901760
        %6992 = vmatmul.mubr.f32.gmra.mrb[0].mxu0 %v6991
        %v6993 = vpop.f32.mrb[0].mxu0
        %v6994 = vadd.f32 %v6665, %v6993
        %v6995 = vpop.f32.mrb[0].mxu0
        %6996 = vmatprep.mubr.f32.mxu0 0.0
        %v6997 = vand.u32 %v427, 4294901760
        %6998 = vmatmul.mubr.f32.gmra.mrb[0].mxu0 %v6997
        %v6999 = vpop.f32.mrb[0].mxu0
        %v7000 = vadd.f32 %v6675, %v6999
        %v7001 = vpop.f32.mrb[0].mxu0
        %7002 = vmatprep.mubr.f32.mxu0 0.0
        %v7003 = vand.u32 %v428, 4294901760
        %7004 = vmatmul.mubr.f32.gmra.mrb[0].mxu0 %v7003
        %v7005 = vpop.f32.mrb[0].mxu0
        %v7006 = vadd.f32 %v6685, %v7005
        %v7007 = vpop.f32.mrb[0].mxu0
        %7008 = vmatprep.mubr.f32.mxu0 0.0
        %v7009 = vand.u32 %v429, 4294901760
        %7010 = vmatmul.mubr.f32.gmra.mrb[0].mxu0 %v7009
        %v7011 = vpop.f32.mrb[0].mxu0
        %v7012 = vadd.f32 %v6695, %v7011
        %v7013 = vpop.f32.mrb[0].mxu0
        %7014 = vmatprep.mubr.f32.mxu0 0.0
        %v7015 = vand.u32 %v430, 4294901760
        %7016 = vmatmul.mubr.f32.gmra.mrb[0].mxu0 %v7015
        %v7017 = vpop.f32.mrb[0].mxu0
        %v7018 = vadd.f32 %v6705, %v7017
        %v7019 = vpop.f32.mrb[0].mxu0
        %7020 = vmatprep.mubr.f32.mxu0 0.0
        %v7021 = vand.u32 %v431, 4294901760
        %7022 = vmatmul.mubr.f32.gmra.mrb[0].mxu0 %v7021
        %v7023 = vpop.f32.mrb[0].mxu0
        %v7024 = vadd.f32 %v6715, %v7023
        %v7025 = vpop.f32.mrb[0].mxu0
        %7026 = vmatprep.mubr.f32.mxu0 0.0
        %v7027 = vand.u32 %v432, 4294901760
        %7028 = vmatmul.mubr.f32.gmra.mrb[0].mxu0 %v7027
        %v7029 = vpop.f32.mrb[0].mxu0
        %v7030 = vadd.f32 %v6725, %v7029
        %v7031 = vpop.f32.mrb[0].mxu0
        %7032 = vmatprep.mubr.f32.mxu0 0.0
        %v7033 = vand.u32 %v433, 4294901760
        %7034 = vmatmul.mubr.f32.gmra.mrb[0].mxu0 %v7033
        %v7035 = vpop.f32.mrb[0].mxu0
        %v7036 = vadd.f32 %v6735, %v7035
        %v7037 = vpop.f32.mrb[0].mxu0
        %7038 = vmatprep.mubr.f32.mxu0 0.0
        %v7039 = vand.u32 %v434, 4294901760
        %7040 = vmatmul.mubr.f32.gmra.mrb[0].mxu0 %v7039
        %v7041 = vpop.f32.mrb[0].mxu0
        %v7042 = vadd.f32 %v6745, %v7041
        %v7043 = vpop.f32.mrb[0].mxu0
        %7044 = vmatprep.mubr.f32.mxu0 0.0
        %v7045 = vand.u32 %v435, 4294901760
        %7046 = vmatmul.mubr.f32.gmra.mrb[0].mxu0 %v7045
        %v7047 = vpop.f32.mrb[0].mxu0
        %v7048 = vadd.f32 %v6755, %v7047
        %v7049 = vpop.f32.mrb[0].mxu0
        %7050 = vmatprep.mubr.f32.mxu0 0.0
        %v7051 = vand.u32 %v436, 4294901760
        %7052 = vmatmul.mubr.f32.gmra.mrb[0].mxu0 %v7051
        %v7053 = vpop.f32.mrb[0].mxu0
        %v7054 = vadd.f32 %v6765, %v7053
        %v7055 = vpop.f32.mrb[0].mxu0
        %7056 = vdwg.mxu0
        %7057 = vmatprep.subr.mxu0 0.0
        %v7058 = vand.u32 %v443, 4294901760
        %v7059 = vsub.f32 %v443, %v7058
        %7060 = vmatpush1.msra.mxu0 %v7059
        %7061 = vmatprep.subr.mxu0 0.0
        %v7062 = vand.u32 %v450, 4294901760
        %v7063 = vsub.f32 %v450, %v7062
        %7064 = vmatpush1.msra.mxu0 %v7063
        %7065 = vmatprep.subr.mxu0 0.0
        %v7066 = vand.u32 %v457, 4294901760
        %v7067 = vsub.f32 %v457, %v7066
        %7068 = vmatpush1.msra.mxu0 %v7067
        %7069 = vmatprep.subr.mxu0 0.0
        %v7070 = vand.u32 %v464, 4294901760
        %v7071 = vsub.f32 %v464, %v7070
        %7072 = vmatpush1.msra.mxu0 %v7071
        %7073 = vmatprep.subr.mxu0 0.0
        %v7074 = vand.u32 %v471, 4294901760
        %v7075 = vsub.f32 %v471, %v7074
        %7076 = vmatpush1.msra.mxu0 %v7075
        %7077 = vmatprep.subr.mxu0 0.0
        %v7078 = vand.u32 %v478, 4294901760
        %v7079 = vsub.f32 %v478, %v7078
        %7080 = vmatpush1.msra.mxu0 %v7079
        %7081 = vmatprep.subr.mxu0 0.0
        %v7082 = vand.u32 %v485, 4294901760
        %v7083 = vsub.f32 %v485, %v7082
        %7084 = vmatpush1.msra.mxu0 %v7083
        %7085 = vmatprep.subr.mxu0 0.0
        %v7086 = vand.u32 %v492, 4294901760
        %v7087 = vsub.f32 %v492, %v7086
        %7088 = vmatpush1.msra.mxu0 %v7087
        %7089 = vmatprep.subr.mxu0 0.0
        %v7090 = vand.u32 %v499, 4294901760
        %v7091 = vsub.f32 %v499, %v7090
        %7092 = vmatpush1.msra.mxu0 %v7091
        %7093 = vmatprep.subr.mxu0 0.0
        %v7094 = vand.u32 %v506, 4294901760
        %v7095 = vsub.f32 %v506, %v7094
        %7096 = vmatpush1.msra.mxu0 %v7095
        %7097 = vmatprep.subr.mxu0 0.0
        %v7098 = vand.u32 %v513, 4294901760
        %v7099 = vsub.f32 %v513, %v7098
        %7100 = vmatpush1.msra.mxu0 %v7099
        %7101 = vmatprep.subr.mxu0 0.0
        %v7102 = vand.u32 %v520, 4294901760
        %v7103 = vsub.f32 %v520, %v7102
        %7104 = vmatpush1.msra.mxu0 %v7103
        %7105 = vmatprep.subr.mxu0 0.0
        %v7106 = vand.u32 %v527, 4294901760
        %v7107 = vsub.f32 %v527, %v7106
        %7108 = vmatpush1.msra.mxu0 %v7107
        %7109 = vmatprep.subr.mxu0 0.0
        %v7110 = vand.u32 %v534, 4294901760
        %v7111 = vsub.f32 %v534, %v7110
        %7112 = vmatpush1.msra.mxu0 %v7111
        %7113 = vmatprep.subr.mxu0 0.0
        %v7114 = vand.u32 %v541, 4294901760
        %v7115 = vsub.f32 %v541, %v7114
        %7116 = vmatpush1.msra.mxu0 %v7115
        %7117 = vmatprep.subr.mxu0 0.0
        %v7118 = vand.u32 %v548, 4294901760
        %v7119 = vsub.f32 %v548, %v7118
        %7120 = vmatpush1.msra.mxu0 %v7119
        %7121 = vmatprep.subr.mxu0 0.0
        %7122 = vmatpush1.msra.mxu0 0.0
        %7123 = vmatprep.subr.mxu0 0.0
        %7124 = vmatpush1.msra.mxu0 0.0
        %7125 = vmatprep.subr.mxu0 0.0
        %7126 = vmatpush1.msra.mxu0 0.0
        %7127 = vmatprep.subr.mxu0 0.0
        %7128 = vmatpush1.msra.mxu0 0.0
        %7129 = vmatprep.subr.mxu0 0.0
        %7130 = vmatpush1.msra.mxu0 0.0
        %7131 = vmatprep.subr.mxu0 0.0
        %7132 = vmatpush1.msra.mxu0 0.0
        %7133 = vmatprep.subr.mxu0 0.0
        %7134 = vmatpush1.msra.mxu0 0.0
        %7135 = vmatprep.subr.mxu0 0.0
        %7136 = vmatpush1.msra.mxu0 0.0
        %7137 = vmatprep.subr.mxu0 0.0
        %7138 = vmatpush1.msra.mxu0 0.0
        %7139 = vmatprep.subr.mxu0 0.0
        %7140 = vmatpush1.msra.mxu0 0.0
        %7141 = vmatprep.subr.mxu0 0.0
        %7142 = vmatpush1.msra.mxu0 0.0
        %7143 = vmatprep.subr.mxu0 0.0
        %7144 = vmatpush1.msra.mxu0 0.0
        %7145 = vmatprep.subr.mxu0 0.0
        %7146 = vmatpush1.msra.mxu0 0.0
        %7147 = vmatprep.subr.mxu0 0.0
        %7148 = vmatpush1.msra.mxu0 0.0
        %7149 = vmatprep.subr.mxu0 0.0
        %7150 = vmatpush1.msra.mxu0 0.0
        %7151 = vmatprep.subr.mxu0 0.0
        %7152 = vmatpush1.msra.mxu0 0.0
        %7153 = vmatprep.mubr.f32.mxu0 0.0
        %v7154 = vand.u32 %v413, 4294901760
        %v7155 = vsub.f32 %v413, %v7154
        %7156 = vmatmul.mubr.f32.gmra.mrb[0].mxu0 %v7155
        %v7157 = vpop.f32.mrb[0].mxu0
        %v7158 = vadd.f32 %v6916, %v7157
        %v7159 = vpop.f32.mrb[0].mxu0
        %7160 = vmatprep.mubr.f32.mxu0 0.0
        %v7161 = vand.u32 %v414, 4294901760
        %v7162 = vsub.f32 %v414, %v7161
        %7163 = vmatmul.mubr.f32.gmra.mrb[0].mxu0 %v7162
        %v7164 = vpop.f32.mrb[0].mxu0
        %v7165 = vadd.f32 %v6922, %v7164
        %v7166 = vpop.f32.mrb[0].mxu0
        %7167 = vmatprep.mubr.f32.mxu0 0.0
        %v7168 = vand.u32 %v415, 4294901760
        %v7169 = vsub.f32 %v415, %v7168
        %7170 = vmatmul.mubr.f32.gmra.mrb[0].mxu0 %v7169
        %v7171 = vpop.f32.mrb[0].mxu0
        %v7172 = vadd.f32 %v6928, %v7171
        %v7173 = vpop.f32.mrb[0].mxu0
        %7174 = vmatprep.mubr.f32.mxu0 0.0
        %v7175 = vand.u32 %v416, 4294901760
        %v7176 = vsub.f32 %v416, %v7175
        %7177 = vmatmul.mubr.f32.gmra.mrb[0].mxu0 %v7176
        %v7178 = vpop.f32.mrb[0].mxu0
        %v7179 = vadd.f32 %v6934, %v7178
        %v7180 = vpop.f32.mrb[0].mxu0
        %7181 = vmatprep.mubr.f32.mxu0 0.0
        %v7182 = vand.u32 %v417, 4294901760
        %v7183 = vsub.f32 %v417, %v7182
        %7184 = vmatmul.mubr.f32.gmra.mrb[0].mxu0 %v7183
        %v7185 = vpop.f32.mrb[0].mxu0
        %v7186 = vadd.f32 %v6940, %v7185
        %v7187 = vpop.f32.mrb[0].mxu0
        %7188 = vmatprep.mubr.f32.mxu0 0.0
        %v7189 = vand.u32 %v418, 4294901760
        %v7190 = vsub.f32 %v418, %v7189
        %7191 = vmatmul.mubr.f32.gmra.mrb[0].mxu0 %v7190
        %v7192 = vpop.f32.mrb[0].mxu0
        %v7193 = vadd.f32 %v6946, %v7192
        %v7194 = vpop.f32.mrb[0].mxu0
        %7195 = vmatprep.mubr.f32.mxu0 0.0
        %v7196 = vand.u32 %v419, 4294901760
        %v7197 = vsub.f32 %v419, %v7196
        %7198 = vmatmul.mubr.f32.gmra.mrb[0].mxu0 %v7197
        %v7199 = vpop.f32.mrb[0].mxu0
        %v7200 = vadd.f32 %v6952, %v7199
        %v7201 = vpop.f32.mrb[0].mxu0
        %7202 = vmatprep.mubr.f32.mxu0 0.0
        %v7203 = vand.u32 %v420, 4294901760
        %v7204 = vsub.f32 %v420, %v7203
        %7205 = vmatmul.mubr.f32.gmra.mrb[0].mxu0 %v7204
        %v7206 = vpop.f32.mrb[0].mxu0
        %v7207 = vadd.f32 %v6958, %v7206
        %v7208 = vpop.f32.mrb[0].mxu0
        %7209 = vmatprep.mubr.f32.mxu0 0.0
        %v7210 = vand.u32 %v421, 4294901760
        %v7211 = vsub.f32 %v421, %v7210
        %7212 = vmatmul.mubr.f32.gmra.mrb[0].mxu0 %v7211
        %v7213 = vpop.f32.mrb[0].mxu0
        %v7214 = vadd.f32 %v6964, %v7213
        %v7215 = vpop.f32.mrb[0].mxu0
        %7216 = vmatprep.mubr.f32.mxu0 0.0
        %v7217 = vand.u32 %v422, 4294901760
        %v7218 = vsub.f32 %v422, %v7217
        %7219 = vmatmul.mubr.f32.gmra.mrb[0].mxu0 %v7218
        %v7220 = vpop.f32.mrb[0].mxu0
        %v7221 = vadd.f32 %v6970, %v7220
        %v7222 = vpop.f32.mrb[0].mxu0
        %7223 = vmatprep.mubr.f32.mxu0 0.0
        %v7224 = vand.u32 %v423, 4294901760
        %v7225 = vsub.f32 %v423, %v7224
        %7226 = vmatmul.mubr.f32.gmra.mrb[0].mxu0 %v7225
        %v7227 = vpop.f32.mrb[0].mxu0
        %v7228 = vadd.f32 %v6976, %v7227
        %v7229 = vpop.f32.mrb[0].mxu0
        %7230 = vmatprep.mubr.f32.mxu0 0.0
        %v7231 = vand.u32 %v424, 4294901760
        %v7232 = vsub.f32 %v424, %v7231
        %7233 = vmatmul.mubr.f32.gmra.mrb[0].mxu0 %v7232
        %v7234 = vpop.f32.mrb[0].mxu0
        %v7235 = vadd.f32 %v6982, %v7234
        %v7236 = vpop.f32.mrb[0].mxu0
        %7237 = vmatprep.mubr.f32.mxu0 0.0
        %v7238 = vand.u32 %v425, 4294901760
        %v7239 = vsub.f32 %v425, %v7238
        %7240 = vmatmul.mubr.f32.gmra.mrb[0].mxu0 %v7239
        %v7241 = vpop.f32.mrb[0].mxu0
        %v7242 = vadd.f32 %v6988, %v7241
        %v7243 = vpop.f32.mrb[0].mxu0
        %7244 = vmatprep.mubr.f32.mxu0 0.0
        %v7245 = vand.u32 %v426, 4294901760
        %v7246 = vsub.f32 %v426, %v7245
        %7247 = vmatmul.mubr.f32.gmra.mrb[0].mxu0 %v7246
        %v7248 = vpop.f32.mrb[0].mxu0
        %v7249 = vadd.f32 %v6994, %v7248
        %v7250 = vpop.f32.mrb[0].mxu0
        %7251 = vmatprep.mubr.f32.mxu0 0.0
        %v7252 = vand.u32 %v427, 4294901760
        %v7253 = vsub.f32 %v427, %v7252
        %7254 = vmatmul.mubr.f32.gmra.mrb[0].mxu0 %v7253
        %v7255 = vpop.f32.mrb[0].mxu0
        %v7256 = vadd.f32 %v7000, %v7255
        %v7257 = vpop.f32.mrb[0].mxu0
        %7258 = vmatprep.mubr.f32.mxu0 0.0
        %v7259 = vand.u32 %v428, 4294901760
        %v7260 = vsub.f32 %v428, %v7259
        %7261 = vmatmul.mubr.f32.gmra.mrb[0].mxu0 %v7260
        %v7262 = vpop.f32.mrb[0].mxu0
        %v7263 = vadd.f32 %v7006, %v7262
        %v7264 = vpop.f32.mrb[0].mxu0
        %7265 = vmatprep.mubr.f32.mxu0 0.0
        %v7266 = vand.u32 %v429, 4294901760
        %v7267 = vsub.f32 %v429, %v7266
        %7268 = vmatmul.mubr.f32.gmra.mrb[0].mxu0 %v7267
        %v7269 = vpop.f32.mrb[0].mxu0
        %v7270 = vadd.f32 %v7012, %v7269
        %v7271 = vpop.f32.mrb[0].mxu0
        %7272 = vmatprep.mubr.f32.mxu0 0.0
        %v7273 = vand.u32 %v430, 4294901760
        %v7274 = vsub.f32 %v430, %v7273
        %7275 = vmatmul.mubr.f32.gmra.mrb[0].mxu0 %v7274
        %v7276 = vpop.f32.mrb[0].mxu0
        %v7277 = vadd.f32 %v7018, %v7276
        %v7278 = vpop.f32.mrb[0].mxu0
        %7279 = vmatprep.mubr.f32.mxu0 0.0
        %v7280 = vand.u32 %v431, 4294901760
        %v7281 = vsub.f32 %v431, %v7280
        %7282 = vmatmul.mubr.f32.gmra.mrb[0].mxu0 %v7281
        %v7283 = vpop.f32.mrb[0].mxu0
        %v7284 = vadd.f32 %v7024, %v7283
        %v7285 = vpop.f32.mrb[0].mxu0
        %7286 = vmatprep.mubr.f32.mxu0 0.0
        %v7287 = vand.u32 %v432, 4294901760
        %v7288 = vsub.f32 %v432, %v7287
        %7289 = vmatmul.mubr.f32.gmra.mrb[0].mxu0 %v7288
        %v7290 = vpop.f32.mrb[0].mxu0
        %v7291 = vadd.f32 %v7030, %v7290
        %v7292 = vpop.f32.mrb[0].mxu0
        %7293 = vmatprep.mubr.f32.mxu0 0.0
        %v7294 = vand.u32 %v433, 4294901760
        %v7295 = vsub.f32 %v433, %v7294
        %7296 = vmatmul.mubr.f32.gmra.mrb[0].mxu0 %v7295
        %v7297 = vpop.f32.mrb[0].mxu0
        %v7298 = vadd.f32 %v7036, %v7297
        %v7299 = vpop.f32.mrb[0].mxu0
        %7300 = vmatprep.mubr.f32.mxu0 0.0
        %v7301 = vand.u32 %v434, 4294901760
        %v7302 = vsub.f32 %v434, %v7301
        %7303 = vmatmul.mubr.f32.gmra.mrb[0].mxu0 %v7302
        %v7304 = vpop.f32.mrb[0].mxu0
        %v7305 = vadd.f32 %v7042, %v7304
        %v7306 = vpop.f32.mrb[0].mxu0
        %7307 = vmatprep.mubr.f32.mxu0 0.0
        %v7308 = vand.u32 %v435, 4294901760
        %v7309 = vsub.f32 %v435, %v7308
        %7310 = vmatmul.mubr.f32.gmra.mrb[0].mxu0 %v7309
        %v7311 = vpop.f32.mrb[0].mxu0
        %v7312 = vadd.f32 %v7048, %v7311
        %v7313 = vpop.f32.mrb[0].mxu0
        %7314 = vmatprep.mubr.f32.mxu0 0.0
        %v7315 = vand.u32 %v436, 4294901760
        %v7316 = vsub.f32 %v436, %v7315
        %7317 = vmatmul.mubr.f32.gmra.mrb[0].mxu0 %v7316
        %v7318 = vpop.f32.mrb[0].mxu0
        %v7319 = vadd.f32 %v7054, %v7318
        %v7320 = vpop.f32.mrb[0].mxu0
        %7321 = vdwg.mxu0
        %7322 = vmatprep.subr.mxu0 0.0
        %v7323 = vand.u32 %v443, 4294901760
        %7324 = vmatpush1.msra.mxu0 %v7323
        %7325 = vmatprep.subr.mxu0 0.0
        %v7326 = vand.u32 %v450, 4294901760
        %7327 = vmatpush1.msra.mxu0 %v7326
        %7328 = vmatprep.subr.mxu0 0.0
        %v7329 = vand.u32 %v457, 4294901760
        %7330 = vmatpush1.msra.mxu0 %v7329
        %7331 = vmatprep.subr.mxu0 0.0
        %v7332 = vand.u32 %v464, 4294901760
        %7333 = vmatpush1.msra.mxu0 %v7332
        %7334 = vmatprep.subr.mxu0 0.0
        %v7335 = vand.u32 %v471, 4294901760
        %7336 = vmatpush1.msra.mxu0 %v7335
        %7337 = vmatprep.subr.mxu0 0.0
        %v7338 = vand.u32 %v478, 4294901760
        %7339 = vmatpush1.msra.mxu0 %v7338
        %7340 = vmatprep.subr.mxu0 0.0
        %v7341 = vand.u32 %v485, 4294901760
        %7342 = vmatpush1.msra.mxu0 %v7341
        %7343 = vmatprep.subr.mxu0 0.0
        %v7344 = vand.u32 %v492, 4294901760
        %7345 = vmatpush1.msra.mxu0 %v7344
        %7346 = vmatprep.subr.mxu0 0.0
        %v7347 = vand.u32 %v499, 4294901760
        %7348 = vmatpush1.msra.mxu0 %v7347
        %7349 = vmatprep.subr.mxu0 0.0
        %v7350 = vand.u32 %v506, 4294901760
        %7351 = vmatpush1.msra.mxu0 %v7350
        %7352 = vmatprep.subr.mxu0 0.0
        %v7353 = vand.u32 %v513, 4294901760
        %7354 = vmatpush1.msra.mxu0 %v7353
        %7355 = vmatprep.subr.mxu0 0.0
        %v7356 = vand.u32 %v520, 4294901760
        %7357 = vmatpush1.msra.mxu0 %v7356
        %7358 = vmatprep.subr.mxu0 0.0
        %v7359 = vand.u32 %v527, 4294901760
        %7360 = vmatpush1.msra.mxu0 %v7359
        %7361 = vmatprep.subr.mxu0 0.0
        %v7362 = vand.u32 %v534, 4294901760
        %7363 = vmatpush1.msra.mxu0 %v7362
        %7364 = vmatprep.subr.mxu0 0.0
        %v7365 = vand.u32 %v541, 4294901760
        %7366 = vmatpush1.msra.mxu0 %v7365
        %7367 = vmatprep.subr.mxu0 0.0
        %v7368 = vand.u32 %v548, 4294901760
        %7369 = vmatpush1.msra.mxu0 %v7368
        %7370 = vmatprep.subr.mxu0 0.0
        %7371 = vmatpush1.msra.mxu0 0.0
        %7372 = vmatprep.subr.mxu0 0.0
        %7373 = vmatpush1.msra.mxu0 0.0
        %7374 = vmatprep.subr.mxu0 0.0
        %7375 = vmatpush1.msra.mxu0 0.0
        %7376 = vmatprep.subr.mxu0 0.0
        %7377 = vmatpush1.msra.mxu0 0.0
        %7378 = vmatprep.subr.mxu0 0.0
        %7379 = vmatpush1.msra.mxu0 0.0
        %7380 = vmatprep.subr.mxu0 0.0
        %7381 = vmatpush1.msra.mxu0 0.0
        %7382 = vmatprep.subr.mxu0 0.0
        %7383 = vmatpush1.msra.mxu0 0.0
        %7384 = vmatprep.subr.mxu0 0.0
        %7385 = vmatpush1.msra.mxu0 0.0
        %7386 = vmatprep.subr.mxu0 0.0
        %7387 = vmatpush1.msra.mxu0 0.0
        %7388 = vmatprep.subr.mxu0 0.0
        %7389 = vmatpush1.msra.mxu0 0.0
        %7390 = vmatprep.subr.mxu0 0.0
        %7391 = vmatpush1.msra.mxu0 0.0
        %7392 = vmatprep.subr.mxu0 0.0
        %7393 = vmatpush1.msra.mxu0 0.0
        %7394 = vmatprep.subr.mxu0 0.0
        %7395 = vmatpush1.msra.mxu0 0.0
        %7396 = vmatprep.subr.mxu0 0.0
        %7397 = vmatpush1.msra.mxu0 0.0
        %7398 = vmatprep.subr.mxu0 0.0
        %7399 = vmatpush1.msra.mxu0 0.0
        %7400 = vmatprep.subr.mxu0 0.0
        %7401 = vmatpush1.msra.mxu0 0.0
        %7402 = vmatprep.mubr.f32.mxu0 0.0
        %v7403 = vand.u32 %v413, 4294901760
        %v7404 = vsub.f32 %v413, %v7403
        %v7405 = vand.u32 %v7404, 4294901760
        %7406 = vmatmul.mubr.f32.gmra.mrb[0].mxu0 %v7405
        %v7407 = vpop.f32.mrb[0].mxu0
        %v7408 = vadd.f32 %v7158, %v7407
        %v7409 = vpop.f32.mrb[0].mxu0
        %7410 = vmatprep.mubr.f32.mxu0 0.0
        %v7411 = vand.u32 %v414, 4294901760
        %v7412 = vsub.f32 %v414, %v7411
        %v7413 = vand.u32 %v7412, 4294901760
        %7414 = vmatmul.mubr.f32.gmra.mrb[0].mxu0 %v7413
        %v7415 = vpop.f32.mrb[0].mxu0
        %v7416 = vadd.f32 %v7165, %v7415
        %v7417 = vpop.f32.mrb[0].mxu0
        %7418 = vmatprep.mubr.f32.mxu0 0.0
        %v7419 = vand.u32 %v415, 4294901760
        %v7420 = vsub.f32 %v415, %v7419
        %v7421 = vand.u32 %v7420, 4294901760
        %7422 = vmatmul.mubr.f32.gmra.mrb[0].mxu0 %v7421
        %v7423 = vpop.f32.mrb[0].mxu0
        %v7424 = vadd.f32 %v7172, %v7423
        %v7425 = vpop.f32.mrb[0].mxu0
        %7426 = vmatprep.mubr.f32.mxu0 0.0
        %v7427 = vand.u32 %v416, 4294901760
        %v7428 = vsub.f32 %v416, %v7427
        %v7429 = vand.u32 %v7428, 4294901760
        %7430 = vmatmul.mubr.f32.gmra.mrb[0].mxu0 %v7429
        %v7431 = vpop.f32.mrb[0].mxu0
        %v7432 = vadd.f32 %v7179, %v7431
        %v7433 = vpop.f32.mrb[0].mxu0
        %7434 = vmatprep.mubr.f32.mxu0 0.0
        %v7435 = vand.u32 %v417, 4294901760
        %v7436 = vsub.f32 %v417, %v7435
        %v7437 = vand.u32 %v7436, 4294901760
        %7438 = vmatmul.mubr.f32.gmra.mrb[0].mxu0 %v7437
        %v7439 = vpop.f32.mrb[0].mxu0
        %v7440 = vadd.f32 %v7186, %v7439
        %v7441 = vpop.f32.mrb[0].mxu0
        %7442 = vmatprep.mubr.f32.mxu0 0.0
        %v7443 = vand.u32 %v418, 4294901760
        %v7444 = vsub.f32 %v418, %v7443
        %v7445 = vand.u32 %v7444, 4294901760
        %7446 = vmatmul.mubr.f32.gmra.mrb[0].mxu0 %v7445
        %v7447 = vpop.f32.mrb[0].mxu0
        %v7448 = vadd.f32 %v7193, %v7447
        %v7449 = vpop.f32.mrb[0].mxu0
        %7450 = vmatprep.mubr.f32.mxu0 0.0
        %v7451 = vand.u32 %v419, 4294901760
        %v7452 = vsub.f32 %v419, %v7451
        %v7453 = vand.u32 %v7452, 4294901760
        %7454 = vmatmul.mubr.f32.gmra.mrb[0].mxu0 %v7453
        %v7455 = vpop.f32.mrb[0].mxu0
        %v7456 = vadd.f32 %v7200, %v7455
        %v7457 = vpop.f32.mrb[0].mxu0
        %7458 = vmatprep.mubr.f32.mxu0 0.0
        %v7459 = vand.u32 %v420, 4294901760
        %v7460 = vsub.f32 %v420, %v7459
        %v7461 = vand.u32 %v7460, 4294901760
        %7462 = vmatmul.mubr.f32.gmra.mrb[0].mxu0 %v7461
        %v7463 = vpop.f32.mrb[0].mxu0
        %v7464 = vadd.f32 %v7207, %v7463
        %v7465 = vpop.f32.mrb[0].mxu0
        %7466 = vmatprep.mubr.f32.mxu0 0.0
        %v7467 = vand.u32 %v421, 4294901760
        %v7468 = vsub.f32 %v421, %v7467
        %v7469 = vand.u32 %v7468, 4294901760
        %7470 = vmatmul.mubr.f32.gmra.mrb[0].mxu0 %v7469
        %v7471 = vpop.f32.mrb[0].mxu0
        %v7472 = vadd.f32 %v7214, %v7471
        %v7473 = vpop.f32.mrb[0].mxu0
        %7474 = vmatprep.mubr.f32.mxu0 0.0
        %v7475 = vand.u32 %v422, 4294901760
        %v7476 = vsub.f32 %v422, %v7475
        %v7477 = vand.u32 %v7476, 4294901760
        %7478 = vmatmul.mubr.f32.gmra.mrb[0].mxu0 %v7477
        %v7479 = vpop.f32.mrb[0].mxu0
        %v7480 = vadd.f32 %v7221, %v7479
        %v7481 = vpop.f32.mrb[0].mxu0
        %7482 = vmatprep.mubr.f32.mxu0 0.0
        %v7483 = vand.u32 %v423, 4294901760
        %v7484 = vsub.f32 %v423, %v7483
        %v7485 = vand.u32 %v7484, 4294901760
        %7486 = vmatmul.mubr.f32.gmra.mrb[0].mxu0 %v7485
        %v7487 = vpop.f32.mrb[0].mxu0
        %v7488 = vadd.f32 %v7228, %v7487
        %v7489 = vpop.f32.mrb[0].mxu0
        %7490 = vmatprep.mubr.f32.mxu0 0.0
        %v7491 = vand.u32 %v424, 4294901760
        %v7492 = vsub.f32 %v424, %v7491
        %v7493 = vand.u32 %v7492, 4294901760
        %7494 = vmatmul.mubr.f32.gmra.mrb[0].mxu0 %v7493
        %v7495 = vpop.f32.mrb[0].mxu0
        %v7496 = vadd.f32 %v7235, %v7495
        %v7497 = vpop.f32.mrb[0].mxu0
        %7498 = vmatprep.mubr.f32.mxu0 0.0
        %v7499 = vand.u32 %v425, 4294901760
        %v7500 = vsub.f32 %v425, %v7499
        %v7501 = vand.u32 %v7500, 4294901760
        %7502 = vmatmul.mubr.f32.gmra.mrb[0].mxu0 %v7501
        %v7503 = vpop.f32.mrb[0].mxu0
        %v7504 = vadd.f32 %v7242, %v7503
        %v7505 = vpop.f32.mrb[0].mxu0
        %7506 = vmatprep.mubr.f32.mxu0 0.0
        %v7507 = vand.u32 %v426, 4294901760
        %v7508 = vsub.f32 %v426, %v7507
        %v7509 = vand.u32 %v7508, 4294901760
        %7510 = vmatmul.mubr.f32.gmra.mrb[0].mxu0 %v7509
        %v7511 = vpop.f32.mrb[0].mxu0
        %v7512 = vadd.f32 %v7249, %v7511
        %v7513 = vpop.f32.mrb[0].mxu0
        %7514 = vmatprep.mubr.f32.mxu0 0.0
        %v7515 = vand.u32 %v427, 4294901760
        %v7516 = vsub.f32 %v427, %v7515
        %v7517 = vand.u32 %v7516, 4294901760
        %7518 = vmatmul.mubr.f32.gmra.mrb[0].mxu0 %v7517
        %v7519 = vpop.f32.mrb[0].mxu0
        %v7520 = vadd.f32 %v7256, %v7519
        %v7521 = vpop.f32.mrb[0].mxu0
        %7522 = vmatprep.mubr.f32.mxu0 0.0
        %v7523 = vand.u32 %v428, 4294901760
        %v7524 = vsub.f32 %v428, %v7523
        %v7525 = vand.u32 %v7524, 4294901760
        %7526 = vmatmul.mubr.f32.gmra.mrb[0].mxu0 %v7525
        %v7527 = vpop.f32.mrb[0].mxu0
        %v7528 = vadd.f32 %v7263, %v7527
        %v7529 = vpop.f32.mrb[0].mxu0
        %7530 = vmatprep.mubr.f32.mxu0 0.0
        %v7531 = vand.u32 %v429, 4294901760
        %v7532 = vsub.f32 %v429, %v7531
        %v7533 = vand.u32 %v7532, 4294901760
        %7534 = vmatmul.mubr.f32.gmra.mrb[0].mxu0 %v7533
        %v7535 = vpop.f32.mrb[0].mxu0
        %v7536 = vadd.f32 %v7270, %v7535
        %v7537 = vpop.f32.mrb[0].mxu0
        %7538 = vmatprep.mubr.f32.mxu0 0.0
        %v7539 = vand.u32 %v430, 4294901760
        %v7540 = vsub.f32 %v430, %v7539
        %v7541 = vand.u32 %v7540, 4294901760
        %7542 = vmatmul.mubr.f32.gmra.mrb[0].mxu0 %v7541
        %v7543 = vpop.f32.mrb[0].mxu0
        %v7544 = vadd.f32 %v7277, %v7543
        %v7545 = vpop.f32.mrb[0].mxu0
        %7546 = vmatprep.mubr.f32.mxu0 0.0
        %v7547 = vand.u32 %v431, 4294901760
        %v7548 = vsub.f32 %v431, %v7547
        %v7549 = vand.u32 %v7548, 4294901760
        %7550 = vmatmul.mubr.f32.gmra.mrb[0].mxu0 %v7549
        %v7551 = vpop.f32.mrb[0].mxu0
        %v7552 = vadd.f32 %v7284, %v7551
        %v7553 = vpop.f32.mrb[0].mxu0
        %7554 = vmatprep.mubr.f32.mxu0 0.0
        %v7555 = vand.u32 %v432, 4294901760
        %v7556 = vsub.f32 %v432, %v7555
        %v7557 = vand.u32 %v7556, 4294901760
        %7558 = vmatmul.mubr.f32.gmra.mrb[0].mxu0 %v7557
        %v7559 = vpop.f32.mrb[0].mxu0
        %v7560 = vadd.f32 %v7291, %v7559
        %v7561 = vpop.f32.mrb[0].mxu0
        %7562 = vmatprep.mubr.f32.mxu0 0.0
        %v7563 = vand.u32 %v433, 4294901760
        %v7564 = vsub.f32 %v433, %v7563
        %v7565 = vand.u32 %v7564, 4294901760
        %7566 = vmatmul.mubr.f32.gmra.mrb[0].mxu0 %v7565
        %v7567 = vpop.f32.mrb[0].mxu0
        %v7568 = vadd.f32 %v7298, %v7567
        %v7569 = vpop.f32.mrb[0].mxu0
        %7570 = vmatprep.mubr.f32.mxu0 0.0
        %v7571 = vand.u32 %v434, 4294901760
        %v7572 = vsub.f32 %v434, %v7571
        %v7573 = vand.u32 %v7572, 4294901760
        %7574 = vmatmul.mubr.f32.gmra.mrb[0].mxu0 %v7573
        %v7575 = vpop.f32.mrb[0].mxu0
        %v7576 = vadd.f32 %v7305, %v7575
        %v7577 = vpop.f32.mrb[0].mxu0
        %7578 = vmatprep.mubr.f32.mxu0 0.0
        %v7579 = vand.u32 %v435, 4294901760
        %v7580 = vsub.f32 %v435, %v7579
        %v7581 = vand.u32 %v7580, 4294901760
        %7582 = vmatmul.mubr.f32.gmra.mrb[0].mxu0 %v7581
        %v7583 = vpop.f32.mrb[0].mxu0
        %v7584 = vadd.f32 %v7312, %v7583
        %v7585 = vpop.f32.mrb[0].mxu0
        %7586 = vmatprep.mubr.f32.mxu0 0.0
        %v7587 = vand.u32 %v436, 4294901760
        %v7588 = vsub.f32 %v436, %v7587
        %v7589 = vand.u32 %v7588, 4294901760
        %7590 = vmatmul.mubr.f32.gmra.mrb[0].mxu0 %v7589
        %v7591 = vpop.f32.mrb[0].mxu0
        %v7592 = vadd.f32 %v7319, %v7591
        %v7593 = vpop.f32.mrb[0].mxu0
        %7594 = vdwg.mxu0
        %7595 = vmatprep.subr.mxu0 0.0
        %v7596 = vand.u32 %v443, 4294901760
        %v7597 = vsub.f32 %v443, %v7596
        %v7598 = vand.u32 %v7597, 4294901760
        %7599 = vmatpush1.msra.mxu0 %v7598
        %7600 = vmatprep.subr.mxu0 0.0
        %v7601 = vand.u32 %v450, 4294901760
        %v7602 = vsub.f32 %v450, %v7601
        %v7603 = vand.u32 %v7602, 4294901760
        %7604 = vmatpush1.msra.mxu0 %v7603
        %7605 = vmatprep.subr.mxu0 0.0
        %v7606 = vand.u32 %v457, 4294901760
        %v7607 = vsub.f32 %v457, %v7606
        %v7608 = vand.u32 %v7607, 4294901760
        %7609 = vmatpush1.msra.mxu0 %v7608
        %7610 = vmatprep.subr.mxu0 0.0
        %v7611 = vand.u32 %v464, 4294901760
        %v7612 = vsub.f32 %v464, %v7611
        %v7613 = vand.u32 %v7612, 4294901760
        %7614 = vmatpush1.msra.mxu0 %v7613
        %7615 = vmatprep.subr.mxu0 0.0
        %v7616 = vand.u32 %v471, 4294901760
        %v7617 = vsub.f32 %v471, %v7616
        %v7618 = vand.u32 %v7617, 4294901760
        %7619 = vmatpush1.msra.mxu0 %v7618
        %7620 = vmatprep.subr.mxu0 0.0
        %v7621 = vand.u32 %v478, 4294901760
        %v7622 = vsub.f32 %v478, %v7621
        %v7623 = vand.u32 %v7622, 4294901760
        %7624 = vmatpush1.msra.mxu0 %v7623
        %7625 = vmatprep.subr.mxu0 0.0
        %v7626 = vand.u32 %v485, 4294901760
        %v7627 = vsub.f32 %v485, %v7626
        %v7628 = vand.u32 %v7627, 4294901760
        %7629 = vmatpush1.msra.mxu0 %v7628
        %7630 = vmatprep.subr.mxu0 0.0
        %v7631 = vand.u32 %v492, 4294901760
        %v7632 = vsub.f32 %v492, %v7631
        %v7633 = vand.u32 %v7632, 4294901760
        %7634 = vmatpush1.msra.mxu0 %v7633
        %7635 = vmatprep.subr.mxu0 0.0
        %v7636 = vand.u32 %v499, 4294901760
        %v7637 = vsub.f32 %v499, %v7636
        %v7638 = vand.u32 %v7637, 4294901760
        %7639 = vmatpush1.msra.mxu0 %v7638
        %7640 = vmatprep.subr.mxu0 0.0
        %v7641 = vand.u32 %v506, 4294901760
        %v7642 = vsub.f32 %v506, %v7641
        %v7643 = vand.u32 %v7642, 4294901760
        %7644 = vmatpush1.msra.mxu0 %v7643
        %7645 = vmatprep.subr.mxu0 0.0
        %v7646 = vand.u32 %v513, 4294901760
        %v7647 = vsub.f32 %v513, %v7646
        %v7648 = vand.u32 %v7647, 4294901760
        %7649 = vmatpush1.msra.mxu0 %v7648
        %7650 = vmatprep.subr.mxu0 0.0
        %v7651 = vand.u32 %v520, 4294901760
        %v7652 = vsub.f32 %v520, %v7651
        %v7653 = vand.u32 %v7652, 4294901760
        %7654 = vmatpush1.msra.mxu0 %v7653
        %7655 = vmatprep.subr.mxu0 0.0
        %v7656 = vand.u32 %v527, 4294901760
        %v7657 = vsub.f32 %v527, %v7656
        %v7658 = vand.u32 %v7657, 4294901760
        %7659 = vmatpush1.msra.mxu0 %v7658
        %7660 = vmatprep.subr.mxu0 0.0
        %v7661 = vand.u32 %v534, 4294901760
        %v7662 = vsub.f32 %v534, %v7661
        %v7663 = vand.u32 %v7662, 4294901760
        %7664 = vmatpush1.msra.mxu0 %v7663
        %7665 = vmatprep.subr.mxu0 0.0
        %v7666 = vand.u32 %v541, 4294901760
        %v7667 = vsub.f32 %v541, %v7666
        %v7668 = vand.u32 %v7667, 4294901760
        %7669 = vmatpush1.msra.mxu0 %v7668
        %7670 = vmatprep.subr.mxu0 0.0
        %v7671 = vand.u32 %v548, 4294901760
        %v7672 = vsub.f32 %v548, %v7671
        %v7673 = vand.u32 %v7672, 4294901760
        %7674 = vmatpush1.msra.mxu0 %v7673
        %7675 = vmatprep.subr.mxu0 0.0
        %7676 = vmatpush1.msra.mxu0 0.0
        %7677 = vmatprep.subr.mxu0 0.0
        %7678 = vmatpush1.msra.mxu0 0.0
        %7679 = vmatprep.subr.mxu0 0.0
        %7680 = vmatpush1.msra.mxu0 0.0
        %7681 = vmatprep.subr.mxu0 0.0
        %7682 = vmatpush1.msra.mxu0 0.0
        %7683 = vmatprep.subr.mxu0 0.0
        %7684 = vmatpush1.msra.mxu0 0.0
        %7685 = vmatprep.subr.mxu0 0.0
        %7686 = vmatpush1.msra.mxu0 0.0
        %7687 = vmatprep.subr.mxu0 0.0
        %7688 = vmatpush1.msra.mxu0 0.0
        %7689 = vmatprep.subr.mxu0 0.0
        %7690 = vmatpush1.msra.mxu0 0.0
        %7691 = vmatprep.subr.mxu0 0.0
        %7692 = vmatpush1.msra.mxu0 0.0
        %7693 = vmatprep.subr.mxu0 0.0
        %7694 = vmatpush1.msra.mxu0 0.0
        %7695 = vmatprep.subr.mxu0 0.0
        %7696 = vmatpush1.msra.mxu0 0.0
        %7697 = vmatprep.subr.mxu0 0.0
        %7698 = vmatpush1.msra.mxu0 0.0
        %7699 = vmatprep.subr.mxu0 0.0
        %7700 = vmatpush1.msra.mxu0 0.0
        %7701 = vmatprep.subr.mxu0 0.0
        %7702 = vmatpush1.msra.mxu0 0.0
        %7703 = vmatprep.subr.mxu0 0.0
        %7704 = vmatpush1.msra.mxu0 0.0
        %7705 = vmatprep.subr.mxu0 0.0
        %7706 = vmatpush1.msra.mxu0 0.0
        %7707 = vmatprep.mubr.f32.mxu0 0.0
        %v7708 = vand.u32 %v413, 4294901760
        %7709 = vmatmul.mubr.f32.gmra.mrb[0].mxu0 %v7708
        %v7710 = vpop.f32.mrb[0].mxu0
        %v7711 = vadd.f32 %v7408, %v7710
        %v7712 = vpop.f32.mrb[0].mxu0
        %7713 = vmatprep.mubr.f32.mxu0 0.0
        %v7714 = vand.u32 %v414, 4294901760
        %7715 = vmatmul.mubr.f32.gmra.mrb[0].mxu0 %v7714
        %v7716 = vpop.f32.mrb[0].mxu0
        %v7717 = vadd.f32 %v7416, %v7716
        %v7718 = vpop.f32.mrb[0].mxu0
        %7719 = vmatprep.mubr.f32.mxu0 0.0
        %v7720 = vand.u32 %v415, 4294901760
        %7721 = vmatmul.mubr.f32.gmra.mrb[0].mxu0 %v7720
        %v7722 = vpop.f32.mrb[0].mxu0
        %v7723 = vadd.f32 %v7424, %v7722
        %v7724 = vpop.f32.mrb[0].mxu0
        %7725 = vmatprep.mubr.f32.mxu0 0.0
        %v7726 = vand.u32 %v416, 4294901760
        %7727 = vmatmul.mubr.f32.gmra.mrb[0].mxu0 %v7726
        %v7728 = vpop.f32.mrb[0].mxu0
        %v7729 = vadd.f32 %v7432, %v7728
        %v7730 = vpop.f32.mrb[0].mxu0
        %7731 = vmatprep.mubr.f32.mxu0 0.0
        %v7732 = vand.u32 %v417, 4294901760
        %7733 = vmatmul.mubr.f32.gmra.mrb[0].mxu0 %v7732
        %v7734 = vpop.f32.mrb[0].mxu0
        %v7735 = vadd.f32 %v7440, %v7734
        %v7736 = vpop.f32.mrb[0].mxu0
        %7737 = vmatprep.mubr.f32.mxu0 0.0
        %v7738 = vand.u32 %v418, 4294901760
        %7739 = vmatmul.mubr.f32.gmra.mrb[0].mxu0 %v7738
        %v7740 = vpop.f32.mrb[0].mxu0
        %v7741 = vadd.f32 %v7448, %v7740
        %v7742 = vpop.f32.mrb[0].mxu0
        %7743 = vmatprep.mubr.f32.mxu0 0.0
        %v7744 = vand.u32 %v419, 4294901760
        %7745 = vmatmul.mubr.f32.gmra.mrb[0].mxu0 %v7744
        %v7746 = vpop.f32.mrb[0].mxu0
        %v7747 = vadd.f32 %v7456, %v7746
        %v7748 = vpop.f32.mrb[0].mxu0
        %7749 = vmatprep.mubr.f32.mxu0 0.0
        %v7750 = vand.u32 %v420, 4294901760
        %7751 = vmatmul.mubr.f32.gmra.mrb[0].mxu0 %v7750
        %v7752 = vpop.f32.mrb[0].mxu0
        %v7753 = vadd.f32 %v7464, %v7752
        %v7754 = vpop.f32.mrb[0].mxu0
        %7755 = vmatprep.mubr.f32.mxu0 0.0
        %v7756 = vand.u32 %v421, 4294901760
        %7757 = vmatmul.mubr.f32.gmra.mrb[0].mxu0 %v7756
        %v7758 = vpop.f32.mrb[0].mxu0
        %v7759 = vadd.f32 %v7472, %v7758
        %v7760 = vpop.f32.mrb[0].mxu0
        %7761 = vmatprep.mubr.f32.mxu0 0.0
        %v7762 = vand.u32 %v422, 4294901760
        %7763 = vmatmul.mubr.f32.gmra.mrb[0].mxu0 %v7762
        %v7764 = vpop.f32.mrb[0].mxu0
        %v7765 = vadd.f32 %v7480, %v7764
        %v7766 = vpop.f32.mrb[0].mxu0
        %7767 = vmatprep.mubr.f32.mxu0 0.0
        %v7768 = vand.u32 %v423, 4294901760
        %7769 = vmatmul.mubr.f32.gmra.mrb[0].mxu0 %v7768
        %v7770 = vpop.f32.mrb[0].mxu0
        %v7771 = vadd.f32 %v7488, %v7770
        %v7772 = vpop.f32.mrb[0].mxu0
        %7773 = vmatprep.mubr.f32.mxu0 0.0
        %v7774 = vand.u32 %v424, 4294901760
        %7775 = vmatmul.mubr.f32.gmra.mrb[0].mxu0 %v7774
        %v7776 = vpop.f32.mrb[0].mxu0
        %v7777 = vadd.f32 %v7496, %v7776
        %v7778 = vpop.f32.mrb[0].mxu0
        %7779 = vmatprep.mubr.f32.mxu0 0.0
        %v7780 = vand.u32 %v425, 4294901760
        %7781 = vmatmul.mubr.f32.gmra.mrb[0].mxu0 %v7780
        %v7782 = vpop.f32.mrb[0].mxu0
        %v7783 = vadd.f32 %v7504, %v7782
        %v7784 = vpop.f32.mrb[0].mxu0
        %7785 = vmatprep.mubr.f32.mxu0 0.0
        %v7786 = vand.u32 %v426, 4294901760
        %7787 = vmatmul.mubr.f32.gmra.mrb[0].mxu0 %v7786
        %v7788 = vpop.f32.mrb[0].mxu0
        %v7789 = vadd.f32 %v7512, %v7788
        %v7790 = vpop.f32.mrb[0].mxu0
        %7791 = vmatprep.mubr.f32.mxu0 0.0
        %v7792 = vand.u32 %v427, 4294901760
        %7793 = vmatmul.mubr.f32.gmra.mrb[0].mxu0 %v7792
        %v7794 = vpop.f32.mrb[0].mxu0
        %v7795 = vadd.f32 %v7520, %v7794
        %v7796 = vpop.f32.mrb[0].mxu0
        %7797 = vmatprep.mubr.f32.mxu0 0.0
        %v7798 = vand.u32 %v428, 4294901760
        %7799 = vmatmul.mubr.f32.gmra.mrb[0].mxu0 %v7798
        %v7800 = vpop.f32.mrb[0].mxu0
        %v7801 = vadd.f32 %v7528, %v7800
        %v7802 = vpop.f32.mrb[0].mxu0
        %7803 = vmatprep.mubr.f32.mxu0 0.0
        %v7804 = vand.u32 %v429, 4294901760
        %7805 = vmatmul.mubr.f32.gmra.mrb[0].mxu0 %v7804
        %v7806 = vpop.f32.mrb[0].mxu0
        %v7807 = vadd.f32 %v7536, %v7806
        %v7808 = vpop.f32.mrb[0].mxu0
        %7809 = vmatprep.mubr.f32.mxu0 0.0
        %v7810 = vand.u32 %v430, 4294901760
        %7811 = vmatmul.mubr.f32.gmra.mrb[0].mxu0 %v7810
        %v7812 = vpop.f32.mrb[0].mxu0
        %v7813 = vadd.f32 %v7544, %v7812
        %v7814 = vpop.f32.mrb[0].mxu0
        %7815 = vmatprep.mubr.f32.mxu0 0.0
        %v7816 = vand.u32 %v431, 4294901760
        %7817 = vmatmul.mubr.f32.gmra.mrb[0].mxu0 %v7816
        %v7818 = vpop.f32.mrb[0].mxu0
        %v7819 = vadd.f32 %v7552, %v7818
        %v7820 = vpop.f32.mrb[0].mxu0
        %7821 = vmatprep.mubr.f32.mxu0 0.0
        %v7822 = vand.u32 %v432, 4294901760
        %7823 = vmatmul.mubr.f32.gmra.mrb[0].mxu0 %v7822
        %v7824 = vpop.f32.mrb[0].mxu0
        %v7825 = vadd.f32 %v7560, %v7824
        %v7826 = vpop.f32.mrb[0].mxu0
        %7827 = vmatprep.mubr.f32.mxu0 0.0
        %v7828 = vand.u32 %v433, 4294901760
        %7829 = vmatmul.mubr.f32.gmra.mrb[0].mxu0 %v7828
        %v7830 = vpop.f32.mrb[0].mxu0
        %v7831 = vadd.f32 %v7568, %v7830
        %v7832 = vpop.f32.mrb[0].mxu0
        %7833 = vmatprep.mubr.f32.mxu0 0.0
        %v7834 = vand.u32 %v434, 4294901760
        %7835 = vmatmul.mubr.f32.gmra.mrb[0].mxu0 %v7834
        %v7836 = vpop.f32.mrb[0].mxu0
        %v7837 = vadd.f32 %v7576, %v7836
        %v7838 = vpop.f32.mrb[0].mxu0
        %7839 = vmatprep.mubr.f32.mxu0 0.0
        %v7840 = vand.u32 %v435, 4294901760
        %7841 = vmatmul.mubr.f32.gmra.mrb[0].mxu0 %v7840
        %v7842 = vpop.f32.mrb[0].mxu0
        %v7843 = vadd.f32 %v7584, %v7842
        %v7844 = vpop.f32.mrb[0].mxu0
        %7845 = vmatprep.mubr.f32.mxu0 0.0
        %v7846 = vand.u32 %v436, 4294901760
        %7847 = vmatmul.mubr.f32.gmra.mrb[0].mxu0 %v7846
        %v7848 = vpop.f32.mrb[0].mxu0
        %v7849 = vadd.f32 %v7592, %v7848
        %v7850 = vpop.f32.mrb[0].mxu0
        %7851 = vdwg.mxu0
        %7852 = vmatprep.subr.mxu0 0.0
        %v7853 = vand.u32 %v443, 4294901760
        %7854 = vmatpush1.msra.mxu0 %v7853
        %7855 = vmatprep.subr.mxu0 0.0
        %v7856 = vand.u32 %v450, 4294901760
        %7857 = vmatpush1.msra.mxu0 %v7856
        %7858 = vmatprep.subr.mxu0 0.0
        %v7859 = vand.u32 %v457, 4294901760
        %7860 = vmatpush1.msra.mxu0 %v7859
        %7861 = vmatprep.subr.mxu0 0.0
        %v7862 = vand.u32 %v464, 4294901760
        %7863 = vmatpush1.msra.mxu0 %v7862
        %7864 = vmatprep.subr.mxu0 0.0
        %v7865 = vand.u32 %v471, 4294901760
        %7866 = vmatpush1.msra.mxu0 %v7865
        %7867 = vmatprep.subr.mxu0 0.0
        %v7868 = vand.u32 %v478, 4294901760
        %7869 = vmatpush1.msra.mxu0 %v7868
        %7870 = vmatprep.subr.mxu0 0.0
        %v7871 = vand.u32 %v485, 4294901760
        %7872 = vmatpush1.msra.mxu0 %v7871
        %7873 = vmatprep.subr.mxu0 0.0
        %v7874 = vand.u32 %v492, 4294901760
        %7875 = vmatpush1.msra.mxu0 %v7874
        %7876 = vmatprep.subr.mxu0 0.0
        %v7877 = vand.u32 %v499, 4294901760
        %7878 = vmatpush1.msra.mxu0 %v7877
        %7879 = vmatprep.subr.mxu0 0.0
        %v7880 = vand.u32 %v506, 4294901760
        %7881 = vmatpush1.msra.mxu0 %v7880
        %7882 = vmatprep.subr.mxu0 0.0
        %v7883 = vand.u32 %v513, 4294901760
        %7884 = vmatpush1.msra.mxu0 %v7883
        %7885 = vmatprep.subr.mxu0 0.0
        %v7886 = vand.u32 %v520, 4294901760
        %7887 = vmatpush1.msra.mxu0 %v7886
        %7888 = vmatprep.subr.mxu0 0.0
        %v7889 = vand.u32 %v527, 4294901760
        %7890 = vmatpush1.msra.mxu0 %v7889
        %7891 = vmatprep.subr.mxu0 0.0
        %v7892 = vand.u32 %v534, 4294901760
        %7893 = vmatpush1.msra.mxu0 %v7892
        %7894 = vmatprep.subr.mxu0 0.0
        %v7895 = vand.u32 %v541, 4294901760
        %7896 = vmatpush1.msra.mxu0 %v7895
        %7897 = vmatprep.subr.mxu0 0.0
        %v7898 = vand.u32 %v548, 4294901760
        %7899 = vmatpush1.msra.mxu0 %v7898
        %7900 = vmatprep.subr.mxu0 0.0
        %7901 = vmatpush1.msra.mxu0 0.0
        %7902 = vmatprep.subr.mxu0 0.0
        %7903 = vmatpush1.msra.mxu0 0.0
        %7904 = vmatprep.subr.mxu0 0.0
        %7905 = vmatpush1.msra.mxu0 0.0
        %7906 = vmatprep.subr.mxu0 0.0
        %7907 = vmatpush1.msra.mxu0 0.0
        %7908 = vmatprep.subr.mxu0 0.0
        %7909 = vmatpush1.msra.mxu0 0.0
        %7910 = vmatprep.subr.mxu0 0.0
        %7911 = vmatpush1.msra.mxu0 0.0
        %7912 = vmatprep.subr.mxu0 0.0
        %7913 = vmatpush1.msra.mxu0 0.0
        %7914 = vmatprep.subr.mxu0 0.0
        %7915 = vmatpush1.msra.mxu0 0.0
        %7916 = vmatprep.subr.mxu0 0.0
        %7917 = vmatpush1.msra.mxu0 0.0
        %7918 = vmatprep.subr.mxu0 0.0
        %7919 = vmatpush1.msra.mxu0 0.0
        %7920 = vmatprep.subr.mxu0 0.0
        %7921 = vmatpush1.msra.mxu0 0.0
        %7922 = vmatprep.subr.mxu0 0.0
        %7923 = vmatpush1.msra.mxu0 0.0
        %7924 = vmatprep.subr.mxu0 0.0
        %7925 = vmatpush1.msra.mxu0 0.0
        %7926 = vmatprep.subr.mxu0 0.0
        %7927 = vmatpush1.msra.mxu0 0.0
        %7928 = vmatprep.subr.mxu0 0.0
        %7929 = vmatpush1.msra.mxu0 0.0
        %7930 = vmatprep.subr.mxu0 0.0
        %7931 = vmatpush1.msra.mxu0 0.0
        %7932 = vmatprep.mubr.f32.mxu0 0.0
        %v7933 = vand.u32 %v413, 4294901760
        %7934 = vmatmul.mubr.f32.gmra.mrb[0].mxu0 %v7933
        %v7935 = vpop.f32.mrb[0].mxu0
        %v7936 = vadd.f32 %v7711, %v7935
        %v7937 = vpop.f32.mrb[0].mxu0
        %7938 = vmatprep.mubr.f32.mxu0 0.0
        %v7939 = vand.u32 %v414, 4294901760
        %7940 = vmatmul.mubr.f32.gmra.mrb[0].mxu0 %v7939
        %v7941 = vpop.f32.mrb[0].mxu0
        %v7942 = vadd.f32 %v7717, %v7941
        %v7943 = vpop.f32.mrb[0].mxu0
        %7944 = vmatprep.mubr.f32.mxu0 0.0
        %v7945 = vand.u32 %v415, 4294901760
        %7946 = vmatmul.mubr.f32.gmra.mrb[0].mxu0 %v7945
        %v7947 = vpop.f32.mrb[0].mxu0
        %v7948 = vadd.f32 %v7723, %v7947
        %v7949 = vpop.f32.mrb[0].mxu0
        %7950 = vmatprep.mubr.f32.mxu0 0.0
        %v7951 = vand.u32 %v416, 4294901760
        %7952 = vmatmul.mubr.f32.gmra.mrb[0].mxu0 %v7951
        %v7953 = vpop.f32.mrb[0].mxu0
        %v7954 = vadd.f32 %v7729, %v7953
        %v7955 = vpop.f32.mrb[0].mxu0
        %7956 = vmatprep.mubr.f32.mxu0 0.0
        %v7957 = vand.u32 %v417, 4294901760
        %7958 = vmatmul.mubr.f32.gmra.mrb[0].mxu0 %v7957
        %v7959 = vpop.f32.mrb[0].mxu0
        %v7960 = vadd.f32 %v7735, %v7959
        %v7961 = vpop.f32.mrb[0].mxu0
        %7962 = vmatprep.mubr.f32.mxu0 0.0
        %v7963 = vand.u32 %v418, 4294901760
        %7964 = vmatmul.mubr.f32.gmra.mrb[0].mxu0 %v7963
        %v7965 = vpop.f32.mrb[0].mxu0
        %v7966 = vadd.f32 %v7741, %v7965
        %v7967 = vpop.f32.mrb[0].mxu0
        %7968 = vmatprep.mubr.f32.mxu0 0.0
        %v7969 = vand.u32 %v419, 4294901760
        %7970 = vmatmul.mubr.f32.gmra.mrb[0].mxu0 %v7969
        %v7971 = vpop.f32.mrb[0].mxu0
        %v7972 = vadd.f32 %v7747, %v7971
        %v7973 = vpop.f32.mrb[0].mxu0
        %7974 = vmatprep.mubr.f32.mxu0 0.0
        %v7975 = vand.u32 %v420, 4294901760
        %7976 = vmatmul.mubr.f32.gmra.mrb[0].mxu0 %v7975
        %v7977 = vpop.f32.mrb[0].mxu0
        %v7978 = vadd.f32 %v7753, %v7977
        %v7979 = vpop.f32.mrb[0].mxu0
        %7980 = vmatprep.mubr.f32.mxu0 0.0
        %v7981 = vand.u32 %v421, 4294901760
        %7982 = vmatmul.mubr.f32.gmra.mrb[0].mxu0 %v7981
        %v7983 = vpop.f32.mrb[0].mxu0
        %v7984 = vadd.f32 %v7759, %v7983
        %v7985 = vpop.f32.mrb[0].mxu0
        %7986 = vmatprep.mubr.f32.mxu0 0.0
        %v7987 = vand.u32 %v422, 4294901760
        %7988 = vmatmul.mubr.f32.gmra.mrb[0].mxu0 %v7987
        %v7989 = vpop.f32.mrb[0].mxu0
        %v7990 = vadd.f32 %v7765, %v7989
        %v7991 = vpop.f32.mrb[0].mxu0
        %7992 = vmatprep.mubr.f32.mxu0 0.0
        %v7993 = vand.u32 %v423, 4294901760
        %7994 = vmatmul.mubr.f32.gmra.mrb[0].mxu0 %v7993
        %v7995 = vpop.f32.mrb[0].mxu0
        %v7996 = vadd.f32 %v7771, %v7995
        %v7997 = vpop.f32.mrb[0].mxu0
        %7998 = vmatprep.mubr.f32.mxu0 0.0
        %v7999 = vand.u32 %v424, 4294901760
        %8000 = vmatmul.mubr.f32.gmra.mrb[0].mxu0 %v7999
        %v8001 = vpop.f32.mrb[0].mxu0
        %v8002 = vadd.f32 %v7777, %v8001
        %v8003 = vpop.f32.mrb[0].mxu0
        %8004 = vmatprep.mubr.f32.mxu0 0.0
        %v8005 = vand.u32 %v425, 4294901760
        %8006 = vmatmul.mubr.f32.gmra.mrb[0].mxu0 %v8005
        %v8007 = vpop.f32.mrb[0].mxu0
        %v8008 = vadd.f32 %v7783, %v8007
        %v8009 = vpop.f32.mrb[0].mxu0
        %8010 = vmatprep.mubr.f32.mxu0 0.0
        %v8011 = vand.u32 %v426, 4294901760
        %8012 = vmatmul.mubr.f32.gmra.mrb[0].mxu0 %v8011
        %v8013 = vpop.f32.mrb[0].mxu0
        %v8014 = vadd.f32 %v7789, %v8013
        %v8015 = vpop.f32.mrb[0].mxu0
        %8016 = vmatprep.mubr.f32.mxu0 0.0
        %v8017 = vand.u32 %v427, 4294901760
        %8018 = vmatmul.mubr.f32.gmra.mrb[0].mxu0 %v8017
        %v8019 = vpop.f32.mrb[0].mxu0
        %v8020 = vadd.f32 %v7795, %v8019
        %v8021 = vpop.f32.mrb[0].mxu0
        %8022 = vmatprep.mubr.f32.mxu0 0.0
        %v8023 = vand.u32 %v428, 4294901760
        %8024 = vmatmul.mubr.f32.gmra.mrb[0].mxu0 %v8023
        %v8025 = vpop.f32.mrb[0].mxu0
        %v8026 = vadd.f32 %v7801, %v8025
        %v8027 = vpop.f32.mrb[0].mxu0
        %8028 = vmatprep.mubr.f32.mxu0 0.0
        %v8029 = vand.u32 %v429, 4294901760
        %8030 = vmatmul.mubr.f32.gmra.mrb[0].mxu0 %v8029
        %v8031 = vpop.f32.mrb[0].mxu0
        %v8032 = vadd.f32 %v7807, %v8031
        %v8033 = vpop.f32.mrb[0].mxu0
        %8034 = vmatprep.mubr.f32.mxu0 0.0
        %v8035 = vand.u32 %v430, 4294901760
        %8036 = vmatmul.mubr.f32.gmra.mrb[0].mxu0 %v8035
        %v8037 = vpop.f32.mrb[0].mxu0
        %v8038 = vadd.f32 %v7813, %v8037
        %v8039 = vpop.f32.mrb[0].mxu0
        %8040 = vmatprep.mubr.f32.mxu0 0.0
        %v8041 = vand.u32 %v431, 4294901760
        %8042 = vmatmul.mubr.f32.gmra.mrb[0].mxu0 %v8041
        %v8043 = vpop.f32.mrb[0].mxu0
        %v8044 = vadd.f32 %v7819, %v8043
        %v8045 = vpop.f32.mrb[0].mxu0
        %8046 = vmatprep.mubr.f32.mxu0 0.0
        %v8047 = vand.u32 %v432, 4294901760
        %8048 = vmatmul.mubr.f32.gmra.mrb[0].mxu0 %v8047
        %v8049 = vpop.f32.mrb[0].mxu0
        %v8050 = vadd.f32 %v7825, %v8049
        %v8051 = vpop.f32.mrb[0].mxu0
        %8052 = vmatprep.mubr.f32.mxu0 0.0
        %v8053 = vand.u32 %v433, 4294901760
        %8054 = vmatmul.mubr.f32.gmra.mrb[0].mxu0 %v8053
        %v8055 = vpop.f32.mrb[0].mxu0
        %v8056 = vadd.f32 %v7831, %v8055
        %v8057 = vpop.f32.mrb[0].mxu0
        %8058 = vmatprep.mubr.f32.mxu0 0.0
        %v8059 = vand.u32 %v434, 4294901760
        %8060 = vmatmul.mubr.f32.gmra.mrb[0].mxu0 %v8059
        %v8061 = vpop.f32.mrb[0].mxu0
        %v8062 = vadd.f32 %v7837, %v8061
        %v8063 = vpop.f32.mrb[0].mxu0
        %8064 = vmatprep.mubr.f32.mxu0 0.0
        %v8065 = vand.u32 %v435, 4294901760
        %8066 = vmatmul.mubr.f32.gmra.mrb[0].mxu0 %v8065
        %v8067 = vpop.f32.mrb[0].mxu0
        %v8068 = vadd.f32 %v7843, %v8067
        %v8069 = vpop.f32.mrb[0].mxu0
        %8070 = vmatprep.mubr.f32.mxu0 0.0
        %v8071 = vand.u32 %v436, 4294901760
        %8072 = vmatmul.mubr.f32.gmra.mrb[0].mxu0 %v8071
        %v8073 = vpop.f32.mrb[0].mxu0
        %v8074 = vadd.f32 %v7849, %v8073
        %v8075 = vpop.f32.mrb[0].mxu0
        %8076 = vdwg.mxu0
        %vm8101 = vcmask 1046528
        %v8102 = vrot.slane %v2328, 1
        %v8103 = vrot.slane %v2335, 1
        %v8104 = vsel %vm8101, %v8102, %v8103
        %v8105 = vrot.slane %v2341, 1
        %v8106 = vsel %vm8101, %v8103, %v8105
        %v8107 = vrot.slane %v2348, 1
        %v8108 = vrot.slane %v2355, 1
        %v8109 = vsel %vm8101, %v8107, %v8108
        %v8110 = vrot.slane %v2361, 1
        %v8111 = vsel %vm8101, %v8108, %v8110
        %v8112 = vrot.slane %v2368, 1
        %v8113 = vrot.slane %v2375, 1
        %v8114 = vsel %vm8101, %v8112, %v8113
        %v8115 = vrot.slane %v2381, 1
        %v8116 = vsel %vm8101, %v8113, %v8115
        %v8117 = vrot.slane %v2388, 1
        %v8118 = vrot.slane %v2395, 1
        %v8119 = vsel %vm8101, %v8117, %v8118
        %v8120 = vrot.slane %v2401, 1
        %v8121 = vsel %vm8101, %v8118, %v8120
        %v8122 = vrot.slane %v2408, 1
        %v8123 = vrot.slane %v2415, 1
        %v8124 = vsel %vm8101, %v8122, %v8123
        %v8125 = vrot.slane %v2421, 1
        %v8126 = vsel %vm8101, %v8123, %v8125
        %v8127 = vrot.slane %v2428, 1
        %v8128 = vrot.slane %v2435, 1
        %v8129 = vsel %vm8101, %v8127, %v8128
        %v8130 = vrot.slane %v2441, 1
        %v8131 = vsel %vm8101, %v8128, %v8130
        %v8132 = vrot.slane %v2448, 1
        %v8133 = vrot.slane %v2455, 1
        %v8134 = vsel %vm8101, %v8132, %v8133
        %v8135 = vrot.slane %v2461, 1
        %v8136 = vsel %vm8101, %v8133, %v8135
        %v8137 = vrot.slane %v2468, 1
        %v8138 = vrot.slane %v2475, 1
        %v8139 = vsel %vm8101, %v8137, %v8138
        %v8140 = vrot.slane %v2481, 1
        %v8141 = vsel %vm8101, %v8138, %v8140
        %v8158 = vadd.f32 %v2326, %v8104
        %v8159 = vadd.f32 %v2333, %v8106
        %v8160 = vadd.f32 %v2346, %v8109
        %v8161 = vadd.f32 %v2353, %v8111
        %v8162 = vadd.f32 %v2366, %v8114
        %v8163 = vadd.f32 %v2373, %v8116
        %v8164 = vadd.f32 %v2386, %v8119
        %v8165 = vadd.f32 %v2393, %v8121
        %v8166 = vadd.f32 %v2406, %v8124
        %v8167 = vadd.f32 %v2413, %v8126
        %v8168 = vadd.f32 %v2426, %v8129
        %v8169 = vadd.f32 %v2433, %v8131
        %v8170 = vadd.f32 %v2446, %v8134
        %v8171 = vadd.f32 %v2453, %v8136
        %v8172 = vadd.f32 %v2466, %v8139
        %v8173 = vadd.f32 %v2473, %v8141
        %vm8198 = vcmask 1045504
        %v8199 = vrot.slane %v4300, 2
        %v8200 = vrot.slane %v4307, 2
        %v8201 = vsel %vm8198, %v8199, %v8200
        %v8202 = vrot.slane %v4314, 2
        %v8203 = vsel %vm8198, %v8200, %v8202
        %v8204 = vrot.slane %v4321, 2
        %v8205 = vrot.slane %v4328, 2
        %v8206 = vsel %vm8198, %v8204, %v8205
        %v8207 = vrot.slane %v4335, 2
        %v8208 = vsel %vm8198, %v8205, %v8207
        %v8209 = vrot.slane %v4342, 2
        %v8210 = vrot.slane %v4349, 2
        %v8211 = vsel %vm8198, %v8209, %v8210
        %v8212 = vrot.slane %v4356, 2
        %v8213 = vsel %vm8198, %v8210, %v8212
        %v8214 = vrot.slane %v4363, 2
        %v8215 = vrot.slane %v4370, 2
        %v8216 = vsel %vm8198, %v8214, %v8215
        %v8217 = vrot.slane %v4377, 2
        %v8218 = vsel %vm8198, %v8215, %v8217
        %v8219 = vrot.slane %v4384, 2
        %v8220 = vrot.slane %v4391, 2
        %v8221 = vsel %vm8198, %v8219, %v8220
        %v8222 = vrot.slane %v4398, 2
        %v8223 = vsel %vm8198, %v8220, %v8222
        %v8224 = vrot.slane %v4405, 2
        %v8225 = vrot.slane %v4412, 2
        %v8226 = vsel %vm8198, %v8224, %v8225
        %v8227 = vrot.slane %v4419, 2
        %v8228 = vsel %vm8198, %v8225, %v8227
        %v8229 = vrot.slane %v4426, 2
        %v8230 = vrot.slane %v4433, 2
        %v8231 = vsel %vm8198, %v8229, %v8230
        %v8232 = vrot.slane %v4440, 2
        %v8233 = vsel %vm8198, %v8230, %v8232
        %v8234 = vrot.slane %v4447, 2
        %v8235 = vrot.slane %v4454, 2
        %v8236 = vsel %vm8198, %v8234, %v8235
        %v8237 = vrot.slane %v4461, 2
        %v8238 = vsel %vm8198, %v8235, %v8237
        %v8255 = vadd.f32 %v8158, %v8201
        %v8256 = vadd.f32 %v8159, %v8203
        %v8257 = vadd.f32 %v8160, %v8206
        %v8258 = vadd.f32 %v8161, %v8208
        %v8259 = vadd.f32 %v8162, %v8211
        %v8260 = vadd.f32 %v8163, %v8213
        %v8261 = vadd.f32 %v8164, %v8216
        %v8262 = vadd.f32 %v8165, %v8218
        %v8263 = vadd.f32 %v8166, %v8221
        %v8264 = vadd.f32 %v8167, %v8223
        %v8265 = vadd.f32 %v8168, %v8226
        %v8266 = vadd.f32 %v8169, %v8228
        %v8267 = vadd.f32 %v8170, %v8231
        %v8268 = vadd.f32 %v8171, %v8233
        %v8269 = vadd.f32 %v8172, %v8236
        %v8270 = vadd.f32 %v8173, %v8238
        %vm8295 = vcmask 1044480
        %v8296 = vrot.slane %v4302, 3
        %v8297 = vrot.slane %v4309, 3
        %v8298 = vsel %vm8295, %v8296, %v8297
        %v8299 = vrot.slane %v4316, 3
        %v8300 = vsel %vm8295, %v8297, %v8299
        %v8301 = vrot.slane %v4323, 3
        %v8302 = vrot.slane %v4330, 3
        %v8303 = vsel %vm8295, %v8301, %v8302
        %v8304 = vrot.slane %v4337, 3
        %v8305 = vsel %vm8295, %v8302, %v8304
        %v8306 = vrot.slane %v4344, 3
        %v8307 = vrot.slane %v4351, 3
        %v8308 = vsel %vm8295, %v8306, %v8307
        %v8309 = vrot.slane %v4358, 3
        %v8310 = vsel %vm8295, %v8307, %v8309
        %v8311 = vrot.slane %v4365, 3
        %v8312 = vrot.slane %v4372, 3
        %v8313 = vsel %vm8295, %v8311, %v8312
        %v8314 = vrot.slane %v4379, 3
        %v8315 = vsel %vm8295, %v8312, %v8314
        %v8316 = vrot.slane %v4386, 3
        %v8317 = vrot.slane %v4393, 3
        %v8318 = vsel %vm8295, %v8316, %v8317
        %v8319 = vrot.slane %v4400, 3
        %v8320 = vsel %vm8295, %v8317, %v8319
        %v8321 = vrot.slane %v4407, 3
        %v8322 = vrot.slane %v4414, 3
        %v8323 = vsel %vm8295, %v8321, %v8322
        %v8324 = vrot.slane %v4421, 3
        %v8325 = vsel %vm8295, %v8322, %v8324
        %v8326 = vrot.slane %v4428, 3
        %v8327 = vrot.slane %v4435, 3
        %v8328 = vsel %vm8295, %v8326, %v8327
        %v8329 = vrot.slane %v4442, 3
        %v8330 = vsel %vm8295, %v8327, %v8329
        %v8331 = vrot.slane %v4449, 3
        %v8332 = vrot.slane %v4456, 3
        %v8333 = vsel %vm8295, %v8331, %v8332
        %v8334 = vrot.slane %v4463, 3
        %v8335 = vsel %vm8295, %v8332, %v8334
        %v8352 = vadd.f32 %v8255, %v8298
        %v8353 = vadd.f32 %v8256, %v8300
        %v8354 = vadd.f32 %v8257, %v8303
        %v8355 = vadd.f32 %v8258, %v8305
        %v8356 = vadd.f32 %v8259, %v8308
        %v8357 = vadd.f32 %v8260, %v8310
        %v8358 = vadd.f32 %v8261, %v8313
        %v8359 = vadd.f32 %v8262, %v8315
        %v8360 = vadd.f32 %v8263, %v8318
        %v8361 = vadd.f32 %v8264, %v8320
        %v8362 = vadd.f32 %v8265, %v8323
        %v8363 = vadd.f32 %v8266, %v8325
        %v8364 = vadd.f32 %v8267, %v8328
        %v8365 = vadd.f32 %v8268, %v8330
        %v8366 = vadd.f32 %v8269, %v8333
        %v8367 = vadd.f32 %v8270, %v8335
        %vm8392 = vcmask 1043456
        %v8393 = vrot.slane %v6282, 4
        %v8394 = vrot.slane %v6289, 4
        %v8395 = vsel %vm8392, %v8393, %v8394
        %v8396 = vrot.slane %v6296, 4
        %v8397 = vsel %vm8392, %v8394, %v8396
        %v8398 = vrot.slane %v6303, 4
        %v8399 = vrot.slane %v6310, 4
        %v8400 = vsel %vm8392, %v8398, %v8399
        %v8401 = vrot.slane %v6317, 4
        %v8402 = vsel %vm8392, %v8399, %v8401
        %v8403 = vrot.slane %v6324, 4
        %v8404 = vrot.slane %v6331, 4
        %v8405 = vsel %vm8392, %v8403, %v8404
        %v8406 = vrot.slane %v6338, 4
        %v8407 = vsel %vm8392, %v8404, %v8406
        %v8408 = vrot.slane %v6345, 4
        %v8409 = vrot.slane %v6352, 4
        %v8410 = vsel %vm8392, %v8408, %v8409
        %v8411 = vrot.slane %v6359, 4
        %v8412 = vsel %vm8392, %v8409, %v8411
        %v8413 = vrot.slane %v6366, 4
        %v8414 = vrot.slane %v6373, 4
        %v8415 = vsel %vm8392, %v8413, %v8414
        %v8416 = vrot.slane %v6380, 4
        %v8417 = vsel %vm8392, %v8414, %v8416
        %v8418 = vrot.slane %v6387, 4
        %v8419 = vrot.slane %v6394, 4
        %v8420 = vsel %vm8392, %v8418, %v8419
        %v8421 = vrot.slane %v6401, 4
        %v8422 = vsel %vm8392, %v8419, %v8421
        %v8423 = vrot.slane %v6408, 4
        %v8424 = vrot.slane %v6415, 4
        %v8425 = vsel %vm8392, %v8423, %v8424
        %v8426 = vrot.slane %v6422, 4
        %v8427 = vsel %vm8392, %v8424, %v8426
        %v8428 = vrot.slane %v6429, 4
        %v8429 = vrot.slane %v6436, 4
        %v8430 = vsel %vm8392, %v8428, %v8429
        %v8431 = vrot.slane %v6443, 4
        %v8432 = vsel %vm8392, %v8429, %v8431
        %v8449 = vadd.f32 %v8352, %v8395
        %v8450 = vadd.f32 %v8353, %v8397
        %v8451 = vadd.f32 %v8354, %v8400
        %v8452 = vadd.f32 %v8355, %v8402
        %v8453 = vadd.f32 %v8356, %v8405
        %v8454 = vadd.f32 %v8357, %v8407
        %v8455 = vadd.f32 %v8358, %v8410
        %v8456 = vadd.f32 %v8359, %v8412
        %v8457 = vadd.f32 %v8360, %v8415
        %v8458 = vadd.f32 %v8361, %v8417
        %v8459 = vadd.f32 %v8362, %v8420
        %v8460 = vadd.f32 %v8363, %v8422
        %v8461 = vadd.f32 %v8364, %v8425
        %v8462 = vadd.f32 %v8365, %v8427
        %v8463 = vadd.f32 %v8366, %v8430
        %v8464 = vadd.f32 %v8367, %v8432
        %vm8489 = vcmask 1042432
        %v8490 = vrot.slane %v6284, 5
        %v8491 = vrot.slane %v6291, 5
        %v8492 = vsel %vm8489, %v8490, %v8491
        %v8493 = vrot.slane %v6298, 5
        %v8494 = vsel %vm8489, %v8491, %v8493
        %v8495 = vrot.slane %v6305, 5
        %v8496 = vrot.slane %v6312, 5
        %v8497 = vsel %vm8489, %v8495, %v8496
        %v8498 = vrot.slane %v6319, 5
        %v8499 = vsel %vm8489, %v8496, %v8498
        %v8500 = vrot.slane %v6326, 5
        %v8501 = vrot.slane %v6333, 5
        %v8502 = vsel %vm8489, %v8500, %v8501
        %v8503 = vrot.slane %v6340, 5
        %v8504 = vsel %vm8489, %v8501, %v8503
        %v8505 = vrot.slane %v6347, 5
        %v8506 = vrot.slane %v6354, 5
        %v8507 = vsel %vm8489, %v8505, %v8506
        %v8508 = vrot.slane %v6361, 5
        %v8509 = vsel %vm8489, %v8506, %v8508
        %v8510 = vrot.slane %v6368, 5
        %v8511 = vrot.slane %v6375, 5
        %v8512 = vsel %vm8489, %v8510, %v8511
        %v8513 = vrot.slane %v6382, 5
        %v8514 = vsel %vm8489, %v8511, %v8513
        %v8515 = vrot.slane %v6389, 5
        %v8516 = vrot.slane %v6396, 5
        %v8517 = vsel %vm8489, %v8515, %v8516
        %v8518 = vrot.slane %v6403, 5
        %v8519 = vsel %vm8489, %v8516, %v8518
        %v8520 = vrot.slane %v6410, 5
        %v8521 = vrot.slane %v6417, 5
        %v8522 = vsel %vm8489, %v8520, %v8521
        %v8523 = vrot.slane %v6424, 5
        %v8524 = vsel %vm8489, %v8521, %v8523
        %v8525 = vrot.slane %v6431, 5
        %v8526 = vrot.slane %v6438, 5
        %v8527 = vsel %vm8489, %v8525, %v8526
        %v8528 = vrot.slane %v6445, 5
        %v8529 = vsel %vm8489, %v8526, %v8528
        %v8546 = vadd.f32 %v8449, %v8492
        %v8547 = vadd.f32 %v8450, %v8494
        %v8548 = vadd.f32 %v8451, %v8497
        %v8549 = vadd.f32 %v8452, %v8499
        %v8550 = vadd.f32 %v8453, %v8502
        %v8551 = vadd.f32 %v8454, %v8504
        %v8552 = vadd.f32 %v8455, %v8507
        %v8553 = vadd.f32 %v8456, %v8509
        %v8554 = vadd.f32 %v8457, %v8512
        %v8555 = vadd.f32 %v8458, %v8514
        %v8556 = vadd.f32 %v8459, %v8517
        %v8557 = vadd.f32 %v8460, %v8519
        %v8558 = vadd.f32 %v8461, %v8522
        %v8559 = vadd.f32 %v8462, %v8524
        %v8560 = vadd.f32 %v8463, %v8527
        %v8561 = vadd.f32 %v8464, %v8529
        %vm8586 = vcmask 1041408
        %v8587 = vrot.slane %v7936, 6
        %v8588 = vrot.slane %v7942, 6
        %v8589 = vsel %vm8586, %v8587, %v8588
        %v8590 = vrot.slane %v7948, 6
        %v8591 = vsel %vm8586, %v8588, %v8590
        %v8592 = vrot.slane %v7954, 6
        %v8593 = vrot.slane %v7960, 6
        %v8594 = vsel %vm8586, %v8592, %v8593
        %v8595 = vrot.slane %v7966, 6
        %v8596 = vsel %vm8586, %v8593, %v8595
        %v8597 = vrot.slane %v7972, 6
        %v8598 = vrot.slane %v7978, 6
        %v8599 = vsel %vm8586, %v8597, %v8598
        %v8600 = vrot.slane %v7984, 6
        %v8601 = vsel %vm8586, %v8598, %v8600
        %v8602 = vrot.slane %v7990, 6
        %v8603 = vrot.slane %v7996, 6
        %v8604 = vsel %vm8586, %v8602, %v8603
        %v8605 = vrot.slane %v8002, 6
        %v8606 = vsel %vm8586, %v8603, %v8605
        %v8607 = vrot.slane %v8008, 6
        %v8608 = vrot.slane %v8014, 6
        %v8609 = vsel %vm8586, %v8607, %v8608
        %v8610 = vrot.slane %v8020, 6
        %v8611 = vsel %vm8586, %v8608, %v8610
        %v8612 = vrot.slane %v8026, 6
        %v8613 = vrot.slane %v8032, 6
        %v8614 = vsel %vm8586, %v8612, %v8613
        %v8615 = vrot.slane %v8038, 6
        %v8616 = vsel %vm8586, %v8613, %v8615
        %v8617 = vrot.slane %v8044, 6
        %v8618 = vrot.slane %v8050, 6
        %v8619 = vsel %vm8586, %v8617, %v8618
        %v8620 = vrot.slane %v8056, 6
        %v8621 = vsel %vm8586, %v8618, %v8620
        %v8622 = vrot.slane %v8062, 6
        %v8623 = vrot.slane %v8068, 6
        %v8624 = vsel %vm8586, %v8622, %v8623
        %v8625 = vrot.slane %v8074, 6
        %v8626 = vsel %vm8586, %v8623, %v8625
        %v8643 = vadd.f32 %v8546, %v8589
        %v8644 = vadd.f32 %v8547, %v8591
        %v8645 = vadd.f32 %v8548, %v8594
        %v8646 = vadd.f32 %v8549, %v8596
        %v8647 = vadd.f32 %v8550, %v8599
        %v8648 = vadd.f32 %v8551, %v8601
        %v8649 = vadd.f32 %v8552, %v8604
        %v8650 = vadd.f32 %v8553, %v8606
        %v8651 = vadd.f32 %v8554, %v8609
        %v8652 = vadd.f32 %v8555, %v8611
        %v8653 = vadd.f32 %v8556, %v8614
        %v8654 = vadd.f32 %v8557, %v8616
        %v8655 = vadd.f32 %v8558, %v8619
        %v8656 = vadd.f32 %v8559, %v8621
        %v8657 = vadd.f32 %v8560, %v8624
        %v8658 = vadd.f32 %v8561, %v8626
        %v8659 = vld [vmem:[#allocation7] sm:$0xff]
        %v8660 = vld [vmem:[#allocation7 + $0x8] sm:$0xff]
        %v8661 = vadd.f32 %v8643, %v8659
        %v8662 = vadd.f32 %v8644, %v8660
        %v8663 = vadd.f32 %v8645, %v8659
        %v8664 = vadd.f32 %v8646, %v8660
        %v8665 = vadd.f32 %v8647, %v8659
        %v8666 = vadd.f32 %v8648, %v8660
        %v8667 = vadd.f32 %v8649, %v8659
        %v8668 = vadd.f32 %v8650, %v8660
        %v8669 = vadd.f32 %v8651, %v8659
        %v8670 = vadd.f32 %v8652, %v8660
        %v8671 = vadd.f32 %v8653, %v8659
        %v8672 = vadd.f32 %v8654, %v8660
        %v8673 = vadd.f32 %v8655, %v8659
        %v8674 = vadd.f32 %v8656, %v8660
        %v8675 = vadd.f32 %v8657, %v8659
        %v8676 = vadd.f32 %v8658, %v8660
        %v8677 = vmax.f32 %v8661, %v8662
        %v8678 = vrot.slane %v8677, 4
        %v8679 = vmax.f32 %v8677, %v8678
        %v8680 = vrot.slane %v8679, 2
        %v8681 = vmax.f32 %v8679, %v8680
        %v8682 = vrot.slane %v8681, 1
        %v8683 = vmax.f32 %v8681, %v8682
        %v8684 = vmax.f32 %v8663, %v8664
        %v8685 = vrot.slane %v8684, 4
        %v8686 = vmax.f32 %v8684, %v8685
        %v8687 = vrot.slane %v8686, 2
        %v8688 = vmax.f32 %v8686, %v8687
        %v8689 = vrot.slane %v8688, 1
        %v8690 = vmax.f32 %v8688, %v8689
        %v8691 = vmax.f32 %v8665, %v8666
        %v8692 = vrot.slane %v8691, 4
        %v8693 = vmax.f32 %v8691, %v8692
        %v8694 = vrot.slane %v8693, 2
        %v8695 = vmax.f32 %v8693, %v8694
        %v8696 = vrot.slane %v8695, 1
        %v8697 = vmax.f32 %v8695, %v8696
        %v8698 = vmax.f32 %v8667, %v8668
        %v8699 = vrot.slane %v8698, 4
        %v8700 = vmax.f32 %v8698, %v8699
        %v8701 = vrot.slane %v8700, 2
        %v8702 = vmax.f32 %v8700, %v8701
        %v8703 = vrot.slane %v8702, 1
        %v8704 = vmax.f32 %v8702, %v8703
        %v8705 = vmax.f32 %v8669, %v8670
        %v8706 = vrot.slane %v8705, 4
        %v8707 = vmax.f32 %v8705, %v8706
        %v8708 = vrot.slane %v8707, 2
        %v8709 = vmax.f32 %v8707, %v8708
        %v8710 = vrot.slane %v8709, 1
        %v8711 = vmax.f32 %v8709, %v8710
        %v8712 = vmax.f32 %v8671, %v8672
        %v8713 = vrot.slane %v8712, 4
        %v8714 = vmax.f32 %v8712, %v8713
        %v8715 = vrot.slane %v8714, 2
        %v8716 = vmax.f32 %v8714, %v8715
        %v8717 = vrot.slane %v8716, 1
        %v8718 = vmax.f32 %v8716, %v8717
        %v8719 = vmax.f32 %v8673, %v8674
        %v8720 = vrot.slane %v8719, 4
        %v8721 = vmax.f32 %v8719, %v8720
        %v8722 = vrot.slane %v8721, 2
        %v8723 = vmax.f32 %v8721, %v8722
        %v8724 = vrot.slane %v8723, 1
        %v8725 = vmax.f32 %v8723, %v8724
        %v8726 = vmax.f32 %v8675, %v8676
        %v8727 = vrot.slane %v8726, 4
        %v8728 = vmax.f32 %v8726, %v8727
        %v8729 = vrot.slane %v8728, 2
        %v8730 = vmax.f32 %v8728, %v8729
        %v8731 = vrot.slane %v8730, 1
        %v8732 = vmax.f32 %v8730, %v8731
        %v8733 = vld [vmem:[%s3] sm:$0x1]
        %v8735 = vlaneseq
        %v8736 = vshrl.u32 %v8735, 7
        %v8737 = vsub.s32 0, %v8736
        %v8738 = vrot.slane %v8733, %v8737
        %v8740 = vadd.f32 %v8683, %v8738
        %v8741 = vadd.f32 %v8690, %v8738
        %v8742 = vadd.f32 %v8697, %v8738
        %v8743 = vadd.f32 %v8704, %v8738
        %v8744 = vadd.f32 %v8711, %v8738
        %v8745 = vadd.f32 %v8718, %v8738
        %v8746 = vadd.f32 %v8725, %v8738
        %v8747 = vadd.f32 %v8732, %v8738
        %v8748 = vmax.f32 %v8740, 0.0
        %v8749 = vmax.f32 %v8741, 0.0
        %v8750 = vmax.f32 %v8742, 0.0
        %v8751 = vmax.f32 %v8743, 0.0
        %v8752 = vmax.f32 %v8744, 0.0
        %v8753 = vmax.f32 %v8745, 0.0
        %v8754 = vmax.f32 %v8746, 0.0
        %v8755 = vmax.f32 %v8747, 0.0
        %v8764 = vrot.slane %v8749, 7
        %vm8765 = vcmask 1041409
        %v8766 = vsel %vm8765, %v8764, %v8748
        %v8767 = vrot.slane %v8750, 6
        %vm8768 = vcmask 1042434
        %v8769 = vsel %vm8768, %v8767, %v8766
        %v8770 = vrot.slane %v8751, 5
        %vm8771 = vcmask 1043459
        %v8772 = vsel %vm8771, %v8770, %v8769
        %v8773 = vrot.slane %v8752, 4
        %vm8774 = vcmask 1044484
        %v8775 = vsel %vm8774, %v8773, %v8772
        %v8776 = vrot.slane %v8753, 3
        %vm8777 = vcmask 1045509
        %v8778 = vsel %vm8777, %v8776, %v8775
        %v8779 = vrot.slane %v8754, 2
        %vm8780 = vcmask 1046534
        %v8781 = vsel %vm8780, %v8779, %v8778
        %v8782 = vrot.slane %v8755, 1
        %vm8783 = vcmask 1047559
        %v8784 = vsel %vm8783, %v8782, %v8781
        %8786 = vst [vmem:[%s241] sm:$0xff] %v8784
        %s8787 = sand.u32 %s119, 1
        %s8788 = scalar_lea.sflag [#allocation4], %s8787
        %s8789 = sand.u32 %s119, 1
        %s8790 = smul.addr %s8789, 8
        %s8791 = scalar_lea.vmem [#allocation8], %s8790
        // Predicated region
        $region49: #{tpu_custom_call.1} parent=35 // pred_check
          %p8792 = pneg %p129
        $region50: #{tpu_custom_call.1} parent=35 // pred_check_branch
          %8794 = sbr.rel (%p8792) target = $region52
        $region51: #{tpu_custom_call.1} parent=35 // pred_region
          %s8796 = ssub.s32 128, 128
          %8797 = vsyncadd %s8788, %s8796
          %s8798 = smul.addr %s22, 128
          %s8799 = scalar_lea.hbm %s4, %s8798
          %s8801 = sshll.u32 %s8791, 4
          %s8802 = int_to_ptr.vmem [resolvable:$true] %s8801
          %8804 = dma.vmem_to_hbm [thread:$0]  %s8802, 128, %s8799, %s8788
        $region52: #{tpu_custom_call.1} parent=35 // pred_fallthru
          _
      $region36: #{tpu_custom_call.1} parent=5 // pred_fallthru
        _
      %p8805 = scmp.le.s32.totalorder 2, %s17
      // Predicated region
      $region53: #{tpu_custom_call.1} parent=5 // pred_check
        %p8806 = pneg %p8805
      $region54: #{tpu_custom_call.1} parent=5 // pred_check_branch
        %8808 = sbr.rel (%p8806) target = $region56
      $region55: #{tpu_custom_call.1} parent=5 // pred_region
        %s8809 = ssub.s32 %s17, 2
        // Predicated region
        $region57: #{tpu_custom_call.1} parent=55 // pred_check
          %p8810 = pneg %p135
        $region58: #{tpu_custom_call.1} parent=55 // pred_check_branch
          %8812 = sbr.rel (%p8810) target = $region60
        $region59: #{tpu_custom_call.1} parent=55 // pred_region
          %s8813 = sand.u32 %s120, 1
          %s8814 = scalar_lea.sflag [#allocation4], %s8813
          %s8815 = sand.u32 %s120, 1
          %s8816 = smul.addr %s8815, 8
          %s8817 = scalar_lea.vmem [#allocation8], %s8816
          %8818 = dma.done %s8814, 128
        $region60: #{tpu_custom_call.1} parent=55 // pred_fallthru
          _
      $region56: #{tpu_custom_call.1} parent=5 // pred_fallthru
        _
    $region6: #{tpu_custom_call.1} parent=1 // loop_footer
      %s21 = sadd.s32 1, %s17
    $region7: #{tpu_custom_call.1} parent=1 // loop_footer_branch
      %16 = sbr.rel target = $region3
    $region8: #{tpu_custom_call.1} parent=1 // loop_exit
      _
    %8819 = vsyncpa [#allocation3], 1
    %s8820 = scalar_lea.sflag [#allocation3], 1
    %8821 = vsyncpa %s8820, 1
    %8822 = vsyncpa [#allocation6], 1
    %8823 = vsyncpa [#allocation4], 1
    %s8824 = scalar_lea.sflag [#allocation4], 1
    %8825 = vsyncpa %s8824, 1

</llo_original>
